<compile_context>
chip_gen: v5e
topology: v5e:2x2
jax: 0.10.0
libtpu: 0.0.40
codegen_flags: <defaults>
</compile_context>

<pallas_src>
import jax
import jax.numpy as jnp
from jax.experimental import pallas as pl
from jax.experimental.pallas import tpu as pltpu

LRELU_SLOPE = 0.2
BN_EPS = 1e-5


def _round_up(v, m):
    return (v + m - 1) // m * m


def _make_fused_kernel(*, num_layers, ker, w0, widths, counts, c_pad,
                       compute_dtype):
    """Fused head->body->tail kernel, fully unrolled at trace time."""

    def kernel(x_ref, w_ref, p_ref, m_ref, o_ref, col_ref):
        # x_ref  : (c_pad, widths[0])          channels x flat (n,y,x) pixels
        # w_ref  : (L, c_pad, ker*ker*c_pad)   per-layer (Cout, tap*C + Cin)
        # p_ref  : (L, 3, c_pad, 1)            merged [bias, gamma, beta], f32
        # m_ref  : (L-1, widths[1])            1.0 on valid pixel columns, f32
        # o_ref  : (1, widths[-1])             tail conv output, flat pixels
        # col_ref: (ker*ker*c_pad, widths[1])  im2col scratch, reused per layer
        a = x_ref[...]                                     # compute_dtype
        for l in range(num_layers):
            w_out = widths[l + 1]
            # im2col: stack the 9 shifted activation views along sublanes
            # (stores are aligned: sublane offset tap*c_pad, lane width % 128 == 0).
            # TODO(synk): the lane shifts could be routed through pltpu.roll to
            # move them onto the otherwise-idle XLU slot.
            for dy in range(ker):
                for dx in range(ker):
                    tap = dy * ker + dx
                    off = dy * w0 + dx
                    col_ref[tap * c_pad:(tap + 1) * c_pad, 0:w_out] = (
                        a[:, off:off + w_out])
            # One MXU matmul per layer: (c_pad, 9*c_pad) @ (9*c_pad, w_out),
            # K = ker*ker*c_pad, f32 accumulation (no per-tap accumulator RMW).
            y = jnp.dot(w_ref[l], col_ref[:, 0:w_out],
                        preferred_element_type=jnp.float32)
            y = y + p_ref[l, 0]                            # conv bias
            if l < num_layers - 1:
                # BatchNorm2d, training-mode batch stats (biased variance),
                # over the valid (N, Ho, Wo) pixel columns only, then the
                # affine transform fused with LeakyReLU(0.2).
                inv_cnt = 1.0 / float(counts[l])
                valid = m_ref[l:l + 1, 0:w_out] > 0.5      # (1, w_out) bool
                mean = jnp.sum(jnp.where(valid, y, 0.0), axis=-1,
                               keepdims=True) * inv_cnt
                d = y - mean
                dm = jnp.where(valid, d, 0.0)
                var = jnp.sum(dm * dm, axis=-1, keepdims=True) * inv_cnt
                scale = p_ref[l, 1] * jax.lax.rsqrt(var + BN_EPS)  # (c_pad,1)
                y = d * scale + p_ref[l, 2]                # fused affine
                y = jnp.maximum(y, LRELU_SLOPE * y)        # LeakyReLU(0.2)
                a = y.astype(compute_dtype)
            else:
                o_ref[...] = y[0:1, :]                     # tail Cout=1: row 0

    return kernel


def wdiscriminator_forward(params, x_nchw, *, padd_size=0,
                           compute_dtype=jnp.bfloat16):
    """head -> body -> tail.  Input NCHW float32, output NCHW (C=1)."""
    # TODO(synk): padd_size > 0 needs a re-padded flat pixel grid per layer;
    # the SinGAN WDiscriminator default (padd_size=0) is the supported path.
    assert padd_size == 0, "fused kernel implements padding=0 (SinGAN default)"

    n, c_in, h0, w0 = x_nchw.shape
    num_layers = len(params)
    ker = params[0]["w"].shape[0]
    assert h0 - num_layers * (ker - 1) >= 1
    assert w0 - num_layers * (ker - 1) >= 1

    c_max = max([c_in] + [p["w"].shape[3] for p in params])
    c_pad = max(8, _round_up(c_max, 8))

    # Flat-pixel geometry: column f = n*(H0*W0) + y*W0 + x lives on lanes.
    # Layer l consumes widths[l] columns and produces widths[l+1] columns;
    # the extra (>= (ker-1)*(W0+1)) columns only feed garbage pixels which
    # are excluded from the BatchNorm statistics and never read back.
    max_off = (ker - 1) * (w0 + 1)
    pad_step = _round_up(max_off + 1, 128)
    m_last = _round_up(n * h0 * w0, 128)
    widths = [m_last + (num_layers - l) * pad_step
              for l in range(num_layers + 1)]

    valid_hw = [(h0 - (l + 1) * (ker - 1), w0 - (l + 1) * (ker - 1))
                for l in range(num_layers)]
    counts = [n * hv * wv for (hv, wv) in valid_hw]

    # ---- VMEM budget (whole network resident in VMEM, single invocation) ----
    bpe = jnp.dtype(compute_dtype).itemsize
    act_bytes = c_pad * widths[0] * bpe                  # input / live activation
    col_bytes = ker * ker * c_pad * widths[1] * bpe      # im2col scratch
    y_bytes = c_pad * widths[1] * 4                      # f32 conv/BN value
    aux_bytes = (num_layers * c_pad * ker * ker * c_pad * bpe   # weights
                 + num_layers * 3 * c_pad * 128 * 4             # bias/gamma/beta
                 + 8 * widths[1] * 4                            # BN masks
                 + 8 * widths[-1] * 4)                          # output
    vmem_est = 2 * act_bytes + col_bytes + 4 * y_bytes + aux_bytes
    # TODO(synk): at real SinGAN resolutions switch to a pixel-tiled 'parallel'
    # grid (2 TCs on v7x) with halo columns and a two-pass BatchNorm.
    assert vmem_est < 40 * 1024 * 1024, (
        "input too large for the fused single-block kernel")
    vmem_limit = int(min(max(2 * vmem_est, 16 * 1024 * 1024),
                         56 * 1024 * 1024))

    # ---- pack operands (plain-JAX glue, tiny) ----
    x_flat = jnp.transpose(x_nchw, (1, 0, 2, 3)).reshape(c_in, n * h0 * w0)
    x_flat = jnp.pad(x_flat, ((0, c_pad - c_in), (0, widths[0] - n * h0 * w0)))
    x_flat = x_flat.astype(compute_dtype)

    w_list, p_list = [], []
    for p in params:
        kh, kw, cin, cout = p["w"].shape
        w = jnp.pad(p["w"], ((0, 0), (0, 0),
                             (0, c_pad - cin), (0, c_pad - cout)))
        # (kh,kw,Cin,Cout) -> (Cout, kh*kw*Cin): lane-dense stacked-K weights,
        # column index = tap*c_pad + cin, matching the im2col row order.
        w_list.append(jnp.transpose(w, (3, 0, 1, 2)).reshape(c_pad,
                                                             kh * kw * c_pad))
        b = jnp.pad(p["b"], (0, c_pad - cout))
        g = jnp.pad(p["gamma"], (0, c_pad - cout), constant_values=1.0)
        be = jnp.pad(p["beta"], (0, c_pad - cout))
        p_list.append(jnp.stack([b, g, be], axis=0))
    w_all = jnp.stack(w_list, axis=0).astype(compute_dtype)   # (L, C, 9*C)
    p_all = jnp.stack(p_list, axis=0)[..., None].astype(jnp.float32)  # (L,3,C,1)

    # Per-layer validity masks for the BN layers (purely static geometry).
    w_mask = widths[1]
    cols = jnp.arange(w_mask, dtype=jnp.int32)
    nn_i = cols // (h0 * w0)
    yy_i = (cols % (h0 * w0)) // w0
    xx_i = cols % w0
    masks = []
    for l in range(num_layers - 1):
        hv, wv = valid_hw[l]
        masks.append(((nn_i < n) & (yy_i < hv) & (xx_i < wv))
                     .astype(jnp.float32))
    m_all = jnp.stack(masks, axis=0)                           # (L-1, w_mask)

    kernel = _make_fused_kernel(
        num_layers=num_layers, ker=ker, w0=w0, widths=widths, counts=counts,
        c_pad=c_pad, compute_dtype=compute_dtype)

    flops = 2 * c_pad * (ker * ker * c_pad) * sum(widths[1:])
    bytes_accessed = (x_flat.size * x_flat.dtype.itemsize
                      + w_all.size * w_all.dtype.itemsize
                      + p_all.size * 4 + m_all.size * 4 + widths[-1] * 4)

    out = pl.pallas_call(
        kernel,
        out_shape=jax.ShapeDtypeStruct((1, widths[-1]), jnp.float32),
        scratch_shapes=[pltpu.VMEM((ker * ker * c_pad, widths[1]),
                                   compute_dtype)],
        compiler_params=pltpu.CompilerParams(vmem_limit_bytes=vmem_limit),
        cost_estimate=pl.CostEstimate(
            flops=flops,
            transcendentals=(num_layers - 1) * c_pad,
            bytes_accessed=bytes_accessed),
    )(x_flat, w_all, p_all, m_all)

    # Unpack: row 0 holds the tail conv output on the flat pixel grid; keep
    # only the valid top-left (Ho, Wo) corner.
    hv, wv = valid_hw[-1]
    y = out[0, : n * h0 * w0].reshape(n, h0, w0)[:, :hv, :wv]
    return y[:, None, :, :]                                   # NCHW, C=1


def init_wdiscriminator_params(key, *, nc_im=3, nfc=32, min_nfc=32,
                               num_layer=5, ker_size=3):
    """Deterministic synthetic parameters matching WDiscriminator.__init__."""
    layer_dims = [(nc_im, nfc)]                                # head
    n_ch = nfc
    for i in range(num_layer - 2):                             # body
        n_ch = int(nfc / (2 ** (i + 1)))
        layer_dims.append((max(2 * n_ch, min_nfc), max(n_ch, min_nfc)))
    layer_dims.append((max(n_ch, min_nfc), 1))                 # tail

    params = []
    for (cin, cout) in layer_dims:
        key, kw_, kb_, kg_, kbe_ = jax.random.split(key, 5)
        fan_in = cin * ker_size * ker_size
        w = jax.random.normal(kw_, (ker_size, ker_size, cin, cout),
                              jnp.float32) / jnp.sqrt(jnp.float32(fan_in))
        b = 0.1 * jax.random.normal(kb_, (cout,), jnp.float32)
        gamma = 1.0 + 0.1 * jax.random.normal(kg_, (cout,), jnp.float32)
        beta = 0.1 * jax.random.normal(kbe_, (cout,), jnp.float32)
        params.append({"w": w, "b": b, "gamma": gamma, "beta": beta})
    return params


def _reference_forward(params, x_nchw, *, padd_size=0,
                       compute_dtype=jnp.float32):
    """Pure-JAX/XLA reference (no Pallas).  `compute_dtype` quantizes the conv
    operands exactly like the kernel does (f32 accumulation either way)."""
    x = jnp.transpose(x_nchw, (0, 2, 3, 1))
    last = len(params) - 1
    for idx, p in enumerate(params):
        y = jax.lax.conv_general_dilated(
            x.astype(compute_dtype), p["w"].astype(compute_dtype),
            window_strides=(1, 1), padding=[(padd_size, padd_size)] * 2,
            dimension_numbers=("NHWC", "HWIO", "NHWC"),
            preferred_element_type=jnp.float32,
            precision=jax.lax.Precision.HIGHEST)
        y = y + p["b"]
        if idx != last:
            mean = jnp.mean(y, axis=(0, 1, 2), keepdims=True)
            var = jnp.mean(jnp.square(y - mean), axis=(0, 1, 2), keepdims=True)
            y = (y - mean) * jax.lax.rsqrt(var + BN_EPS)
            y = y * p["gamma"] + p["beta"]
            y = jnp.maximum(y, LRELU_SLOPE * y)
        x = y
    return jnp.transpose(x, (0, 3, 1, 2))


if __name__ == "__main__":
    key = jax.random.PRNGKey(0)
    k_params, k_x = jax.random.split(key)

    params = init_wdiscriminator_params(
        k_params, nc_im=3, nfc=32, min_nfc=32, num_layer=5, ker_size=3)

    # Small input consistent with the module: batch=2, nc_im=3, 16x16 spatial.
    x = jax.random.normal(k_x, (2, 3, 16, 16), jnp.float32)

    out = jax.block_until_ready(
        wdiscriminator_forward(params, x, padd_size=0,
                               compute_dtype=jnp.bfloat16))
    assert out.shape == (2, 1, 6, 6), out.shape

    # (1) Check against a reference with the same bf16 operand quantization
    #     (tolerance covers bf16-ulp re-rounding drift across the 5 layers).
    ref_bf16 = jax.block_until_ready(
        _reference_forward(params, x, padd_size=0,
                           compute_dtype=jnp.bfloat16))
    assert jnp.allclose(out, ref_bf16, atol=2e-2, rtol=2e-2), (
        float(jnp.max(jnp.abs(out - ref_bf16))))

    # (2) Sanity check against the full-float32 reference (bounds the total
    #     bf16 quantization drift; a structural bug would be O(1) off).
    ref_f32 = jax.block_until_ready(
        _reference_forward(params, x, padd_size=0,
                           compute_dtype=jnp.float32))
    assert jnp.allclose(out, ref_f32, atol=1e-1, rtol=1e-1), (
        float(jnp.max(jnp.abs(out - ref_f32))))

    print("KERNEL_OK")
</pallas_src>

<mosaic_0001>
module attributes {stable_mosaic.version = 11 : i64} {
  func.func @kernel(%arg0: memref<32x1152xbf16, #tpu.memory_space<vmem>>, %arg1: memref<5x32x288xbf16, #tpu.memory_space<vmem>>, %arg2: memref<5x3x32x1xf32, #tpu.memory_space<vmem>>, %arg3: memref<4x1024xf32, #tpu.memory_space<vmem>>, %arg4: memref<1x512xf32, #tpu.memory_space<vmem>>, %arg5: memref<288x1024xbf16, #tpu.memory_space<vmem>>) attributes {dimension_semantics = [], scalar_prefetch = 0 : i64, scratch_operands = 1 : i64, tpu.core_type = #tpu.core_type<tc>} {
    %c0 = arith.constant 0 : index
    %c0_0 = arith.constant 0 : index
    %0 = vector.load %arg0[%c0, %c0_0] : memref<32x1152xbf16, #tpu.memory_space<vmem>>, vector<32x1152xbf16>
    %1 = vector.extract_strided_slice %0 {offsets = [0, 0], sizes = [32, 1024], strides = [1, 1]} : vector<32x1152xbf16> to vector<32x1024xbf16>
    %c0_1 = arith.constant 0 : index
    %c0_2 = arith.constant 0 : index
    %2 = vector.load %arg5[%c0_1, %c0_2] : memref<288x1024xbf16, #tpu.memory_space<vmem>>, vector<32x1024xbf16>
    tpu.vector_store %arg5[%c0_1, %c0_2], %1 {strides = array<i32>} : memref<288x1024xbf16, #tpu.memory_space<vmem>>, vector<32x1024xbf16>,
    %3 = vector.extract_strided_slice %0 {offsets = [0, 1], sizes = [32, 1024], strides = [1, 1]} : vector<32x1152xbf16> to vector<32x1024xbf16>
    %c32 = arith.constant 32 : index
    %c0_3 = arith.constant 0 : index
    %4 = vector.load %arg5[%c32, %c0_3] : memref<288x1024xbf16, #tpu.memory_space<vmem>>, vector<32x1024xbf16>
    tpu.vector_store %arg5[%c32, %c0_3], %3 {strides = array<i32>} : memref<288x1024xbf16, #tpu.memory_space<vmem>>, vector<32x1024xbf16>,
    %5 = vector.extract_strided_slice %0 {offsets = [0, 2], sizes = [32, 1024], strides = [1, 1]} : vector<32x1152xbf16> to vector<32x1024xbf16>
    %c64 = arith.constant 64 : index
    %c0_4 = arith.constant 0 : index
    %6 = vector.load %arg5[%c64, %c0_4] : memref<288x1024xbf16, #tpu.memory_space<vmem>>, vector<32x1024xbf16>
    tpu.vector_store %arg5[%c64, %c0_4], %5 {strides = array<i32>} : memref<288x1024xbf16, #tpu.memory_space<vmem>>, vector<32x1024xbf16>,
    %7 = vector.extract_strided_slice %0 {offsets = [0, 16], sizes = [32, 1024], strides = [1, 1]} : vector<32x1152xbf16> to vector<32x1024xbf16>
    %c96 = arith.constant 96 : index
    %c0_5 = arith.constant 0 : index
    %8 = vector.load %arg5[%c96, %c0_5] : memref<288x1024xbf16, #tpu.memory_space<vmem>>, vector<32x1024xbf16>
    tpu.vector_store %arg5[%c96, %c0_5], %7 {strides = array<i32>} : memref<288x1024xbf16, #tpu.memory_space<vmem>>, vector<32x1024xbf16>,
    %9 = vector.extract_strided_slice %0 {offsets = [0, 17], sizes = [32, 1024], strides = [1, 1]} : vector<32x1152xbf16> to vector<32x1024xbf16>
    %c128 = arith.constant 128 : index
    %c0_6 = arith.constant 0 : index
    %10 = vector.load %arg5[%c128, %c0_6] : memref<288x1024xbf16, #tpu.memory_space<vmem>>, vector<32x1024xbf16>
    tpu.vector_store %arg5[%c128, %c0_6], %9 {strides = array<i32>} : memref<288x1024xbf16, #tpu.memory_space<vmem>>, vector<32x1024xbf16>,
    %11 = vector.extract_strided_slice %0 {offsets = [0, 18], sizes = [32, 1024], strides = [1, 1]} : vector<32x1152xbf16> to vector<32x1024xbf16>
    %c160 = arith.constant 160 : index
    %c0_7 = arith.constant 0 : index
    %12 = vector.load %arg5[%c160, %c0_7] : memref<288x1024xbf16, #tpu.memory_space<vmem>>, vector<32x1024xbf16>
    tpu.vector_store %arg5[%c160, %c0_7], %11 {strides = array<i32>} : memref<288x1024xbf16, #tpu.memory_space<vmem>>, vector<32x1024xbf16>,
    %13 = vector.extract_strided_slice %0 {offsets = [0, 32], sizes = [32, 1024], strides = [1, 1]} : vector<32x1152xbf16> to vector<32x1024xbf16>
    %c192 = arith.constant 192 : index
    %c0_8 = arith.constant 0 : index
    %14 = vector.load %arg5[%c192, %c0_8] : memref<288x1024xbf16, #tpu.memory_space<vmem>>, vector<32x1024xbf16>
    tpu.vector_store %arg5[%c192, %c0_8], %13 {strides = array<i32>} : memref<288x1024xbf16, #tpu.memory_space<vmem>>, vector<32x1024xbf16>,
    %15 = vector.extract_strided_slice %0 {offsets = [0, 33], sizes = [32, 1024], strides = [1, 1]} : vector<32x1152xbf16> to vector<32x1024xbf16>
    %c224 = arith.constant 224 : index
    %c0_9 = arith.constant 0 : index
    %16 = vector.load %arg5[%c224, %c0_9] : memref<288x1024xbf16, #tpu.memory_space<vmem>>, vector<32x1024xbf16>
    tpu.vector_store %arg5[%c224, %c0_9], %15 {strides = array<i32>} : memref<288x1024xbf16, #tpu.memory_space<vmem>>, vector<32x1024xbf16>,
    %17 = vector.extract_strided_slice %0 {offsets = [0, 34], sizes = [32, 1024], strides = [1, 1]} : vector<32x1152xbf16> to vector<32x1024xbf16>
    %c256 = arith.constant 256 : index
    %c0_10 = arith.constant 0 : index
    %18 = vector.load %arg5[%c256, %c0_10] : memref<288x1024xbf16, #tpu.memory_space<vmem>>, vector<32x1024xbf16>
    tpu.vector_store %arg5[%c256, %c0_10], %17 {strides = array<i32>} : memref<288x1024xbf16, #tpu.memory_space<vmem>>, vector<32x1024xbf16>,
    %c0_11 = arith.constant 0 : index
    %c0_12 = arith.constant 0 : index
    %c0_13 = arith.constant 0 : index
    %19 = vector.load %arg1[%c0_11, %c0_12, %c0_13] : memref<5x32x288xbf16, #tpu.memory_space<vmem>>, vector<1x32x288xbf16>
    %20 = vector.shape_cast %19 : vector<1x32x288xbf16> to vector<32x288xbf16>
    %c0_14 = arith.constant 0 : index
    %c0_15 = arith.constant 0 : index
    %21 = vector.load %arg5[%c0_14, %c0_15] : memref<288x1024xbf16, #tpu.memory_space<vmem>>, vector<288x1024xbf16>
    %cst = arith.constant dense<0.000000e+00> : vector<32x1024xf32>
    %22 = tpu.matmul %20, %21, %cst {dimension_numbers = #tpu.dot_dimension_numbers<[1], [0], [0], [1], [0, 0, 1, 1], [], []>} : vector<32x288xbf16>, vector<288x1024xbf16>, vector<32x1024xf32> -> vector<32x1024xf32>
    %c0_16 = arith.constant 0 : index
    %c0_17 = arith.constant 0 : index
    %c0_18 = arith.constant 0 : index
    %c0_19 = arith.constant 0 : index
    %23 = vector.load %arg2[%c0_16, %c0_17, %c0_18, %c0_19] : memref<5x3x32x1xf32, #tpu.memory_space<vmem>>, vector<1x1x32x1xf32>
    %24 = vector.shape_cast %23 : vector<1x1x32x1xf32> to vector<32x1xf32>
    %25 = vector.broadcast %24 : vector<32x1xf32> to vector<32x1024xf32>
    %26 = arith.addf %22, %25 : vector<32x1024xf32>
    %c0_20 = arith.constant 0 : index
    %c0_21 = arith.constant 0 : index
    %27 = vector.load %arg3[%c0_20, %c0_21] : memref<4x1024xf32, #tpu.memory_space<vmem>>, vector<1x1024xf32>
    %cst_22 = arith.constant 5.000000e-01 : f32
    %28 = vector.broadcast %cst_22 : f32 to vector<1x1024xf32>
    %29 = arith.cmpf ogt, %27, %28 : vector<1x1024xf32>
    %cst_23 = arith.constant 0.000000e+00 : f32
    %30 = vector.shape_cast %29 : vector<1x1024xi1> to vector<1x1024xi1>
    %31 = vector.broadcast %30 : vector<1x1024xi1> to vector<32x1024xi1>
    %32 = vector.broadcast %cst_23 : f32 to vector<32x1024xf32>
    %33 = arith.select %31, %26, %32 : vector<32x1024xi1>, vector<32x1024xf32>
    %cst_24 = arith.constant dense<0.000000e+00> : vector<32xf32>
    %34 = vector.multi_reduction <add>, %33, %cst_24 [1] : vector<32x1024xf32> to vector<32xf32>
    %35 = vector.shape_cast %34 : vector<32xf32> to vector<32x1xf32>
    %cst_25 = arith.constant 0.00255102036 : f32
    %36 = vector.broadcast %cst_25 : f32 to vector<32x1xf32>
    %37 = arith.mulf %35, %36 : vector<32x1xf32>
    %38 = vector.broadcast %37 : vector<32x1xf32> to vector<32x1024xf32>
    %39 = arith.subf %26, %38 : vector<32x1024xf32>
    %cst_26 = arith.constant 0.000000e+00 : f32
    %40 = vector.shape_cast %29 : vector<1x1024xi1> to vector<1x1024xi1>
    %41 = vector.broadcast %40 : vector<1x1024xi1> to vector<32x1024xi1>
    %42 = vector.broadcast %cst_26 : f32 to vector<32x1024xf32>
    %43 = arith.select %41, %39, %42 : vector<32x1024xi1>, vector<32x1024xf32>
    %44 = arith.mulf %43, %43 : vector<32x1024xf32>
    %cst_27 = arith.constant dense<0.000000e+00> : vector<32xf32>
    %45 = vector.multi_reduction <add>, %44, %cst_27 [1] : vector<32x1024xf32> to vector<32xf32>
    %46 = vector.shape_cast %45 : vector<32xf32> to vector<32x1xf32>
    %cst_28 = arith.constant 0.00255102036 : f32
    %47 = vector.broadcast %cst_28 : f32 to vector<32x1xf32>
    %48 = arith.mulf %46, %47 : vector<32x1xf32>
    %c0_29 = arith.constant 0 : index
    %c1 = arith.constant 1 : index
    %c0_30 = arith.constant 0 : index
    %c0_31 = arith.constant 0 : index
    %49 = vector.load %arg2[%c0_29, %c1, %c0_30, %c0_31] : memref<5x3x32x1xf32, #tpu.memory_space<vmem>>, vector<1x1x32x1xf32>
    %50 = vector.shape_cast %49 : vector<1x1x32x1xf32> to vector<32x1xf32>
    %cst_32 = arith.constant 9.99999974E-6 : f32
    %51 = vector.broadcast %cst_32 : f32 to vector<32x1xf32>
    %52 = arith.addf %48, %51 : vector<32x1xf32>
    %53 = math.rsqrt %52 : vector<32x1xf32>
    %54 = arith.mulf %50, %53 : vector<32x1xf32>
    %55 = vector.broadcast %54 : vector<32x1xf32> to vector<32x1024xf32>
    %56 = arith.mulf %39, %55 : vector<32x1024xf32>
    %c0_33 = arith.constant 0 : index
    %c2 = arith.constant 2 : index
    %c0_34 = arith.constant 0 : index
    %c0_35 = arith.constant 0 : index
    %57 = vector.load %arg2[%c0_33, %c2, %c0_34, %c0_35] : memref<5x3x32x1xf32, #tpu.memory_space<vmem>>, vector<1x1x32x1xf32>
    %58 = vector.shape_cast %57 : vector<1x1x32x1xf32> to vector<32x1xf32>
    %59 = vector.broadcast %58 : vector<32x1xf32> to vector<32x1024xf32>
    %60 = arith.addf %56, %59 : vector<32x1024xf32>
    %cst_36 = arith.constant 2.000000e-01 : f32
    %61 = vector.broadcast %cst_36 : f32 to vector<32x1024xf32>
    %62 = arith.mulf %61, %60 : vector<32x1024xf32>
    %63 = arith.maximumf %60, %62 : vector<32x1024xf32>
    %64 = arith.truncf %63 : vector<32x1024xf32> to vector<32x1024xbf16>
    %65 = vector.extract_strided_slice %64 {offsets = [0, 0], sizes = [32, 896], strides = [1, 1]} : vector<32x1024xbf16> to vector<32x896xbf16>
    %c0_37 = arith.constant 0 : index
    %c0_38 = arith.constant 0 : index
    %66 = vector.load %arg5[%c0_37, %c0_38] : memref<288x1024xbf16, #tpu.memory_space<vmem>>, vector<32x896xbf16>
    tpu.vector_store %arg5[%c0_37, %c0_38], %65 {strides = array<i32>} : memref<288x1024xbf16, #tpu.memory_space<vmem>>, vector<32x896xbf16>,
    %67 = vector.extract_strided_slice %64 {offsets = [0, 1], sizes = [32, 896], strides = [1, 1]} : vector<32x1024xbf16> to vector<32x896xbf16>
    %c32_39 = arith.constant 32 : index
    %c0_40 = arith.constant 0 : index
    %68 = vector.load %arg5[%c32_39, %c0_40] : memref<288x1024xbf16, #tpu.memory_space<vmem>>, vector<32x896xbf16>
    tpu.vector_store %arg5[%c32_39, %c0_40], %67 {strides = array<i32>} : memref<288x1024xbf16, #tpu.memory_space<vmem>>, vector<32x896xbf16>,
    %69 = vector.extract_strided_slice %64 {offsets = [0, 2], sizes = [32, 896], strides = [1, 1]} : vector<32x1024xbf16> to vector<32x896xbf16>
    %c64_41 = arith.constant 64 : index
    %c0_42 = arith.constant 0 : index
    %70 = vector.load %arg5[%c64_41, %c0_42] : memref<288x1024xbf16, #tpu.memory_space<vmem>>, vector<32x896xbf16>
    tpu.vector_store %arg5[%c64_41, %c0_42], %69 {strides = array<i32>} : memref<288x1024xbf16, #tpu.memory_space<vmem>>, vector<32x896xbf16>,
    %71 = vector.extract_strided_slice %64 {offsets = [0, 16], sizes = [32, 896], strides = [1, 1]} : vector<32x1024xbf16> to vector<32x896xbf16>
    %c96_43 = arith.constant 96 : index
    %c0_44 = arith.constant 0 : index
    %72 = vector.load %arg5[%c96_43, %c0_44] : memref<288x1024xbf16, #tpu.memory_space<vmem>>, vector<32x896xbf16>
    tpu.vector_store %arg5[%c96_43, %c0_44], %71 {strides = array<i32>} : memref<288x1024xbf16, #tpu.memory_space<vmem>>, vector<32x896xbf16>,
    %73 = vector.extract_strided_slice %64 {offsets = [0, 17], sizes = [32, 896], strides = [1, 1]} : vector<32x1024xbf16> to vector<32x896xbf16>
    %c128_45 = arith.constant 128 : index
    %c0_46 = arith.constant 0 : index
    %74 = vector.load %arg5[%c128_45, %c0_46] : memref<288x1024xbf16, #tpu.memory_space<vmem>>, vector<32x896xbf16>
    tpu.vector_store %arg5[%c128_45, %c0_46], %73 {strides = array<i32>} : memref<288x1024xbf16, #tpu.memory_space<vmem>>, vector<32x896xbf16>,
    %75 = vector.extract_strided_slice %64 {offsets = [0, 18], sizes = [32, 896], strides = [1, 1]} : vector<32x1024xbf16> to vector<32x896xbf16>
    %c160_47 = arith.constant 160 : index
    %c0_48 = arith.constant 0 : index
    %76 = vector.load %arg5[%c160_47, %c0_48] : memref<288x1024xbf16, #tpu.memory_space<vmem>>, vector<32x896xbf16>
    tpu.vector_store %arg5[%c160_47, %c0_48], %75 {strides = array<i32>} : memref<288x1024xbf16, #tpu.memory_space<vmem>>, vector<32x896xbf16>,
    %77 = vector.extract_strided_slice %64 {offsets = [0, 32], sizes = [32, 896], strides = [1, 1]} : vector<32x1024xbf16> to vector<32x896xbf16>
    %c192_49 = arith.constant 192 : index
    %c0_50 = arith.constant 0 : index
    %78 = vector.load %arg5[%c192_49, %c0_50] : memref<288x1024xbf16, #tpu.memory_space<vmem>>, vector<32x896xbf16>
    tpu.vector_store %arg5[%c192_49, %c0_50], %77 {strides = array<i32>} : memref<288x1024xbf16, #tpu.memory_space<vmem>>, vector<32x896xbf16>,
    %79 = vector.extract_strided_slice %64 {offsets = [0, 33], sizes = [32, 896], strides = [1, 1]} : vector<32x1024xbf16> to vector<32x896xbf16>
    %c224_51 = arith.constant 224 : index
    %c0_52 = arith.constant 0 : index
    %80 = vector.load %arg5[%c224_51, %c0_52] : memref<288x1024xbf16, #tpu.memory_space<vmem>>, vector<32x896xbf16>
    tpu.vector_store %arg5[%c224_51, %c0_52], %79 {strides = array<i32>} : memref<288x1024xbf16, #tpu.memory_space<vmem>>, vector<32x896xbf16>,
    %81 = vector.extract_strided_slice %64 {offsets = [0, 34], sizes = [32, 896], strides = [1, 1]} : vector<32x1024xbf16> to vector<32x896xbf16>
    %c256_53 = arith.constant 256 : index
    %c0_54 = arith.constant 0 : index
    %82 = vector.load %arg5[%c256_53, %c0_54] : memref<288x1024xbf16, #tpu.memory_space<vmem>>, vector<32x896xbf16>
    tpu.vector_store %arg5[%c256_53, %c0_54], %81 {strides = array<i32>} : memref<288x1024xbf16, #tpu.memory_space<vmem>>, vector<32x896xbf16>,
    %c1_55 = arith.constant 1 : index
    %c0_56 = arith.constant 0 : index
    %c0_57 = arith.constant 0 : index
    %83 = vector.load %arg1[%c1_55, %c0_56, %c0_57] : memref<5x32x288xbf16, #tpu.memory_space<vmem>>, vector<1x32x288xbf16>
    %84 = vector.shape_cast %83 : vector<1x32x288xbf16> to vector<32x288xbf16>
    %c0_58 = arith.constant 0 : index
    %c0_59 = arith.constant 0 : index
    %85 = vector.load %arg5[%c0_58, %c0_59] : memref<288x1024xbf16, #tpu.memory_space<vmem>>, vector<288x896xbf16>
    %cst_60 = arith.constant dense<0.000000e+00> : vector<32x896xf32>
    %86 = tpu.matmul %84, %85, %cst_60 {dimension_numbers = #tpu.dot_dimension_numbers<[1], [0], [0], [1], [0, 0, 1, 1], [], []>} : vector<32x288xbf16>, vector<288x896xbf16>, vector<32x896xf32> -> vector<32x896xf32>
    %c1_61 = arith.constant 1 : index
    %c0_62 = arith.constant 0 : index
    %c0_63 = arith.constant 0 : index
    %c0_64 = arith.constant 0 : index
    %87 = vector.load %arg2[%c1_61, %c0_62, %c0_63, %c0_64] : memref<5x3x32x1xf32, #tpu.memory_space<vmem>>, vector<1x1x32x1xf32>
    %88 = vector.shape_cast %87 : vector<1x1x32x1xf32> to vector<32x1xf32>
    %89 = vector.broadcast %88 : vector<32x1xf32> to vector<32x896xf32>
    %90 = arith.addf %86, %89 : vector<32x896xf32>
    %c1_65 = arith.constant 1 : index
    %c0_66 = arith.constant 0 : index
    %91 = vector.load %arg3[%c1_65, %c0_66] : memref<4x1024xf32, #tpu.memory_space<vmem>>, vector<1x896xf32>
    %cst_67 = arith.constant 5.000000e-01 : f32
    %92 = vector.broadcast %cst_67 : f32 to vector<1x896xf32>
    %93 = arith.cmpf ogt, %91, %92 : vector<1x896xf32>
    %cst_68 = arith.constant 0.000000e+00 : f32
    %94 = vector.shape_cast %93 : vector<1x896xi1> to vector<1x896xi1>
    %95 = vector.broadcast %94 : vector<1x896xi1> to vector<32x896xi1>
    %96 = vector.broadcast %cst_68 : f32 to vector<32x896xf32>
    %97 = arith.select %95, %90, %96 : vector<32x896xi1>, vector<32x896xf32>
    %cst_69 = arith.constant dense<0.000000e+00> : vector<32xf32>
    %98 = vector.multi_reduction <add>, %97, %cst_69 [1] : vector<32x896xf32> to vector<32xf32>
    %99 = vector.shape_cast %98 : vector<32xf32> to vector<32x1xf32>
    %cst_70 = arith.constant 0.00347222225 : f32
    %100 = vector.broadcast %cst_70 : f32 to vector<32x1xf32>
    %101 = arith.mulf %99, %100 : vector<32x1xf32>
    %102 = vector.broadcast %101 : vector<32x1xf32> to vector<32x896xf32>
    %103 = arith.subf %90, %102 : vector<32x896xf32>
    %cst_71 = arith.constant 0.000000e+00 : f32
    %104 = vector.shape_cast %93 : vector<1x896xi1> to vector<1x896xi1>
    %105 = vector.broadcast %104 : vector<1x896xi1> to vector<32x896xi1>
    %106 = vector.broadcast %cst_71 : f32 to vector<32x896xf32>
    %107 = arith.select %105, %103, %106 : vector<32x896xi1>, vector<32x896xf32>
    %108 = arith.mulf %107, %107 : vector<32x896xf32>
    %cst_72 = arith.constant dense<0.000000e+00> : vector<32xf32>
    %109 = vector.multi_reduction <add>, %108, %cst_72 [1] : vector<32x896xf32> to vector<32xf32>
    %110 = vector.shape_cast %109 : vector<32xf32> to vector<32x1xf32>
    %cst_73 = arith.constant 0.00347222225 : f32
    %111 = vector.broadcast %cst_73 : f32 to vector<32x1xf32>
    %112 = arith.mulf %110, %111 : vector<32x1xf32>
    %c1_74 = arith.constant 1 : index
    %c1_75 = arith.constant 1 : index
    %c0_76 = arith.constant 0 : index
    %c0_77 = arith.constant 0 : index
    %113 = vector.load %arg2[%c1_74, %c1_75, %c0_76, %c0_77] : memref<5x3x32x1xf32, #tpu.memory_space<vmem>>, vector<1x1x32x1xf32>
    %114 = vector.shape_cast %113 : vector<1x1x32x1xf32> to vector<32x1xf32>
    %cst_78 = arith.constant 9.99999974E-6 : f32
    %115 = vector.broadcast %cst_78 : f32 to vector<32x1xf32>
    %116 = arith.addf %112, %115 : vector<32x1xf32>
    %117 = math.rsqrt %116 : vector<32x1xf32>
    %118 = arith.mulf %114, %117 : vector<32x1xf32>
    %119 = vector.broadcast %118 : vector<32x1xf32> to vector<32x896xf32>
    %120 = arith.mulf %103, %119 : vector<32x896xf32>
    %c1_79 = arith.constant 1 : index
    %c2_80 = arith.constant 2 : index
    %c0_81 = arith.constant 0 : index
    %c0_82 = arith.constant 0 : index
    %121 = vector.load %arg2[%c1_79, %c2_80, %c0_81, %c0_82] : memref<5x3x32x1xf32, #tpu.memory_space<vmem>>, vector<1x1x32x1xf32>
    %122 = vector.shape_cast %121 : vector<1x1x32x1xf32> to vector<32x1xf32>
    %123 = vector.broadcast %122 : vector<32x1xf32> to vector<32x896xf32>
    %124 = arith.addf %120, %123 : vector<32x896xf32>
    %cst_83 = arith.constant 2.000000e-01 : f32
    %125 = vector.broadcast %cst_83 : f32 to vector<32x896xf32>
    %126 = arith.mulf %125, %124 : vector<32x896xf32>
    %127 = arith.maximumf %124, %126 : vector<32x896xf32>
    %128 = arith.truncf %127 : vector<32x896xf32> to vector<32x896xbf16>
    %129 = vector.extract_strided_slice %128 {offsets = [0, 0], sizes = [32, 768], strides = [1, 1]} : vector<32x896xbf16> to vector<32x768xbf16>
    %c0_84 = arith.constant 0 : index
    %c0_85 = arith.constant 0 : index
    %130 = vector.load %arg5[%c0_84, %c0_85] : memref<288x1024xbf16, #tpu.memory_space<vmem>>, vector<32x768xbf16>
    tpu.vector_store %arg5[%c0_84, %c0_85], %129 {strides = array<i32>} : memref<288x1024xbf16, #tpu.memory_space<vmem>>, vector<32x768xbf16>,
    %131 = vector.extract_strided_slice %128 {offsets = [0, 1], sizes = [32, 768], strides = [1, 1]} : vector<32x896xbf16> to vector<32x768xbf16>
    %c32_86 = arith.constant 32 : index
    %c0_87 = arith.constant 0 : index
    %132 = vector.load %arg5[%c32_86, %c0_87] : memref<288x1024xbf16, #tpu.memory_space<vmem>>, vector<32x768xbf16>
    tpu.vector_store %arg5[%c32_86, %c0_87], %131 {strides = array<i32>} : memref<288x1024xbf16, #tpu.memory_space<vmem>>, vector<32x768xbf16>,
    %133 = vector.extract_strided_slice %128 {offsets = [0, 2], sizes = [32, 768], strides = [1, 1]} : vector<32x896xbf16> to vector<32x768xbf16>
    %c64_88 = arith.constant 64 : index
    %c0_89 = arith.constant 0 : index
    %134 = vector.load %arg5[%c64_88, %c0_89] : memref<288x1024xbf16, #tpu.memory_space<vmem>>, vector<32x768xbf16>
    tpu.vector_store %arg5[%c64_88, %c0_89], %133 {strides = array<i32>} : memref<288x1024xbf16, #tpu.memory_space<vmem>>, vector<32x768xbf16>,
    %135 = vector.extract_strided_slice %128 {offsets = [0, 16], sizes = [32, 768], strides = [1, 1]} : vector<32x896xbf16> to vector<32x768xbf16>
    %c96_90 = arith.constant 96 : index
    %c0_91 = arith.constant 0 : index
    %136 = vector.load %arg5[%c96_90, %c0_91] : memref<288x1024xbf16, #tpu.memory_space<vmem>>, vector<32x768xbf16>
    tpu.vector_store %arg5[%c96_90, %c0_91], %135 {strides = array<i32>} : memref<288x1024xbf16, #tpu.memory_space<vmem>>, vector<32x768xbf16>,
    %137 = vector.extract_strided_slice %128 {offsets = [0, 17], sizes = [32, 768], strides = [1, 1]} : vector<32x896xbf16> to vector<32x768xbf16>
    %c128_92 = arith.constant 128 : index
    %c0_93 = arith.constant 0 : index
    %138 = vector.load %arg5[%c128_92, %c0_93] : memref<288x1024xbf16, #tpu.memory_space<vmem>>, vector<32x768xbf16>
    tpu.vector_store %arg5[%c128_92, %c0_93], %137 {strides = array<i32>} : memref<288x1024xbf16, #tpu.memory_space<vmem>>, vector<32x768xbf16>,
    %139 = vector.extract_strided_slice %128 {offsets = [0, 18], sizes = [32, 768], strides = [1, 1]} : vector<32x896xbf16> to vector<32x768xbf16>
    %c160_94 = arith.constant 160 : index
    %c0_95 = arith.constant 0 : index
    %140 = vector.load %arg5[%c160_94, %c0_95] : memref<288x1024xbf16, #tpu.memory_space<vmem>>, vector<32x768xbf16>
    tpu.vector_store %arg5[%c160_94, %c0_95], %139 {strides = array<i32>} : memref<288x1024xbf16, #tpu.memory_space<vmem>>, vector<32x768xbf16>,
    %141 = vector.extract_strided_slice %128 {offsets = [0, 32], sizes = [32, 768], strides = [1, 1]} : vector<32x896xbf16> to vector<32x768xbf16>
    %c192_96 = arith.constant 192 : index
    %c0_97 = arith.constant 0 : index
    %142 = vector.load %arg5[%c192_96, %c0_97] : memref<288x1024xbf16, #tpu.memory_space<vmem>>, vector<32x768xbf16>
    tpu.vector_store %arg5[%c192_96, %c0_97], %141 {strides = array<i32>} : memref<288x1024xbf16, #tpu.memory_space<vmem>>, vector<32x768xbf16>,
    %143 = vector.extract_strided_slice %128 {offsets = [0, 33], sizes = [32, 768], strides = [1, 1]} : vector<32x896xbf16> to vector<32x768xbf16>
    %c224_98 = arith.constant 224 : index
    %c0_99 = arith.constant 0 : index
    %144 = vector.load %arg5[%c224_98, %c0_99] : memref<288x1024xbf16, #tpu.memory_space<vmem>>, vector<32x768xbf16>
    tpu.vector_store %arg5[%c224_98, %c0_99], %143 {strides = array<i32>} : memref<288x1024xbf16, #tpu.memory_space<vmem>>, vector<32x768xbf16>,
    %145 = vector.extract_strided_slice %128 {offsets = [0, 34], sizes = [32, 768], strides = [1, 1]} : vector<32x896xbf16> to vector<32x768xbf16>
    %c256_100 = arith.constant 256 : index
    %c0_101 = arith.constant 0 : index
    %146 = vector.load %arg5[%c256_100, %c0_101] : memref<288x1024xbf16, #tpu.memory_space<vmem>>, vector<32x768xbf16>
    tpu.vector_store %arg5[%c256_100, %c0_101], %145 {strides = array<i32>} : memref<288x1024xbf16, #tpu.memory_space<vmem>>, vector<32x768xbf16>,
    %c2_102 = arith.constant 2 : index
    %c0_103 = arith.constant 0 : index
    %c0_104 = arith.constant 0 : index
    %147 = vector.load %arg1[%c2_102, %c0_103, %c0_104] : memref<5x32x288xbf16, #tpu.memory_space<vmem>>, vector<1x32x288xbf16>
    %148 = vector.shape_cast %147 : vector<1x32x288xbf16> to vector<32x288xbf16>
    %c0_105 = arith.constant 0 : index
    %c0_106 = arith.constant 0 : index
    %149 = vector.load %arg5[%c0_105, %c0_106] : memref<288x1024xbf16, #tpu.memory_space<vmem>>, vector<288x768xbf16>
    %cst_107 = arith.constant dense<0.000000e+00> : vector<32x768xf32>
    %150 = tpu.matmul %148, %149, %cst_107 {dimension_numbers = #tpu.dot_dimension_numbers<[1], [0], [0], [1], [0, 0, 1, 1], [], []>} : vector<32x288xbf16>, vector<288x768xbf16>, vector<32x768xf32> -> vector<32x768xf32>
    %c2_108 = arith.constant 2 : index
    %c0_109 = arith.constant 0 : index
    %c0_110 = arith.constant 0 : index
    %c0_111 = arith.constant 0 : index
    %151 = vector.load %arg2[%c2_108, %c0_109, %c0_110, %c0_111] : memref<5x3x32x1xf32, #tpu.memory_space<vmem>>, vector<1x1x32x1xf32>
    %152 = vector.shape_cast %151 : vector<1x1x32x1xf32> to vector<32x1xf32>
    %153 = vector.broadcast %152 : vector<32x1xf32> to vector<32x768xf32>
    %154 = arith.addf %150, %153 : vector<32x768xf32>
    %c2_112 = arith.constant 2 : index
    %c0_113 = arith.constant 0 : index
    %155 = vector.load %arg3[%c2_112, %c0_113] : memref<4x1024xf32, #tpu.memory_space<vmem>>, vector<1x768xf32>
    %cst_114 = arith.constant 5.000000e-01 : f32
    %156 = vector.broadcast %cst_114 : f32 to vector<1x768xf32>
    %157 = arith.cmpf ogt, %155, %156 : vector<1x768xf32>
    %cst_115 = arith.constant 0.000000e+00 : f32
    %158 = vector.shape_cast %157 : vector<1x768xi1> to vector<1x768xi1>
    %159 = vector.broadcast %158 : vector<1x768xi1> to vector<32x768xi1>
    %160 = vector.broadcast %cst_115 : f32 to vector<32x768xf32>
    %161 = arith.select %159, %154, %160 : vector<32x768xi1>, vector<32x768xf32>
    %cst_116 = arith.constant dense<0.000000e+00> : vector<32xf32>
    %162 = vector.multi_reduction <add>, %161, %cst_116 [1] : vector<32x768xf32> to vector<32xf32>
    %163 = vector.shape_cast %162 : vector<32xf32> to vector<32x1xf32>
    %cst_117 = arith.constant 5.000000e-03 : f32
    %164 = vector.broadcast %cst_117 : f32 to vector<32x1xf32>
    %165 = arith.mulf %163, %164 : vector<32x1xf32>
    %166 = vector.broadcast %165 : vector<32x1xf32> to vector<32x768xf32>
    %167 = arith.subf %154, %166 : vector<32x768xf32>
    %cst_118 = arith.constant 0.000000e+00 : f32
    %168 = vector.shape_cast %157 : vector<1x768xi1> to vector<1x768xi1>
    %169 = vector.broadcast %168 : vector<1x768xi1> to vector<32x768xi1>
    %170 = vector.broadcast %cst_118 : f32 to vector<32x768xf32>
    %171 = arith.select %169, %167, %170 : vector<32x768xi1>, vector<32x768xf32>
    %172 = arith.mulf %171, %171 : vector<32x768xf32>
    %cst_119 = arith.constant dense<0.000000e+00> : vector<32xf32>
    %173 = vector.multi_reduction <add>, %172, %cst_119 [1] : vector<32x768xf32> to vector<32xf32>
    %174 = vector.shape_cast %173 : vector<32xf32> to vector<32x1xf32>
    %cst_120 = arith.constant 5.000000e-03 : f32
    %175 = vector.broadcast %cst_120 : f32 to vector<32x1xf32>
    %176 = arith.mulf %174, %175 : vector<32x1xf32>
    %c2_121 = arith.constant 2 : index
    %c1_122 = arith.constant 1 : index
    %c0_123 = arith.constant 0 : index
    %c0_124 = arith.constant 0 : index
    %177 = vector.load %arg2[%c2_121, %c1_122, %c0_123, %c0_124] : memref<5x3x32x1xf32, #tpu.memory_space<vmem>>, vector<1x1x32x1xf32>
    %178 = vector.shape_cast %177 : vector<1x1x32x1xf32> to vector<32x1xf32>
    %cst_125 = arith.constant 9.99999974E-6 : f32
    %179 = vector.broadcast %cst_125 : f32 to vector<32x1xf32>
    %180 = arith.addf %176, %179 : vector<32x1xf32>
    %181 = math.rsqrt %180 : vector<32x1xf32>
    %182 = arith.mulf %178, %181 : vector<32x1xf32>
    %183 = vector.broadcast %182 : vector<32x1xf32> to vector<32x768xf32>
    %184 = arith.mulf %167, %183 : vector<32x768xf32>
    %c2_126 = arith.constant 2 : index
    %c2_127 = arith.constant 2 : index
    %c0_128 = arith.constant 0 : index
    %c0_129 = arith.constant 0 : index
    %185 = vector.load %arg2[%c2_126, %c2_127, %c0_128, %c0_129] : memref<5x3x32x1xf32, #tpu.memory_space<vmem>>, vector<1x1x32x1xf32>
    %186 = vector.shape_cast %185 : vector<1x1x32x1xf32> to vector<32x1xf32>
    %187 = vector.broadcast %186 : vector<32x1xf32> to vector<32x768xf32>
    %188 = arith.addf %184, %187 : vector<32x768xf32>
    %cst_130 = arith.constant 2.000000e-01 : f32
    %189 = vector.broadcast %cst_130 : f32 to vector<32x768xf32>
    %190 = arith.mulf %189, %188 : vector<32x768xf32>
    %191 = arith.maximumf %188, %190 : vector<32x768xf32>
    %192 = arith.truncf %191 : vector<32x768xf32> to vector<32x768xbf16>
    %193 = vector.extract_strided_slice %192 {offsets = [0, 0], sizes = [32, 640], strides = [1, 1]} : vector<32x768xbf16> to vector<32x640xbf16>
    %c0_131 = arith.constant 0 : index
    %c0_132 = arith.constant 0 : index
    %194 = vector.load %arg5[%c0_131, %c0_132] : memref<288x1024xbf16, #tpu.memory_space<vmem>>, vector<32x640xbf16>
    tpu.vector_store %arg5[%c0_131, %c0_132], %193 {strides = array<i32>} : memref<288x1024xbf16, #tpu.memory_space<vmem>>, vector<32x640xbf16>,
    %195 = vector.extract_strided_slice %192 {offsets = [0, 1], sizes = [32, 640], strides = [1, 1]} : vector<32x768xbf16> to vector<32x640xbf16>
    %c32_133 = arith.constant 32 : index
    %c0_134 = arith.constant 0 : index
    %196 = vector.load %arg5[%c32_133, %c0_134] : memref<288x1024xbf16, #tpu.memory_space<vmem>>, vector<32x640xbf16>
    tpu.vector_store %arg5[%c32_133, %c0_134], %195 {strides = array<i32>} : memref<288x1024xbf16, #tpu.memory_space<vmem>>, vector<32x640xbf16>,
    %197 = vector.extract_strided_slice %192 {offsets = [0, 2], sizes = [32, 640], strides = [1, 1]} : vector<32x768xbf16> to vector<32x640xbf16>
    %c64_135 = arith.constant 64 : index
    %c0_136 = arith.constant 0 : index
    %198 = vector.load %arg5[%c64_135, %c0_136] : memref<288x1024xbf16, #tpu.memory_space<vmem>>, vector<32x640xbf16>
    tpu.vector_store %arg5[%c64_135, %c0_136], %197 {strides = array<i32>} : memref<288x1024xbf16, #tpu.memory_space<vmem>>, vector<32x640xbf16>,
    %199 = vector.extract_strided_slice %192 {offsets = [0, 16], sizes = [32, 640], strides = [1, 1]} : vector<32x768xbf16> to vector<32x640xbf16>
    %c96_137 = arith.constant 96 : index
    %c0_138 = arith.constant 0 : index
    %200 = vector.load %arg5[%c96_137, %c0_138] : memref<288x1024xbf16, #tpu.memory_space<vmem>>, vector<32x640xbf16>
    tpu.vector_store %arg5[%c96_137, %c0_138], %199 {strides = array<i32>} : memref<288x1024xbf16, #tpu.memory_space<vmem>>, vector<32x640xbf16>,
    %201 = vector.extract_strided_slice %192 {offsets = [0, 17], sizes = [32, 640], strides = [1, 1]} : vector<32x768xbf16> to vector<32x640xbf16>
    %c128_139 = arith.constant 128 : index
    %c0_140 = arith.constant 0 : index
    %202 = vector.load %arg5[%c128_139, %c0_140] : memref<288x1024xbf16, #tpu.memory_space<vmem>>, vector<32x640xbf16>
    tpu.vector_store %arg5[%c128_139, %c0_140], %201 {strides = array<i32>} : memref<288x1024xbf16, #tpu.memory_space<vmem>>, vector<32x640xbf16>,
    %203 = vector.extract_strided_slice %192 {offsets = [0, 18], sizes = [32, 640], strides = [1, 1]} : vector<32x768xbf16> to vector<32x640xbf16>
    %c160_141 = arith.constant 160 : index
    %c0_142 = arith.constant 0 : index
    %204 = vector.load %arg5[%c160_141, %c0_142] : memref<288x1024xbf16, #tpu.memory_space<vmem>>, vector<32x640xbf16>
    tpu.vector_store %arg5[%c160_141, %c0_142], %203 {strides = array<i32>} : memref<288x1024xbf16, #tpu.memory_space<vmem>>, vector<32x640xbf16>,
    %205 = vector.extract_strided_slice %192 {offsets = [0, 32], sizes = [32, 640], strides = [1, 1]} : vector<32x768xbf16> to vector<32x640xbf16>
    %c192_143 = arith.constant 192 : index
    %c0_144 = arith.constant 0 : index
    %206 = vector.load %arg5[%c192_143, %c0_144] : memref<288x1024xbf16, #tpu.memory_space<vmem>>, vector<32x640xbf16>
    tpu.vector_store %arg5[%c192_143, %c0_144], %205 {strides = array<i32>} : memref<288x1024xbf16, #tpu.memory_space<vmem>>, vector<32x640xbf16>,
    %207 = vector.extract_strided_slice %192 {offsets = [0, 33], sizes = [32, 640], strides = [1, 1]} : vector<32x768xbf16> to vector<32x640xbf16>
    %c224_145 = arith.constant 224 : index
    %c0_146 = arith.constant 0 : index
    %208 = vector.load %arg5[%c224_145, %c0_146] : memref<288x1024xbf16, #tpu.memory_space<vmem>>, vector<32x640xbf16>
    tpu.vector_store %arg5[%c224_145, %c0_146], %207 {strides = array<i32>} : memref<288x1024xbf16, #tpu.memory_space<vmem>>, vector<32x640xbf16>,
    %209 = vector.extract_strided_slice %192 {offsets = [0, 34], sizes = [32, 640], strides = [1, 1]} : vector<32x768xbf16> to vector<32x640xbf16>
    %c256_147 = arith.constant 256 : index
    %c0_148 = arith.constant 0 : index
    %210 = vector.load %arg5[%c256_147, %c0_148] : memref<288x1024xbf16, #tpu.memory_space<vmem>>, vector<32x640xbf16>
    tpu.vector_store %arg5[%c256_147, %c0_148], %209 {strides = array<i32>} : memref<288x1024xbf16, #tpu.memory_space<vmem>>, vector<32x640xbf16>,
    %c3 = arith.constant 3 : index
    %c0_149 = arith.constant 0 : index
    %c0_150 = arith.constant 0 : index
    %211 = vector.load %arg1[%c3, %c0_149, %c0_150] : memref<5x32x288xbf16, #tpu.memory_space<vmem>>, vector<1x32x288xbf16>
    %212 = vector.shape_cast %211 : vector<1x32x288xbf16> to vector<32x288xbf16>
    %c0_151 = arith.constant 0 : index
    %c0_152 = arith.constant 0 : index
    %213 = vector.load %arg5[%c0_151, %c0_152] : memref<288x1024xbf16, #tpu.memory_space<vmem>>, vector<288x640xbf16>
    %cst_153 = arith.constant dense<0.000000e+00> : vector<32x640xf32>
    %214 = tpu.matmul %212, %213, %cst_153 {dimension_numbers = #tpu.dot_dimension_numbers<[1], [0], [0], [1], [0, 0, 1, 1], [], []>} : vector<32x288xbf16>, vector<288x640xbf16>, vector<32x640xf32> -> vector<32x640xf32>
    %c3_154 = arith.constant 3 : index
    %c0_155 = arith.constant 0 : index
    %c0_156 = arith.constant 0 : index
    %c0_157 = arith.constant 0 : index
    %215 = vector.load %arg2[%c3_154, %c0_155, %c0_156, %c0_157] : memref<5x3x32x1xf32, #tpu.memory_space<vmem>>, vector<1x1x32x1xf32>
    %216 = vector.shape_cast %215 : vector<1x1x32x1xf32> to vector<32x1xf32>
    %217 = vector.broadcast %216 : vector<32x1xf32> to vector<32x640xf32>
    %218 = arith.addf %214, %217 : vector<32x640xf32>
    %c3_158 = arith.constant 3 : index
    %c0_159 = arith.constant 0 : index
    %219 = vector.load %arg3[%c3_158, %c0_159] : memref<4x1024xf32, #tpu.memory_space<vmem>>, vector<1x640xf32>
    %cst_160 = arith.constant 5.000000e-01 : f32
    %220 = vector.broadcast %cst_160 : f32 to vector<1x640xf32>
    %221 = arith.cmpf ogt, %219, %220 : vector<1x640xf32>
    %cst_161 = arith.constant 0.000000e+00 : f32
    %222 = vector.shape_cast %221 : vector<1x640xi1> to vector<1x640xi1>
    %223 = vector.broadcast %222 : vector<1x640xi1> to vector<32x640xi1>
    %224 = vector.broadcast %cst_161 : f32 to vector<32x640xf32>
    %225 = arith.select %223, %218, %224 : vector<32x640xi1>, vector<32x640xf32>
    %cst_162 = arith.constant dense<0.000000e+00> : vector<32xf32>
    %226 = vector.multi_reduction <add>, %225, %cst_162 [1] : vector<32x640xf32> to vector<32xf32>
    %227 = vector.shape_cast %226 : vector<32xf32> to vector<32x1xf32>
    %cst_163 = arith.constant 7.812500e-03 : f32
    %228 = vector.broadcast %cst_163 : f32 to vector<32x1xf32>
    %229 = arith.mulf %227, %228 : vector<32x1xf32>
    %230 = vector.broadcast %229 : vector<32x1xf32> to vector<32x640xf32>
    %231 = arith.subf %218, %230 : vector<32x640xf32>
    %cst_164 = arith.constant 0.000000e+00 : f32
    %232 = vector.shape_cast %221 : vector<1x640xi1> to vector<1x640xi1>
    %233 = vector.broadcast %232 : vector<1x640xi1> to vector<32x640xi1>
    %234 = vector.broadcast %cst_164 : f32 to vector<32x640xf32>
    %235 = arith.select %233, %231, %234 : vector<32x640xi1>, vector<32x640xf32>
    %236 = arith.mulf %235, %235 : vector<32x640xf32>
    %cst_165 = arith.constant dense<0.000000e+00> : vector<32xf32>
    %237 = vector.multi_reduction <add>, %236, %cst_165 [1] : vector<32x640xf32> to vector<32xf32>
    %238 = vector.shape_cast %237 : vector<32xf32> to vector<32x1xf32>
    %cst_166 = arith.constant 7.812500e-03 : f32
    %239 = vector.broadcast %cst_166 : f32 to vector<32x1xf32>
    %240 = arith.mulf %238, %239 : vector<32x1xf32>
    %c3_167 = arith.constant 3 : index
    %c1_168 = arith.constant 1 : index
    %c0_169 = arith.constant 0 : index
    %c0_170 = arith.constant 0 : index
    %241 = vector.load %arg2[%c3_167, %c1_168, %c0_169, %c0_170] : memref<5x3x32x1xf32, #tpu.memory_space<vmem>>, vector<1x1x32x1xf32>
    %242 = vector.shape_cast %241 : vector<1x1x32x1xf32> to vector<32x1xf32>
    %cst_171 = arith.constant 9.99999974E-6 : f32
    %243 = vector.broadcast %cst_171 : f32 to vector<32x1xf32>
    %244 = arith.addf %240, %243 : vector<32x1xf32>
    %245 = math.rsqrt %244 : vector<32x1xf32>
    %246 = arith.mulf %242, %245 : vector<32x1xf32>
    %247 = vector.broadcast %246 : vector<32x1xf32> to vector<32x640xf32>
    %248 = arith.mulf %231, %247 : vector<32x640xf32>
    %c3_172 = arith.constant 3 : index
    %c2_173 = arith.constant 2 : index
    %c0_174 = arith.constant 0 : index
    %c0_175 = arith.constant 0 : index
    %249 = vector.load %arg2[%c3_172, %c2_173, %c0_174, %c0_175] : memref<5x3x32x1xf32, #tpu.memory_space<vmem>>, vector<1x1x32x1xf32>
    %250 = vector.shape_cast %249 : vector<1x1x32x1xf32> to vector<32x1xf32>
    %251 = vector.broadcast %250 : vector<32x1xf32> to vector<32x640xf32>
    %252 = arith.addf %248, %251 : vector<32x640xf32>
    %cst_176 = arith.constant 2.000000e-01 : f32
    %253 = vector.broadcast %cst_176 : f32 to vector<32x640xf32>
    %254 = arith.mulf %253, %252 : vector<32x640xf32>
    %255 = arith.maximumf %252, %254 : vector<32x640xf32>
    %256 = arith.truncf %255 : vector<32x640xf32> to vector<32x640xbf16>
    %257 = vector.extract_strided_slice %256 {offsets = [0, 0], sizes = [32, 512], strides = [1, 1]} : vector<32x640xbf16> to vector<32x512xbf16>
    %c0_177 = arith.constant 0 : index
    %c0_178 = arith.constant 0 : index
    %258 = vector.load %arg5[%c0_177, %c0_178] : memref<288x1024xbf16, #tpu.memory_space<vmem>>, vector<32x512xbf16>
    tpu.vector_store %arg5[%c0_177, %c0_178], %257 {strides = array<i32>} : memref<288x1024xbf16, #tpu.memory_space<vmem>>, vector<32x512xbf16>,
    %259 = vector.extract_strided_slice %256 {offsets = [0, 1], sizes = [32, 512], strides = [1, 1]} : vector<32x640xbf16> to vector<32x512xbf16>
    %c32_179 = arith.constant 32 : index
    %c0_180 = arith.constant 0 : index
    %260 = vector.load %arg5[%c32_179, %c0_180] : memref<288x1024xbf16, #tpu.memory_space<vmem>>, vector<32x512xbf16>
    tpu.vector_store %arg5[%c32_179, %c0_180], %259 {strides = array<i32>} : memref<288x1024xbf16, #tpu.memory_space<vmem>>, vector<32x512xbf16>,
    %261 = vector.extract_strided_slice %256 {offsets = [0, 2], sizes = [32, 512], strides = [1, 1]} : vector<32x640xbf16> to vector<32x512xbf16>
    %c64_181 = arith.constant 64 : index
    %c0_182 = arith.constant 0 : index
    %262 = vector.load %arg5[%c64_181, %c0_182] : memref<288x1024xbf16, #tpu.memory_space<vmem>>, vector<32x512xbf16>
    tpu.vector_store %arg5[%c64_181, %c0_182], %261 {strides = array<i32>} : memref<288x1024xbf16, #tpu.memory_space<vmem>>, vector<32x512xbf16>,
    %263 = vector.extract_strided_slice %256 {offsets = [0, 16], sizes = [32, 512], strides = [1, 1]} : vector<32x640xbf16> to vector<32x512xbf16>
    %c96_183 = arith.constant 96 : index
    %c0_184 = arith.constant 0 : index
    %264 = vector.load %arg5[%c96_183, %c0_184] : memref<288x1024xbf16, #tpu.memory_space<vmem>>, vector<32x512xbf16>
    tpu.vector_store %arg5[%c96_183, %c0_184], %263 {strides = array<i32>} : memref<288x1024xbf16, #tpu.memory_space<vmem>>, vector<32x512xbf16>,
    %265 = vector.extract_strided_slice %256 {offsets = [0, 17], sizes = [32, 512], strides = [1, 1]} : vector<32x640xbf16> to vector<32x512xbf16>
    %c128_185 = arith.constant 128 : index
    %c0_186 = arith.constant 0 : index
    %266 = vector.load %arg5[%c128_185, %c0_186] : memref<288x1024xbf16, #tpu.memory_space<vmem>>, vector<32x512xbf16>
    tpu.vector_store %arg5[%c128_185, %c0_186], %265 {strides = array<i32>} : memref<288x1024xbf16, #tpu.memory_space<vmem>>, vector<32x512xbf16>,
    %267 = vector.extract_strided_slice %256 {offsets = [0, 18], sizes = [32, 512], strides = [1, 1]} : vector<32x640xbf16> to vector<32x512xbf16>
    %c160_187 = arith.constant 160 : index
    %c0_188 = arith.constant 0 : index
    %268 = vector.load %arg5[%c160_187, %c0_188] : memref<288x1024xbf16, #tpu.memory_space<vmem>>, vector<32x512xbf16>
    tpu.vector_store %arg5[%c160_187, %c0_188], %267 {strides = array<i32>} : memref<288x1024xbf16, #tpu.memory_space<vmem>>, vector<32x512xbf16>,
    %269 = vector.extract_strided_slice %256 {offsets = [0, 32], sizes = [32, 512], strides = [1, 1]} : vector<32x640xbf16> to vector<32x512xbf16>
    %c192_189 = arith.constant 192 : index
    %c0_190 = arith.constant 0 : index
    %270 = vector.load %arg5[%c192_189, %c0_190] : memref<288x1024xbf16, #tpu.memory_space<vmem>>, vector<32x512xbf16>
    tpu.vector_store %arg5[%c192_189, %c0_190], %269 {strides = array<i32>} : memref<288x1024xbf16, #tpu.memory_space<vmem>>, vector<32x512xbf16>,
    %271 = vector.extract_strided_slice %256 {offsets = [0, 33], sizes = [32, 512], strides = [1, 1]} : vector<32x640xbf16> to vector<32x512xbf16>
    %c224_191 = arith.constant 224 : index
    %c0_192 = arith.constant 0 : index
    %272 = vector.load %arg5[%c224_191, %c0_192] : memref<288x1024xbf16, #tpu.memory_space<vmem>>, vector<32x512xbf16>
    tpu.vector_store %arg5[%c224_191, %c0_192], %271 {strides = array<i32>} : memref<288x1024xbf16, #tpu.memory_space<vmem>>, vector<32x512xbf16>,
    %273 = vector.extract_strided_slice %256 {offsets = [0, 34], sizes = [32, 512], strides = [1, 1]} : vector<32x640xbf16> to vector<32x512xbf16>
    %c256_193 = arith.constant 256 : index
    %c0_194 = arith.constant 0 : index
    %274 = vector.load %arg5[%c256_193, %c0_194] : memref<288x1024xbf16, #tpu.memory_space<vmem>>, vector<32x512xbf16>
    tpu.vector_store %arg5[%c256_193, %c0_194], %273 {strides = array<i32>} : memref<288x1024xbf16, #tpu.memory_space<vmem>>, vector<32x512xbf16>,
    %c4 = arith.constant 4 : index
    %c0_195 = arith.constant 0 : index
    %c0_196 = arith.constant 0 : index
    %275 = vector.load %arg1[%c4, %c0_195, %c0_196] : memref<5x32x288xbf16, #tpu.memory_space<vmem>>, vector<1x32x288xbf16>
    %276 = vector.shape_cast %275 : vector<1x32x288xbf16> to vector<32x288xbf16>
    %c0_197 = arith.constant 0 : index
    %c0_198 = arith.constant 0 : index
    %277 = vector.load %arg5[%c0_197, %c0_198] : memref<288x1024xbf16, #tpu.memory_space<vmem>>, vector<288x512xbf16>
    %cst_199 = arith.constant dense<0.000000e+00> : vector<32x512xf32>
    %278 = tpu.matmul %276, %277, %cst_199 {dimension_numbers = #tpu.dot_dimension_numbers<[1], [0], [0], [1], [0, 0, 1, 1], [], []>} : vector<32x288xbf16>, vector<288x512xbf16>, vector<32x512xf32> -> vector<32x512xf32>
    %c4_200 = arith.constant 4 : index
    %c0_201 = arith.constant 0 : index
    %c0_202 = arith.constant 0 : index
    %c0_203 = arith.constant 0 : index
    %279 = vector.load %arg2[%c4_200, %c0_201, %c0_202, %c0_203] : memref<5x3x32x1xf32, #tpu.memory_space<vmem>>, vector<1x1x32x1xf32>
    %280 = vector.shape_cast %279 : vector<1x1x32x1xf32> to vector<32x1xf32>
    %281 = vector.broadcast %280 : vector<32x1xf32> to vector<32x512xf32>
    %282 = arith.addf %278, %281 : vector<32x512xf32>
    %283 = vector.extract_strided_slice %282 {offsets = [0, 0], sizes = [1, 512], strides = [1, 1]} : vector<32x512xf32> to vector<1x512xf32>
    %c0_204 = arith.constant 0 : index
    %c0_205 = arith.constant 0 : index
    %284 = vector.load %arg4[%c0_204, %c0_205] : memref<1x512xf32, #tpu.memory_space<vmem>>, vector<1x512xf32>
    tpu.vector_store %arg4[%c0_204, %c0_205], %283 {strides = array<i32>} : memref<1x512xf32, #tpu.memory_space<vmem>>, vector<1x512xf32>,
    return
  }
}

</mosaic_0001>

<llo_original>
// kernel: tpu_custom_call.1
$region0: #{tpu_custom_call.1}
  #allocation0 [shape = 'u32[]', space=smem, size = 0x4, offset = 0x4, fixed_abs, tag = 'smem constant byte address 0x4 - core index']
  #allocation1 [shape = 'u32[72,128]{1,0:T(1,128)}', space=vmem, size = 0x9000, scoped, tag = 'internal scratch']
  #allocation2 [shape = 'bf16[288,1024]{1,0:T(8,128)(2,1)}', space=vmem, size = 0x90000, scoped, tag = 'scratch operand']
  %s0 = inlined_call_operand.vmem [shape: bf16[32,1152], index: 0, kind: input, shape index: {}]
  %s1 = inlined_call_operand.vmem [shape: bf16[5,32,288], index: 1, kind: input, shape index: {}]
  %s2 = inlined_call_operand.vmem [shape: f32[5,3,32,1], index: 2, kind: input, shape index: {}]
  %s3 = inlined_call_operand.vmem [shape: f32[4,1024], index: 3, kind: input, shape index: {}]
  %s4 = inlined_call_operand.hbm [shape: f32[1,512], index: 4, kind: output, shape index: {}]
  %s5 = sld [smem:[#allocation0]]
  $region26: #{tpu_custom_call.1} parent=0
    _
  %s7 = ssub.s32 1, %s5
  %s8 = scalar_select 0, %s7, %s5
  $region1: #{tpu_custom_call.1} parent=0
    #allocation3 [shape = 'u8[2048]{0}', space=vmem, size = 0x800, scoped, tag = 'output window, operand 0, single buffered']
    #allocation4 [shape = 's32[1]{0}', space=sflag, size = 0x4, scoped, tag = 'scoped memory for tpu_custom_call.1']
    %9 = vsyncpa [#allocation4], 0
    // Predicated region
    $region2: #{tpu_custom_call.1} parent=1 // pred_check
      _
    $region3: #{tpu_custom_call.1} parent=1 // pred_check_branch
      %11 = sbr.rel (0) target = $region5
    $region4: #{tpu_custom_call.1} parent=1 // pred_region
      _
    $region5: #{tpu_custom_call.1} parent=1 // pred_fallthru
      _
    // Predicated region
    $region6: #{tpu_custom_call.1} parent=1 // pred_check
      _
    $region7: #{tpu_custom_call.1} parent=1 // pred_check_branch
      %13 = sbr.rel (0) target = $region9
    $region8: #{tpu_custom_call.1} parent=1 // pred_region
      _
    $region9: #{tpu_custom_call.1} parent=1 // pred_fallthru
      _
    // Predicated region
    $region10: #{tpu_custom_call.1} parent=1 // pred_check
      _
    $region11: #{tpu_custom_call.1} parent=1 // pred_check_branch
      %15 = sbr.rel (0) target = $region13
    $region12: #{tpu_custom_call.1} parent=1 // pred_region
      _
    $region13: #{tpu_custom_call.1} parent=1 // pred_fallthru
      _
    // Predicated region
    $region14: #{tpu_custom_call.1} parent=1 // pred_check
      _
    $region15: #{tpu_custom_call.1} parent=1 // pred_check_branch
      %17 = sbr.rel (0) target = $region17
    $region16: #{tpu_custom_call.1} parent=1 // pred_region
      _
    $region17: #{tpu_custom_call.1} parent=1 // pred_fallthru
      _
    %v19 = vld [vmem:[%s0] sm:$0xff]
    %v20 = vld [vmem:[%s0 + $0x8] sm:$0xff]
    %v21 = vld [vmem:[%s0 + $0x10] sm:$0xff]
    %v22 = vld [vmem:[%s0 + $0x18] sm:$0xff]
    %v23 = vld [vmem:[%s0 + $0x20] sm:$0xf]
    %v24 = vld [vmem:[%s0 + $0x24] sm:$0xff]
    %v25 = vld [vmem:[%s0 + $0x2c] sm:$0xff]
    %v26 = vld [vmem:[%s0 + $0x34] sm:$0xff]
    %v27 = vld [vmem:[%s0 + $0x3c] sm:$0xff]
    %v28 = vld [vmem:[%s0 + $0x44] sm:$0xf]
    %v29 = vld [vmem:[%s0 + $0x48] sm:$0xff]
    %v30 = vld [vmem:[%s0 + $0x50] sm:$0xff]
    %v31 = vld [vmem:[%s0 + $0x58] sm:$0xff]
    %v32 = vld [vmem:[%s0 + $0x60] sm:$0xff]
    %v33 = vld [vmem:[%s0 + $0x68] sm:$0xf]
    %v34 = vld [vmem:[%s0 + $0x6c] sm:$0xff]
    %v35 = vld [vmem:[%s0 + $0x74] sm:$0xff]
    %v36 = vld [vmem:[%s0 + $0x7c] sm:$0xff]
    %v37 = vld [vmem:[%s0 + $0x84] sm:$0xff]
    %v38 = vld [vmem:[%s0 + $0x8c] sm:$0xf]
    %39 = vst [vmem:[#allocation2] sm:$0xff] %v19
    %40 = vst [vmem:[#allocation2 + $0x8] sm:$0xff] %v20
    %41 = vst [vmem:[#allocation2 + $0x10] sm:$0xff] %v21
    %42 = vst [vmem:[#allocation2 + $0x18] sm:$0xff] %v22
    %43 = vst [vmem:[#allocation2 + $0x20] sm:$0xff] %v24
    %44 = vst [vmem:[#allocation2 + $0x28] sm:$0xff] %v25
    %45 = vst [vmem:[#allocation2 + $0x30] sm:$0xff] %v26
    %46 = vst [vmem:[#allocation2 + $0x38] sm:$0xff] %v27
    %47 = vst [vmem:[#allocation2 + $0x40] sm:$0xff] %v29
    %48 = vst [vmem:[#allocation2 + $0x48] sm:$0xff] %v30
    %49 = vst [vmem:[#allocation2 + $0x50] sm:$0xff] %v31
    %50 = vst [vmem:[#allocation2 + $0x58] sm:$0xff] %v32
    %51 = vst [vmem:[#allocation2 + $0x60] sm:$0xff] %v34
    %52 = vst [vmem:[#allocation2 + $0x68] sm:$0xff] %v35
    %53 = vst [vmem:[#allocation2 + $0x70] sm:$0xff] %v36
    %54 = vst [vmem:[#allocation2 + $0x78] sm:$0xff] %v37
    %75 = vrot.lane.b32.xlu0 %v19, 127
    %v76 = vpop.permute.xlu0 %75
    %77 = vrot.lane.b32.xlu0 %v20, 127
    %v78 = vpop.permute.xlu0 %77
    %79 = vrot.lane.b32.xlu0 %v21, 127
    %v80 = vpop.permute.xlu0 %79
    %81 = vrot.lane.b32.xlu0 %v22, 127
    %v82 = vpop.permute.xlu0 %81
    %83 = vrot.lane.b32.xlu0 %v23, 127
    %v84 = vpop.permute.xlu0 %83
    %85 = vrot.lane.b32.xlu0 %v24, 127
    %v86 = vpop.permute.xlu0 %85
    %87 = vrot.lane.b32.xlu0 %v25, 127
    %v88 = vpop.permute.xlu0 %87
    %89 = vrot.lane.b32.xlu0 %v26, 127
    %v90 = vpop.permute.xlu0 %89
    %91 = vrot.lane.b32.xlu0 %v27, 127
    %v92 = vpop.permute.xlu0 %91
    %93 = vrot.lane.b32.xlu0 %v28, 127
    %v94 = vpop.permute.xlu0 %93
    %95 = vrot.lane.b32.xlu0 %v29, 127
    %v96 = vpop.permute.xlu0 %95
    %97 = vrot.lane.b32.xlu0 %v30, 127
    %v98 = vpop.permute.xlu0 %97
    %99 = vrot.lane.b32.xlu0 %v31, 127
    %v100 = vpop.permute.xlu0 %99
    %101 = vrot.lane.b32.xlu0 %v32, 127
    %v102 = vpop.permute.xlu0 %101
    %103 = vrot.lane.b32.xlu0 %v33, 127
    %v104 = vpop.permute.xlu0 %103
    %105 = vrot.lane.b32.xlu0 %v34, 127
    %v106 = vpop.permute.xlu0 %105
    %107 = vrot.lane.b32.xlu0 %v35, 127
    %v108 = vpop.permute.xlu0 %107
    %109 = vrot.lane.b32.xlu0 %v36, 127
    %v110 = vpop.permute.xlu0 %109
    %111 = vrot.lane.b32.xlu0 %v37, 127
    %v112 = vpop.permute.xlu0 %111
    %113 = vrot.lane.b32.xlu0 %v38, 127
    %v114 = vpop.permute.xlu0 %113
    %v115 = vrot.slane %v76, 4
    %v116 = vrot.slane %v78, 4
    %v117 = vrot.slane %v80, 4
    %v118 = vrot.slane %v82, 4
    %v119 = vrot.slane %v84, 4
    %v120 = vrot.slane %v86, 4
    %v121 = vrot.slane %v88, 4
    %v122 = vrot.slane %v90, 4
    %v123 = vrot.slane %v92, 4
    %v124 = vrot.slane %v94, 4
    %v125 = vrot.slane %v96, 4
    %v126 = vrot.slane %v98, 4
    %v127 = vrot.slane %v100, 4
    %v128 = vrot.slane %v102, 4
    %v129 = vrot.slane %v104, 4
    %v130 = vrot.slane %v106, 4
    %v131 = vrot.slane %v108, 4
    %v132 = vrot.slane %v110, 4
    %v133 = vrot.slane %v112, 4
    %v134 = vrot.slane %v114, 4
    %vm135 = vcmask 1043456
    %v136 = vsel %vm135, %v115, %v116
    %vm137 = vcmask 1039360
    %v138 = vsel %vm137, %v76, %v136
    %v139 = vsel %vm135, %v116, %v117
    %v140 = vsel %vm137, %v78, %v139
    %v141 = vsel %vm135, %v117, %v118
    %v142 = vsel %vm137, %v80, %v141
    %v143 = vsel %vm135, %v118, %v119
    %v144 = vsel %vm137, %v82, %v143
    %v145 = vsel %vm135, %v120, %v121
    %v146 = vsel %vm137, %v86, %v145
    %v147 = vsel %vm135, %v121, %v122
    %v148 = vsel %vm137, %v88, %v147
    %v149 = vsel %vm135, %v122, %v123
    %v150 = vsel %vm137, %v90, %v149
    %v151 = vsel %vm135, %v123, %v124
    %v152 = vsel %vm137, %v92, %v151
    %v153 = vsel %vm135, %v125, %v126
    %v154 = vsel %vm137, %v96, %v153
    %v155 = vsel %vm135, %v126, %v127
    %v156 = vsel %vm137, %v98, %v155
    %v157 = vsel %vm135, %v127, %v128
    %v158 = vsel %vm137, %v100, %v157
    %v159 = vsel %vm135, %v128, %v129
    %v160 = vsel %vm137, %v102, %v159
    %v161 = vsel %vm135, %v130, %v131
    %v162 = vsel %vm137, %v106, %v161
    %v163 = vsel %vm135, %v131, %v132
    %v164 = vsel %vm137, %v108, %v163
    %v165 = vsel %vm135, %v132, %v133
    %v166 = vsel %vm137, %v110, %v165
    %v167 = vsel %vm135, %v133, %v134
    %v168 = vsel %vm137, %v112, %v167
    %185 = vst [vmem:[#allocation2 + $0x80] sm:$0xff] %v138
    %186 = vst [vmem:[#allocation2 + $0x88] sm:$0xff] %v140
    %187 = vst [vmem:[#allocation2 + $0x90] sm:$0xff] %v142
    %188 = vst [vmem:[#allocation2 + $0x98] sm:$0xff] %v144
    %189 = vst [vmem:[#allocation2 + $0xa0] sm:$0xff] %v146
    %190 = vst [vmem:[#allocation2 + $0xa8] sm:$0xff] %v148
    %191 = vst [vmem:[#allocation2 + $0xb0] sm:$0xff] %v150
    %192 = vst [vmem:[#allocation2 + $0xb8] sm:$0xff] %v152
    %193 = vst [vmem:[#allocation2 + $0xc0] sm:$0xff] %v154
    %194 = vst [vmem:[#allocation2 + $0xc8] sm:$0xff] %v156
    %195 = vst [vmem:[#allocation2 + $0xd0] sm:$0xff] %v158
    %196 = vst [vmem:[#allocation2 + $0xd8] sm:$0xff] %v160
    %197 = vst [vmem:[#allocation2 + $0xe0] sm:$0xff] %v162
    %198 = vst [vmem:[#allocation2 + $0xe8] sm:$0xff] %v164
    %199 = vst [vmem:[#allocation2 + $0xf0] sm:$0xff] %v166
    %200 = vst [vmem:[#allocation2 + $0xf8] sm:$0xff] %v168
    %201 = vrot.lane.b32.xlu0 %v19, 126
    %v202 = vpop.permute.xlu0 %201
    %203 = vrot.lane.b32.xlu0 %v20, 126
    %v204 = vpop.permute.xlu0 %203
    %205 = vrot.lane.b32.xlu0 %v21, 126
    %v206 = vpop.permute.xlu0 %205
    %207 = vrot.lane.b32.xlu0 %v22, 126
    %v208 = vpop.permute.xlu0 %207
    %209 = vrot.lane.b32.xlu0 %v23, 126
    %v210 = vpop.permute.xlu0 %209
    %211 = vrot.lane.b32.xlu0 %v24, 126
    %v212 = vpop.permute.xlu0 %211
    %213 = vrot.lane.b32.xlu0 %v25, 126
    %v214 = vpop.permute.xlu0 %213
    %215 = vrot.lane.b32.xlu0 %v26, 126
    %v216 = vpop.permute.xlu0 %215
    %217 = vrot.lane.b32.xlu0 %v27, 126
    %v218 = vpop.permute.xlu0 %217
    %219 = vrot.lane.b32.xlu0 %v28, 126
    %v220 = vpop.permute.xlu0 %219
    %221 = vrot.lane.b32.xlu0 %v29, 126
    %v222 = vpop.permute.xlu0 %221
    %223 = vrot.lane.b32.xlu0 %v30, 126
    %v224 = vpop.permute.xlu0 %223
    %225 = vrot.lane.b32.xlu0 %v31, 126
    %v226 = vpop.permute.xlu0 %225
    %227 = vrot.lane.b32.xlu0 %v32, 126
    %v228 = vpop.permute.xlu0 %227
    %229 = vrot.lane.b32.xlu0 %v33, 126
    %v230 = vpop.permute.xlu0 %229
    %231 = vrot.lane.b32.xlu0 %v34, 126
    %v232 = vpop.permute.xlu0 %231
    %233 = vrot.lane.b32.xlu0 %v35, 126
    %v234 = vpop.permute.xlu0 %233
    %235 = vrot.lane.b32.xlu0 %v36, 126
    %v236 = vpop.permute.xlu0 %235
    %237 = vrot.lane.b32.xlu0 %v37, 126
    %v238 = vpop.permute.xlu0 %237
    %239 = vrot.lane.b32.xlu0 %v38, 126
    %v240 = vpop.permute.xlu0 %239
    %v241 = vrot.slane %v202, 4
    %v242 = vrot.slane %v204, 4
    %v243 = vrot.slane %v206, 4
    %v244 = vrot.slane %v208, 4
    %v245 = vrot.slane %v210, 4
    %v246 = vrot.slane %v212, 4
    %v247 = vrot.slane %v214, 4
    %v248 = vrot.slane %v216, 4
    %v249 = vrot.slane %v218, 4
    %v250 = vrot.slane %v220, 4
    %v251 = vrot.slane %v222, 4
    %v252 = vrot.slane %v224, 4
    %v253 = vrot.slane %v226, 4
    %v254 = vrot.slane %v228, 4
    %v255 = vrot.slane %v230, 4
    %v256 = vrot.slane %v232, 4
    %v257 = vrot.slane %v234, 4
    %v258 = vrot.slane %v236, 4
    %v259 = vrot.slane %v238, 4
    %v260 = vrot.slane %v240, 4
    %v261 = vsel %vm135, %v241, %v242
    %vm262 = vcmask 1031168
    %v263 = vsel %vm262, %v202, %v261
    %v264 = vsel %vm135, %v242, %v243
    %v265 = vsel %vm262, %v204, %v264
    %v266 = vsel %vm135, %v243, %v244
    %v267 = vsel %vm262, %v206, %v266
    %v268 = vsel %vm135, %v244, %v245
    %v269 = vsel %vm262, %v208, %v268
    %v270 = vsel %vm135, %v246, %v247
    %v271 = vsel %vm262, %v212, %v270
    %v272 = vsel %vm135, %v247, %v248
    %v273 = vsel %vm262, %v214, %v272
    %v274 = vsel %vm135, %v248, %v249
    %v275 = vsel %vm262, %v216, %v274
    %v276 = vsel %vm135, %v249, %v250
    %v277 = vsel %vm262, %v218, %v276
    %v278 = vsel %vm135, %v251, %v252
    %v279 = vsel %vm262, %v222, %v278
    %v280 = vsel %vm135, %v252, %v253
    %v281 = vsel %vm262, %v224, %v280
    %v282 = vsel %vm135, %v253, %v254
    %v283 = vsel %vm262, %v226, %v282
    %v284 = vsel %vm135, %v254, %v255
    %v285 = vsel %vm262, %v228, %v284
    %v286 = vsel %vm135, %v256, %v257
    %v287 = vsel %vm262, %v232, %v286
    %v288 = vsel %vm135, %v257, %v258
    %v289 = vsel %vm262, %v234, %v288
    %v290 = vsel %vm135, %v258, %v259
    %v291 = vsel %vm262, %v236, %v290
    %v292 = vsel %vm135, %v259, %v260
    %v293 = vsel %vm262, %v238, %v292
    %310 = vst [vmem:[#allocation2 + $0x100] sm:$0xff] %v263
    %311 = vst [vmem:[#allocation2 + $0x108] sm:$0xff] %v265
    %312 = vst [vmem:[#allocation2 + $0x110] sm:$0xff] %v267
    %313 = vst [vmem:[#allocation2 + $0x118] sm:$0xff] %v269
    %314 = vst [vmem:[#allocation2 + $0x120] sm:$0xff] %v271
    %315 = vst [vmem:[#allocation2 + $0x128] sm:$0xff] %v273
    %316 = vst [vmem:[#allocation2 + $0x130] sm:$0xff] %v275
    %317 = vst [vmem:[#allocation2 + $0x138] sm:$0xff] %v277
    %318 = vst [vmem:[#allocation2 + $0x140] sm:$0xff] %v279
    %319 = vst [vmem:[#allocation2 + $0x148] sm:$0xff] %v281
    %320 = vst [vmem:[#allocation2 + $0x150] sm:$0xff] %v283
    %321 = vst [vmem:[#allocation2 + $0x158] sm:$0xff] %v285
    %322 = vst [vmem:[#allocation2 + $0x160] sm:$0xff] %v287
    %323 = vst [vmem:[#allocation2 + $0x168] sm:$0xff] %v289
    %324 = vst [vmem:[#allocation2 + $0x170] sm:$0xff] %v291
    %325 = vst [vmem:[#allocation2 + $0x178] sm:$0xff] %v293
    %326 = vrot.lane.b32.xlu0 %v19, 112
    %v327 = vpop.permute.xlu0 %326
    %328 = vrot.lane.b32.xlu0 %v20, 112
    %v329 = vpop.permute.xlu0 %328
    %330 = vrot.lane.b32.xlu0 %v21, 112
    %v331 = vpop.permute.xlu0 %330
    %332 = vrot.lane.b32.xlu0 %v22, 112
    %v333 = vpop.permute.xlu0 %332
    %334 = vrot.lane.b32.xlu0 %v23, 112
    %v335 = vpop.permute.xlu0 %334
    %336 = vrot.lane.b32.xlu0 %v24, 112
    %v337 = vpop.permute.xlu0 %336
    %338 = vrot.lane.b32.xlu0 %v25, 112
    %v339 = vpop.permute.xlu0 %338
    %340 = vrot.lane.b32.xlu0 %v26, 112
    %v341 = vpop.permute.xlu0 %340
    %342 = vrot.lane.b32.xlu0 %v27, 112
    %v343 = vpop.permute.xlu0 %342
    %344 = vrot.lane.b32.xlu0 %v28, 112
    %v345 = vpop.permute.xlu0 %344
    %346 = vrot.lane.b32.xlu0 %v29, 112
    %v347 = vpop.permute.xlu0 %346
    %348 = vrot.lane.b32.xlu0 %v30, 112
    %v349 = vpop.permute.xlu0 %348
    %350 = vrot.lane.b32.xlu0 %v31, 112
    %v351 = vpop.permute.xlu0 %350
    %352 = vrot.lane.b32.xlu0 %v32, 112
    %v353 = vpop.permute.xlu0 %352
    %354 = vrot.lane.b32.xlu0 %v33, 112
    %v355 = vpop.permute.xlu0 %354
    %356 = vrot.lane.b32.xlu0 %v34, 112
    %v357 = vpop.permute.xlu0 %356
    %358 = vrot.lane.b32.xlu0 %v35, 112
    %v359 = vpop.permute.xlu0 %358
    %360 = vrot.lane.b32.xlu0 %v36, 112
    %v361 = vpop.permute.xlu0 %360
    %362 = vrot.lane.b32.xlu0 %v37, 112
    %v363 = vpop.permute.xlu0 %362
    %364 = vrot.lane.b32.xlu0 %v38, 112
    %v365 = vpop.permute.xlu0 %364
    %v366 = vrot.slane %v327, 4
    %v367 = vrot.slane %v329, 4
    %v368 = vrot.slane %v331, 4
    %v369 = vrot.slane %v333, 4
    %v370 = vrot.slane %v335, 4
    %v371 = vrot.slane %v337, 4
    %v372 = vrot.slane %v339, 4
    %v373 = vrot.slane %v341, 4
    %v374 = vrot.slane %v343, 4
    %v375 = vrot.slane %v345, 4
    %v376 = vrot.slane %v347, 4
    %v377 = vrot.slane %v349, 4
    %v378 = vrot.slane %v351, 4
    %v379 = vrot.slane %v353, 4
    %v380 = vrot.slane %v355, 4
    %v381 = vrot.slane %v357, 4
    %v382 = vrot.slane %v359, 4
    %v383 = vrot.slane %v361, 4
    %v384 = vrot.slane %v363, 4
    %v385 = vrot.slane %v365, 4
    %v386 = vsel %vm135, %v366, %v367
    %vm387 = vcmask 916480
    %v388 = vsel %vm387, %v327, %v386
    %v389 = vsel %vm135, %v367, %v368
    %v390 = vsel %vm387, %v329, %v389
    %v391 = vsel %vm135, %v368, %v369
    %v392 = vsel %vm387, %v331, %v391
    %v393 = vsel %vm135, %v369, %v370
    %v394 = vsel %vm387, %v333, %v393
    %v395 = vsel %vm135, %v371, %v372
    %v396 = vsel %vm387, %v337, %v395
    %v397 = vsel %vm135, %v372, %v373
    %v398 = vsel %vm387, %v339, %v397
    %v399 = vsel %vm135, %v373, %v374
    %v400 = vsel %vm387, %v341, %v399
    %v401 = vsel %vm135, %v374, %v375
    %v402 = vsel %vm387, %v343, %v401
    %v403 = vsel %vm135, %v376, %v377
    %v404 = vsel %vm387, %v347, %v403
    %v405 = vsel %vm135, %v377, %v378
    %v406 = vsel %vm387, %v349, %v405
    %v407 = vsel %vm135, %v378, %v379
    %v408 = vsel %vm387, %v351, %v407
    %v409 = vsel %vm135, %v379, %v380
    %v410 = vsel %vm387, %v353, %v409
    %v411 = vsel %vm135, %v381, %v382
    %v412 = vsel %vm387, %v357, %v411
    %v413 = vsel %vm135, %v382, %v383
    %v414 = vsel %vm387, %v359, %v413
    %v415 = vsel %vm135, %v383, %v384
    %v416 = vsel %vm387, %v361, %v415
    %v417 = vsel %vm135, %v384, %v385
    %v418 = vsel %vm387, %v363, %v417
    %435 = vst [vmem:[#allocation2 + $0x180] sm:$0xff] %v388
    %436 = vst [vmem:[#allocation2 + $0x188] sm:$0xff] %v390
    %437 = vst [vmem:[#allocation2 + $0x190] sm:$0xff] %v392
    %438 = vst [vmem:[#allocation2 + $0x198] sm:$0xff] %v394
    %439 = vst [vmem:[#allocation2 + $0x1a0] sm:$0xff] %v396
    %440 = vst [vmem:[#allocation2 + $0x1a8] sm:$0xff] %v398
    %441 = vst [vmem:[#allocation2 + $0x1b0] sm:$0xff] %v400
    %442 = vst [vmem:[#allocation2 + $0x1b8] sm:$0xff] %v402
    %443 = vst [vmem:[#allocation2 + $0x1c0] sm:$0xff] %v404
    %444 = vst [vmem:[#allocation2 + $0x1c8] sm:$0xff] %v406
    %445 = vst [vmem:[#allocation2 + $0x1d0] sm:$0xff] %v408
    %446 = vst [vmem:[#allocation2 + $0x1d8] sm:$0xff] %v410
    %447 = vst [vmem:[#allocation2 + $0x1e0] sm:$0xff] %v412
    %448 = vst [vmem:[#allocation2 + $0x1e8] sm:$0xff] %v414
    %449 = vst [vmem:[#allocation2 + $0x1f0] sm:$0xff] %v416
    %450 = vst [vmem:[#allocation2 + $0x1f8] sm:$0xff] %v418
    %451 = vrot.lane.b32.xlu0 %v19, 111
    %v452 = vpop.permute.xlu0 %451
    %453 = vrot.lane.b32.xlu0 %v20, 111
    %v454 = vpop.permute.xlu0 %453
    %455 = vrot.lane.b32.xlu0 %v21, 111
    %v456 = vpop.permute.xlu0 %455
    %457 = vrot.lane.b32.xlu0 %v22, 111
    %v458 = vpop.permute.xlu0 %457
    %459 = vrot.lane.b32.xlu0 %v23, 111
    %v460 = vpop.permute.xlu0 %459
    %461 = vrot.lane.b32.xlu0 %v24, 111
    %v462 = vpop.permute.xlu0 %461
    %463 = vrot.lane.b32.xlu0 %v25, 111
    %v464 = vpop.permute.xlu0 %463
    %465 = vrot.lane.b32.xlu0 %v26, 111
    %v466 = vpop.permute.xlu0 %465
    %467 = vrot.lane.b32.xlu0 %v27, 111
    %v468 = vpop.permute.xlu0 %467
    %469 = vrot.lane.b32.xlu0 %v28, 111
    %v470 = vpop.permute.xlu0 %469
    %471 = vrot.lane.b32.xlu0 %v29, 111
    %v472 = vpop.permute.xlu0 %471
    %473 = vrot.lane.b32.xlu0 %v30, 111
    %v474 = vpop.permute.xlu0 %473
    %475 = vrot.lane.b32.xlu0 %v31, 111
    %v476 = vpop.permute.xlu0 %475
    %477 = vrot.lane.b32.xlu0 %v32, 111
    %v478 = vpop.permute.xlu0 %477
    %479 = vrot.lane.b32.xlu0 %v33, 111
    %v480 = vpop.permute.xlu0 %479
    %481 = vrot.lane.b32.xlu0 %v34, 111
    %v482 = vpop.permute.xlu0 %481
    %483 = vrot.lane.b32.xlu0 %v35, 111
    %v484 = vpop.permute.xlu0 %483
    %485 = vrot.lane.b32.xlu0 %v36, 111
    %v486 = vpop.permute.xlu0 %485
    %487 = vrot.lane.b32.xlu0 %v37, 111
    %v488 = vpop.permute.xlu0 %487
    %489 = vrot.lane.b32.xlu0 %v38, 111
    %v490 = vpop.permute.xlu0 %489
    %v491 = vrot.slane %v452, 4
    %v492 = vrot.slane %v454, 4
    %v493 = vrot.slane %v456, 4
    %v494 = vrot.slane %v458, 4
    %v495 = vrot.slane %v460, 4
    %v496 = vrot.slane %v462, 4
    %v497 = vrot.slane %v464, 4
    %v498 = vrot.slane %v466, 4
    %v499 = vrot.slane %v468, 4
    %v500 = vrot.slane %v470, 4
    %v501 = vrot.slane %v472, 4
    %v502 = vrot.slane %v474, 4
    %v503 = vrot.slane %v476, 4
    %v504 = vrot.slane %v478, 4
    %v505 = vrot.slane %v480, 4
    %v506 = vrot.slane %v482, 4
    %v507 = vrot.slane %v484, 4
    %v508 = vrot.slane %v486, 4
    %v509 = vrot.slane %v488, 4
    %v510 = vrot.slane %v490, 4
    %v511 = vsel %vm135, %v491, %v492
    %vm512 = vcmask 908288
    %v513 = vsel %vm512, %v452, %v511
    %v514 = vsel %vm135, %v492, %v493
    %v515 = vsel %vm512, %v454, %v514
    %v516 = vsel %vm135, %v493, %v494
    %v517 = vsel %vm512, %v456, %v516
    %v518 = vsel %vm135, %v494, %v495
    %v519 = vsel %vm512, %v458, %v518
    %v520 = vsel %vm135, %v496, %v497
    %v521 = vsel %vm512, %v462, %v520
    %v522 = vsel %vm135, %v497, %v498
    %v523 = vsel %vm512, %v464, %v522
    %v524 = vsel %vm135, %v498, %v499
    %v525 = vsel %vm512, %v466, %v524
    %v526 = vsel %vm135, %v499, %v500
    %v527 = vsel %vm512, %v468, %v526
    %v528 = vsel %vm135, %v501, %v502
    %v529 = vsel %vm512, %v472, %v528
    %v530 = vsel %vm135, %v502, %v503
    %v531 = vsel %vm512, %v474, %v530
    %v532 = vsel %vm135, %v503, %v504
    %v533 = vsel %vm512, %v476, %v532
    %v534 = vsel %vm135, %v504, %v505
    %v535 = vsel %vm512, %v478, %v534
    %v536 = vsel %vm135, %v506, %v507
    %v537 = vsel %vm512, %v482, %v536
    %v538 = vsel %vm135, %v507, %v508
    %v539 = vsel %vm512, %v484, %v538
    %v540 = vsel %vm135, %v508, %v509
    %v541 = vsel %vm512, %v486, %v540
    %v542 = vsel %vm135, %v509, %v510
    %v543 = vsel %vm512, %v488, %v542
    %560 = vst [vmem:[#allocation2 + $0x200] sm:$0xff] %v513
    %561 = vst [vmem:[#allocation2 + $0x208] sm:$0xff] %v515
    %562 = vst [vmem:[#allocation2 + $0x210] sm:$0xff] %v517
    %563 = vst [vmem:[#allocation2 + $0x218] sm:$0xff] %v519
    %564 = vst [vmem:[#allocation2 + $0x220] sm:$0xff] %v521
    %565 = vst [vmem:[#allocation2 + $0x228] sm:$0xff] %v523
    %566 = vst [vmem:[#allocation2 + $0x230] sm:$0xff] %v525
    %567 = vst [vmem:[#allocation2 + $0x238] sm:$0xff] %v527
    %568 = vst [vmem:[#allocation2 + $0x240] sm:$0xff] %v529
    %569 = vst [vmem:[#allocation2 + $0x248] sm:$0xff] %v531
    %570 = vst [vmem:[#allocation2 + $0x250] sm:$0xff] %v533
    %571 = vst [vmem:[#allocation2 + $0x258] sm:$0xff] %v535
    %572 = vst [vmem:[#allocation2 + $0x260] sm:$0xff] %v537
    %573 = vst [vmem:[#allocation2 + $0x268] sm:$0xff] %v539
    %574 = vst [vmem:[#allocation2 + $0x270] sm:$0xff] %v541
    %575 = vst [vmem:[#allocation2 + $0x278] sm:$0xff] %v543
    %576 = vrot.lane.b32.xlu0 %v19, 110
    %v577 = vpop.permute.xlu0 %576
    %578 = vrot.lane.b32.xlu0 %v20, 110
    %v579 = vpop.permute.xlu0 %578
    %580 = vrot.lane.b32.xlu0 %v21, 110
    %v581 = vpop.permute.xlu0 %580
    %582 = vrot.lane.b32.xlu0 %v22, 110
    %v583 = vpop.permute.xlu0 %582
    %584 = vrot.lane.b32.xlu0 %v23, 110
    %v585 = vpop.permute.xlu0 %584
    %586 = vrot.lane.b32.xlu0 %v24, 110
    %v587 = vpop.permute.xlu0 %586
    %588 = vrot.lane.b32.xlu0 %v25, 110
    %v589 = vpop.permute.xlu0 %588
    %590 = vrot.lane.b32.xlu0 %v26, 110
    %v591 = vpop.permute.xlu0 %590
    %592 = vrot.lane.b32.xlu0 %v27, 110
    %v593 = vpop.permute.xlu0 %592
    %594 = vrot.lane.b32.xlu0 %v28, 110
    %v595 = vpop.permute.xlu0 %594
    %596 = vrot.lane.b32.xlu0 %v29, 110
    %v597 = vpop.permute.xlu0 %596
    %598 = vrot.lane.b32.xlu0 %v30, 110
    %v599 = vpop.permute.xlu0 %598
    %600 = vrot.lane.b32.xlu0 %v31, 110
    %v601 = vpop.permute.xlu0 %600
    %602 = vrot.lane.b32.xlu0 %v32, 110
    %v603 = vpop.permute.xlu0 %602
    %604 = vrot.lane.b32.xlu0 %v33, 110
    %v605 = vpop.permute.xlu0 %604
    %606 = vrot.lane.b32.xlu0 %v34, 110
    %v607 = vpop.permute.xlu0 %606
    %608 = vrot.lane.b32.xlu0 %v35, 110
    %v609 = vpop.permute.xlu0 %608
    %610 = vrot.lane.b32.xlu0 %v36, 110
    %v611 = vpop.permute.xlu0 %610
    %612 = vrot.lane.b32.xlu0 %v37, 110
    %v613 = vpop.permute.xlu0 %612
    %614 = vrot.lane.b32.xlu0 %v38, 110
    %v615 = vpop.permute.xlu0 %614
    %v616 = vrot.slane %v577, 4
    %v617 = vrot.slane %v579, 4
    %v618 = vrot.slane %v581, 4
    %v619 = vrot.slane %v583, 4
    %v620 = vrot.slane %v585, 4
    %v621 = vrot.slane %v587, 4
    %v622 = vrot.slane %v589, 4
    %v623 = vrot.slane %v591, 4
    %v624 = vrot.slane %v593, 4
    %v625 = vrot.slane %v595, 4
    %v626 = vrot.slane %v597, 4
    %v627 = vrot.slane %v599, 4
    %v628 = vrot.slane %v601, 4
    %v629 = vrot.slane %v603, 4
    %v630 = vrot.slane %v605, 4
    %v631 = vrot.slane %v607, 4
    %v632 = vrot.slane %v609, 4
    %v633 = vrot.slane %v611, 4
    %v634 = vrot.slane %v613, 4
    %v635 = vrot.slane %v615, 4
    %v636 = vsel %vm135, %v616, %v617
    %vm637 = vcmask 900096
    %v638 = vsel %vm637, %v577, %v636
    %v639 = vsel %vm135, %v617, %v618
    %v640 = vsel %vm637, %v579, %v639
    %v641 = vsel %vm135, %v618, %v619
    %v642 = vsel %vm637, %v581, %v641
    %v643 = vsel %vm135, %v619, %v620
    %v644 = vsel %vm637, %v583, %v643
    %v645 = vsel %vm135, %v621, %v622
    %v646 = vsel %vm637, %v587, %v645
    %v647 = vsel %vm135, %v622, %v623
    %v648 = vsel %vm637, %v589, %v647
    %v649 = vsel %vm135, %v623, %v624
    %v650 = vsel %vm637, %v591, %v649
    %v651 = vsel %vm135, %v624, %v625
    %v652 = vsel %vm637, %v593, %v651
    %v653 = vsel %vm135, %v626, %v627
    %v654 = vsel %vm637, %v597, %v653
    %v655 = vsel %vm135, %v627, %v628
    %v656 = vsel %vm637, %v599, %v655
    %v657 = vsel %vm135, %v628, %v629
    %v658 = vsel %vm637, %v601, %v657
    %v659 = vsel %vm135, %v629, %v630
    %v660 = vsel %vm637, %v603, %v659
    %v661 = vsel %vm135, %v631, %v632
    %v662 = vsel %vm637, %v607, %v661
    %v663 = vsel %vm135, %v632, %v633
    %v664 = vsel %vm637, %v609, %v663
    %v665 = vsel %vm135, %v633, %v634
    %v666 = vsel %vm637, %v611, %v665
    %v667 = vsel %vm135, %v634, %v635
    %v668 = vsel %vm637, %v613, %v667
    %685 = vst [vmem:[#allocation2 + $0x280] sm:$0xff] %v638
    %686 = vst [vmem:[#allocation2 + $0x288] sm:$0xff] %v640
    %687 = vst [vmem:[#allocation2 + $0x290] sm:$0xff] %v642
    %688 = vst [vmem:[#allocation2 + $0x298] sm:$0xff] %v644
    %689 = vst [vmem:[#allocation2 + $0x2a0] sm:$0xff] %v646
    %690 = vst [vmem:[#allocation2 + $0x2a8] sm:$0xff] %v648
    %691 = vst [vmem:[#allocation2 + $0x2b0] sm:$0xff] %v650
    %692 = vst [vmem:[#allocation2 + $0x2b8] sm:$0xff] %v652
    %693 = vst [vmem:[#allocation2 + $0x2c0] sm:$0xff] %v654
    %694 = vst [vmem:[#allocation2 + $0x2c8] sm:$0xff] %v656
    %695 = vst [vmem:[#allocation2 + $0x2d0] sm:$0xff] %v658
    %696 = vst [vmem:[#allocation2 + $0x2d8] sm:$0xff] %v660
    %697 = vst [vmem:[#allocation2 + $0x2e0] sm:$0xff] %v662
    %698 = vst [vmem:[#allocation2 + $0x2e8] sm:$0xff] %v664
    %699 = vst [vmem:[#allocation2 + $0x2f0] sm:$0xff] %v666
    %700 = vst [vmem:[#allocation2 + $0x2f8] sm:$0xff] %v668
    %701 = vrot.lane.b32.xlu0 %v19, 96
    %v702 = vpop.permute.xlu0 %701
    %703 = vrot.lane.b32.xlu0 %v20, 96
    %v704 = vpop.permute.xlu0 %703
    %705 = vrot.lane.b32.xlu0 %v21, 96
    %v706 = vpop.permute.xlu0 %705
    %707 = vrot.lane.b32.xlu0 %v22, 96
    %v708 = vpop.permute.xlu0 %707
    %709 = vrot.lane.b32.xlu0 %v23, 96
    %v710 = vpop.permute.xlu0 %709
    %711 = vrot.lane.b32.xlu0 %v24, 96
    %v712 = vpop.permute.xlu0 %711
    %713 = vrot.lane.b32.xlu0 %v25, 96
    %v714 = vpop.permute.xlu0 %713
    %715 = vrot.lane.b32.xlu0 %v26, 96
    %v716 = vpop.permute.xlu0 %715
    %717 = vrot.lane.b32.xlu0 %v27, 96
    %v718 = vpop.permute.xlu0 %717
    %719 = vrot.lane.b32.xlu0 %v28, 96
    %v720 = vpop.permute.xlu0 %719
    %721 = vrot.lane.b32.xlu0 %v29, 96
    %v722 = vpop.permute.xlu0 %721
    %723 = vrot.lane.b32.xlu0 %v30, 96
    %v724 = vpop.permute.xlu0 %723
    %725 = vrot.lane.b32.xlu0 %v31, 96
    %v726 = vpop.permute.xlu0 %725
    %727 = vrot.lane.b32.xlu0 %v32, 96
    %v728 = vpop.permute.xlu0 %727
    %729 = vrot.lane.b32.xlu0 %v33, 96
    %v730 = vpop.permute.xlu0 %729
    %731 = vrot.lane.b32.xlu0 %v34, 96
    %v732 = vpop.permute.xlu0 %731
    %733 = vrot.lane.b32.xlu0 %v35, 96
    %v734 = vpop.permute.xlu0 %733
    %735 = vrot.lane.b32.xlu0 %v36, 96
    %v736 = vpop.permute.xlu0 %735
    %737 = vrot.lane.b32.xlu0 %v37, 96
    %v738 = vpop.permute.xlu0 %737
    %739 = vrot.lane.b32.xlu0 %v38, 96
    %v740 = vpop.permute.xlu0 %739
    %v741 = vrot.slane %v702, 4
    %v742 = vrot.slane %v704, 4
    %v743 = vrot.slane %v706, 4
    %v744 = vrot.slane %v708, 4
    %v745 = vrot.slane %v710, 4
    %v746 = vrot.slane %v712, 4
    %v747 = vrot.slane %v714, 4
    %v748 = vrot.slane %v716, 4
    %v749 = vrot.slane %v718, 4
    %v750 = vrot.slane %v720, 4
    %v751 = vrot.slane %v722, 4
    %v752 = vrot.slane %v724, 4
    %v753 = vrot.slane %v726, 4
    %v754 = vrot.slane %v728, 4
    %v755 = vrot.slane %v730, 4
    %v756 = vrot.slane %v732, 4
    %v757 = vrot.slane %v734, 4
    %v758 = vrot.slane %v736, 4
    %v759 = vrot.slane %v738, 4
    %v760 = vrot.slane %v740, 4
    %v761 = vsel %vm135, %v741, %v742
    %vm762 = vcmask 785408
    %v763 = vsel %vm762, %v702, %v761
    %v764 = vsel %vm135, %v742, %v743
    %v765 = vsel %vm762, %v704, %v764
    %v766 = vsel %vm135, %v743, %v744
    %v767 = vsel %vm762, %v706, %v766
    %v768 = vsel %vm135, %v744, %v745
    %v769 = vsel %vm762, %v708, %v768
    %v770 = vsel %vm135, %v746, %v747
    %v771 = vsel %vm762, %v712, %v770
    %v772 = vsel %vm135, %v747, %v748
    %v773 = vsel %vm762, %v714, %v772
    %v774 = vsel %vm135, %v748, %v749
    %v775 = vsel %vm762, %v716, %v774
    %v776 = vsel %vm135, %v749, %v750
    %v777 = vsel %vm762, %v718, %v776
    %v778 = vsel %vm135, %v751, %v752
    %v779 = vsel %vm762, %v722, %v778
    %v780 = vsel %vm135, %v752, %v753
    %v781 = vsel %vm762, %v724, %v780
    %v782 = vsel %vm135, %v753, %v754
    %v783 = vsel %vm762, %v726, %v782
    %v784 = vsel %vm135, %v754, %v755
    %v785 = vsel %vm762, %v728, %v784
    %v786 = vsel %vm135, %v756, %v757
    %v787 = vsel %vm762, %v732, %v786
    %v788 = vsel %vm135, %v757, %v758
    %v789 = vsel %vm762, %v734, %v788
    %v790 = vsel %vm135, %v758, %v759
    %v791 = vsel %vm762, %v736, %v790
    %v792 = vsel %vm135, %v759, %v760
    %v793 = vsel %vm762, %v738, %v792
    %810 = vst [vmem:[#allocation2 + $0x300] sm:$0xff] %v763
    %811 = vst [vmem:[#allocation2 + $0x308] sm:$0xff] %v765
    %812 = vst [vmem:[#allocation2 + $0x310] sm:$0xff] %v767
    %813 = vst [vmem:[#allocation2 + $0x318] sm:$0xff] %v769
    %814 = vst [vmem:[#allocation2 + $0x320] sm:$0xff] %v771
    %815 = vst [vmem:[#allocation2 + $0x328] sm:$0xff] %v773
    %816 = vst [vmem:[#allocation2 + $0x330] sm:$0xff] %v775
    %817 = vst [vmem:[#allocation2 + $0x338] sm:$0xff] %v777
    %818 = vst [vmem:[#allocation2 + $0x340] sm:$0xff] %v779
    %819 = vst [vmem:[#allocation2 + $0x348] sm:$0xff] %v781
    %820 = vst [vmem:[#allocation2 + $0x350] sm:$0xff] %v783
    %821 = vst [vmem:[#allocation2 + $0x358] sm:$0xff] %v785
    %822 = vst [vmem:[#allocation2 + $0x360] sm:$0xff] %v787
    %823 = vst [vmem:[#allocation2 + $0x368] sm:$0xff] %v789
    %824 = vst [vmem:[#allocation2 + $0x370] sm:$0xff] %v791
    %825 = vst [vmem:[#allocation2 + $0x378] sm:$0xff] %v793
    %826 = vrot.lane.b32.xlu0 %v19, 95
    %v827 = vpop.permute.xlu0 %826
    %828 = vrot.lane.b32.xlu0 %v20, 95
    %v829 = vpop.permute.xlu0 %828
    %830 = vrot.lane.b32.xlu0 %v21, 95
    %v831 = vpop.permute.xlu0 %830
    %832 = vrot.lane.b32.xlu0 %v22, 95
    %v833 = vpop.permute.xlu0 %832
    %834 = vrot.lane.b32.xlu0 %v23, 95
    %v835 = vpop.permute.xlu0 %834
    %836 = vrot.lane.b32.xlu0 %v24, 95
    %v837 = vpop.permute.xlu0 %836
    %838 = vrot.lane.b32.xlu0 %v25, 95
    %v839 = vpop.permute.xlu0 %838
    %840 = vrot.lane.b32.xlu0 %v26, 95
    %v841 = vpop.permute.xlu0 %840
    %842 = vrot.lane.b32.xlu0 %v27, 95
    %v843 = vpop.permute.xlu0 %842
    %844 = vrot.lane.b32.xlu0 %v28, 95
    %v845 = vpop.permute.xlu0 %844
    %846 = vrot.lane.b32.xlu0 %v29, 95
    %v847 = vpop.permute.xlu0 %846
    %848 = vrot.lane.b32.xlu0 %v30, 95
    %v849 = vpop.permute.xlu0 %848
    %850 = vrot.lane.b32.xlu0 %v31, 95
    %v851 = vpop.permute.xlu0 %850
    %852 = vrot.lane.b32.xlu0 %v32, 95
    %v853 = vpop.permute.xlu0 %852
    %854 = vrot.lane.b32.xlu0 %v33, 95
    %v855 = vpop.permute.xlu0 %854
    %856 = vrot.lane.b32.xlu0 %v34, 95
    %v857 = vpop.permute.xlu0 %856
    %858 = vrot.lane.b32.xlu0 %v35, 95
    %v859 = vpop.permute.xlu0 %858
    %860 = vrot.lane.b32.xlu0 %v36, 95
    %v861 = vpop.permute.xlu0 %860
    %862 = vrot.lane.b32.xlu0 %v37, 95
    %v863 = vpop.permute.xlu0 %862
    %864 = vrot.lane.b32.xlu0 %v38, 95
    %v865 = vpop.permute.xlu0 %864
    %v866 = vrot.slane %v827, 4
    %v867 = vrot.slane %v829, 4
    %v868 = vrot.slane %v831, 4
    %v869 = vrot.slane %v833, 4
    %v870 = vrot.slane %v835, 4
    %v871 = vrot.slane %v837, 4
    %v872 = vrot.slane %v839, 4
    %v873 = vrot.slane %v841, 4
    %v874 = vrot.slane %v843, 4
    %v875 = vrot.slane %v845, 4
    %v876 = vrot.slane %v847, 4
    %v877 = vrot.slane %v849, 4
    %v878 = vrot.slane %v851, 4
    %v879 = vrot.slane %v853, 4
    %v880 = vrot.slane %v855, 4
    %v881 = vrot.slane %v857, 4
    %v882 = vrot.slane %v859, 4
    %v883 = vrot.slane %v861, 4
    %v884 = vrot.slane %v863, 4
    %v885 = vrot.slane %v865, 4
    %v886 = vsel %vm135, %v866, %v867
    %vm887 = vcmask 777216
    %v888 = vsel %vm887, %v827, %v886
    %v889 = vsel %vm135, %v867, %v868
    %v890 = vsel %vm887, %v829, %v889
    %v891 = vsel %vm135, %v868, %v869
    %v892 = vsel %vm887, %v831, %v891
    %v893 = vsel %vm135, %v869, %v870
    %v894 = vsel %vm887, %v833, %v893
    %v895 = vsel %vm135, %v871, %v872
    %v896 = vsel %vm887, %v837, %v895
    %v897 = vsel %vm135, %v872, %v873
    %v898 = vsel %vm887, %v839, %v897
    %v899 = vsel %vm135, %v873, %v874
    %v900 = vsel %vm887, %v841, %v899
    %v901 = vsel %vm135, %v874, %v875
    %v902 = vsel %vm887, %v843, %v901
    %v903 = vsel %vm135, %v876, %v877
    %v904 = vsel %vm887, %v847, %v903
    %v905 = vsel %vm135, %v877, %v878
    %v906 = vsel %vm887, %v849, %v905
    %v907 = vsel %vm135, %v878, %v879
    %v908 = vsel %vm887, %v851, %v907
    %v909 = vsel %vm135, %v879, %v880
    %v910 = vsel %vm887, %v853, %v909
    %v911 = vsel %vm135, %v881, %v882
    %v912 = vsel %vm887, %v857, %v911
    %v913 = vsel %vm135, %v882, %v883
    %v914 = vsel %vm887, %v859, %v913
    %v915 = vsel %vm135, %v883, %v884
    %v916 = vsel %vm887, %v861, %v915
    %v917 = vsel %vm135, %v884, %v885
    %v918 = vsel %vm887, %v863, %v917
    %935 = vst [vmem:[#allocation2 + $0x380] sm:$0xff] %v888
    %936 = vst [vmem:[#allocation2 + $0x388] sm:$0xff] %v890
    %937 = vst [vmem:[#allocation2 + $0x390] sm:$0xff] %v892
    %938 = vst [vmem:[#allocation2 + $0x398] sm:$0xff] %v894
    %939 = vst [vmem:[#allocation2 + $0x3a0] sm:$0xff] %v896
    %940 = vst [vmem:[#allocation2 + $0x3a8] sm:$0xff] %v898
    %941 = vst [vmem:[#allocation2 + $0x3b0] sm:$0xff] %v900
    %942 = vst [vmem:[#allocation2 + $0x3b8] sm:$0xff] %v902
    %943 = vst [vmem:[#allocation2 + $0x3c0] sm:$0xff] %v904
    %944 = vst [vmem:[#allocation2 + $0x3c8] sm:$0xff] %v906
    %945 = vst [vmem:[#allocation2 + $0x3d0] sm:$0xff] %v908
    %946 = vst [vmem:[#allocation2 + $0x3d8] sm:$0xff] %v910
    %947 = vst [vmem:[#allocation2 + $0x3e0] sm:$0xff] %v912
    %948 = vst [vmem:[#allocation2 + $0x3e8] sm:$0xff] %v914
    %949 = vst [vmem:[#allocation2 + $0x3f0] sm:$0xff] %v916
    %950 = vst [vmem:[#allocation2 + $0x3f8] sm:$0xff] %v918
    %951 = vrot.lane.b32.xlu0 %v19, 94
    %v952 = vpop.permute.xlu0 %951
    %953 = vrot.lane.b32.xlu0 %v20, 94
    %v954 = vpop.permute.xlu0 %953
    %955 = vrot.lane.b32.xlu0 %v21, 94
    %v956 = vpop.permute.xlu0 %955
    %957 = vrot.lane.b32.xlu0 %v22, 94
    %v958 = vpop.permute.xlu0 %957
    %959 = vrot.lane.b32.xlu0 %v23, 94
    %v960 = vpop.permute.xlu0 %959
    %961 = vrot.lane.b32.xlu0 %v24, 94
    %v962 = vpop.permute.xlu0 %961
    %963 = vrot.lane.b32.xlu0 %v25, 94
    %v964 = vpop.permute.xlu0 %963
    %965 = vrot.lane.b32.xlu0 %v26, 94
    %v966 = vpop.permute.xlu0 %965
    %967 = vrot.lane.b32.xlu0 %v27, 94
    %v968 = vpop.permute.xlu0 %967
    %969 = vrot.lane.b32.xlu0 %v28, 94
    %v970 = vpop.permute.xlu0 %969
    %971 = vrot.lane.b32.xlu0 %v29, 94
    %v972 = vpop.permute.xlu0 %971
    %973 = vrot.lane.b32.xlu0 %v30, 94
    %v974 = vpop.permute.xlu0 %973
    %975 = vrot.lane.b32.xlu0 %v31, 94
    %v976 = vpop.permute.xlu0 %975
    %977 = vrot.lane.b32.xlu0 %v32, 94
    %v978 = vpop.permute.xlu0 %977
    %979 = vrot.lane.b32.xlu0 %v33, 94
    %v980 = vpop.permute.xlu0 %979
    %981 = vrot.lane.b32.xlu0 %v34, 94
    %v982 = vpop.permute.xlu0 %981
    %983 = vrot.lane.b32.xlu0 %v35, 94
    %v984 = vpop.permute.xlu0 %983
    %985 = vrot.lane.b32.xlu0 %v36, 94
    %v986 = vpop.permute.xlu0 %985
    %987 = vrot.lane.b32.xlu0 %v37, 94
    %v988 = vpop.permute.xlu0 %987
    %989 = vrot.lane.b32.xlu0 %v38, 94
    %v990 = vpop.permute.xlu0 %989
    %v991 = vrot.slane %v952, 4
    %v992 = vrot.slane %v954, 4
    %v993 = vrot.slane %v956, 4
    %v994 = vrot.slane %v958, 4
    %v995 = vrot.slane %v960, 4
    %v996 = vrot.slane %v962, 4
    %v997 = vrot.slane %v964, 4
    %v998 = vrot.slane %v966, 4
    %v999 = vrot.slane %v968, 4
    %v1000 = vrot.slane %v970, 4
    %v1001 = vrot.slane %v972, 4
    %v1002 = vrot.slane %v974, 4
    %v1003 = vrot.slane %v976, 4
    %v1004 = vrot.slane %v978, 4
    %v1005 = vrot.slane %v980, 4
    %v1006 = vrot.slane %v982, 4
    %v1007 = vrot.slane %v984, 4
    %v1008 = vrot.slane %v986, 4
    %v1009 = vrot.slane %v988, 4
    %v1010 = vrot.slane %v990, 4
    %v1011 = vsel %vm135, %v991, %v992
    %vm1012 = vcmask 769024
    %v1013 = vsel %vm1012, %v952, %v1011
    %v1014 = vsel %vm135, %v992, %v993
    %v1015 = vsel %vm1012, %v954, %v1014
    %v1016 = vsel %vm135, %v993, %v994
    %v1017 = vsel %vm1012, %v956, %v1016
    %v1018 = vsel %vm135, %v994, %v995
    %v1019 = vsel %vm1012, %v958, %v1018
    %v1020 = vsel %vm135, %v996, %v997
    %v1021 = vsel %vm1012, %v962, %v1020
    %v1022 = vsel %vm135, %v997, %v998
    %v1023 = vsel %vm1012, %v964, %v1022
    %v1024 = vsel %vm135, %v998, %v999
    %v1025 = vsel %vm1012, %v966, %v1024
    %v1026 = vsel %vm135, %v999, %v1000
    %v1027 = vsel %vm1012, %v968, %v1026
    %v1028 = vsel %vm135, %v1001, %v1002
    %v1029 = vsel %vm1012, %v972, %v1028
    %v1030 = vsel %vm135, %v1002, %v1003
    %v1031 = vsel %vm1012, %v974, %v1030
    %v1032 = vsel %vm135, %v1003, %v1004
    %v1033 = vsel %vm1012, %v976, %v1032
    %v1034 = vsel %vm135, %v1004, %v1005
    %v1035 = vsel %vm1012, %v978, %v1034
    %v1036 = vsel %vm135, %v1006, %v1007
    %v1037 = vsel %vm1012, %v982, %v1036
    %v1038 = vsel %vm135, %v1007, %v1008
    %v1039 = vsel %vm1012, %v984, %v1038
    %v1040 = vsel %vm135, %v1008, %v1009
    %v1041 = vsel %vm1012, %v986, %v1040
    %v1042 = vsel %vm135, %v1009, %v1010
    %v1043 = vsel %vm1012, %v988, %v1042
    %1060 = vst [vmem:[#allocation2 + $0x400] sm:$0xff] %v1013
    %1061 = vst [vmem:[#allocation2 + $0x408] sm:$0xff] %v1015
    %1062 = vst [vmem:[#allocation2 + $0x410] sm:$0xff] %v1017
    %1063 = vst [vmem:[#allocation2 + $0x418] sm:$0xff] %v1019
    %1064 = vst [vmem:[#allocation2 + $0x420] sm:$0xff] %v1021
    %1065 = vst [vmem:[#allocation2 + $0x428] sm:$0xff] %v1023
    %1066 = vst [vmem:[#allocation2 + $0x430] sm:$0xff] %v1025
    %1067 = vst [vmem:[#allocation2 + $0x438] sm:$0xff] %v1027
    %1068 = vst [vmem:[#allocation2 + $0x440] sm:$0xff] %v1029
    %1069 = vst [vmem:[#allocation2 + $0x448] sm:$0xff] %v1031
    %1070 = vst [vmem:[#allocation2 + $0x450] sm:$0xff] %v1033
    %1071 = vst [vmem:[#allocation2 + $0x458] sm:$0xff] %v1035
    %1072 = vst [vmem:[#allocation2 + $0x460] sm:$0xff] %v1037
    %1073 = vst [vmem:[#allocation2 + $0x468] sm:$0xff] %v1039
    %1074 = vst [vmem:[#allocation2 + $0x470] sm:$0xff] %v1041
    %1075 = vst [vmem:[#allocation2 + $0x478] sm:$0xff] %v1043
    %v1076 = vld [vmem:[%s1] sm:$0xff]
    %v1077 = vld [vmem:[%s1 + $0x8] sm:$0xf]
    %v1078 = vld [vmem:[%s1 + $0xc] sm:$0xff]
    %v1079 = vld [vmem:[%s1 + $0x14] sm:$0xf]
    %v1080 = vld [vmem:[%s1 + $0x18] sm:$0xff]
    %v1081 = vld [vmem:[%s1 + $0x20] sm:$0xf]
    %v1082 = vld [vmem:[%s1 + $0x24] sm:$0xff]
    %v1083 = vld [vmem:[%s1 + $0x2c] sm:$0xf]
    %v1084 = vld [vmem:[#allocation2] sm:$0xff]
    %v1085 = vld [vmem:[#allocation2 + $0x8] sm:$0xff]
    %v1086 = vld [vmem:[#allocation2 + $0x10] sm:$0xff]
    %v1087 = vld [vmem:[#allocation2 + $0x18] sm:$0xff]
    %v1088 = vld [vmem:[#allocation2 + $0x20] sm:$0xff]
    %v1089 = vld [vmem:[#allocation2 + $0x28] sm:$0xff]
    %v1090 = vld [vmem:[#allocation2 + $0x30] sm:$0xff]
    %v1091 = vld [vmem:[#allocation2 + $0x38] sm:$0xff]
    %v1092 = vld [vmem:[#allocation2 + $0x40] sm:$0xff]
    %v1093 = vld [vmem:[#allocation2 + $0x48] sm:$0xff]
    %v1094 = vld [vmem:[#allocation2 + $0x50] sm:$0xff]
    %v1095 = vld [vmem:[#allocation2 + $0x58] sm:$0xff]
    %v1096 = vld [vmem:[#allocation2 + $0x60] sm:$0xff]
    %v1097 = vld [vmem:[#allocation2 + $0x68] sm:$0xff]
    %v1098 = vld [vmem:[#allocation2 + $0x70] sm:$0xff]
    %v1099 = vld [vmem:[#allocation2 + $0x78] sm:$0xff]
    %v1100 = vld [vmem:[#allocation2 + $0x80] sm:$0xff]
    %v1101 = vld [vmem:[#allocation2 + $0x88] sm:$0xff]
    %v1102 = vld [vmem:[#allocation2 + $0x90] sm:$0xff]
    %v1103 = vld [vmem:[#allocation2 + $0x98] sm:$0xff]
    %v1104 = vld [vmem:[#allocation2 + $0xa0] sm:$0xff]
    %v1105 = vld [vmem:[#allocation2 + $0xa8] sm:$0xff]
    %v1106 = vld [vmem:[#allocation2 + $0xb0] sm:$0xff]
    %v1107 = vld [vmem:[#allocation2 + $0xb8] sm:$0xff]
    %v1108 = vld [vmem:[#allocation2 + $0xc0] sm:$0xff]
    %v1109 = vld [vmem:[#allocation2 + $0xc8] sm:$0xff]
    %v1110 = vld [vmem:[#allocation2 + $0xd0] sm:$0xff]
    %v1111 = vld [vmem:[#allocation2 + $0xd8] sm:$0xff]
    %v1112 = vld [vmem:[#allocation2 + $0xe0] sm:$0xff]
    %v1113 = vld [vmem:[#allocation2 + $0xe8] sm:$0xff]
    %v1114 = vld [vmem:[#allocation2 + $0xf0] sm:$0xff]
    %v1115 = vld [vmem:[#allocation2 + $0xf8] sm:$0xff]
    %v1116 = vld [vmem:[#allocation2 + $0x100] sm:$0xff]
    %v1117 = vld [vmem:[#allocation2 + $0x108] sm:$0xff]
    %v1118 = vld [vmem:[#allocation2 + $0x110] sm:$0xff]
    %v1119 = vld [vmem:[#allocation2 + $0x118] sm:$0xff]
    %v1120 = vld [vmem:[#allocation2 + $0x120] sm:$0xff]
    %v1121 = vld [vmem:[#allocation2 + $0x128] sm:$0xff]
    %v1122 = vld [vmem:[#allocation2 + $0x130] sm:$0xff]
    %v1123 = vld [vmem:[#allocation2 + $0x138] sm:$0xff]
    %v1124 = vld [vmem:[#allocation2 + $0x140] sm:$0xff]
    %v1125 = vld [vmem:[#allocation2 + $0x148] sm:$0xff]
    %v1126 = vld [vmem:[#allocation2 + $0x150] sm:$0xff]
    %v1127 = vld [vmem:[#allocation2 + $0x158] sm:$0xff]
    %v1128 = vld [vmem:[#allocation2 + $0x160] sm:$0xff]
    %v1129 = vld [vmem:[#allocation2 + $0x168] sm:$0xff]
    %v1130 = vld [vmem:[#allocation2 + $0x170] sm:$0xff]
    %v1131 = vld [vmem:[#allocation2 + $0x178] sm:$0xff]
    %v1132 = vld [vmem:[#allocation2 + $0x180] sm:$0xff]
    %v1133 = vld [vmem:[#allocation2 + $0x188] sm:$0xff]
    %v1134 = vld [vmem:[#allocation2 + $0x190] sm:$0xff]
    %v1135 = vld [vmem:[#allocation2 + $0x198] sm:$0xff]
    %v1136 = vld [vmem:[#allocation2 + $0x1a0] sm:$0xff]
    %v1137 = vld [vmem:[#allocation2 + $0x1a8] sm:$0xff]
    %v1138 = vld [vmem:[#allocation2 + $0x1b0] sm:$0xff]
    %v1139 = vld [vmem:[#allocation2 + $0x1b8] sm:$0xff]
    %v1140 = vld [vmem:[#allocation2 + $0x1c0] sm:$0xff]
    %v1141 = vld [vmem:[#allocation2 + $0x1c8] sm:$0xff]
    %v1142 = vld [vmem:[#allocation2 + $0x1d0] sm:$0xff]
    %v1143 = vld [vmem:[#allocation2 + $0x1d8] sm:$0xff]
    %v1144 = vld [vmem:[#allocation2 + $0x1e0] sm:$0xff]
    %v1145 = vld [vmem:[#allocation2 + $0x1e8] sm:$0xff]
    %v1146 = vld [vmem:[#allocation2 + $0x1f0] sm:$0xff]
    %v1147 = vld [vmem:[#allocation2 + $0x1f8] sm:$0xff]
    %v1148 = vld [vmem:[#allocation2 + $0x200] sm:$0xff]
    %v1149 = vld [vmem:[#allocation2 + $0x208] sm:$0xff]
    %v1150 = vld [vmem:[#allocation2 + $0x210] sm:$0xff]
    %v1151 = vld [vmem:[#allocation2 + $0x218] sm:$0xff]
    %v1152 = vld [vmem:[#allocation2 + $0x220] sm:$0xff]
    %v1153 = vld [vmem:[#allocation2 + $0x228] sm:$0xff]
    %v1154 = vld [vmem:[#allocation2 + $0x230] sm:$0xff]
    %v1155 = vld [vmem:[#allocation2 + $0x238] sm:$0xff]
    %v1156 = vld [vmem:[#allocation2 + $0x240] sm:$0xff]
    %v1157 = vld [vmem:[#allocation2 + $0x248] sm:$0xff]
    %v1158 = vld [vmem:[#allocation2 + $0x250] sm:$0xff]
    %v1159 = vld [vmem:[#allocation2 + $0x258] sm:$0xff]
    %v1160 = vld [vmem:[#allocation2 + $0x260] sm:$0xff]
    %v1161 = vld [vmem:[#allocation2 + $0x268] sm:$0xff]
    %v1162 = vld [vmem:[#allocation2 + $0x270] sm:$0xff]
    %v1163 = vld [vmem:[#allocation2 + $0x278] sm:$0xff]
    %v1164 = vld [vmem:[#allocation2 + $0x280] sm:$0xff]
    %v1165 = vld [vmem:[#allocation2 + $0x288] sm:$0xff]
    %v1166 = vld [vmem:[#allocation2 + $0x290] sm:$0xff]
    %v1167 = vld [vmem:[#allocation2 + $0x298] sm:$0xff]
    %v1168 = vld [vmem:[#allocation2 + $0x2a0] sm:$0xff]
    %v1169 = vld [vmem:[#allocation2 + $0x2a8] sm:$0xff]
    %v1170 = vld [vmem:[#allocation2 + $0x2b0] sm:$0xff]
    %v1171 = vld [vmem:[#allocation2 + $0x2b8] sm:$0xff]
    %v1172 = vld [vmem:[#allocation2 + $0x2c0] sm:$0xff]
    %v1173 = vld [vmem:[#allocation2 + $0x2c8] sm:$0xff]
    %v1174 = vld [vmem:[#allocation2 + $0x2d0] sm:$0xff]
    %v1175 = vld [vmem:[#allocation2 + $0x2d8] sm:$0xff]
    %v1176 = vld [vmem:[#allocation2 + $0x2e0] sm:$0xff]
    %v1177 = vld [vmem:[#allocation2 + $0x2e8] sm:$0xff]
    %v1178 = vld [vmem:[#allocation2 + $0x2f0] sm:$0xff]
    %v1179 = vld [vmem:[#allocation2 + $0x2f8] sm:$0xff]
    %v1180 = vld [vmem:[#allocation2 + $0x300] sm:$0xff]
    %v1181 = vld [vmem:[#allocation2 + $0x308] sm:$0xff]
    %v1182 = vld [vmem:[#allocation2 + $0x310] sm:$0xff]
    %v1183 = vld [vmem:[#allocation2 + $0x318] sm:$0xff]
    %v1184 = vld [vmem:[#allocation2 + $0x320] sm:$0xff]
    %v1185 = vld [vmem:[#allocation2 + $0x328] sm:$0xff]
    %v1186 = vld [vmem:[#allocation2 + $0x330] sm:$0xff]
    %v1187 = vld [vmem:[#allocation2 + $0x338] sm:$0xff]
    %v1188 = vld [vmem:[#allocation2 + $0x340] sm:$0xff]
    %v1189 = vld [vmem:[#allocation2 + $0x348] sm:$0xff]
    %v1190 = vld [vmem:[#allocation2 + $0x350] sm:$0xff]
    %v1191 = vld [vmem:[#allocation2 + $0x358] sm:$0xff]
    %v1192 = vld [vmem:[#allocation2 + $0x360] sm:$0xff]
    %v1193 = vld [vmem:[#allocation2 + $0x368] sm:$0xff]
    %v1194 = vld [vmem:[#allocation2 + $0x370] sm:$0xff]
    %v1195 = vld [vmem:[#allocation2 + $0x378] sm:$0xff]
    %v1196 = vld [vmem:[#allocation2 + $0x380] sm:$0xff]
    %v1197 = vld [vmem:[#allocation2 + $0x388] sm:$0xff]
    %v1198 = vld [vmem:[#allocation2 + $0x390] sm:$0xff]
    %v1199 = vld [vmem:[#allocation2 + $0x398] sm:$0xff]
    %v1200 = vld [vmem:[#allocation2 + $0x3a0] sm:$0xff]
    %v1201 = vld [vmem:[#allocation2 + $0x3a8] sm:$0xff]
    %v1202 = vld [vmem:[#allocation2 + $0x3b0] sm:$0xff]
    %v1203 = vld [vmem:[#allocation2 + $0x3b8] sm:$0xff]
    %v1204 = vld [vmem:[#allocation2 + $0x3c0] sm:$0xff]
    %v1205 = vld [vmem:[#allocation2 + $0x3c8] sm:$0xff]
    %v1206 = vld [vmem:[#allocation2 + $0x3d0] sm:$0xff]
    %v1207 = vld [vmem:[#allocation2 + $0x3d8] sm:$0xff]
    %v1208 = vld [vmem:[#allocation2 + $0x3e0] sm:$0xff]
    %v1209 = vld [vmem:[#allocation2 + $0x3e8] sm:$0xff]
    %v1210 = vld [vmem:[#allocation2 + $0x3f0] sm:$0xff]
    %v1211 = vld [vmem:[#allocation2 + $0x3f8] sm:$0xff]
    %v1212 = vld [vmem:[#allocation2 + $0x400] sm:$0xff]
    %v1213 = vld [vmem:[#allocation2 + $0x408] sm:$0xff]
    %v1214 = vld [vmem:[#allocation2 + $0x410] sm:$0xff]
    %v1215 = vld [vmem:[#allocation2 + $0x418] sm:$0xff]
    %v1216 = vld [vmem:[#allocation2 + $0x420] sm:$0xff]
    %v1217 = vld [vmem:[#allocation2 + $0x428] sm:$0xff]
    %v1218 = vld [vmem:[#allocation2 + $0x430] sm:$0xff]
    %v1219 = vld [vmem:[#allocation2 + $0x438] sm:$0xff]
    %v1220 = vld [vmem:[#allocation2 + $0x440] sm:$0xff]
    %v1221 = vld [vmem:[#allocation2 + $0x448] sm:$0xff]
    %v1222 = vld [vmem:[#allocation2 + $0x450] sm:$0xff]
    %v1223 = vld [vmem:[#allocation2 + $0x458] sm:$0xff]
    %v1224 = vld [vmem:[#allocation2 + $0x460] sm:$0xff]
    %v1225 = vld [vmem:[#allocation2 + $0x468] sm:$0xff]
    %v1226 = vld [vmem:[#allocation2 + $0x470] sm:$0xff]
    %v1227 = vld [vmem:[#allocation2 + $0x478] sm:$0xff]
    %v1228 = vld [vmem:[%s2] sm:$0xff]
    %v1229 = vld [vmem:[%s2 + $0x8] sm:$0xff]
    %v1230 = vld [vmem:[%s2 + $0x10] sm:$0xff]
    %v1231 = vld [vmem:[%s2 + $0x18] sm:$0xff]
    %1233 = vset.pattern.permute.xlu0 0
    %1234 = vperm.xlu0 %1233, %v1228
    %v1235 = vpop.permute.xlu0 %1234
    %1238 = vset.pattern.permute.xlu0 0
    %1239 = vperm.xlu0 %1238, %v1229
    %v1240 = vpop.permute.xlu0 %1239
    %1243 = vset.pattern.permute.xlu0 0
    %1244 = vperm.xlu0 %1243, %v1230
    %v1245 = vpop.permute.xlu0 %1244
    %1248 = vset.pattern.permute.xlu0 0
    %1249 = vperm.xlu0 %1248, %v1231
    %v1250 = vpop.permute.xlu0 %1249
    %v1260 = vunpack.c.l.b16 %v1076
    %v1261 = vunpack.c.h.b16 %v1076
    %v1262 = vunpack.c.l.b16 %v1077
    %v1263 = vunpack.c.l.b16 %v1078
    %v1264 = vunpack.c.h.b16 %v1078
    %v1265 = vunpack.c.l.b16 %v1079
    %v1266 = vunpack.c.l.b16 %v1080
    %v1267 = vunpack.c.h.b16 %v1080
    %v1268 = vunpack.c.l.b16 %v1081
    %v1269 = vunpack.c.l.b16 %v1082
    %v1270 = vunpack.c.h.b16 %v1082
    %v1271 = vunpack.c.l.b16 %v1083
    %v1272 = vpack.c.b16 %v1263, %v1260
    %v1273 = vpack.c.b16 %v1264, %v1261
    %v1274 = vpack.c.b16 %v1265, %v1262
    %v1275 = vpack.c.b16 %v1269, %v1266
    %v1276 = vpack.c.b16 %v1270, %v1267
    %v1277 = vpack.c.b16 %v1271, %v1268
    %v1426 = vunpack.c.l.b16 %v1084
    %v1427 = vunpack.c.h.b16 %v1084
    %v1428 = vunpack.c.l.b16 %v1085
    %v1429 = vunpack.c.h.b16 %v1085
    %v1430 = vunpack.c.l.b16 %v1086
    %v1431 = vunpack.c.h.b16 %v1086
    %v1432 = vunpack.c.l.b16 %v1087
    %v1433 = vunpack.c.h.b16 %v1087
    %v1434 = vunpack.c.l.b16 %v1088
    %v1435 = vunpack.c.h.b16 %v1088
    %v1436 = vunpack.c.l.b16 %v1089
    %v1437 = vunpack.c.h.b16 %v1089
    %v1438 = vunpack.c.l.b16 %v1090
    %v1439 = vunpack.c.h.b16 %v1090
    %v1440 = vunpack.c.l.b16 %v1091
    %v1441 = vunpack.c.h.b16 %v1091
    %v1442 = vunpack.c.l.b16 %v1092
    %v1443 = vunpack.c.h.b16 %v1092
    %v1444 = vunpack.c.l.b16 %v1093
    %v1445 = vunpack.c.h.b16 %v1093
    %v1446 = vunpack.c.l.b16 %v1094
    %v1447 = vunpack.c.h.b16 %v1094
    %v1448 = vunpack.c.l.b16 %v1095
    %v1449 = vunpack.c.h.b16 %v1095
    %v1450 = vunpack.c.l.b16 %v1096
    %v1451 = vunpack.c.h.b16 %v1096
    %v1452 = vunpack.c.l.b16 %v1097
    %v1453 = vunpack.c.h.b16 %v1097
    %v1454 = vunpack.c.l.b16 %v1098
    %v1455 = vunpack.c.h.b16 %v1098
    %v1456 = vunpack.c.l.b16 %v1099
    %v1457 = vunpack.c.h.b16 %v1099
    %v1458 = vunpack.c.l.b16 %v1100
    %v1459 = vunpack.c.h.b16 %v1100
    %v1460 = vunpack.c.l.b16 %v1101
    %v1461 = vunpack.c.h.b16 %v1101
    %v1462 = vunpack.c.l.b16 %v1102
    %v1463 = vunpack.c.h.b16 %v1102
    %v1464 = vunpack.c.l.b16 %v1103
    %v1465 = vunpack.c.h.b16 %v1103
    %v1466 = vunpack.c.l.b16 %v1104
    %v1467 = vunpack.c.h.b16 %v1104
    %v1468 = vunpack.c.l.b16 %v1105
    %v1469 = vunpack.c.h.b16 %v1105
    %v1470 = vunpack.c.l.b16 %v1106
    %v1471 = vunpack.c.h.b16 %v1106
    %v1472 = vunpack.c.l.b16 %v1107
    %v1473 = vunpack.c.h.b16 %v1107
    %v1474 = vunpack.c.l.b16 %v1108
    %v1475 = vunpack.c.h.b16 %v1108
    %v1476 = vunpack.c.l.b16 %v1109
    %v1477 = vunpack.c.h.b16 %v1109
    %v1478 = vunpack.c.l.b16 %v1110
    %v1479 = vunpack.c.h.b16 %v1110
    %v1480 = vunpack.c.l.b16 %v1111
    %v1481 = vunpack.c.h.b16 %v1111
    %v1482 = vunpack.c.l.b16 %v1112
    %v1483 = vunpack.c.h.b16 %v1112
    %v1484 = vunpack.c.l.b16 %v1113
    %v1485 = vunpack.c.h.b16 %v1113
    %v1486 = vunpack.c.l.b16 %v1114
    %v1487 = vunpack.c.h.b16 %v1114
    %v1488 = vunpack.c.l.b16 %v1115
    %v1489 = vunpack.c.h.b16 %v1115
    %v1490 = vunpack.c.l.b16 %v1116
    %v1491 = vunpack.c.h.b16 %v1116
    %v1492 = vunpack.c.l.b16 %v1117
    %v1493 = vunpack.c.h.b16 %v1117
    %v1494 = vunpack.c.l.b16 %v1118
    %v1495 = vunpack.c.h.b16 %v1118
    %v1496 = vunpack.c.l.b16 %v1119
    %v1497 = vunpack.c.h.b16 %v1119
    %v1498 = vunpack.c.l.b16 %v1120
    %v1499 = vunpack.c.h.b16 %v1120
    %v1500 = vunpack.c.l.b16 %v1121
    %v1501 = vunpack.c.h.b16 %v1121
    %v1502 = vunpack.c.l.b16 %v1122
    %v1503 = vunpack.c.h.b16 %v1122
    %v1504 = vunpack.c.l.b16 %v1123
    %v1505 = vunpack.c.h.b16 %v1123
    %v1506 = vunpack.c.l.b16 %v1124
    %v1507 = vunpack.c.h.b16 %v1124
    %v1508 = vunpack.c.l.b16 %v1125
    %v1509 = vunpack.c.h.b16 %v1125
    %v1510 = vunpack.c.l.b16 %v1126
    %v1511 = vunpack.c.h.b16 %v1126
    %v1512 = vunpack.c.l.b16 %v1127
    %v1513 = vunpack.c.h.b16 %v1127
    %v1514 = vunpack.c.l.b16 %v1128
    %v1515 = vunpack.c.h.b16 %v1128
    %v1516 = vunpack.c.l.b16 %v1129
    %v1517 = vunpack.c.h.b16 %v1129
    %v1518 = vunpack.c.l.b16 %v1130
    %v1519 = vunpack.c.h.b16 %v1130
    %v1520 = vunpack.c.l.b16 %v1131
    %v1521 = vunpack.c.h.b16 %v1131
    %v1522 = vunpack.c.l.b16 %v1132
    %v1523 = vunpack.c.h.b16 %v1132
    %v1524 = vunpack.c.l.b16 %v1133
    %v1525 = vunpack.c.h.b16 %v1133
    %v1526 = vunpack.c.l.b16 %v1134
    %v1527 = vunpack.c.h.b16 %v1134
    %v1528 = vunpack.c.l.b16 %v1135
    %v1529 = vunpack.c.h.b16 %v1135
    %v1530 = vunpack.c.l.b16 %v1136
    %v1531 = vunpack.c.h.b16 %v1136
    %v1532 = vunpack.c.l.b16 %v1137
    %v1533 = vunpack.c.h.b16 %v1137
    %v1534 = vunpack.c.l.b16 %v1138
    %v1535 = vunpack.c.h.b16 %v1138
    %v1536 = vunpack.c.l.b16 %v1139
    %v1537 = vunpack.c.h.b16 %v1139
    %v1538 = vunpack.c.l.b16 %v1140
    %v1539 = vunpack.c.h.b16 %v1140
    %v1540 = vunpack.c.l.b16 %v1141
    %v1541 = vunpack.c.h.b16 %v1141
    %v1542 = vunpack.c.l.b16 %v1142
    %v1543 = vunpack.c.h.b16 %v1142
    %v1544 = vunpack.c.l.b16 %v1143
    %v1545 = vunpack.c.h.b16 %v1143
    %v1546 = vunpack.c.l.b16 %v1144
    %v1547 = vunpack.c.h.b16 %v1144
    %v1548 = vunpack.c.l.b16 %v1145
    %v1549 = vunpack.c.h.b16 %v1145
    %v1550 = vunpack.c.l.b16 %v1146
    %v1551 = vunpack.c.h.b16 %v1146
    %v1552 = vunpack.c.l.b16 %v1147
    %v1553 = vunpack.c.h.b16 %v1147
    %v1554 = vunpack.c.l.b16 %v1148
    %v1555 = vunpack.c.h.b16 %v1148
    %v1556 = vunpack.c.l.b16 %v1149
    %v1557 = vunpack.c.h.b16 %v1149
    %v1558 = vunpack.c.l.b16 %v1150
    %v1559 = vunpack.c.h.b16 %v1150
    %v1560 = vunpack.c.l.b16 %v1151
    %v1561 = vunpack.c.h.b16 %v1151
    %v1562 = vunpack.c.l.b16 %v1152
    %v1563 = vunpack.c.h.b16 %v1152
    %v1564 = vunpack.c.l.b16 %v1153
    %v1565 = vunpack.c.h.b16 %v1153
    %v1566 = vunpack.c.l.b16 %v1154
    %v1567 = vunpack.c.h.b16 %v1154
    %v1568 = vunpack.c.l.b16 %v1155
    %v1569 = vunpack.c.h.b16 %v1155
    %v1570 = vunpack.c.l.b16 %v1156
    %v1571 = vunpack.c.h.b16 %v1156
    %v1572 = vunpack.c.l.b16 %v1157
    %v1573 = vunpack.c.h.b16 %v1157
    %v1574 = vunpack.c.l.b16 %v1158
    %v1575 = vunpack.c.h.b16 %v1158
    %v1576 = vunpack.c.l.b16 %v1159
    %v1577 = vunpack.c.h.b16 %v1159
    %v1578 = vunpack.c.l.b16 %v1160
    %v1579 = vunpack.c.h.b16 %v1160
    %v1580 = vunpack.c.l.b16 %v1161
    %v1581 = vunpack.c.h.b16 %v1161
    %v1582 = vunpack.c.l.b16 %v1162
    %v1583 = vunpack.c.h.b16 %v1162
    %v1584 = vunpack.c.l.b16 %v1163
    %v1585 = vunpack.c.h.b16 %v1163
    %v1586 = vunpack.c.l.b16 %v1164
    %v1587 = vunpack.c.h.b16 %v1164
    %v1588 = vunpack.c.l.b16 %v1165
    %v1589 = vunpack.c.h.b16 %v1165
    %v1590 = vunpack.c.l.b16 %v1166
    %v1591 = vunpack.c.h.b16 %v1166
    %v1592 = vunpack.c.l.b16 %v1167
    %v1593 = vunpack.c.h.b16 %v1167
    %v1594 = vunpack.c.l.b16 %v1168
    %v1595 = vunpack.c.h.b16 %v1168
    %v1596 = vunpack.c.l.b16 %v1169
    %v1597 = vunpack.c.h.b16 %v1169
    %v1598 = vunpack.c.l.b16 %v1170
    %v1599 = vunpack.c.h.b16 %v1170
    %v1600 = vunpack.c.l.b16 %v1171
    %v1601 = vunpack.c.h.b16 %v1171
    %v1602 = vunpack.c.l.b16 %v1172
    %v1603 = vunpack.c.h.b16 %v1172
    %v1604 = vunpack.c.l.b16 %v1173
    %v1605 = vunpack.c.h.b16 %v1173
    %v1606 = vunpack.c.l.b16 %v1174
    %v1607 = vunpack.c.h.b16 %v1174
    %v1608 = vunpack.c.l.b16 %v1175
    %v1609 = vunpack.c.h.b16 %v1175
    %v1610 = vunpack.c.l.b16 %v1176
    %v1611 = vunpack.c.h.b16 %v1176
    %v1612 = vunpack.c.l.b16 %v1177
    %v1613 = vunpack.c.h.b16 %v1177
    %v1614 = vunpack.c.l.b16 %v1178
    %v1615 = vunpack.c.h.b16 %v1178
    %v1616 = vunpack.c.l.b16 %v1179
    %v1617 = vunpack.c.h.b16 %v1179
    %v1618 = vunpack.c.l.b16 %v1180
    %v1619 = vunpack.c.h.b16 %v1180
    %v1620 = vunpack.c.l.b16 %v1181
    %v1621 = vunpack.c.h.b16 %v1181
    %v1622 = vunpack.c.l.b16 %v1182
    %v1623 = vunpack.c.h.b16 %v1182
    %v1624 = vunpack.c.l.b16 %v1183
    %v1625 = vunpack.c.h.b16 %v1183
    %v1626 = vunpack.c.l.b16 %v1184
    %v1627 = vunpack.c.h.b16 %v1184
    %v1628 = vunpack.c.l.b16 %v1185
    %v1629 = vunpack.c.h.b16 %v1185
    %v1630 = vunpack.c.l.b16 %v1186
    %v1631 = vunpack.c.h.b16 %v1186
    %v1632 = vunpack.c.l.b16 %v1187
    %v1633 = vunpack.c.h.b16 %v1187
    %v1634 = vunpack.c.l.b16 %v1188
    %v1635 = vunpack.c.h.b16 %v1188
    %v1636 = vunpack.c.l.b16 %v1189
    %v1637 = vunpack.c.h.b16 %v1189
    %v1638 = vunpack.c.l.b16 %v1190
    %v1639 = vunpack.c.h.b16 %v1190
    %v1640 = vunpack.c.l.b16 %v1191
    %v1641 = vunpack.c.h.b16 %v1191
    %v1642 = vunpack.c.l.b16 %v1192
    %v1643 = vunpack.c.h.b16 %v1192
    %v1644 = vunpack.c.l.b16 %v1193
    %v1645 = vunpack.c.h.b16 %v1193
    %v1646 = vunpack.c.l.b16 %v1194
    %v1647 = vunpack.c.h.b16 %v1194
    %v1648 = vunpack.c.l.b16 %v1195
    %v1649 = vunpack.c.h.b16 %v1195
    %v1650 = vunpack.c.l.b16 %v1196
    %v1651 = vunpack.c.h.b16 %v1196
    %v1652 = vunpack.c.l.b16 %v1197
    %v1653 = vunpack.c.h.b16 %v1197
    %v1654 = vunpack.c.l.b16 %v1198
    %v1655 = vunpack.c.h.b16 %v1198
    %v1656 = vunpack.c.l.b16 %v1199
    %v1657 = vunpack.c.h.b16 %v1199
    %v1658 = vunpack.c.l.b16 %v1200
    %v1659 = vunpack.c.h.b16 %v1200
    %v1660 = vunpack.c.l.b16 %v1201
    %v1661 = vunpack.c.h.b16 %v1201
    %v1662 = vunpack.c.l.b16 %v1202
    %v1663 = vunpack.c.h.b16 %v1202
    %v1664 = vunpack.c.l.b16 %v1203
    %v1665 = vunpack.c.h.b16 %v1203
    %v1666 = vunpack.c.l.b16 %v1204
    %v1667 = vunpack.c.h.b16 %v1204
    %v1668 = vunpack.c.l.b16 %v1205
    %v1669 = vunpack.c.h.b16 %v1205
    %v1670 = vunpack.c.l.b16 %v1206
    %v1671 = vunpack.c.h.b16 %v1206
    %v1672 = vunpack.c.l.b16 %v1207
    %v1673 = vunpack.c.h.b16 %v1207
    %v1674 = vunpack.c.l.b16 %v1208
    %v1675 = vunpack.c.h.b16 %v1208
    %v1676 = vunpack.c.l.b16 %v1209
    %v1677 = vunpack.c.h.b16 %v1209
    %v1678 = vunpack.c.l.b16 %v1210
    %v1679 = vunpack.c.h.b16 %v1210
    %v1680 = vunpack.c.l.b16 %v1211
    %v1681 = vunpack.c.h.b16 %v1211
    %v1682 = vunpack.c.l.b16 %v1212
    %v1683 = vunpack.c.h.b16 %v1212
    %v1684 = vunpack.c.l.b16 %v1213
    %v1685 = vunpack.c.h.b16 %v1213
    %v1686 = vunpack.c.l.b16 %v1214
    %v1687 = vunpack.c.h.b16 %v1214
    %v1688 = vunpack.c.l.b16 %v1215
    %v1689 = vunpack.c.h.b16 %v1215
    %v1690 = vunpack.c.l.b16 %v1216
    %v1691 = vunpack.c.h.b16 %v1216
    %v1692 = vunpack.c.l.b16 %v1217
    %v1693 = vunpack.c.h.b16 %v1217
    %v1694 = vunpack.c.l.b16 %v1218
    %v1695 = vunpack.c.h.b16 %v1218
    %v1696 = vunpack.c.l.b16 %v1219
    %v1697 = vunpack.c.h.b16 %v1219
    %v1698 = vunpack.c.l.b16 %v1220
    %v1699 = vunpack.c.h.b16 %v1220
    %v1700 = vunpack.c.l.b16 %v1221
    %v1701 = vunpack.c.h.b16 %v1221
    %v1702 = vunpack.c.l.b16 %v1222
    %v1703 = vunpack.c.h.b16 %v1222
    %v1704 = vunpack.c.l.b16 %v1223
    %v1705 = vunpack.c.h.b16 %v1223
    %v1706 = vunpack.c.l.b16 %v1224
    %v1707 = vunpack.c.h.b16 %v1224
    %v1708 = vunpack.c.l.b16 %v1225
    %v1709 = vunpack.c.h.b16 %v1225
    %v1710 = vunpack.c.l.b16 %v1226
    %v1711 = vunpack.c.h.b16 %v1226
    %v1712 = vunpack.c.l.b16 %v1227
    %v1713 = vunpack.c.h.b16 %v1227
    %v1714 = vpack.c.b16 %v1434, %v1426
    %v1715 = vpack.c.b16 %v1435, %v1427
    %v1716 = vpack.c.b16 %v1436, %v1428
    %v1717 = vpack.c.b16 %v1437, %v1429
    %v1718 = vpack.c.b16 %v1438, %v1430
    %v1719 = vpack.c.b16 %v1439, %v1431
    %v1720 = vpack.c.b16 %v1440, %v1432
    %v1721 = vpack.c.b16 %v1441, %v1433
    %v1722 = vpack.c.b16 %v1450, %v1442
    %v1723 = vpack.c.b16 %v1451, %v1443
    %v1724 = vpack.c.b16 %v1452, %v1444
    %v1725 = vpack.c.b16 %v1453, %v1445
    %v1726 = vpack.c.b16 %v1454, %v1446
    %v1727 = vpack.c.b16 %v1455, %v1447
    %v1728 = vpack.c.b16 %v1456, %v1448
    %v1729 = vpack.c.b16 %v1457, %v1449
    %v1730 = vpack.c.b16 %v1466, %v1458
    %v1731 = vpack.c.b16 %v1467, %v1459
    %v1732 = vpack.c.b16 %v1468, %v1460
    %v1733 = vpack.c.b16 %v1469, %v1461
    %v1734 = vpack.c.b16 %v1470, %v1462
    %v1735 = vpack.c.b16 %v1471, %v1463
    %v1736 = vpack.c.b16 %v1472, %v1464
    %v1737 = vpack.c.b16 %v1473, %v1465
    %v1738 = vpack.c.b16 %v1482, %v1474
    %v1739 = vpack.c.b16 %v1483, %v1475
    %v1740 = vpack.c.b16 %v1484, %v1476
    %v1741 = vpack.c.b16 %v1485, %v1477
    %v1742 = vpack.c.b16 %v1486, %v1478
    %v1743 = vpack.c.b16 %v1487, %v1479
    %v1744 = vpack.c.b16 %v1488, %v1480
    %v1745 = vpack.c.b16 %v1489, %v1481
    %v1746 = vpack.c.b16 %v1498, %v1490
    %v1747 = vpack.c.b16 %v1499, %v1491
    %v1748 = vpack.c.b16 %v1500, %v1492
    %v1749 = vpack.c.b16 %v1501, %v1493
    %v1750 = vpack.c.b16 %v1502, %v1494
    %v1751 = vpack.c.b16 %v1503, %v1495
    %v1752 = vpack.c.b16 %v1504, %v1496
    %v1753 = vpack.c.b16 %v1505, %v1497
    %v1754 = vpack.c.b16 %v1514, %v1506
    %v1755 = vpack.c.b16 %v1515, %v1507
    %v1756 = vpack.c.b16 %v1516, %v1508
    %v1757 = vpack.c.b16 %v1517, %v1509
    %v1758 = vpack.c.b16 %v1518, %v1510
    %v1759 = vpack.c.b16 %v1519, %v1511
    %v1760 = vpack.c.b16 %v1520, %v1512
    %v1761 = vpack.c.b16 %v1521, %v1513
    %v1762 = vpack.c.b16 %v1530, %v1522
    %v1763 = vpack.c.b16 %v1531, %v1523
    %v1764 = vpack.c.b16 %v1532, %v1524
    %v1765 = vpack.c.b16 %v1533, %v1525
    %v1766 = vpack.c.b16 %v1534, %v1526
    %v1767 = vpack.c.b16 %v1535, %v1527
    %v1768 = vpack.c.b16 %v1536, %v1528
    %v1769 = vpack.c.b16 %v1537, %v1529
    %v1770 = vpack.c.b16 %v1546, %v1538
    %v1771 = vpack.c.b16 %v1547, %v1539
    %v1772 = vpack.c.b16 %v1548, %v1540
    %v1773 = vpack.c.b16 %v1549, %v1541
    %v1774 = vpack.c.b16 %v1550, %v1542
    %v1775 = vpack.c.b16 %v1551, %v1543
    %v1776 = vpack.c.b16 %v1552, %v1544
    %v1777 = vpack.c.b16 %v1553, %v1545
    %v1778 = vpack.c.b16 %v1562, %v1554
    %v1779 = vpack.c.b16 %v1563, %v1555
    %v1780 = vpack.c.b16 %v1564, %v1556
    %v1781 = vpack.c.b16 %v1565, %v1557
    %v1782 = vpack.c.b16 %v1566, %v1558
    %v1783 = vpack.c.b16 %v1567, %v1559
    %v1784 = vpack.c.b16 %v1568, %v1560
    %v1785 = vpack.c.b16 %v1569, %v1561
    %v1786 = vpack.c.b16 %v1578, %v1570
    %v1787 = vpack.c.b16 %v1579, %v1571
    %v1788 = vpack.c.b16 %v1580, %v1572
    %v1789 = vpack.c.b16 %v1581, %v1573
    %v1790 = vpack.c.b16 %v1582, %v1574
    %v1791 = vpack.c.b16 %v1583, %v1575
    %v1792 = vpack.c.b16 %v1584, %v1576
    %v1793 = vpack.c.b16 %v1585, %v1577
    %v1794 = vpack.c.b16 %v1594, %v1586
    %v1795 = vpack.c.b16 %v1595, %v1587
    %v1796 = vpack.c.b16 %v1596, %v1588
    %v1797 = vpack.c.b16 %v1597, %v1589
    %v1798 = vpack.c.b16 %v1598, %v1590
    %v1799 = vpack.c.b16 %v1599, %v1591
    %v1800 = vpack.c.b16 %v1600, %v1592
    %v1801 = vpack.c.b16 %v1601, %v1593
    %v1802 = vpack.c.b16 %v1610, %v1602
    %v1803 = vpack.c.b16 %v1611, %v1603
    %v1804 = vpack.c.b16 %v1612, %v1604
    %v1805 = vpack.c.b16 %v1613, %v1605
    %v1806 = vpack.c.b16 %v1614, %v1606
    %v1807 = vpack.c.b16 %v1615, %v1607
    %v1808 = vpack.c.b16 %v1616, %v1608
    %v1809 = vpack.c.b16 %v1617, %v1609
    %v1810 = vpack.c.b16 %v1626, %v1618
    %v1811 = vpack.c.b16 %v1627, %v1619
    %v1812 = vpack.c.b16 %v1628, %v1620
    %v1813 = vpack.c.b16 %v1629, %v1621
    %v1814 = vpack.c.b16 %v1630, %v1622
    %v1815 = vpack.c.b16 %v1631, %v1623
    %v1816 = vpack.c.b16 %v1632, %v1624
    %v1817 = vpack.c.b16 %v1633, %v1625
    %v1818 = vpack.c.b16 %v1642, %v1634
    %v1819 = vpack.c.b16 %v1643, %v1635
    %v1820 = vpack.c.b16 %v1644, %v1636
    %v1821 = vpack.c.b16 %v1645, %v1637
    %v1822 = vpack.c.b16 %v1646, %v1638
    %v1823 = vpack.c.b16 %v1647, %v1639
    %v1824 = vpack.c.b16 %v1648, %v1640
    %v1825 = vpack.c.b16 %v1649, %v1641
    %v1826 = vpack.c.b16 %v1658, %v1650
    %v1827 = vpack.c.b16 %v1659, %v1651
    %v1828 = vpack.c.b16 %v1660, %v1652
    %v1829 = vpack.c.b16 %v1661, %v1653
    %v1830 = vpack.c.b16 %v1662, %v1654
    %v1831 = vpack.c.b16 %v1663, %v1655
    %v1832 = vpack.c.b16 %v1664, %v1656
    %v1833 = vpack.c.b16 %v1665, %v1657
    %v1834 = vpack.c.b16 %v1674, %v1666
    %v1835 = vpack.c.b16 %v1675, %v1667
    %v1836 = vpack.c.b16 %v1676, %v1668
    %v1837 = vpack.c.b16 %v1677, %v1669
    %v1838 = vpack.c.b16 %v1678, %v1670
    %v1839 = vpack.c.b16 %v1679, %v1671
    %v1840 = vpack.c.b16 %v1680, %v1672
    %v1841 = vpack.c.b16 %v1681, %v1673
    %v1842 = vpack.c.b16 %v1690, %v1682
    %v1843 = vpack.c.b16 %v1691, %v1683
    %v1844 = vpack.c.b16 %v1692, %v1684
    %v1845 = vpack.c.b16 %v1693, %v1685
    %v1846 = vpack.c.b16 %v1694, %v1686
    %v1847 = vpack.c.b16 %v1695, %v1687
    %v1848 = vpack.c.b16 %v1696, %v1688
    %v1849 = vpack.c.b16 %v1697, %v1689
    %v1850 = vpack.c.b16 %v1706, %v1698
    %v1851 = vpack.c.b16 %v1707, %v1699
    %v1852 = vpack.c.b16 %v1708, %v1700
    %v1853 = vpack.c.b16 %v1709, %v1701
    %v1854 = vpack.c.b16 %v1710, %v1702
    %v1855 = vpack.c.b16 %v1711, %v1703
    %v1856 = vpack.c.b16 %v1712, %v1704
    %v1857 = vpack.c.b16 %v1713, %v1705
    %vm2002 = vcmask 261120
    %v2004 = vsel %vm2002, %v1274, 0
    %v2007 = vsel %vm2002, %v1277, 0
    %2009 = vmatpush.bf16.msra.mxu0 %v1770
    %2010 = vmatpush.bf16.msra.mxu0 %v1762
    %2011 = vmatpush.bf16.msra.mxu0 %v1754
    %2012 = vmatpush.bf16.msra.mxu0 %v1746
    %2013 = vmatpush.bf16.msra.mxu0 %v1738
    %2014 = vmatpush.bf16.msra.mxu0 %v1730
    %2015 = vmatpush.bf16.msra.mxu0 %v1722
    %2016 = vmatpush.bf16.msra.mxu0 %v1714
    %2017 = vmatmul.bf16.gmra.mxu0 %v1272
    %v2018 = vpop.f32.mrf.mxu0
    %v2019 = vadd.f32 %v1235, %v2018
    %v2020 = vpop.f32.mrf.mxu0
    %v2021 = vadd.f32 %v1240, %v2020
    %2022 = vmatmul.bf16.gmra.mxu0 %v1275
    %v2023 = vpop.f32.mrf.mxu0
    %v2024 = vadd.f32 %v1245, %v2023
    %v2025 = vpop.f32.mrf.mxu0
    %v2026 = vadd.f32 %v1250, %v2025
    %2027 = vdwg.mxu0
    %2028 = vmatpush.bf16.msra.mxu0 %v1834
    %2029 = vmatpush.bf16.msra.mxu0 %v1826
    %2030 = vmatpush.bf16.msra.mxu0 %v1818
    %2031 = vmatpush.bf16.msra.mxu0 %v1810
    %2032 = vmatpush.bf16.msra.mxu0 %v1802
    %2033 = vmatpush.bf16.msra.mxu0 %v1794
    %2034 = vmatpush.bf16.msra.mxu0 %v1786
    %2035 = vmatpush.bf16.msra.mxu0 %v1778
    %2036 = vmatmul.bf16.gmra.mxu0 %v1273
    %v2037 = vpop.f32.mrf.mxu0
    %v2038 = vadd.f32 %v2019, %v2037
    %v2039 = vpop.f32.mrf.mxu0
    %v2040 = vadd.f32 %v2021, %v2039
    %2041 = vmatmul.bf16.gmra.mxu0 %v1276
    %v2042 = vpop.f32.mrf.mxu0
    %v2043 = vadd.f32 %v2024, %v2042
    %v2044 = vpop.f32.mrf.mxu0
    %v2045 = vadd.f32 %v2026, %v2044
    %2046 = vdwg.mxu0
    %2047 = vmatpush.bf16.msra.mxu0 0
    %2048 = vmatpush.bf16.msra.mxu0 0
    %2049 = vmatpush.bf16.msra.mxu0 0
    %2050 = vmatpush.bf16.msra.mxu0 0
    %2051 = vmatpush.bf16.msra.mxu0 0
    %2052 = vmatpush.bf16.msra.mxu0 0
    %2053 = vmatpush.bf16.msra.mxu0 %v1850
    %2054 = vmatpush.bf16.msra.mxu0 %v1842
    %2055 = vmatmul.bf16.gmra.mxu0 %v2004
    %v2056 = vpop.f32.mrf.mxu0
    %v2057 = vadd.f32 %v2038, %v2056
    %v2058 = vpop.f32.mrf.mxu0
    %v2059 = vadd.f32 %v2040, %v2058
    %2060 = vmatmul.bf16.gmra.mxu0 %v2007
    %v2061 = vpop.f32.mrf.mxu0
    %v2062 = vadd.f32 %v2043, %v2061
    %v2063 = vpop.f32.mrf.mxu0
    %v2064 = vadd.f32 %v2045, %v2063
    %2065 = vdwg.mxu0
    %2066 = vmatpush.bf16.msra.mxu0 %v1771
    %2067 = vmatpush.bf16.msra.mxu0 %v1763
    %2068 = vmatpush.bf16.msra.mxu0 %v1755
    %2069 = vmatpush.bf16.msra.mxu0 %v1747
    %2070 = vmatpush.bf16.msra.mxu0 %v1739
    %2071 = vmatpush.bf16.msra.mxu0 %v1731
    %2072 = vmatpush.bf16.msra.mxu0 %v1723
    %2073 = vmatpush.bf16.msra.mxu0 %v1715
    %2074 = vmatmul.bf16.gmra.mxu0 %v1272
    %v2075 = vpop.f32.mrf.mxu0
    %v2076 = vadd.f32 %v1235, %v2075
    %v2077 = vpop.f32.mrf.mxu0
    %v2078 = vadd.f32 %v1240, %v2077
    %2079 = vmatmul.bf16.gmra.mxu0 %v1275
    %v2080 = vpop.f32.mrf.mxu0
    %v2081 = vadd.f32 %v1245, %v2080
    %v2082 = vpop.f32.mrf.mxu0
    %v2083 = vadd.f32 %v1250, %v2082
    %2084 = vdwg.mxu0
    %2085 = vmatpush.bf16.msra.mxu0 %v1835
    %2086 = vmatpush.bf16.msra.mxu0 %v1827
    %2087 = vmatpush.bf16.msra.mxu0 %v1819
    %2088 = vmatpush.bf16.msra.mxu0 %v1811
    %2089 = vmatpush.bf16.msra.mxu0 %v1803
    %2090 = vmatpush.bf16.msra.mxu0 %v1795
    %2091 = vmatpush.bf16.msra.mxu0 %v1787
    %2092 = vmatpush.bf16.msra.mxu0 %v1779
    %2093 = vmatmul.bf16.gmra.mxu0 %v1273
    %v2094 = vpop.f32.mrf.mxu0
    %v2095 = vadd.f32 %v2076, %v2094
    %v2096 = vpop.f32.mrf.mxu0
    %v2097 = vadd.f32 %v2078, %v2096
    %2098 = vmatmul.bf16.gmra.mxu0 %v1276
    %v2099 = vpop.f32.mrf.mxu0
    %v2100 = vadd.f32 %v2081, %v2099
    %v2101 = vpop.f32.mrf.mxu0
    %v2102 = vadd.f32 %v2083, %v2101
    %2103 = vdwg.mxu0
    %2104 = vmatpush.bf16.msra.mxu0 0
    %2105 = vmatpush.bf16.msra.mxu0 0
    %2106 = vmatpush.bf16.msra.mxu0 0
    %2107 = vmatpush.bf16.msra.mxu0 0
    %2108 = vmatpush.bf16.msra.mxu0 0
    %2109 = vmatpush.bf16.msra.mxu0 0
    %2110 = vmatpush.bf16.msra.mxu0 %v1851
    %2111 = vmatpush.bf16.msra.mxu0 %v1843
    %2112 = vmatmul.bf16.gmra.mxu0 %v2004
    %v2113 = vpop.f32.mrf.mxu0
    %v2114 = vadd.f32 %v2095, %v2113
    %v2115 = vpop.f32.mrf.mxu0
    %v2116 = vadd.f32 %v2097, %v2115
    %2117 = vmatmul.bf16.gmra.mxu0 %v2007
    %v2118 = vpop.f32.mrf.mxu0
    %v2119 = vadd.f32 %v2100, %v2118
    %v2120 = vpop.f32.mrf.mxu0
    %v2121 = vadd.f32 %v2102, %v2120
    %2122 = vdwg.mxu0
    %2123 = vmatpush.bf16.msra.mxu0 %v1772
    %2124 = vmatpush.bf16.msra.mxu0 %v1764
    %2125 = vmatpush.bf16.msra.mxu0 %v1756
    %2126 = vmatpush.bf16.msra.mxu0 %v1748
    %2127 = vmatpush.bf16.msra.mxu0 %v1740
    %2128 = vmatpush.bf16.msra.mxu0 %v1732
    %2129 = vmatpush.bf16.msra.mxu0 %v1724
    %2130 = vmatpush.bf16.msra.mxu0 %v1716
    %2131 = vmatmul.bf16.gmra.mxu0 %v1272
    %v2132 = vpop.f32.mrf.mxu0
    %v2133 = vadd.f32 %v1235, %v2132
    %v2134 = vpop.f32.mrf.mxu0
    %v2135 = vadd.f32 %v1240, %v2134
    %2136 = vmatmul.bf16.gmra.mxu0 %v1275
    %v2137 = vpop.f32.mrf.mxu0
    %v2138 = vadd.f32 %v1245, %v2137
    %v2139 = vpop.f32.mrf.mxu0
    %v2140 = vadd.f32 %v1250, %v2139
    %2141 = vdwg.mxu0
    %2142 = vmatpush.bf16.msra.mxu0 %v1836
    %2143 = vmatpush.bf16.msra.mxu0 %v1828
    %2144 = vmatpush.bf16.msra.mxu0 %v1820
    %2145 = vmatpush.bf16.msra.mxu0 %v1812
    %2146 = vmatpush.bf16.msra.mxu0 %v1804
    %2147 = vmatpush.bf16.msra.mxu0 %v1796
    %2148 = vmatpush.bf16.msra.mxu0 %v1788
    %2149 = vmatpush.bf16.msra.mxu0 %v1780
    %2150 = vmatmul.bf16.gmra.mxu0 %v1273
    %v2151 = vpop.f32.mrf.mxu0
    %v2152 = vadd.f32 %v2133, %v2151
    %v2153 = vpop.f32.mrf.mxu0
    %v2154 = vadd.f32 %v2135, %v2153
    %2155 = vmatmul.bf16.gmra.mxu0 %v1276
    %v2156 = vpop.f32.mrf.mxu0
    %v2157 = vadd.f32 %v2138, %v2156
    %v2158 = vpop.f32.mrf.mxu0
    %v2159 = vadd.f32 %v2140, %v2158
    %2160 = vdwg.mxu0
    %2161 = vmatpush.bf16.msra.mxu0 0
    %2162 = vmatpush.bf16.msra.mxu0 0
    %2163 = vmatpush.bf16.msra.mxu0 0
    %2164 = vmatpush.bf16.msra.mxu0 0
    %2165 = vmatpush.bf16.msra.mxu0 0
    %2166 = vmatpush.bf16.msra.mxu0 0
    %2167 = vmatpush.bf16.msra.mxu0 %v1852
    %2168 = vmatpush.bf16.msra.mxu0 %v1844
    %2169 = vmatmul.bf16.gmra.mxu0 %v2004
    %v2170 = vpop.f32.mrf.mxu0
    %v2171 = vadd.f32 %v2152, %v2170
    %v2172 = vpop.f32.mrf.mxu0
    %v2173 = vadd.f32 %v2154, %v2172
    %2174 = vmatmul.bf16.gmra.mxu0 %v2007
    %v2175 = vpop.f32.mrf.mxu0
    %v2176 = vadd.f32 %v2157, %v2175
    %v2177 = vpop.f32.mrf.mxu0
    %v2178 = vadd.f32 %v2159, %v2177
    %2179 = vdwg.mxu0
    %2180 = vmatpush.bf16.msra.mxu0 %v1773
    %2181 = vmatpush.bf16.msra.mxu0 %v1765
    %2182 = vmatpush.bf16.msra.mxu0 %v1757
    %2183 = vmatpush.bf16.msra.mxu0 %v1749
    %2184 = vmatpush.bf16.msra.mxu0 %v1741
    %2185 = vmatpush.bf16.msra.mxu0 %v1733
    %2186 = vmatpush.bf16.msra.mxu0 %v1725
    %2187 = vmatpush.bf16.msra.mxu0 %v1717
    %2188 = vmatmul.bf16.gmra.mxu0 %v1272
    %v2189 = vpop.f32.mrf.mxu0
    %v2190 = vadd.f32 %v1235, %v2189
    %v2191 = vpop.f32.mrf.mxu0
    %v2192 = vadd.f32 %v1240, %v2191
    %2193 = vmatmul.bf16.gmra.mxu0 %v1275
    %v2194 = vpop.f32.mrf.mxu0
    %v2195 = vadd.f32 %v1245, %v2194
    %v2196 = vpop.f32.mrf.mxu0
    %v2197 = vadd.f32 %v1250, %v2196
    %2198 = vdwg.mxu0
    %2199 = vmatpush.bf16.msra.mxu0 %v1837
    %2200 = vmatpush.bf16.msra.mxu0 %v1829
    %2201 = vmatpush.bf16.msra.mxu0 %v1821
    %2202 = vmatpush.bf16.msra.mxu0 %v1813
    %2203 = vmatpush.bf16.msra.mxu0 %v1805
    %2204 = vmatpush.bf16.msra.mxu0 %v1797
    %2205 = vmatpush.bf16.msra.mxu0 %v1789
    %2206 = vmatpush.bf16.msra.mxu0 %v1781
    %2207 = vmatmul.bf16.gmra.mxu0 %v1273
    %v2208 = vpop.f32.mrf.mxu0
    %v2209 = vadd.f32 %v2190, %v2208
    %v2210 = vpop.f32.mrf.mxu0
    %v2211 = vadd.f32 %v2192, %v2210
    %2212 = vmatmul.bf16.gmra.mxu0 %v1276
    %v2213 = vpop.f32.mrf.mxu0
    %v2214 = vadd.f32 %v2195, %v2213
    %v2215 = vpop.f32.mrf.mxu0
    %v2216 = vadd.f32 %v2197, %v2215
    %2217 = vdwg.mxu0
    %2218 = vmatpush.bf16.msra.mxu0 0
    %2219 = vmatpush.bf16.msra.mxu0 0
    %2220 = vmatpush.bf16.msra.mxu0 0
    %2221 = vmatpush.bf16.msra.mxu0 0
    %2222 = vmatpush.bf16.msra.mxu0 0
    %2223 = vmatpush.bf16.msra.mxu0 0
    %2224 = vmatpush.bf16.msra.mxu0 %v1853
    %2225 = vmatpush.bf16.msra.mxu0 %v1845
    %2226 = vmatmul.bf16.gmra.mxu0 %v2004
    %v2227 = vpop.f32.mrf.mxu0
    %v2228 = vadd.f32 %v2209, %v2227
    %v2229 = vpop.f32.mrf.mxu0
    %v2230 = vadd.f32 %v2211, %v2229
    %2231 = vmatmul.bf16.gmra.mxu0 %v2007
    %v2232 = vpop.f32.mrf.mxu0
    %v2233 = vadd.f32 %v2214, %v2232
    %v2234 = vpop.f32.mrf.mxu0
    %v2235 = vadd.f32 %v2216, %v2234
    %2236 = vdwg.mxu0
    %2237 = vmatpush.bf16.msra.mxu0 %v1774
    %2238 = vmatpush.bf16.msra.mxu0 %v1766
    %2239 = vmatpush.bf16.msra.mxu0 %v1758
    %2240 = vmatpush.bf16.msra.mxu0 %v1750
    %2241 = vmatpush.bf16.msra.mxu0 %v1742
    %2242 = vmatpush.bf16.msra.mxu0 %v1734
    %2243 = vmatpush.bf16.msra.mxu0 %v1726
    %2244 = vmatpush.bf16.msra.mxu0 %v1718
    %2245 = vmatmul.bf16.gmra.mxu0 %v1272
    %v2246 = vpop.f32.mrf.mxu0
    %v2247 = vadd.f32 %v1235, %v2246
    %v2248 = vpop.f32.mrf.mxu0
    %v2249 = vadd.f32 %v1240, %v2248
    %2250 = vmatmul.bf16.gmra.mxu0 %v1275
    %v2251 = vpop.f32.mrf.mxu0
    %v2252 = vadd.f32 %v1245, %v2251
    %v2253 = vpop.f32.mrf.mxu0
    %v2254 = vadd.f32 %v1250, %v2253
    %2255 = vdwg.mxu0
    %2256 = vmatpush.bf16.msra.mxu0 %v1838
    %2257 = vmatpush.bf16.msra.mxu0 %v1830
    %2258 = vmatpush.bf16.msra.mxu0 %v1822
    %2259 = vmatpush.bf16.msra.mxu0 %v1814
    %2260 = vmatpush.bf16.msra.mxu0 %v1806
    %2261 = vmatpush.bf16.msra.mxu0 %v1798
    %2262 = vmatpush.bf16.msra.mxu0 %v1790
    %2263 = vmatpush.bf16.msra.mxu0 %v1782
    %2264 = vmatmul.bf16.gmra.mxu0 %v1273
    %v2265 = vpop.f32.mrf.mxu0
    %v2266 = vadd.f32 %v2247, %v2265
    %v2267 = vpop.f32.mrf.mxu0
    %v2268 = vadd.f32 %v2249, %v2267
    %2269 = vmatmul.bf16.gmra.mxu0 %v1276
    %v2270 = vpop.f32.mrf.mxu0
    %v2271 = vadd.f32 %v2252, %v2270
    %v2272 = vpop.f32.mrf.mxu0
    %v2273 = vadd.f32 %v2254, %v2272
    %2274 = vdwg.mxu0
    %2275 = vmatpush.bf16.msra.mxu0 0
    %2276 = vmatpush.bf16.msra.mxu0 0
    %2277 = vmatpush.bf16.msra.mxu0 0
    %2278 = vmatpush.bf16.msra.mxu0 0
    %2279 = vmatpush.bf16.msra.mxu0 0
    %2280 = vmatpush.bf16.msra.mxu0 0
    %2281 = vmatpush.bf16.msra.mxu0 %v1854
    %2282 = vmatpush.bf16.msra.mxu0 %v1846
    %2283 = vmatmul.bf16.gmra.mxu0 %v2004
    %v2284 = vpop.f32.mrf.mxu0
    %v2285 = vadd.f32 %v2266, %v2284
    %v2286 = vpop.f32.mrf.mxu0
    %v2287 = vadd.f32 %v2268, %v2286
    %2288 = vmatmul.bf16.gmra.mxu0 %v2007
    %v2289 = vpop.f32.mrf.mxu0
    %v2290 = vadd.f32 %v2271, %v2289
    %v2291 = vpop.f32.mrf.mxu0
    %v2292 = vadd.f32 %v2273, %v2291
    %2293 = vdwg.mxu0
    %2294 = vmatpush.bf16.msra.mxu0 %v1775
    %2295 = vmatpush.bf16.msra.mxu0 %v1767
    %2296 = vmatpush.bf16.msra.mxu0 %v1759
    %2297 = vmatpush.bf16.msra.mxu0 %v1751
    %2298 = vmatpush.bf16.msra.mxu0 %v1743
    %2299 = vmatpush.bf16.msra.mxu0 %v1735
    %2300 = vmatpush.bf16.msra.mxu0 %v1727
    %2301 = vmatpush.bf16.msra.mxu0 %v1719
    %2302 = vmatmul.bf16.gmra.mxu0 %v1272
    %v2303 = vpop.f32.mrf.mxu0
    %v2304 = vadd.f32 %v1235, %v2303
    %v2305 = vpop.f32.mrf.mxu0
    %v2306 = vadd.f32 %v1240, %v2305
    %2307 = vmatmul.bf16.gmra.mxu0 %v1275
    %v2308 = vpop.f32.mrf.mxu0
    %v2309 = vadd.f32 %v1245, %v2308
    %v2310 = vpop.f32.mrf.mxu0
    %v2311 = vadd.f32 %v1250, %v2310
    %2312 = vdwg.mxu0
    %2313 = vmatpush.bf16.msra.mxu0 %v1839
    %2314 = vmatpush.bf16.msra.mxu0 %v1831
    %2315 = vmatpush.bf16.msra.mxu0 %v1823
    %2316 = vmatpush.bf16.msra.mxu0 %v1815
    %2317 = vmatpush.bf16.msra.mxu0 %v1807
    %2318 = vmatpush.bf16.msra.mxu0 %v1799
    %2319 = vmatpush.bf16.msra.mxu0 %v1791
    %2320 = vmatpush.bf16.msra.mxu0 %v1783
    %2321 = vmatmul.bf16.gmra.mxu0 %v1273
    %v2322 = vpop.f32.mrf.mxu0
    %v2323 = vadd.f32 %v2304, %v2322
    %v2324 = vpop.f32.mrf.mxu0
    %v2325 = vadd.f32 %v2306, %v2324
    %2326 = vmatmul.bf16.gmra.mxu0 %v1276
    %v2327 = vpop.f32.mrf.mxu0
    %v2328 = vadd.f32 %v2309, %v2327
    %v2329 = vpop.f32.mrf.mxu0
    %v2330 = vadd.f32 %v2311, %v2329
    %2331 = vdwg.mxu0
    %2332 = vmatpush.bf16.msra.mxu0 0
    %2333 = vmatpush.bf16.msra.mxu0 0
    %2334 = vmatpush.bf16.msra.mxu0 0
    %2335 = vmatpush.bf16.msra.mxu0 0
    %2336 = vmatpush.bf16.msra.mxu0 0
    %2337 = vmatpush.bf16.msra.mxu0 0
    %2338 = vmatpush.bf16.msra.mxu0 %v1855
    %2339 = vmatpush.bf16.msra.mxu0 %v1847
    %2340 = vmatmul.bf16.gmra.mxu0 %v2004
    %v2341 = vpop.f32.mrf.mxu0
    %v2342 = vadd.f32 %v2323, %v2341
    %v2343 = vpop.f32.mrf.mxu0
    %v2344 = vadd.f32 %v2325, %v2343
    %2345 = vmatmul.bf16.gmra.mxu0 %v2007
    %v2346 = vpop.f32.mrf.mxu0
    %v2347 = vadd.f32 %v2328, %v2346
    %v2348 = vpop.f32.mrf.mxu0
    %v2349 = vadd.f32 %v2330, %v2348
    %2350 = vdwg.mxu0
    %2351 = vmatpush.bf16.msra.mxu0 %v1776
    %2352 = vmatpush.bf16.msra.mxu0 %v1768
    %2353 = vmatpush.bf16.msra.mxu0 %v1760
    %2354 = vmatpush.bf16.msra.mxu0 %v1752
    %2355 = vmatpush.bf16.msra.mxu0 %v1744
    %2356 = vmatpush.bf16.msra.mxu0 %v1736
    %2357 = vmatpush.bf16.msra.mxu0 %v1728
    %2358 = vmatpush.bf16.msra.mxu0 %v1720
    %2359 = vmatmul.bf16.gmra.mxu0 %v1272
    %v2360 = vpop.f32.mrf.mxu0
    %v2361 = vadd.f32 %v1235, %v2360
    %v2362 = vpop.f32.mrf.mxu0
    %v2363 = vadd.f32 %v1240, %v2362
    %2364 = vmatmul.bf16.gmra.mxu0 %v1275
    %v2365 = vpop.f32.mrf.mxu0
    %v2366 = vadd.f32 %v1245, %v2365
    %v2367 = vpop.f32.mrf.mxu0
    %v2368 = vadd.f32 %v1250, %v2367
    %2369 = vdwg.mxu0
    %2370 = vmatpush.bf16.msra.mxu0 %v1840
    %2371 = vmatpush.bf16.msra.mxu0 %v1832
    %2372 = vmatpush.bf16.msra.mxu0 %v1824
    %2373 = vmatpush.bf16.msra.mxu0 %v1816
    %2374 = vmatpush.bf16.msra.mxu0 %v1808
    %2375 = vmatpush.bf16.msra.mxu0 %v1800
    %2376 = vmatpush.bf16.msra.mxu0 %v1792
    %2377 = vmatpush.bf16.msra.mxu0 %v1784
    %2378 = vmatmul.bf16.gmra.mxu0 %v1273
    %v2379 = vpop.f32.mrf.mxu0
    %v2380 = vadd.f32 %v2361, %v2379
    %v2381 = vpop.f32.mrf.mxu0
    %v2382 = vadd.f32 %v2363, %v2381
    %2383 = vmatmul.bf16.gmra.mxu0 %v1276
    %v2384 = vpop.f32.mrf.mxu0
    %v2385 = vadd.f32 %v2366, %v2384
    %v2386 = vpop.f32.mrf.mxu0
    %v2387 = vadd.f32 %v2368, %v2386
    %2388 = vdwg.mxu0
    %2389 = vmatpush.bf16.msra.mxu0 0
    %2390 = vmatpush.bf16.msra.mxu0 0
    %2391 = vmatpush.bf16.msra.mxu0 0
    %2392 = vmatpush.bf16.msra.mxu0 0
    %2393 = vmatpush.bf16.msra.mxu0 0
    %2394 = vmatpush.bf16.msra.mxu0 0
    %2395 = vmatpush.bf16.msra.mxu0 %v1856
    %2396 = vmatpush.bf16.msra.mxu0 %v1848
    %2397 = vmatmul.bf16.gmra.mxu0 %v2004
    %v2398 = vpop.f32.mrf.mxu0
    %v2399 = vadd.f32 %v2380, %v2398
    %v2400 = vpop.f32.mrf.mxu0
    %v2401 = vadd.f32 %v2382, %v2400
    %2402 = vmatmul.bf16.gmra.mxu0 %v2007
    %v2403 = vpop.f32.mrf.mxu0
    %v2404 = vadd.f32 %v2385, %v2403
    %v2405 = vpop.f32.mrf.mxu0
    %v2406 = vadd.f32 %v2387, %v2405
    %2407 = vdwg.mxu0
    %2408 = vmatpush.bf16.msra.mxu0 %v1777
    %2409 = vmatpush.bf16.msra.mxu0 %v1769
    %2410 = vmatpush.bf16.msra.mxu0 %v1761
    %2411 = vmatpush.bf16.msra.mxu0 %v1753
    %2412 = vmatpush.bf16.msra.mxu0 %v1745
    %2413 = vmatpush.bf16.msra.mxu0 %v1737
    %2414 = vmatpush.bf16.msra.mxu0 %v1729
    %2415 = vmatpush.bf16.msra.mxu0 %v1721
    %2416 = vmatmul.bf16.gmra.mxu0 %v1272
    %v2417 = vpop.f32.mrf.mxu0
    %v2418 = vadd.f32 %v1235, %v2417
    %v2419 = vpop.f32.mrf.mxu0
    %v2420 = vadd.f32 %v1240, %v2419
    %2421 = vmatmul.bf16.gmra.mxu0 %v1275
    %v2422 = vpop.f32.mrf.mxu0
    %v2423 = vadd.f32 %v1245, %v2422
    %v2424 = vpop.f32.mrf.mxu0
    %v2425 = vadd.f32 %v1250, %v2424
    %2426 = vdwg.mxu0
    %2427 = vmatpush.bf16.msra.mxu0 %v1841
    %2428 = vmatpush.bf16.msra.mxu0 %v1833
    %2429 = vmatpush.bf16.msra.mxu0 %v1825
    %2430 = vmatpush.bf16.msra.mxu0 %v1817
    %2431 = vmatpush.bf16.msra.mxu0 %v1809
    %2432 = vmatpush.bf16.msra.mxu0 %v1801
    %2433 = vmatpush.bf16.msra.mxu0 %v1793
    %2434 = vmatpush.bf16.msra.mxu0 %v1785
    %2435 = vmatmul.bf16.gmra.mxu0 %v1273
    %v2436 = vpop.f32.mrf.mxu0
    %v2437 = vadd.f32 %v2418, %v2436
    %v2438 = vpop.f32.mrf.mxu0
    %v2439 = vadd.f32 %v2420, %v2438
    %2440 = vmatmul.bf16.gmra.mxu0 %v1276
    %v2441 = vpop.f32.mrf.mxu0
    %v2442 = vadd.f32 %v2423, %v2441
    %v2443 = vpop.f32.mrf.mxu0
    %v2444 = vadd.f32 %v2425, %v2443
    %2445 = vdwg.mxu0
    %2446 = vmatpush.bf16.msra.mxu0 0
    %2447 = vmatpush.bf16.msra.mxu0 0
    %2448 = vmatpush.bf16.msra.mxu0 0
    %2449 = vmatpush.bf16.msra.mxu0 0
    %2450 = vmatpush.bf16.msra.mxu0 0
    %2451 = vmatpush.bf16.msra.mxu0 0
    %2452 = vmatpush.bf16.msra.mxu0 %v1857
    %2453 = vmatpush.bf16.msra.mxu0 %v1849
    %2454 = vmatmul.bf16.gmra.mxu0 %v2004
    %v2455 = vpop.f32.mrf.mxu0
    %v2456 = vadd.f32 %v2437, %v2455
    %v2457 = vpop.f32.mrf.mxu0
    %v2458 = vadd.f32 %v2439, %v2457
    %2459 = vmatmul.bf16.gmra.mxu0 %v2007
    %v2460 = vpop.f32.mrf.mxu0
    %v2461 = vadd.f32 %v2442, %v2460
    %v2462 = vpop.f32.mrf.mxu0
    %v2463 = vadd.f32 %v2444, %v2462
    %2464 = vdwg.mxu0
    %v2465 = vld [vmem:[%s3] ss:$4 sm:$0xff]
    %vm2466 = vcmp.gt.f32.partialorder %v2465, 0.5
    %v2467 = vsel %vm2466, 1, 0
    %v2468 = vperm.slane %v2467, 0
    %v2469 = vperm.slane %v2467, 1
    %v2470 = vperm.slane %v2467, 2
    %v2471 = vperm.slane %v2467, 3
    %v2472 = vperm.slane %v2467, 4
    %v2473 = vperm.slane %v2467, 5
    %v2474 = vperm.slane %v2467, 6
    %v2475 = vperm.slane %v2467, 7
    %vm2476 = vcmp.eq.s32.totalorder %v2468, 1
    %vm2477 = vcmp.eq.s32.totalorder %v2469, 1
    %vm2478 = vcmp.eq.s32.totalorder %v2470, 1
    %vm2479 = vcmp.eq.s32.totalorder %v2471, 1
    %vm2480 = vcmp.eq.s32.totalorder %v2472, 1
    %vm2481 = vcmp.eq.s32.totalorder %v2473, 1
    %vm2482 = vcmp.eq.s32.totalorder %v2474, 1
    %vm2483 = vcmp.eq.s32.totalorder %v2475, 1
    %v2484 = vsel %vm2476, %v2057, 0.0
    %v2485 = vsel %vm2477, %v2114, 0.0
    %v2486 = vsel %vm2478, %v2171, 0.0
    %v2487 = vsel %vm2479, %v2228, 0.0
    %v2488 = vsel %vm2480, %v2285, 0.0
    %v2489 = vsel %vm2481, %v2342, 0.0
    %v2490 = vsel %vm2482, %v2399, 0.0
    %v2491 = vsel %vm2483, %v2456, 0.0
    %v2492 = vsel %vm2476, %v2059, 0.0
    %v2493 = vsel %vm2477, %v2116, 0.0
    %v2494 = vsel %vm2478, %v2173, 0.0
    %v2495 = vsel %vm2479, %v2230, 0.0
    %v2496 = vsel %vm2480, %v2287, 0.0
    %v2497 = vsel %vm2481, %v2344, 0.0
    %v2498 = vsel %vm2482, %v2401, 0.0
    %v2499 = vsel %vm2483, %v2458, 0.0
    %v2500 = vsel %vm2476, %v2062, 0.0
    %v2501 = vsel %vm2477, %v2119, 0.0
    %v2502 = vsel %vm2478, %v2176, 0.0
    %v2503 = vsel %vm2479, %v2233, 0.0
    %v2504 = vsel %vm2480, %v2290, 0.0
    %v2505 = vsel %vm2481, %v2347, 0.0
    %v2506 = vsel %vm2482, %v2404, 0.0
    %v2507 = vsel %vm2483, %v2461, 0.0
    %v2508 = vsel %vm2476, %v2064, 0.0
    %v2509 = vsel %vm2477, %v2121, 0.0
    %v2510 = vsel %vm2478, %v2178, 0.0
    %v2511 = vsel %vm2479, %v2235, 0.0
    %v2512 = vsel %vm2480, %v2292, 0.0
    %v2513 = vsel %vm2481, %v2349, 0.0
    %v2514 = vsel %vm2482, %v2406, 0.0
    %v2515 = vsel %vm2483, %v2463, 0.0
    %v2516 = vadd.f32 %v2484, %v2485
    %v2517 = vadd.f32 %v2516, %v2486
    %v2518 = vadd.f32 %v2517, %v2487
    %v2519 = vadd.f32 %v2518, %v2488
    %v2520 = vadd.f32 %v2519, %v2489
    %v2521 = vadd.f32 %v2520, %v2490
    %v2522 = vadd.f32 %v2521, %v2491
    %2523 = vadd.xlane.f32.xlu0 %v2522
    %v2524 = vpop.xlane.xlu0 %2523
    %v2525 = vadd.f32 %v2492, %v2493
    %v2526 = vadd.f32 %v2525, %v2494
    %v2527 = vadd.f32 %v2526, %v2495
    %v2528 = vadd.f32 %v2527, %v2496
    %v2529 = vadd.f32 %v2528, %v2497
    %v2530 = vadd.f32 %v2529, %v2498
    %v2531 = vadd.f32 %v2530, %v2499
    %2532 = vadd.xlane.f32.xlu0 %v2531
    %v2533 = vpop.xlane.xlu0 %2532
    %v2534 = vadd.f32 %v2500, %v2501
    %v2535 = vadd.f32 %v2534, %v2502
    %v2536 = vadd.f32 %v2535, %v2503
    %v2537 = vadd.f32 %v2536, %v2504
    %v2538 = vadd.f32 %v2537, %v2505
    %v2539 = vadd.f32 %v2538, %v2506
    %v2540 = vadd.f32 %v2539, %v2507
    %2541 = vadd.xlane.f32.xlu0 %v2540
    %v2542 = vpop.xlane.xlu0 %2541
    %v2543 = vadd.f32 %v2508, %v2509
    %v2544 = vadd.f32 %v2543, %v2510
    %v2545 = vadd.f32 %v2544, %v2511
    %v2546 = vadd.f32 %v2545, %v2512
    %v2547 = vadd.f32 %v2546, %v2513
    %v2548 = vadd.f32 %v2547, %v2514
    %v2549 = vadd.f32 %v2548, %v2515
    %2550 = vadd.xlane.f32.xlu0 %v2549
    %v2551 = vpop.xlane.xlu0 %2550
    %v2552 = vmul.f32 %v2524, 0.0025510204
    %v2553 = vmul.f32 %v2533, 0.0025510204
    %v2554 = vmul.f32 %v2542, 0.0025510204
    %v2555 = vmul.f32 %v2551, 0.0025510204
    %v2556 = vsub.f32 %v2057, %v2552
    %v2557 = vsub.f32 %v2114, %v2552
    %v2558 = vsub.f32 %v2171, %v2552
    %v2559 = vsub.f32 %v2228, %v2552
    %v2560 = vsub.f32 %v2285, %v2552
    %v2561 = vsub.f32 %v2342, %v2552
    %v2562 = vsub.f32 %v2399, %v2552
    %v2563 = vsub.f32 %v2456, %v2552
    %v2564 = vsub.f32 %v2059, %v2553
    %v2565 = vsub.f32 %v2116, %v2553
    %v2566 = vsub.f32 %v2173, %v2553
    %v2567 = vsub.f32 %v2230, %v2553
    %v2568 = vsub.f32 %v2287, %v2553
    %v2569 = vsub.f32 %v2344, %v2553
    %v2570 = vsub.f32 %v2401, %v2553
    %v2571 = vsub.f32 %v2458, %v2553
    %v2572 = vsub.f32 %v2062, %v2554
    %v2573 = vsub.f32 %v2119, %v2554
    %v2574 = vsub.f32 %v2176, %v2554
    %v2575 = vsub.f32 %v2233, %v2554
    %v2576 = vsub.f32 %v2290, %v2554
    %v2577 = vsub.f32 %v2347, %v2554
    %v2578 = vsub.f32 %v2404, %v2554
    %v2579 = vsub.f32 %v2461, %v2554
    %v2580 = vsub.f32 %v2064, %v2555
    %v2581 = vsub.f32 %v2121, %v2555
    %v2582 = vsub.f32 %v2178, %v2555
    %v2583 = vsub.f32 %v2235, %v2555
    %v2584 = vsub.f32 %v2292, %v2555
    %v2585 = vsub.f32 %v2349, %v2555
    %v2586 = vsub.f32 %v2406, %v2555
    %v2587 = vsub.f32 %v2463, %v2555
    %v2588 = vsel %vm2476, %v2556, 0.0
    %v2589 = vsel %vm2477, %v2557, 0.0
    %v2590 = vsel %vm2478, %v2558, 0.0
    %v2591 = vsel %vm2479, %v2559, 0.0
    %v2592 = vsel %vm2480, %v2560, 0.0
    %v2593 = vsel %vm2481, %v2561, 0.0
    %v2594 = vsel %vm2482, %v2562, 0.0
    %v2595 = vsel %vm2483, %v2563, 0.0
    %v2596 = vsel %vm2476, %v2564, 0.0
    %v2597 = vsel %vm2477, %v2565, 0.0
    %v2598 = vsel %vm2478, %v2566, 0.0
    %v2599 = vsel %vm2479, %v2567, 0.0
    %v2600 = vsel %vm2480, %v2568, 0.0
    %v2601 = vsel %vm2481, %v2569, 0.0
    %v2602 = vsel %vm2482, %v2570, 0.0
    %v2603 = vsel %vm2483, %v2571, 0.0
    %v2604 = vsel %vm2476, %v2572, 0.0
    %v2605 = vsel %vm2477, %v2573, 0.0
    %v2606 = vsel %vm2478, %v2574, 0.0
    %v2607 = vsel %vm2479, %v2575, 0.0
    %v2608 = vsel %vm2480, %v2576, 0.0
    %v2609 = vsel %vm2481, %v2577, 0.0
    %v2610 = vsel %vm2482, %v2578, 0.0
    %v2611 = vsel %vm2483, %v2579, 0.0
    %v2612 = vsel %vm2476, %v2580, 0.0
    %v2613 = vsel %vm2477, %v2581, 0.0
    %v2614 = vsel %vm2478, %v2582, 0.0
    %v2615 = vsel %vm2479, %v2583, 0.0
    %v2616 = vsel %vm2480, %v2584, 0.0
    %v2617 = vsel %vm2481, %v2585, 0.0
    %v2618 = vsel %vm2482, %v2586, 0.0
    %v2619 = vsel %vm2483, %v2587, 0.0
    %v2620 = vmul.f32 %v2588, %v2588
    %v2621 = vmul.f32 %v2589, %v2589
    %v2622 = vmul.f32 %v2590, %v2590
    %v2623 = vmul.f32 %v2591, %v2591
    %v2624 = vmul.f32 %v2592, %v2592
    %v2625 = vmul.f32 %v2593, %v2593
    %v2626 = vmul.f32 %v2594, %v2594
    %v2627 = vmul.f32 %v2595, %v2595
    %v2628 = vmul.f32 %v2596, %v2596
    %v2629 = vmul.f32 %v2597, %v2597
    %v2630 = vmul.f32 %v2598, %v2598
    %v2631 = vmul.f32 %v2599, %v2599
    %v2632 = vmul.f32 %v2600, %v2600
    %v2633 = vmul.f32 %v2601, %v2601
    %v2634 = vmul.f32 %v2602, %v2602
    %v2635 = vmul.f32 %v2603, %v2603
    %v2636 = vmul.f32 %v2604, %v2604
    %v2637 = vmul.f32 %v2605, %v2605
    %v2638 = vmul.f32 %v2606, %v2606
    %v2639 = vmul.f32 %v2607, %v2607
    %v2640 = vmul.f32 %v2608, %v2608
    %v2641 = vmul.f32 %v2609, %v2609
    %v2642 = vmul.f32 %v2610, %v2610
    %v2643 = vmul.f32 %v2611, %v2611
    %v2644 = vmul.f32 %v2612, %v2612
    %v2645 = vmul.f32 %v2613, %v2613
    %v2646 = vmul.f32 %v2614, %v2614
    %v2647 = vmul.f32 %v2615, %v2615
    %v2648 = vmul.f32 %v2616, %v2616
    %v2649 = vmul.f32 %v2617, %v2617
    %v2650 = vmul.f32 %v2618, %v2618
    %v2651 = vmul.f32 %v2619, %v2619
    %v2652 = vadd.f32 %v2620, %v2621
    %v2653 = vadd.f32 %v2652, %v2622
    %v2654 = vadd.f32 %v2653, %v2623
    %v2655 = vadd.f32 %v2654, %v2624
    %v2656 = vadd.f32 %v2655, %v2625
    %v2657 = vadd.f32 %v2656, %v2626
    %v2658 = vadd.f32 %v2657, %v2627
    %2659 = vadd.xlane.f32.xlu0 %v2658
    %v2660 = vpop.xlane.xlu0 %2659
    %v2661 = vadd.f32 %v2628, %v2629
    %v2662 = vadd.f32 %v2661, %v2630
    %v2663 = vadd.f32 %v2662, %v2631
    %v2664 = vadd.f32 %v2663, %v2632
    %v2665 = vadd.f32 %v2664, %v2633
    %v2666 = vadd.f32 %v2665, %v2634
    %v2667 = vadd.f32 %v2666, %v2635
    %2668 = vadd.xlane.f32.xlu0 %v2667
    %v2669 = vpop.xlane.xlu0 %2668
    %v2670 = vadd.f32 %v2636, %v2637
    %v2671 = vadd.f32 %v2670, %v2638
    %v2672 = vadd.f32 %v2671, %v2639
    %v2673 = vadd.f32 %v2672, %v2640
    %v2674 = vadd.f32 %v2673, %v2641
    %v2675 = vadd.f32 %v2674, %v2642
    %v2676 = vadd.f32 %v2675, %v2643
    %2677 = vadd.xlane.f32.xlu0 %v2676
    %v2678 = vpop.xlane.xlu0 %2677
    %v2679 = vadd.f32 %v2644, %v2645
    %v2680 = vadd.f32 %v2679, %v2646
    %v2681 = vadd.f32 %v2680, %v2647
    %v2682 = vadd.f32 %v2681, %v2648
    %v2683 = vadd.f32 %v2682, %v2649
    %v2684 = vadd.f32 %v2683, %v2650
    %v2685 = vadd.f32 %v2684, %v2651
    %2686 = vadd.xlane.f32.xlu0 %v2685
    %v2687 = vpop.xlane.xlu0 %2686
    %v2688 = vmul.f32 %v2660, 0.0025510204
    %v2689 = vmul.f32 %v2669, 0.0025510204
    %v2690 = vmul.f32 %v2678, 0.0025510204
    %v2691 = vmul.f32 %v2687, 0.0025510204
    %s2692 = scalar_lea.vmem %s2, 32
    %v2693 = vld [vmem:[%s2692] sm:$0xff]
    %v2694 = vld [vmem:[%s2692 + $0x8] sm:$0xff]
    %v2695 = vld [vmem:[%s2692 + $0x10] sm:$0xff]
    %v2696 = vld [vmem:[%s2692 + $0x18] sm:$0xff]
    %v2697 = vadd.f32 %v2688, 1e-05
    %v2698 = vadd.f32 %v2689, 1e-05
    %v2699 = vadd.f32 %v2690, 1e-05
    %v2700 = vadd.f32 %v2691, 1e-05
    %v2701 = vrsqrt.pop %v2697
    %v2702 = vmul.f32 %v2701, %v2697
    %v2703 = vmul.f32 %v2702, %v2701
    %v2704 = vmul.f32 0.5, %v2703
    %v2705 = vsub.f32 1.5, %v2704
    %v2706 = vmul.f32 %v2701, %v2705
    %vm2707 = vweird.f32 %v2697
    %vm2708 = vweird.f32 %v2701
    %vm2709 = vmor %vm2707, %vm2708
    %v2710 = vsel %vm2709, %v2701, %v2706
    %v2711 = vrsqrt.pop %v2698
    %v2712 = vmul.f32 %v2711, %v2698
    %v2713 = vmul.f32 %v2712, %v2711
    %v2714 = vmul.f32 0.5, %v2713
    %v2715 = vsub.f32 1.5, %v2714
    %v2716 = vmul.f32 %v2711, %v2715
    %vm2717 = vweird.f32 %v2698
    %vm2718 = vweird.f32 %v2711
    %vm2719 = vmor %vm2717, %vm2718
    %v2720 = vsel %vm2719, %v2711, %v2716
    %v2721 = vrsqrt.pop %v2699
    %v2722 = vmul.f32 %v2721, %v2699
    %v2723 = vmul.f32 %v2722, %v2721
    %v2724 = vmul.f32 0.5, %v2723
    %v2725 = vsub.f32 1.5, %v2724
    %v2726 = vmul.f32 %v2721, %v2725
    %vm2727 = vweird.f32 %v2699
    %vm2728 = vweird.f32 %v2721
    %vm2729 = vmor %vm2727, %vm2728
    %v2730 = vsel %vm2729, %v2721, %v2726
    %v2731 = vrsqrt.pop %v2700
    %v2732 = vmul.f32 %v2731, %v2700
    %v2733 = vmul.f32 %v2732, %v2731
    %v2734 = vmul.f32 0.5, %v2733
    %v2735 = vsub.f32 1.5, %v2734
    %v2736 = vmul.f32 %v2731, %v2735
    %vm2737 = vweird.f32 %v2700
    %vm2738 = vweird.f32 %v2731
    %vm2739 = vmor %vm2737, %vm2738
    %v2740 = vsel %vm2739, %v2731, %v2736
    %v2741 = vmul.f32 %v2693, %v2710
    %v2742 = vmul.f32 %v2694, %v2720
    %v2743 = vmul.f32 %v2695, %v2730
    %v2744 = vmul.f32 %v2696, %v2740
    %2746 = vset.pattern.permute.xlu0 0
    %2747 = vperm.xlu0 %2746, %v2741
    %v2748 = vpop.permute.xlu0 %2747
    %2751 = vset.pattern.permute.xlu0 0
    %2752 = vperm.xlu0 %2751, %v2742
    %v2753 = vpop.permute.xlu0 %2752
    %2756 = vset.pattern.permute.xlu0 0
    %2757 = vperm.xlu0 %2756, %v2743
    %v2758 = vpop.permute.xlu0 %2757
    %2761 = vset.pattern.permute.xlu0 0
    %2762 = vperm.xlu0 %2761, %v2744
    %v2763 = vpop.permute.xlu0 %2762
    %v2765 = vmul.f32 %v2556, %v2748
    %v2766 = vmul.f32 %v2557, %v2748
    %v2767 = vmul.f32 %v2558, %v2748
    %v2768 = vmul.f32 %v2559, %v2748
    %v2769 = vmul.f32 %v2560, %v2748
    %v2770 = vmul.f32 %v2561, %v2748
    %v2771 = vmul.f32 %v2562, %v2748
    %v2772 = vmul.f32 %v2563, %v2748
    %v2773 = vmul.f32 %v2564, %v2753
    %v2774 = vmul.f32 %v2565, %v2753
    %v2775 = vmul.f32 %v2566, %v2753
    %v2776 = vmul.f32 %v2567, %v2753
    %v2777 = vmul.f32 %v2568, %v2753
    %v2778 = vmul.f32 %v2569, %v2753
    %v2779 = vmul.f32 %v2570, %v2753
    %v2780 = vmul.f32 %v2571, %v2753
    %v2781 = vmul.f32 %v2572, %v2758
    %v2782 = vmul.f32 %v2573, %v2758
    %v2783 = vmul.f32 %v2574, %v2758
    %v2784 = vmul.f32 %v2575, %v2758
    %v2785 = vmul.f32 %v2576, %v2758
    %v2786 = vmul.f32 %v2577, %v2758
    %v2787 = vmul.f32 %v2578, %v2758
    %v2788 = vmul.f32 %v2579, %v2758
    %v2789 = vmul.f32 %v2580, %v2763
    %v2790 = vmul.f32 %v2581, %v2763
    %v2791 = vmul.f32 %v2582, %v2763
    %v2792 = vmul.f32 %v2583, %v2763
    %v2793 = vmul.f32 %v2584, %v2763
    %v2794 = vmul.f32 %v2585, %v2763
    %v2795 = vmul.f32 %v2586, %v2763
    %v2796 = vmul.f32 %v2587, %v2763
    %s2797 = scalar_lea.vmem %s2, 64
    %v2798 = vld [vmem:[%s2797] sm:$0xff]
    %v2799 = vld [vmem:[%s2797 + $0x8] sm:$0xff]
    %v2800 = vld [vmem:[%s2797 + $0x10] sm:$0xff]
    %v2801 = vld [vmem:[%s2797 + $0x18] sm:$0xff]
    %2803 = vset.pattern.permute.xlu0 0
    %2804 = vperm.xlu0 %2803, %v2798
    %v2805 = vpop.permute.xlu0 %2804
    %2808 = vset.pattern.permute.xlu0 0
    %2809 = vperm.xlu0 %2808, %v2799
    %v2810 = vpop.permute.xlu0 %2809
    %2813 = vset.pattern.permute.xlu0 0
    %2814 = vperm.xlu0 %2813, %v2800
    %v2815 = vpop.permute.xlu0 %2814
    %2818 = vset.pattern.permute.xlu0 0
    %2819 = vperm.xlu0 %2818, %v2801
    %v2820 = vpop.permute.xlu0 %2819
    %v2822 = vadd.f32 %v2765, %v2805
    %v2823 = vadd.f32 %v2766, %v2805
    %v2824 = vadd.f32 %v2767, %v2805
    %v2825 = vadd.f32 %v2768, %v2805
    %v2826 = vadd.f32 %v2769, %v2805
    %v2827 = vadd.f32 %v2770, %v2805
    %v2828 = vadd.f32 %v2771, %v2805
    %v2829 = vadd.f32 %v2772, %v2805
    %v2830 = vadd.f32 %v2773, %v2810
    %v2831 = vadd.f32 %v2774, %v2810
    %v2832 = vadd.f32 %v2775, %v2810
    %v2833 = vadd.f32 %v2776, %v2810
    %v2834 = vadd.f32 %v2777, %v2810
    %v2835 = vadd.f32 %v2778, %v2810
    %v2836 = vadd.f32 %v2779, %v2810
    %v2837 = vadd.f32 %v2780, %v2810
    %v2838 = vadd.f32 %v2781, %v2815
    %v2839 = vadd.f32 %v2782, %v2815
    %v2840 = vadd.f32 %v2783, %v2815
    %v2841 = vadd.f32 %v2784, %v2815
    %v2842 = vadd.f32 %v2785, %v2815
    %v2843 = vadd.f32 %v2786, %v2815
    %v2844 = vadd.f32 %v2787, %v2815
    %v2845 = vadd.f32 %v2788, %v2815
    %v2846 = vadd.f32 %v2789, %v2820
    %v2847 = vadd.f32 %v2790, %v2820
    %v2848 = vadd.f32 %v2791, %v2820
    %v2849 = vadd.f32 %v2792, %v2820
    %v2850 = vadd.f32 %v2793, %v2820
    %v2851 = vadd.f32 %v2794, %v2820
    %v2852 = vadd.f32 %v2795, %v2820
    %v2853 = vadd.f32 %v2796, %v2820
    %v2854 = vmul.f32 %v2822, 0.2
    %v2855 = vmul.f32 %v2823, 0.2
    %v2856 = vmul.f32 %v2824, 0.2
    %v2857 = vmul.f32 %v2825, 0.2
    %v2858 = vmul.f32 %v2826, 0.2
    %v2859 = vmul.f32 %v2827, 0.2
    %v2860 = vmul.f32 %v2828, 0.2
    %v2861 = vmul.f32 %v2829, 0.2
    %v2862 = vmul.f32 %v2830, 0.2
    %v2863 = vmul.f32 %v2831, 0.2
    %v2864 = vmul.f32 %v2832, 0.2
    %v2865 = vmul.f32 %v2833, 0.2
    %v2866 = vmul.f32 %v2834, 0.2
    %v2867 = vmul.f32 %v2835, 0.2
    %v2868 = vmul.f32 %v2836, 0.2
    %v2869 = vmul.f32 %v2837, 0.2
    %v2870 = vmul.f32 %v2838, 0.2
    %v2871 = vmul.f32 %v2839, 0.2
    %v2872 = vmul.f32 %v2840, 0.2
    %v2873 = vmul.f32 %v2841, 0.2
    %v2874 = vmul.f32 %v2842, 0.2
    %v2875 = vmul.f32 %v2843, 0.2
    %v2876 = vmul.f32 %v2844, 0.2
    %v2877 = vmul.f32 %v2845, 0.2
    %v2878 = vmul.f32 %v2846, 0.2
    %v2879 = vmul.f32 %v2847, 0.2
    %v2880 = vmul.f32 %v2848, 0.2
    %v2881 = vmul.f32 %v2849, 0.2
    %v2882 = vmul.f32 %v2850, 0.2
    %v2883 = vmul.f32 %v2851, 0.2
    %v2884 = vmul.f32 %v2852, 0.2
    %v2885 = vmul.f32 %v2853, 0.2
    %v2886 = vmax.f32 %v2822, %v2854
    %v2887 = vmax.f32 %v2823, %v2855
    %v2888 = vmax.f32 %v2824, %v2856
    %v2889 = vmax.f32 %v2825, %v2857
    %v2890 = vmax.f32 %v2826, %v2858
    %v2891 = vmax.f32 %v2827, %v2859
    %v2892 = vmax.f32 %v2828, %v2860
    %v2893 = vmax.f32 %v2829, %v2861
    %v2894 = vmax.f32 %v2830, %v2862
    %v2895 = vmax.f32 %v2831, %v2863
    %v2896 = vmax.f32 %v2832, %v2864
    %v2897 = vmax.f32 %v2833, %v2865
    %v2898 = vmax.f32 %v2834, %v2866
    %v2899 = vmax.f32 %v2835, %v2867
    %v2900 = vmax.f32 %v2836, %v2868
    %v2901 = vmax.f32 %v2837, %v2869
    %v2902 = vmax.f32 %v2838, %v2870
    %v2903 = vmax.f32 %v2839, %v2871
    %v2904 = vmax.f32 %v2840, %v2872
    %v2905 = vmax.f32 %v2841, %v2873
    %v2906 = vmax.f32 %v2842, %v2874
    %v2907 = vmax.f32 %v2843, %v2875
    %v2908 = vmax.f32 %v2844, %v2876
    %v2909 = vmax.f32 %v2845, %v2877
    %v2910 = vmax.f32 %v2846, %v2878
    %v2911 = vmax.f32 %v2847, %v2879
    %v2912 = vmax.f32 %v2848, %v2880
    %v2913 = vmax.f32 %v2849, %v2881
    %v2914 = vmax.f32 %v2850, %v2882
    %v2915 = vmax.f32 %v2851, %v2883
    %v2916 = vmax.f32 %v2852, %v2884
    %v2917 = vmax.f32 %v2853, %v2885
    %v2918 = vpack.c.bf16 %v2887, %v2886
    %v2919 = vpack.c.bf16 %v2889, %v2888
    %v2920 = vpack.c.bf16 %v2891, %v2890
    %v2921 = vpack.c.bf16 %v2893, %v2892
    %v2922 = vpack.c.bf16 %v2895, %v2894
    %v2923 = vpack.c.bf16 %v2897, %v2896
    %v2924 = vpack.c.bf16 %v2899, %v2898
    %v2925 = vpack.c.bf16 %v2901, %v2900
    %v2926 = vpack.c.bf16 %v2903, %v2902
    %v2927 = vpack.c.bf16 %v2905, %v2904
    %v2928 = vpack.c.bf16 %v2907, %v2906
    %v2929 = vpack.c.bf16 %v2909, %v2908
    %v2930 = vpack.c.bf16 %v2911, %v2910
    %v2931 = vpack.c.bf16 %v2913, %v2912
    %v2932 = vpack.c.bf16 %v2915, %v2914
    %v2933 = vpack.c.bf16 %v2917, %v2916
    %2934 = vst [vmem:[#allocation2] sm:$0xff] %v2918
    %2935 = vst [vmem:[#allocation2 + $0x8] sm:$0xff] %v2919
    %2936 = vst [vmem:[#allocation2 + $0x10] sm:$0xff] %v2920
    %2937 = vst [vmem:[#allocation2 + $0x18] sm:$0xf] %v2921
    %2938 = vst [vmem:[#allocation2 + $0x20] sm:$0xff] %v2922
    %2939 = vst [vmem:[#allocation2 + $0x28] sm:$0xff] %v2923
    %2940 = vst [vmem:[#allocation2 + $0x30] sm:$0xff] %v2924
    %2941 = vst [vmem:[#allocation2 + $0x38] sm:$0xf] %v2925
    %2942 = vst [vmem:[#allocation2 + $0x40] sm:$0xff] %v2926
    %2943 = vst [vmem:[#allocation2 + $0x48] sm:$0xff] %v2927
    %2944 = vst [vmem:[#allocation2 + $0x50] sm:$0xff] %v2928
    %2945 = vst [vmem:[#allocation2 + $0x58] sm:$0xf] %v2929
    %2946 = vst [vmem:[#allocation2 + $0x60] sm:$0xff] %v2930
    %2947 = vst [vmem:[#allocation2 + $0x68] sm:$0xff] %v2931
    %2948 = vst [vmem:[#allocation2 + $0x70] sm:$0xff] %v2932
    %2949 = vst [vmem:[#allocation2 + $0x78] sm:$0xf] %v2933
    %2966 = vrot.lane.b32.xlu0 %v2918, 127
    %v2967 = vpop.permute.xlu0 %2966
    %2968 = vrot.lane.b32.xlu0 %v2919, 127
    %v2969 = vpop.permute.xlu0 %2968
    %2970 = vrot.lane.b32.xlu0 %v2920, 127
    %v2971 = vpop.permute.xlu0 %2970
    %2972 = vrot.lane.b32.xlu0 %v2921, 127
    %v2973 = vpop.permute.xlu0 %2972
    %2974 = vrot.lane.b32.xlu0 %v2922, 127
    %v2975 = vpop.permute.xlu0 %2974
    %2976 = vrot.lane.b32.xlu0 %v2923, 127
    %v2977 = vpop.permute.xlu0 %2976
    %2978 = vrot.lane.b32.xlu0 %v2924, 127
    %v2979 = vpop.permute.xlu0 %2978
    %2980 = vrot.lane.b32.xlu0 %v2925, 127
    %v2981 = vpop.permute.xlu0 %2980
    %2982 = vrot.lane.b32.xlu0 %v2926, 127
    %v2983 = vpop.permute.xlu0 %2982
    %2984 = vrot.lane.b32.xlu0 %v2927, 127
    %v2985 = vpop.permute.xlu0 %2984
    %2986 = vrot.lane.b32.xlu0 %v2928, 127
    %v2987 = vpop.permute.xlu0 %2986
    %2988 = vrot.lane.b32.xlu0 %v2929, 127
    %v2989 = vpop.permute.xlu0 %2988
    %2990 = vrot.lane.b32.xlu0 %v2930, 127
    %v2991 = vpop.permute.xlu0 %2990
    %2992 = vrot.lane.b32.xlu0 %v2931, 127
    %v2993 = vpop.permute.xlu0 %2992
    %2994 = vrot.lane.b32.xlu0 %v2932, 127
    %v2995 = vpop.permute.xlu0 %2994
    %2996 = vrot.lane.b32.xlu0 %v2933, 127
    %v2997 = vpop.permute.xlu0 %2996
    %v2998 = vrot.slane %v2967, 4
    %v2999 = vrot.slane %v2969, 4
    %v3000 = vrot.slane %v2971, 4
    %v3001 = vrot.slane %v2973, 4
    %v3002 = vrot.slane %v2975, 4
    %v3003 = vrot.slane %v2977, 4
    %v3004 = vrot.slane %v2979, 4
    %v3005 = vrot.slane %v2981, 4
    %v3006 = vrot.slane %v2983, 4
    %v3007 = vrot.slane %v2985, 4
    %v3008 = vrot.slane %v2987, 4
    %v3009 = vrot.slane %v2989, 4
    %v3010 = vrot.slane %v2991, 4
    %v3011 = vrot.slane %v2993, 4
    %v3012 = vrot.slane %v2995, 4
    %v3013 = vrot.slane %v2997, 4
    %v3014 = vsel %vm135, %v2998, %v2999
    %v3015 = vsel %vm137, %v2967, %v3014
    %v3016 = vsel %vm135, %v2999, %v3000
    %v3017 = vsel %vm137, %v2969, %v3016
    %v3018 = vsel %vm135, %v3000, %v3001
    %v3019 = vsel %vm137, %v2971, %v3018
    %v3020 = vsel %vm137, %v2973, %v3001
    %v3021 = vsel %vm135, %v3002, %v3003
    %v3022 = vsel %vm137, %v2975, %v3021
    %v3023 = vsel %vm135, %v3003, %v3004
    %v3024 = vsel %vm137, %v2977, %v3023
    %v3025 = vsel %vm135, %v3004, %v3005
    %v3026 = vsel %vm137, %v2979, %v3025
    %v3027 = vsel %vm137, %v2981, %v3005
    %v3028 = vsel %vm135, %v3006, %v3007
    %v3029 = vsel %vm137, %v2983, %v3028
    %v3030 = vsel %vm135, %v3007, %v3008
    %v3031 = vsel %vm137, %v2985, %v3030
    %v3032 = vsel %vm135, %v3008, %v3009
    %v3033 = vsel %vm137, %v2987, %v3032
    %v3034 = vsel %vm137, %v2989, %v3009
    %v3035 = vsel %vm135, %v3010, %v3011
    %v3036 = vsel %vm137, %v2991, %v3035
    %v3037 = vsel %vm135, %v3011, %v3012
    %v3038 = vsel %vm137, %v2993, %v3037
    %v3039 = vsel %vm135, %v3012, %v3013
    %v3040 = vsel %vm137, %v2995, %v3039
    %v3041 = vsel %vm137, %v2997, %v3013
    %3058 = vst [vmem:[#allocation2 + $0x80] sm:$0xff] %v3015
    %3059 = vst [vmem:[#allocation2 + $0x88] sm:$0xff] %v3017
    %3060 = vst [vmem:[#allocation2 + $0x90] sm:$0xff] %v3019
    %3061 = vst [vmem:[#allocation2 + $0x98] sm:$0xf] %v3020
    %3062 = vst [vmem:[#allocation2 + $0xa0] sm:$0xff] %v3022
    %3063 = vst [vmem:[#allocation2 + $0xa8] sm:$0xff] %v3024
    %3064 = vst [vmem:[#allocation2 + $0xb0] sm:$0xff] %v3026
    %3065 = vst [vmem:[#allocation2 + $0xb8] sm:$0xf] %v3027
    %3066 = vst [vmem:[#allocation2 + $0xc0] sm:$0xff] %v3029
    %3067 = vst [vmem:[#allocation2 + $0xc8] sm:$0xff] %v3031
    %3068 = vst [vmem:[#allocation2 + $0xd0] sm:$0xff] %v3033
    %3069 = vst [vmem:[#allocation2 + $0xd8] sm:$0xf] %v3034
    %3070 = vst [vmem:[#allocation2 + $0xe0] sm:$0xff] %v3036
    %3071 = vst [vmem:[#allocation2 + $0xe8] sm:$0xff] %v3038
    %3072 = vst [vmem:[#allocation2 + $0xf0] sm:$0xff] %v3040
    %3073 = vst [vmem:[#allocation2 + $0xf8] sm:$0xf] %v3041
    %3074 = vrot.lane.b32.xlu0 %v2918, 126
    %v3075 = vpop.permute.xlu0 %3074
    %3076 = vrot.lane.b32.xlu0 %v2919, 126
    %v3077 = vpop.permute.xlu0 %3076
    %3078 = vrot.lane.b32.xlu0 %v2920, 126
    %v3079 = vpop.permute.xlu0 %3078
    %3080 = vrot.lane.b32.xlu0 %v2921, 126
    %v3081 = vpop.permute.xlu0 %3080
    %3082 = vrot.lane.b32.xlu0 %v2922, 126
    %v3083 = vpop.permute.xlu0 %3082
    %3084 = vrot.lane.b32.xlu0 %v2923, 126
    %v3085 = vpop.permute.xlu0 %3084
    %3086 = vrot.lane.b32.xlu0 %v2924, 126
    %v3087 = vpop.permute.xlu0 %3086
    %3088 = vrot.lane.b32.xlu0 %v2925, 126
    %v3089 = vpop.permute.xlu0 %3088
    %3090 = vrot.lane.b32.xlu0 %v2926, 126
    %v3091 = vpop.permute.xlu0 %3090
    %3092 = vrot.lane.b32.xlu0 %v2927, 126
    %v3093 = vpop.permute.xlu0 %3092
    %3094 = vrot.lane.b32.xlu0 %v2928, 126
    %v3095 = vpop.permute.xlu0 %3094
    %3096 = vrot.lane.b32.xlu0 %v2929, 126
    %v3097 = vpop.permute.xlu0 %3096
    %3098 = vrot.lane.b32.xlu0 %v2930, 126
    %v3099 = vpop.permute.xlu0 %3098
    %3100 = vrot.lane.b32.xlu0 %v2931, 126
    %v3101 = vpop.permute.xlu0 %3100
    %3102 = vrot.lane.b32.xlu0 %v2932, 126
    %v3103 = vpop.permute.xlu0 %3102
    %3104 = vrot.lane.b32.xlu0 %v2933, 126
    %v3105 = vpop.permute.xlu0 %3104
    %v3106 = vrot.slane %v3075, 4
    %v3107 = vrot.slane %v3077, 4
    %v3108 = vrot.slane %v3079, 4
    %v3109 = vrot.slane %v3081, 4
    %v3110 = vrot.slane %v3083, 4
    %v3111 = vrot.slane %v3085, 4
    %v3112 = vrot.slane %v3087, 4
    %v3113 = vrot.slane %v3089, 4
    %v3114 = vrot.slane %v3091, 4
    %v3115 = vrot.slane %v3093, 4
    %v3116 = vrot.slane %v3095, 4
    %v3117 = vrot.slane %v3097, 4
    %v3118 = vrot.slane %v3099, 4
    %v3119 = vrot.slane %v3101, 4
    %v3120 = vrot.slane %v3103, 4
    %v3121 = vrot.slane %v3105, 4
    %v3122 = vsel %vm135, %v3106, %v3107
    %v3123 = vsel %vm262, %v3075, %v3122
    %v3124 = vsel %vm135, %v3107, %v3108
    %v3125 = vsel %vm262, %v3077, %v3124
    %v3126 = vsel %vm135, %v3108, %v3109
    %v3127 = vsel %vm262, %v3079, %v3126
    %v3128 = vsel %vm262, %v3081, %v3109
    %v3129 = vsel %vm135, %v3110, %v3111
    %v3130 = vsel %vm262, %v3083, %v3129
    %v3131 = vsel %vm135, %v3111, %v3112
    %v3132 = vsel %vm262, %v3085, %v3131
    %v3133 = vsel %vm135, %v3112, %v3113
    %v3134 = vsel %vm262, %v3087, %v3133
    %v3135 = vsel %vm262, %v3089, %v3113
    %v3136 = vsel %vm135, %v3114, %v3115
    %v3137 = vsel %vm262, %v3091, %v3136
    %v3138 = vsel %vm135, %v3115, %v3116
    %v3139 = vsel %vm262, %v3093, %v3138
    %v3140 = vsel %vm135, %v3116, %v3117
    %v3141 = vsel %vm262, %v3095, %v3140
    %v3142 = vsel %vm262, %v3097, %v3117
    %v3143 = vsel %vm135, %v3118, %v3119
    %v3144 = vsel %vm262, %v3099, %v3143
    %v3145 = vsel %vm135, %v3119, %v3120
    %v3146 = vsel %vm262, %v3101, %v3145
    %v3147 = vsel %vm135, %v3120, %v3121
    %v3148 = vsel %vm262, %v3103, %v3147
    %v3149 = vsel %vm262, %v3105, %v3121
    %3166 = vst [vmem:[#allocation2 + $0x100] sm:$0xff] %v3123
    %3167 = vst [vmem:[#allocation2 + $0x108] sm:$0xff] %v3125
    %3168 = vst [vmem:[#allocation2 + $0x110] sm:$0xff] %v3127
    %3169 = vst [vmem:[#allocation2 + $0x118] sm:$0xf] %v3128
    %3170 = vst [vmem:[#allocation2 + $0x120] sm:$0xff] %v3130
    %3171 = vst [vmem:[#allocation2 + $0x128] sm:$0xff] %v3132
    %3172 = vst [vmem:[#allocation2 + $0x130] sm:$0xff] %v3134
    %3173 = vst [vmem:[#allocation2 + $0x138] sm:$0xf] %v3135
    %3174 = vst [vmem:[#allocation2 + $0x140] sm:$0xff] %v3137
    %3175 = vst [vmem:[#allocation2 + $0x148] sm:$0xff] %v3139
    %3176 = vst [vmem:[#allocation2 + $0x150] sm:$0xff] %v3141
    %3177 = vst [vmem:[#allocation2 + $0x158] sm:$0xf] %v3142
    %3178 = vst [vmem:[#allocation2 + $0x160] sm:$0xff] %v3144
    %3179 = vst [vmem:[#allocation2 + $0x168] sm:$0xff] %v3146
    %3180 = vst [vmem:[#allocation2 + $0x170] sm:$0xff] %v3148
    %3181 = vst [vmem:[#allocation2 + $0x178] sm:$0xf] %v3149
    %3182 = vrot.lane.b32.xlu0 %v2918, 112
    %v3183 = vpop.permute.xlu0 %3182
    %3184 = vrot.lane.b32.xlu0 %v2919, 112
    %v3185 = vpop.permute.xlu0 %3184
    %3186 = vrot.lane.b32.xlu0 %v2920, 112
    %v3187 = vpop.permute.xlu0 %3186
    %3188 = vrot.lane.b32.xlu0 %v2921, 112
    %v3189 = vpop.permute.xlu0 %3188
    %3190 = vrot.lane.b32.xlu0 %v2922, 112
    %v3191 = vpop.permute.xlu0 %3190
    %3192 = vrot.lane.b32.xlu0 %v2923, 112
    %v3193 = vpop.permute.xlu0 %3192
    %3194 = vrot.lane.b32.xlu0 %v2924, 112
    %v3195 = vpop.permute.xlu0 %3194
    %3196 = vrot.lane.b32.xlu0 %v2925, 112
    %v3197 = vpop.permute.xlu0 %3196
    %3198 = vrot.lane.b32.xlu0 %v2926, 112
    %v3199 = vpop.permute.xlu0 %3198
    %3200 = vrot.lane.b32.xlu0 %v2927, 112
    %v3201 = vpop.permute.xlu0 %3200
    %3202 = vrot.lane.b32.xlu0 %v2928, 112
    %v3203 = vpop.permute.xlu0 %3202
    %3204 = vrot.lane.b32.xlu0 %v2929, 112
    %v3205 = vpop.permute.xlu0 %3204
    %3206 = vrot.lane.b32.xlu0 %v2930, 112
    %v3207 = vpop.permute.xlu0 %3206
    %3208 = vrot.lane.b32.xlu0 %v2931, 112
    %v3209 = vpop.permute.xlu0 %3208
    %3210 = vrot.lane.b32.xlu0 %v2932, 112
    %v3211 = vpop.permute.xlu0 %3210
    %3212 = vrot.lane.b32.xlu0 %v2933, 112
    %v3213 = vpop.permute.xlu0 %3212
    %v3214 = vrot.slane %v3183, 4
    %v3215 = vrot.slane %v3185, 4
    %v3216 = vrot.slane %v3187, 4
    %v3217 = vrot.slane %v3189, 4
    %v3218 = vrot.slane %v3191, 4
    %v3219 = vrot.slane %v3193, 4
    %v3220 = vrot.slane %v3195, 4
    %v3221 = vrot.slane %v3197, 4
    %v3222 = vrot.slane %v3199, 4
    %v3223 = vrot.slane %v3201, 4
    %v3224 = vrot.slane %v3203, 4
    %v3225 = vrot.slane %v3205, 4
    %v3226 = vrot.slane %v3207, 4
    %v3227 = vrot.slane %v3209, 4
    %v3228 = vrot.slane %v3211, 4
    %v3229 = vrot.slane %v3213, 4
    %v3230 = vsel %vm135, %v3214, %v3215
    %v3231 = vsel %vm387, %v3183, %v3230
    %v3232 = vsel %vm135, %v3215, %v3216
    %v3233 = vsel %vm387, %v3185, %v3232
    %v3234 = vsel %vm135, %v3216, %v3217
    %v3235 = vsel %vm387, %v3187, %v3234
    %v3236 = vsel %vm387, %v3189, %v3217
    %v3237 = vsel %vm135, %v3218, %v3219
    %v3238 = vsel %vm387, %v3191, %v3237
    %v3239 = vsel %vm135, %v3219, %v3220
    %v3240 = vsel %vm387, %v3193, %v3239
    %v3241 = vsel %vm135, %v3220, %v3221
    %v3242 = vsel %vm387, %v3195, %v3241
    %v3243 = vsel %vm387, %v3197, %v3221
    %v3244 = vsel %vm135, %v3222, %v3223
    %v3245 = vsel %vm387, %v3199, %v3244
    %v3246 = vsel %vm135, %v3223, %v3224
    %v3247 = vsel %vm387, %v3201, %v3246
    %v3248 = vsel %vm135, %v3224, %v3225
    %v3249 = vsel %vm387, %v3203, %v3248
    %v3250 = vsel %vm387, %v3205, %v3225
    %v3251 = vsel %vm135, %v3226, %v3227
    %v3252 = vsel %vm387, %v3207, %v3251
    %v3253 = vsel %vm135, %v3227, %v3228
    %v3254 = vsel %vm387, %v3209, %v3253
    %v3255 = vsel %vm135, %v3228, %v3229
    %v3256 = vsel %vm387, %v3211, %v3255
    %v3257 = vsel %vm387, %v3213, %v3229
    %3274 = vst [vmem:[#allocation2 + $0x180] sm:$0xff] %v3231
    %3275 = vst [vmem:[#allocation2 + $0x188] sm:$0xff] %v3233
    %3276 = vst [vmem:[#allocation2 + $0x190] sm:$0xff] %v3235
    %3277 = vst [vmem:[#allocation2 + $0x198] sm:$0xf] %v3236
    %3278 = vst [vmem:[#allocation2 + $0x1a0] sm:$0xff] %v3238
    %3279 = vst [vmem:[#allocation2 + $0x1a8] sm:$0xff] %v3240
    %3280 = vst [vmem:[#allocation2 + $0x1b0] sm:$0xff] %v3242
    %3281 = vst [vmem:[#allocation2 + $0x1b8] sm:$0xf] %v3243
    %3282 = vst [vmem:[#allocation2 + $0x1c0] sm:$0xff] %v3245
    %3283 = vst [vmem:[#allocation2 + $0x1c8] sm:$0xff] %v3247
    %3284 = vst [vmem:[#allocation2 + $0x1d0] sm:$0xff] %v3249
    %3285 = vst [vmem:[#allocation2 + $0x1d8] sm:$0xf] %v3250
    %3286 = vst [vmem:[#allocation2 + $0x1e0] sm:$0xff] %v3252
    %3287 = vst [vmem:[#allocation2 + $0x1e8] sm:$0xff] %v3254
    %3288 = vst [vmem:[#allocation2 + $0x1f0] sm:$0xff] %v3256
    %3289 = vst [vmem:[#allocation2 + $0x1f8] sm:$0xf] %v3257
    %3290 = vrot.lane.b32.xlu0 %v2918, 111
    %v3291 = vpop.permute.xlu0 %3290
    %3292 = vrot.lane.b32.xlu0 %v2919, 111
    %v3293 = vpop.permute.xlu0 %3292
    %3294 = vrot.lane.b32.xlu0 %v2920, 111
    %v3295 = vpop.permute.xlu0 %3294
    %3296 = vrot.lane.b32.xlu0 %v2921, 111
    %v3297 = vpop.permute.xlu0 %3296
    %3298 = vrot.lane.b32.xlu0 %v2922, 111
    %v3299 = vpop.permute.xlu0 %3298
    %3300 = vrot.lane.b32.xlu0 %v2923, 111
    %v3301 = vpop.permute.xlu0 %3300
    %3302 = vrot.lane.b32.xlu0 %v2924, 111
    %v3303 = vpop.permute.xlu0 %3302
    %3304 = vrot.lane.b32.xlu0 %v2925, 111
    %v3305 = vpop.permute.xlu0 %3304
    %3306 = vrot.lane.b32.xlu0 %v2926, 111
    %v3307 = vpop.permute.xlu0 %3306
    %3308 = vrot.lane.b32.xlu0 %v2927, 111
    %v3309 = vpop.permute.xlu0 %3308
    %3310 = vrot.lane.b32.xlu0 %v2928, 111
    %v3311 = vpop.permute.xlu0 %3310
    %3312 = vrot.lane.b32.xlu0 %v2929, 111
    %v3313 = vpop.permute.xlu0 %3312
    %3314 = vrot.lane.b32.xlu0 %v2930, 111
    %v3315 = vpop.permute.xlu0 %3314
    %3316 = vrot.lane.b32.xlu0 %v2931, 111
    %v3317 = vpop.permute.xlu0 %3316
    %3318 = vrot.lane.b32.xlu0 %v2932, 111
    %v3319 = vpop.permute.xlu0 %3318
    %3320 = vrot.lane.b32.xlu0 %v2933, 111
    %v3321 = vpop.permute.xlu0 %3320
    %v3322 = vrot.slane %v3291, 4
    %v3323 = vrot.slane %v3293, 4
    %v3324 = vrot.slane %v3295, 4
    %v3325 = vrot.slane %v3297, 4
    %v3326 = vrot.slane %v3299, 4
    %v3327 = vrot.slane %v3301, 4
    %v3328 = vrot.slane %v3303, 4
    %v3329 = vrot.slane %v3305, 4
    %v3330 = vrot.slane %v3307, 4
    %v3331 = vrot.slane %v3309, 4
    %v3332 = vrot.slane %v3311, 4
    %v3333 = vrot.slane %v3313, 4
    %v3334 = vrot.slane %v3315, 4
    %v3335 = vrot.slane %v3317, 4
    %v3336 = vrot.slane %v3319, 4
    %v3337 = vrot.slane %v3321, 4
    %v3338 = vsel %vm135, %v3322, %v3323
    %v3339 = vsel %vm512, %v3291, %v3338
    %v3340 = vsel %vm135, %v3323, %v3324
    %v3341 = vsel %vm512, %v3293, %v3340
    %v3342 = vsel %vm135, %v3324, %v3325
    %v3343 = vsel %vm512, %v3295, %v3342
    %v3344 = vsel %vm512, %v3297, %v3325
    %v3345 = vsel %vm135, %v3326, %v3327
    %v3346 = vsel %vm512, %v3299, %v3345
    %v3347 = vsel %vm135, %v3327, %v3328
    %v3348 = vsel %vm512, %v3301, %v3347
    %v3349 = vsel %vm135, %v3328, %v3329
    %v3350 = vsel %vm512, %v3303, %v3349
    %v3351 = vsel %vm512, %v3305, %v3329
    %v3352 = vsel %vm135, %v3330, %v3331
    %v3353 = vsel %vm512, %v3307, %v3352
    %v3354 = vsel %vm135, %v3331, %v3332
    %v3355 = vsel %vm512, %v3309, %v3354
    %v3356 = vsel %vm135, %v3332, %v3333
    %v3357 = vsel %vm512, %v3311, %v3356
    %v3358 = vsel %vm512, %v3313, %v3333
    %v3359 = vsel %vm135, %v3334, %v3335
    %v3360 = vsel %vm512, %v3315, %v3359
    %v3361 = vsel %vm135, %v3335, %v3336
    %v3362 = vsel %vm512, %v3317, %v3361
    %v3363 = vsel %vm135, %v3336, %v3337
    %v3364 = vsel %vm512, %v3319, %v3363
    %v3365 = vsel %vm512, %v3321, %v3337
    %3382 = vst [vmem:[#allocation2 + $0x200] sm:$0xff] %v3339
    %3383 = vst [vmem:[#allocation2 + $0x208] sm:$0xff] %v3341
    %3384 = vst [vmem:[#allocation2 + $0x210] sm:$0xff] %v3343
    %3385 = vst [vmem:[#allocation2 + $0x218] sm:$0xf] %v3344
    %3386 = vst [vmem:[#allocation2 + $0x220] sm:$0xff] %v3346
    %3387 = vst [vmem:[#allocation2 + $0x228] sm:$0xff] %v3348
    %3388 = vst [vmem:[#allocation2 + $0x230] sm:$0xff] %v3350
    %3389 = vst [vmem:[#allocation2 + $0x238] sm:$0xf] %v3351
    %3390 = vst [vmem:[#allocation2 + $0x240] sm:$0xff] %v3353
    %3391 = vst [vmem:[#allocation2 + $0x248] sm:$0xff] %v3355
    %3392 = vst [vmem:[#allocation2 + $0x250] sm:$0xff] %v3357
    %3393 = vst [vmem:[#allocation2 + $0x258] sm:$0xf] %v3358
    %3394 = vst [vmem:[#allocation2 + $0x260] sm:$0xff] %v3360
    %3395 = vst [vmem:[#allocation2 + $0x268] sm:$0xff] %v3362
    %3396 = vst [vmem:[#allocation2 + $0x270] sm:$0xff] %v3364
    %3397 = vst [vmem:[#allocation2 + $0x278] sm:$0xf] %v3365
    %3398 = vrot.lane.b32.xlu0 %v2918, 110
    %v3399 = vpop.permute.xlu0 %3398
    %3400 = vrot.lane.b32.xlu0 %v2919, 110
    %v3401 = vpop.permute.xlu0 %3400
    %3402 = vrot.lane.b32.xlu0 %v2920, 110
    %v3403 = vpop.permute.xlu0 %3402
    %3404 = vrot.lane.b32.xlu0 %v2921, 110
    %v3405 = vpop.permute.xlu0 %3404
    %3406 = vrot.lane.b32.xlu0 %v2922, 110
    %v3407 = vpop.permute.xlu0 %3406
    %3408 = vrot.lane.b32.xlu0 %v2923, 110
    %v3409 = vpop.permute.xlu0 %3408
    %3410 = vrot.lane.b32.xlu0 %v2924, 110
    %v3411 = vpop.permute.xlu0 %3410
    %3412 = vrot.lane.b32.xlu0 %v2925, 110
    %v3413 = vpop.permute.xlu0 %3412
    %3414 = vrot.lane.b32.xlu0 %v2926, 110
    %v3415 = vpop.permute.xlu0 %3414
    %3416 = vrot.lane.b32.xlu0 %v2927, 110
    %v3417 = vpop.permute.xlu0 %3416
    %3418 = vrot.lane.b32.xlu0 %v2928, 110
    %v3419 = vpop.permute.xlu0 %3418
    %3420 = vrot.lane.b32.xlu0 %v2929, 110
    %v3421 = vpop.permute.xlu0 %3420
    %3422 = vrot.lane.b32.xlu0 %v2930, 110
    %v3423 = vpop.permute.xlu0 %3422
    %3424 = vrot.lane.b32.xlu0 %v2931, 110
    %v3425 = vpop.permute.xlu0 %3424
    %3426 = vrot.lane.b32.xlu0 %v2932, 110
    %v3427 = vpop.permute.xlu0 %3426
    %3428 = vrot.lane.b32.xlu0 %v2933, 110
    %v3429 = vpop.permute.xlu0 %3428
    %v3430 = vrot.slane %v3399, 4
    %v3431 = vrot.slane %v3401, 4
    %v3432 = vrot.slane %v3403, 4
    %v3433 = vrot.slane %v3405, 4
    %v3434 = vrot.slane %v3407, 4
    %v3435 = vrot.slane %v3409, 4
    %v3436 = vrot.slane %v3411, 4
    %v3437 = vrot.slane %v3413, 4
    %v3438 = vrot.slane %v3415, 4
    %v3439 = vrot.slane %v3417, 4
    %v3440 = vrot.slane %v3419, 4
    %v3441 = vrot.slane %v3421, 4
    %v3442 = vrot.slane %v3423, 4
    %v3443 = vrot.slane %v3425, 4
    %v3444 = vrot.slane %v3427, 4
    %v3445 = vrot.slane %v3429, 4
    %v3446 = vsel %vm135, %v3430, %v3431
    %v3447 = vsel %vm637, %v3399, %v3446
    %v3448 = vsel %vm135, %v3431, %v3432
    %v3449 = vsel %vm637, %v3401, %v3448
    %v3450 = vsel %vm135, %v3432, %v3433
    %v3451 = vsel %vm637, %v3403, %v3450
    %v3452 = vsel %vm637, %v3405, %v3433
    %v3453 = vsel %vm135, %v3434, %v3435
    %v3454 = vsel %vm637, %v3407, %v3453
    %v3455 = vsel %vm135, %v3435, %v3436
    %v3456 = vsel %vm637, %v3409, %v3455
    %v3457 = vsel %vm135, %v3436, %v3437
    %v3458 = vsel %vm637, %v3411, %v3457
    %v3459 = vsel %vm637, %v3413, %v3437
    %v3460 = vsel %vm135, %v3438, %v3439
    %v3461 = vsel %vm637, %v3415, %v3460
    %v3462 = vsel %vm135, %v3439, %v3440
    %v3463 = vsel %vm637, %v3417, %v3462
    %v3464 = vsel %vm135, %v3440, %v3441
    %v3465 = vsel %vm637, %v3419, %v3464
    %v3466 = vsel %vm637, %v3421, %v3441
    %v3467 = vsel %vm135, %v3442, %v3443
    %v3468 = vsel %vm637, %v3423, %v3467
    %v3469 = vsel %vm135, %v3443, %v3444
    %v3470 = vsel %vm637, %v3425, %v3469
    %v3471 = vsel %vm135, %v3444, %v3445
    %v3472 = vsel %vm637, %v3427, %v3471
    %v3473 = vsel %vm637, %v3429, %v3445
    %3490 = vst [vmem:[#allocation2 + $0x280] sm:$0xff] %v3447
    %3491 = vst [vmem:[#allocation2 + $0x288] sm:$0xff] %v3449
    %3492 = vst [vmem:[#allocation2 + $0x290] sm:$0xff] %v3451
    %3493 = vst [vmem:[#allocation2 + $0x298] sm:$0xf] %v3452
    %3494 = vst [vmem:[#allocation2 + $0x2a0] sm:$0xff] %v3454
    %3495 = vst [vmem:[#allocation2 + $0x2a8] sm:$0xff] %v3456
    %3496 = vst [vmem:[#allocation2 + $0x2b0] sm:$0xff] %v3458
    %3497 = vst [vmem:[#allocation2 + $0x2b8] sm:$0xf] %v3459
    %3498 = vst [vmem:[#allocation2 + $0x2c0] sm:$0xff] %v3461
    %3499 = vst [vmem:[#allocation2 + $0x2c8] sm:$0xff] %v3463
    %3500 = vst [vmem:[#allocation2 + $0x2d0] sm:$0xff] %v3465
    %3501 = vst [vmem:[#allocation2 + $0x2d8] sm:$0xf] %v3466
    %3502 = vst [vmem:[#allocation2 + $0x2e0] sm:$0xff] %v3468
    %3503 = vst [vmem:[#allocation2 + $0x2e8] sm:$0xff] %v3470
    %3504 = vst [vmem:[#allocation2 + $0x2f0] sm:$0xff] %v3472
    %3505 = vst [vmem:[#allocation2 + $0x2f8] sm:$0xf] %v3473
    %3506 = vrot.lane.b32.xlu0 %v2918, 96
    %v3507 = vpop.permute.xlu0 %3506
    %3508 = vrot.lane.b32.xlu0 %v2919, 96
    %v3509 = vpop.permute.xlu0 %3508
    %3510 = vrot.lane.b32.xlu0 %v2920, 96
    %v3511 = vpop.permute.xlu0 %3510
    %3512 = vrot.lane.b32.xlu0 %v2921, 96
    %v3513 = vpop.permute.xlu0 %3512
    %3514 = vrot.lane.b32.xlu0 %v2922, 96
    %v3515 = vpop.permute.xlu0 %3514
    %3516 = vrot.lane.b32.xlu0 %v2923, 96
    %v3517 = vpop.permute.xlu0 %3516
    %3518 = vrot.lane.b32.xlu0 %v2924, 96
    %v3519 = vpop.permute.xlu0 %3518
    %3520 = vrot.lane.b32.xlu0 %v2925, 96
    %v3521 = vpop.permute.xlu0 %3520
    %3522 = vrot.lane.b32.xlu0 %v2926, 96
    %v3523 = vpop.permute.xlu0 %3522
    %3524 = vrot.lane.b32.xlu0 %v2927, 96
    %v3525 = vpop.permute.xlu0 %3524
    %3526 = vrot.lane.b32.xlu0 %v2928, 96
    %v3527 = vpop.permute.xlu0 %3526
    %3528 = vrot.lane.b32.xlu0 %v2929, 96
    %v3529 = vpop.permute.xlu0 %3528
    %3530 = vrot.lane.b32.xlu0 %v2930, 96
    %v3531 = vpop.permute.xlu0 %3530
    %3532 = vrot.lane.b32.xlu0 %v2931, 96
    %v3533 = vpop.permute.xlu0 %3532
    %3534 = vrot.lane.b32.xlu0 %v2932, 96
    %v3535 = vpop.permute.xlu0 %3534
    %3536 = vrot.lane.b32.xlu0 %v2933, 96
    %v3537 = vpop.permute.xlu0 %3536
    %v3538 = vrot.slane %v3507, 4
    %v3539 = vrot.slane %v3509, 4
    %v3540 = vrot.slane %v3511, 4
    %v3541 = vrot.slane %v3513, 4
    %v3542 = vrot.slane %v3515, 4
    %v3543 = vrot.slane %v3517, 4
    %v3544 = vrot.slane %v3519, 4
    %v3545 = vrot.slane %v3521, 4
    %v3546 = vrot.slane %v3523, 4
    %v3547 = vrot.slane %v3525, 4
    %v3548 = vrot.slane %v3527, 4
    %v3549 = vrot.slane %v3529, 4
    %v3550 = vrot.slane %v3531, 4
    %v3551 = vrot.slane %v3533, 4
    %v3552 = vrot.slane %v3535, 4
    %v3553 = vrot.slane %v3537, 4
    %v3554 = vsel %vm135, %v3538, %v3539
    %v3555 = vsel %vm762, %v3507, %v3554
    %v3556 = vsel %vm135, %v3539, %v3540
    %v3557 = vsel %vm762, %v3509, %v3556
    %v3558 = vsel %vm135, %v3540, %v3541
    %v3559 = vsel %vm762, %v3511, %v3558
    %v3560 = vsel %vm762, %v3513, %v3541
    %v3561 = vsel %vm135, %v3542, %v3543
    %v3562 = vsel %vm762, %v3515, %v3561
    %v3563 = vsel %vm135, %v3543, %v3544
    %v3564 = vsel %vm762, %v3517, %v3563
    %v3565 = vsel %vm135, %v3544, %v3545
    %v3566 = vsel %vm762, %v3519, %v3565
    %v3567 = vsel %vm762, %v3521, %v3545
    %v3568 = vsel %vm135, %v3546, %v3547
    %v3569 = vsel %vm762, %v3523, %v3568
    %v3570 = vsel %vm135, %v3547, %v3548
    %v3571 = vsel %vm762, %v3525, %v3570
    %v3572 = vsel %vm135, %v3548, %v3549
    %v3573 = vsel %vm762, %v3527, %v3572
    %v3574 = vsel %vm762, %v3529, %v3549
    %v3575 = vsel %vm135, %v3550, %v3551
    %v3576 = vsel %vm762, %v3531, %v3575
    %v3577 = vsel %vm135, %v3551, %v3552
    %v3578 = vsel %vm762, %v3533, %v3577
    %v3579 = vsel %vm135, %v3552, %v3553
    %v3580 = vsel %vm762, %v3535, %v3579
    %v3581 = vsel %vm762, %v3537, %v3553
    %3598 = vst [vmem:[#allocation2 + $0x300] sm:$0xff] %v3555
    %3599 = vst [vmem:[#allocation2 + $0x308] sm:$0xff] %v3557
    %3600 = vst [vmem:[#allocation2 + $0x310] sm:$0xff] %v3559
    %3601 = vst [vmem:[#allocation2 + $0x318] sm:$0xf] %v3560
    %3602 = vst [vmem:[#allocation2 + $0x320] sm:$0xff] %v3562
    %3603 = vst [vmem:[#allocation2 + $0x328] sm:$0xff] %v3564
    %3604 = vst [vmem:[#allocation2 + $0x330] sm:$0xff] %v3566
    %3605 = vst [vmem:[#allocation2 + $0x338] sm:$0xf] %v3567
    %3606 = vst [vmem:[#allocation2 + $0x340] sm:$0xff] %v3569
    %3607 = vst [vmem:[#allocation2 + $0x348] sm:$0xff] %v3571
    %3608 = vst [vmem:[#allocation2 + $0x350] sm:$0xff] %v3573
    %3609 = vst [vmem:[#allocation2 + $0x358] sm:$0xf] %v3574
    %3610 = vst [vmem:[#allocation2 + $0x360] sm:$0xff] %v3576
    %3611 = vst [vmem:[#allocation2 + $0x368] sm:$0xff] %v3578
    %3612 = vst [vmem:[#allocation2 + $0x370] sm:$0xff] %v3580
    %3613 = vst [vmem:[#allocation2 + $0x378] sm:$0xf] %v3581
    %3614 = vrot.lane.b32.xlu0 %v2918, 95
    %v3615 = vpop.permute.xlu0 %3614
    %3616 = vrot.lane.b32.xlu0 %v2919, 95
    %v3617 = vpop.permute.xlu0 %3616
    %3618 = vrot.lane.b32.xlu0 %v2920, 95
    %v3619 = vpop.permute.xlu0 %3618
    %3620 = vrot.lane.b32.xlu0 %v2921, 95
    %v3621 = vpop.permute.xlu0 %3620
    %3622 = vrot.lane.b32.xlu0 %v2922, 95
    %v3623 = vpop.permute.xlu0 %3622
    %3624 = vrot.lane.b32.xlu0 %v2923, 95
    %v3625 = vpop.permute.xlu0 %3624
    %3626 = vrot.lane.b32.xlu0 %v2924, 95
    %v3627 = vpop.permute.xlu0 %3626
    %3628 = vrot.lane.b32.xlu0 %v2925, 95
    %v3629 = vpop.permute.xlu0 %3628
    %3630 = vrot.lane.b32.xlu0 %v2926, 95
    %v3631 = vpop.permute.xlu0 %3630
    %3632 = vrot.lane.b32.xlu0 %v2927, 95
    %v3633 = vpop.permute.xlu0 %3632
    %3634 = vrot.lane.b32.xlu0 %v2928, 95
    %v3635 = vpop.permute.xlu0 %3634
    %3636 = vrot.lane.b32.xlu0 %v2929, 95
    %v3637 = vpop.permute.xlu0 %3636
    %3638 = vrot.lane.b32.xlu0 %v2930, 95
    %v3639 = vpop.permute.xlu0 %3638
    %3640 = vrot.lane.b32.xlu0 %v2931, 95
    %v3641 = vpop.permute.xlu0 %3640
    %3642 = vrot.lane.b32.xlu0 %v2932, 95
    %v3643 = vpop.permute.xlu0 %3642
    %3644 = vrot.lane.b32.xlu0 %v2933, 95
    %v3645 = vpop.permute.xlu0 %3644
    %v3646 = vrot.slane %v3615, 4
    %v3647 = vrot.slane %v3617, 4
    %v3648 = vrot.slane %v3619, 4
    %v3649 = vrot.slane %v3621, 4
    %v3650 = vrot.slane %v3623, 4
    %v3651 = vrot.slane %v3625, 4
    %v3652 = vrot.slane %v3627, 4
    %v3653 = vrot.slane %v3629, 4
    %v3654 = vrot.slane %v3631, 4
    %v3655 = vrot.slane %v3633, 4
    %v3656 = vrot.slane %v3635, 4
    %v3657 = vrot.slane %v3637, 4
    %v3658 = vrot.slane %v3639, 4
    %v3659 = vrot.slane %v3641, 4
    %v3660 = vrot.slane %v3643, 4
    %v3661 = vrot.slane %v3645, 4
    %v3662 = vsel %vm135, %v3646, %v3647
    %v3663 = vsel %vm887, %v3615, %v3662
    %v3664 = vsel %vm135, %v3647, %v3648
    %v3665 = vsel %vm887, %v3617, %v3664
    %v3666 = vsel %vm135, %v3648, %v3649
    %v3667 = vsel %vm887, %v3619, %v3666
    %v3668 = vsel %vm887, %v3621, %v3649
    %v3669 = vsel %vm135, %v3650, %v3651
    %v3670 = vsel %vm887, %v3623, %v3669
    %v3671 = vsel %vm135, %v3651, %v3652
    %v3672 = vsel %vm887, %v3625, %v3671
    %v3673 = vsel %vm135, %v3652, %v3653
    %v3674 = vsel %vm887, %v3627, %v3673
    %v3675 = vsel %vm887, %v3629, %v3653
    %v3676 = vsel %vm135, %v3654, %v3655
    %v3677 = vsel %vm887, %v3631, %v3676
    %v3678 = vsel %vm135, %v3655, %v3656
    %v3679 = vsel %vm887, %v3633, %v3678
    %v3680 = vsel %vm135, %v3656, %v3657
    %v3681 = vsel %vm887, %v3635, %v3680
    %v3682 = vsel %vm887, %v3637, %v3657
    %v3683 = vsel %vm135, %v3658, %v3659
    %v3684 = vsel %vm887, %v3639, %v3683
    %v3685 = vsel %vm135, %v3659, %v3660
    %v3686 = vsel %vm887, %v3641, %v3685
    %v3687 = vsel %vm135, %v3660, %v3661
    %v3688 = vsel %vm887, %v3643, %v3687
    %v3689 = vsel %vm887, %v3645, %v3661
    %3706 = vst [vmem:[#allocation2 + $0x380] sm:$0xff] %v3663
    %3707 = vst [vmem:[#allocation2 + $0x388] sm:$0xff] %v3665
    %3708 = vst [vmem:[#allocation2 + $0x390] sm:$0xff] %v3667
    %3709 = vst [vmem:[#allocation2 + $0x398] sm:$0xf] %v3668
    %3710 = vst [vmem:[#allocation2 + $0x3a0] sm:$0xff] %v3670
    %3711 = vst [vmem:[#allocation2 + $0x3a8] sm:$0xff] %v3672
    %3712 = vst [vmem:[#allocation2 + $0x3b0] sm:$0xff] %v3674
    %3713 = vst [vmem:[#allocation2 + $0x3b8] sm:$0xf] %v3675
    %3714 = vst [vmem:[#allocation2 + $0x3c0] sm:$0xff] %v3677
    %3715 = vst [vmem:[#allocation2 + $0x3c8] sm:$0xff] %v3679
    %3716 = vst [vmem:[#allocation2 + $0x3d0] sm:$0xff] %v3681
    %3717 = vst [vmem:[#allocation2 + $0x3d8] sm:$0xf] %v3682
    %3718 = vst [vmem:[#allocation2 + $0x3e0] sm:$0xff] %v3684
    %3719 = vst [vmem:[#allocation2 + $0x3e8] sm:$0xff] %v3686
    %3720 = vst [vmem:[#allocation2 + $0x3f0] sm:$0xff] %v3688
    %3721 = vst [vmem:[#allocation2 + $0x3f8] sm:$0xf] %v3689
    %3722 = vrot.lane.b32.xlu0 %v2918, 94
    %v3723 = vpop.permute.xlu0 %3722
    %3724 = vrot.lane.b32.xlu0 %v2919, 94
    %v3725 = vpop.permute.xlu0 %3724
    %3726 = vrot.lane.b32.xlu0 %v2920, 94
    %v3727 = vpop.permute.xlu0 %3726
    %3728 = vrot.lane.b32.xlu0 %v2921, 94
    %v3729 = vpop.permute.xlu0 %3728
    %3730 = vrot.lane.b32.xlu0 %v2922, 94
    %v3731 = vpop.permute.xlu0 %3730
    %3732 = vrot.lane.b32.xlu0 %v2923, 94
    %v3733 = vpop.permute.xlu0 %3732
    %3734 = vrot.lane.b32.xlu0 %v2924, 94
    %v3735 = vpop.permute.xlu0 %3734
    %3736 = vrot.lane.b32.xlu0 %v2925, 94
    %v3737 = vpop.permute.xlu0 %3736
    %3738 = vrot.lane.b32.xlu0 %v2926, 94
    %v3739 = vpop.permute.xlu0 %3738
    %3740 = vrot.lane.b32.xlu0 %v2927, 94
    %v3741 = vpop.permute.xlu0 %3740
    %3742 = vrot.lane.b32.xlu0 %v2928, 94
    %v3743 = vpop.permute.xlu0 %3742
    %3744 = vrot.lane.b32.xlu0 %v2929, 94
    %v3745 = vpop.permute.xlu0 %3744
    %3746 = vrot.lane.b32.xlu0 %v2930, 94
    %v3747 = vpop.permute.xlu0 %3746
    %3748 = vrot.lane.b32.xlu0 %v2931, 94
    %v3749 = vpop.permute.xlu0 %3748
    %3750 = vrot.lane.b32.xlu0 %v2932, 94
    %v3751 = vpop.permute.xlu0 %3750
    %3752 = vrot.lane.b32.xlu0 %v2933, 94
    %v3753 = vpop.permute.xlu0 %3752
    %v3754 = vrot.slane %v3723, 4
    %v3755 = vrot.slane %v3725, 4
    %v3756 = vrot.slane %v3727, 4
    %v3757 = vrot.slane %v3729, 4
    %v3758 = vrot.slane %v3731, 4
    %v3759 = vrot.slane %v3733, 4
    %v3760 = vrot.slane %v3735, 4
    %v3761 = vrot.slane %v3737, 4
    %v3762 = vrot.slane %v3739, 4
    %v3763 = vrot.slane %v3741, 4
    %v3764 = vrot.slane %v3743, 4
    %v3765 = vrot.slane %v3745, 4
    %v3766 = vrot.slane %v3747, 4
    %v3767 = vrot.slane %v3749, 4
    %v3768 = vrot.slane %v3751, 4
    %v3769 = vrot.slane %v3753, 4
    %v3770 = vsel %vm135, %v3754, %v3755
    %v3771 = vsel %vm1012, %v3723, %v3770
    %v3772 = vsel %vm135, %v3755, %v3756
    %v3773 = vsel %vm1012, %v3725, %v3772
    %v3774 = vsel %vm135, %v3756, %v3757
    %v3775 = vsel %vm1012, %v3727, %v3774
    %v3776 = vsel %vm1012, %v3729, %v3757
    %v3777 = vsel %vm135, %v3758, %v3759
    %v3778 = vsel %vm1012, %v3731, %v3777
    %v3779 = vsel %vm135, %v3759, %v3760
    %v3780 = vsel %vm1012, %v3733, %v3779
    %v3781 = vsel %vm135, %v3760, %v3761
    %v3782 = vsel %vm1012, %v3735, %v3781
    %v3783 = vsel %vm1012, %v3737, %v3761
    %v3784 = vsel %vm135, %v3762, %v3763
    %v3785 = vsel %vm1012, %v3739, %v3784
    %v3786 = vsel %vm135, %v3763, %v3764
    %v3787 = vsel %vm1012, %v3741, %v3786
    %v3788 = vsel %vm135, %v3764, %v3765
    %v3789 = vsel %vm1012, %v3743, %v3788
    %v3790 = vsel %vm1012, %v3745, %v3765
    %v3791 = vsel %vm135, %v3766, %v3767
    %v3792 = vsel %vm1012, %v3747, %v3791
    %v3793 = vsel %vm135, %v3767, %v3768
    %v3794 = vsel %vm1012, %v3749, %v3793
    %v3795 = vsel %vm135, %v3768, %v3769
    %v3796 = vsel %vm1012, %v3751, %v3795
    %v3797 = vsel %vm1012, %v3753, %v3769
    %3814 = vst [vmem:[#allocation2 + $0x400] sm:$0xff] %v3771
    %3815 = vst [vmem:[#allocation2 + $0x408] sm:$0xff] %v3773
    %3816 = vst [vmem:[#allocation2 + $0x410] sm:$0xff] %v3775
    %3817 = vst [vmem:[#allocation2 + $0x418] sm:$0xf] %v3776
    %3818 = vst [vmem:[#allocation2 + $0x420] sm:$0xff] %v3778
    %3819 = vst [vmem:[#allocation2 + $0x428] sm:$0xff] %v3780
    %3820 = vst [vmem:[#allocation2 + $0x430] sm:$0xff] %v3782
    %3821 = vst [vmem:[#allocation2 + $0x438] sm:$0xf] %v3783
    %3822 = vst [vmem:[#allocation2 + $0x440] sm:$0xff] %v3785
    %3823 = vst [vmem:[#allocation2 + $0x448] sm:$0xff] %v3787
    %3824 = vst [vmem:[#allocation2 + $0x450] sm:$0xff] %v3789
    %3825 = vst [vmem:[#allocation2 + $0x458] sm:$0xf] %v3790
    %3826 = vst [vmem:[#allocation2 + $0x460] sm:$0xff] %v3792
    %3827 = vst [vmem:[#allocation2 + $0x468] sm:$0xff] %v3794
    %3828 = vst [vmem:[#allocation2 + $0x470] sm:$0xff] %v3796
    %3829 = vst [vmem:[#allocation2 + $0x478] sm:$0xf] %v3797
    %s3830 = scalar_lea.vmem %s1, 48
    %v3831 = vld [vmem:[%s3830] sm:$0xff]
    %v3832 = vld [vmem:[%s3830 + $0x8] sm:$0xf]
    %v3833 = vld [vmem:[%s3830 + $0xc] sm:$0xff]
    %v3834 = vld [vmem:[%s3830 + $0x14] sm:$0xf]
    %v3835 = vld [vmem:[%s3830 + $0x18] sm:$0xff]
    %v3836 = vld [vmem:[%s3830 + $0x20] sm:$0xf]
    %v3837 = vld [vmem:[%s3830 + $0x24] sm:$0xff]
    %v3838 = vld [vmem:[%s3830 + $0x2c] sm:$0xf]
    %v3839 = vld [vmem:[#allocation2] sm:$0xff]
    %v3840 = vld [vmem:[#allocation2 + $0x8] sm:$0xff]
    %v3841 = vld [vmem:[#allocation2 + $0x10] sm:$0xff]
    %v3842 = vld [vmem:[#allocation2 + $0x18] sm:$0xf]
    %v3843 = vld [vmem:[#allocation2 + $0x20] sm:$0xff]
    %v3844 = vld [vmem:[#allocation2 + $0x28] sm:$0xff]
    %v3845 = vld [vmem:[#allocation2 + $0x30] sm:$0xff]
    %v3846 = vld [vmem:[#allocation2 + $0x38] sm:$0xf]
    %v3847 = vld [vmem:[#allocation2 + $0x40] sm:$0xff]
    %v3848 = vld [vmem:[#allocation2 + $0x48] sm:$0xff]
    %v3849 = vld [vmem:[#allocation2 + $0x50] sm:$0xff]
    %v3850 = vld [vmem:[#allocation2 + $0x58] sm:$0xf]
    %v3851 = vld [vmem:[#allocation2 + $0x60] sm:$0xff]
    %v3852 = vld [vmem:[#allocation2 + $0x68] sm:$0xff]
    %v3853 = vld [vmem:[#allocation2 + $0x70] sm:$0xff]
    %v3854 = vld [vmem:[#allocation2 + $0x78] sm:$0xf]
    %v3855 = vld [vmem:[#allocation2 + $0x80] sm:$0xff]
    %v3856 = vld [vmem:[#allocation2 + $0x88] sm:$0xff]
    %v3857 = vld [vmem:[#allocation2 + $0x90] sm:$0xff]
    %v3858 = vld [vmem:[#allocation2 + $0x98] sm:$0xf]
    %v3859 = vld [vmem:[#allocation2 + $0xa0] sm:$0xff]
    %v3860 = vld [vmem:[#allocation2 + $0xa8] sm:$0xff]
    %v3861 = vld [vmem:[#allocation2 + $0xb0] sm:$0xff]
    %v3862 = vld [vmem:[#allocation2 + $0xb8] sm:$0xf]
    %v3863 = vld [vmem:[#allocation2 + $0xc0] sm:$0xff]
    %v3864 = vld [vmem:[#allocation2 + $0xc8] sm:$0xff]
    %v3865 = vld [vmem:[#allocation2 + $0xd0] sm:$0xff]
    %v3866 = vld [vmem:[#allocation2 + $0xd8] sm:$0xf]
    %v3867 = vld [vmem:[#allocation2 + $0xe0] sm:$0xff]
    %v3868 = vld [vmem:[#allocation2 + $0xe8] sm:$0xff]
    %v3869 = vld [vmem:[#allocation2 + $0xf0] sm:$0xff]
    %v3870 = vld [vmem:[#allocation2 + $0xf8] sm:$0xf]
    %v3871 = vld [vmem:[#allocation2 + $0x100] sm:$0xff]
    %v3872 = vld [vmem:[#allocation2 + $0x108] sm:$0xff]
    %v3873 = vld [vmem:[#allocation2 + $0x110] sm:$0xff]
    %v3874 = vld [vmem:[#allocation2 + $0x118] sm:$0xf]
    %v3875 = vld [vmem:[#allocation2 + $0x120] sm:$0xff]
    %v3876 = vld [vmem:[#allocation2 + $0x128] sm:$0xff]
    %v3877 = vld [vmem:[#allocation2 + $0x130] sm:$0xff]
    %v3878 = vld [vmem:[#allocation2 + $0x138] sm:$0xf]
    %v3879 = vld [vmem:[#allocation2 + $0x140] sm:$0xff]
    %v3880 = vld [vmem:[#allocation2 + $0x148] sm:$0xff]
    %v3881 = vld [vmem:[#allocation2 + $0x150] sm:$0xff]
    %v3882 = vld [vmem:[#allocation2 + $0x158] sm:$0xf]
    %v3883 = vld [vmem:[#allocation2 + $0x160] sm:$0xff]
    %v3884 = vld [vmem:[#allocation2 + $0x168] sm:$0xff]
    %v3885 = vld [vmem:[#allocation2 + $0x170] sm:$0xff]
    %v3886 = vld [vmem:[#allocation2 + $0x178] sm:$0xf]
    %v3887 = vld [vmem:[#allocation2 + $0x180] sm:$0xff]
    %v3888 = vld [vmem:[#allocation2 + $0x188] sm:$0xff]
    %v3889 = vld [vmem:[#allocation2 + $0x190] sm:$0xff]
    %v3890 = vld [vmem:[#allocation2 + $0x198] sm:$0xf]
    %v3891 = vld [vmem:[#allocation2 + $0x1a0] sm:$0xff]
    %v3892 = vld [vmem:[#allocation2 + $0x1a8] sm:$0xff]
    %v3893 = vld [vmem:[#allocation2 + $0x1b0] sm:$0xff]
    %v3894 = vld [vmem:[#allocation2 + $0x1b8] sm:$0xf]
    %v3895 = vld [vmem:[#allocation2 + $0x1c0] sm:$0xff]
    %v3896 = vld [vmem:[#allocation2 + $0x1c8] sm:$0xff]
    %v3897 = vld [vmem:[#allocation2 + $0x1d0] sm:$0xff]
    %v3898 = vld [vmem:[#allocation2 + $0x1d8] sm:$0xf]
    %v3899 = vld [vmem:[#allocation2 + $0x1e0] sm:$0xff]
    %v3900 = vld [vmem:[#allocation2 + $0x1e8] sm:$0xff]
    %v3901 = vld [vmem:[#allocation2 + $0x1f0] sm:$0xff]
    %v3902 = vld [vmem:[#allocation2 + $0x1f8] sm:$0xf]
    %v3903 = vld [vmem:[#allocation2 + $0x200] sm:$0xff]
    %v3904 = vld [vmem:[#allocation2 + $0x208] sm:$0xff]
    %v3905 = vld [vmem:[#allocation2 + $0x210] sm:$0xff]
    %v3906 = vld [vmem:[#allocation2 + $0x218] sm:$0xf]
    %v3907 = vld [vmem:[#allocation2 + $0x220] sm:$0xff]
    %v3908 = vld [vmem:[#allocation2 + $0x228] sm:$0xff]
    %v3909 = vld [vmem:[#allocation2 + $0x230] sm:$0xff]
    %v3910 = vld [vmem:[#allocation2 + $0x238] sm:$0xf]
    %v3911 = vld [vmem:[#allocation2 + $0x240] sm:$0xff]
    %v3912 = vld [vmem:[#allocation2 + $0x248] sm:$0xff]
    %v3913 = vld [vmem:[#allocation2 + $0x250] sm:$0xff]
    %v3914 = vld [vmem:[#allocation2 + $0x258] sm:$0xf]
    %v3915 = vld [vmem:[#allocation2 + $0x260] sm:$0xff]
    %v3916 = vld [vmem:[#allocation2 + $0x268] sm:$0xff]
    %v3917 = vld [vmem:[#allocation2 + $0x270] sm:$0xff]
    %v3918 = vld [vmem:[#allocation2 + $0x278] sm:$0xf]
    %v3919 = vld [vmem:[#allocation2 + $0x280] sm:$0xff]
    %v3920 = vld [vmem:[#allocation2 + $0x288] sm:$0xff]
    %v3921 = vld [vmem:[#allocation2 + $0x290] sm:$0xff]
    %v3922 = vld [vmem:[#allocation2 + $0x298] sm:$0xf]
    %v3923 = vld [vmem:[#allocation2 + $0x2a0] sm:$0xff]
    %v3924 = vld [vmem:[#allocation2 + $0x2a8] sm:$0xff]
    %v3925 = vld [vmem:[#allocation2 + $0x2b0] sm:$0xff]
    %v3926 = vld [vmem:[#allocation2 + $0x2b8] sm:$0xf]
    %v3927 = vld [vmem:[#allocation2 + $0x2c0] sm:$0xff]
    %v3928 = vld [vmem:[#allocation2 + $0x2c8] sm:$0xff]
    %v3929 = vld [vmem:[#allocation2 + $0x2d0] sm:$0xff]
    %v3930 = vld [vmem:[#allocation2 + $0x2d8] sm:$0xf]
    %v3931 = vld [vmem:[#allocation2 + $0x2e0] sm:$0xff]
    %v3932 = vld [vmem:[#allocation2 + $0x2e8] sm:$0xff]
    %v3933 = vld [vmem:[#allocation2 + $0x2f0] sm:$0xff]
    %v3934 = vld [vmem:[#allocation2 + $0x2f8] sm:$0xf]
    %v3935 = vld [vmem:[#allocation2 + $0x300] sm:$0xff]
    %v3936 = vld [vmem:[#allocation2 + $0x308] sm:$0xff]
    %v3937 = vld [vmem:[#allocation2 + $0x310] sm:$0xff]
    %v3938 = vld [vmem:[#allocation2 + $0x318] sm:$0xf]
    %v3939 = vld [vmem:[#allocation2 + $0x320] sm:$0xff]
    %v3940 = vld [vmem:[#allocation2 + $0x328] sm:$0xff]
    %v3941 = vld [vmem:[#allocation2 + $0x330] sm:$0xff]
    %v3942 = vld [vmem:[#allocation2 + $0x338] sm:$0xf]
    %v3943 = vld [vmem:[#allocation2 + $0x340] sm:$0xff]
    %v3944 = vld [vmem:[#allocation2 + $0x348] sm:$0xff]
    %v3945 = vld [vmem:[#allocation2 + $0x350] sm:$0xff]
    %v3946 = vld [vmem:[#allocation2 + $0x358] sm:$0xf]
    %v3947 = vld [vmem:[#allocation2 + $0x360] sm:$0xff]
    %v3948 = vld [vmem:[#allocation2 + $0x368] sm:$0xff]
    %v3949 = vld [vmem:[#allocation2 + $0x370] sm:$0xff]
    %v3950 = vld [vmem:[#allocation2 + $0x378] sm:$0xf]
    %v3951 = vld [vmem:[#allocation2 + $0x380] sm:$0xff]
    %v3952 = vld [vmem:[#allocation2 + $0x388] sm:$0xff]
    %v3953 = vld [vmem:[#allocation2 + $0x390] sm:$0xff]
    %v3954 = vld [vmem:[#allocation2 + $0x398] sm:$0xf]
    %v3955 = vld [vmem:[#allocation2 + $0x3a0] sm:$0xff]
    %v3956 = vld [vmem:[#allocation2 + $0x3a8] sm:$0xff]
    %v3957 = vld [vmem:[#allocation2 + $0x3b0] sm:$0xff]
    %v3958 = vld [vmem:[#allocation2 + $0x3b8] sm:$0xf]
    %v3959 = vld [vmem:[#allocation2 + $0x3c0] sm:$0xff]
    %v3960 = vld [vmem:[#allocation2 + $0x3c8] sm:$0xff]
    %v3961 = vld [vmem:[#allocation2 + $0x3d0] sm:$0xff]
    %v3962 = vld [vmem:[#allocation2 + $0x3d8] sm:$0xf]
    %v3963 = vld [vmem:[#allocation2 + $0x3e0] sm:$0xff]
    %v3964 = vld [vmem:[#allocation2 + $0x3e8] sm:$0xff]
    %v3965 = vld [vmem:[#allocation2 + $0x3f0] sm:$0xff]
    %v3966 = vld [vmem:[#allocation2 + $0x3f8] sm:$0xf]
    %v3967 = vld [vmem:[#allocation2 + $0x400] sm:$0xff]
    %v3968 = vld [vmem:[#allocation2 + $0x408] sm:$0xff]
    %v3969 = vld [vmem:[#allocation2 + $0x410] sm:$0xff]
    %v3970 = vld [vmem:[#allocation2 + $0x418] sm:$0xf]
    %v3971 = vld [vmem:[#allocation2 + $0x420] sm:$0xff]
    %v3972 = vld [vmem:[#allocation2 + $0x428] sm:$0xff]
    %v3973 = vld [vmem:[#allocation2 + $0x430] sm:$0xff]
    %v3974 = vld [vmem:[#allocation2 + $0x438] sm:$0xf]
    %v3975 = vld [vmem:[#allocation2 + $0x440] sm:$0xff]
    %v3976 = vld [vmem:[#allocation2 + $0x448] sm:$0xff]
    %v3977 = vld [vmem:[#allocation2 + $0x450] sm:$0xff]
    %v3978 = vld [vmem:[#allocation2 + $0x458] sm:$0xf]
    %v3979 = vld [vmem:[#allocation2 + $0x460] sm:$0xff]
    %v3980 = vld [vmem:[#allocation2 + $0x468] sm:$0xff]
    %v3981 = vld [vmem:[#allocation2 + $0x470] sm:$0xff]
    %v3982 = vld [vmem:[#allocation2 + $0x478] sm:$0xf]
    %s3983 = scalar_lea.vmem %s2, 96
    %v3984 = vld [vmem:[%s3983] sm:$0xff]
    %v3985 = vld [vmem:[%s3983 + $0x8] sm:$0xff]
    %v3986 = vld [vmem:[%s3983 + $0x10] sm:$0xff]
    %v3987 = vld [vmem:[%s3983 + $0x18] sm:$0xff]
    %3989 = vset.pattern.permute.xlu0 0
    %3990 = vperm.xlu0 %3989, %v3984
    %v3991 = vpop.permute.xlu0 %3990
    %3994 = vset.pattern.permute.xlu0 0
    %3995 = vperm.xlu0 %3994, %v3985
    %v3996 = vpop.permute.xlu0 %3995
    %3999 = vset.pattern.permute.xlu0 0
    %4000 = vperm.xlu0 %3999, %v3986
    %v4001 = vpop.permute.xlu0 %4000
    %4004 = vset.pattern.permute.xlu0 0
    %4005 = vperm.xlu0 %4004, %v3987
    %v4006 = vpop.permute.xlu0 %4005
    %v4016 = vunpack.c.l.b16 %v3831
    %v4017 = vunpack.c.h.b16 %v3831
    %v4018 = vunpack.c.l.b16 %v3832
    %v4019 = vunpack.c.l.b16 %v3833
    %v4020 = vunpack.c.h.b16 %v3833
    %v4021 = vunpack.c.l.b16 %v3834
    %v4022 = vunpack.c.l.b16 %v3835
    %v4023 = vunpack.c.h.b16 %v3835
    %v4024 = vunpack.c.l.b16 %v3836
    %v4025 = vunpack.c.l.b16 %v3837
    %v4026 = vunpack.c.h.b16 %v3837
    %v4027 = vunpack.c.l.b16 %v3838
    %v4028 = vpack.c.b16 %v4019, %v4016
    %v4029 = vpack.c.b16 %v4020, %v4017
    %v4030 = vpack.c.b16 %v4021, %v4018
    %v4031 = vpack.c.b16 %v4025, %v4022
    %v4032 = vpack.c.b16 %v4026, %v4023
    %v4033 = vpack.c.b16 %v4027, %v4024
    %v4182 = vunpack.c.l.b16 %v3839
    %v4183 = vunpack.c.h.b16 %v3839
    %v4184 = vunpack.c.l.b16 %v3840
    %v4185 = vunpack.c.h.b16 %v3840
    %v4186 = vunpack.c.l.b16 %v3841
    %v4187 = vunpack.c.h.b16 %v3841
    %v4188 = vunpack.c.l.b16 %v3842
    %v4189 = vunpack.c.l.b16 %v3843
    %v4190 = vunpack.c.h.b16 %v3843
    %v4191 = vunpack.c.l.b16 %v3844
    %v4192 = vunpack.c.h.b16 %v3844
    %v4193 = vunpack.c.l.b16 %v3845
    %v4194 = vunpack.c.h.b16 %v3845
    %v4195 = vunpack.c.l.b16 %v3846
    %v4196 = vunpack.c.l.b16 %v3847
    %v4197 = vunpack.c.h.b16 %v3847
    %v4198 = vunpack.c.l.b16 %v3848
    %v4199 = vunpack.c.h.b16 %v3848
    %v4200 = vunpack.c.l.b16 %v3849
    %v4201 = vunpack.c.h.b16 %v3849
    %v4202 = vunpack.c.l.b16 %v3850
    %v4203 = vunpack.c.l.b16 %v3851
    %v4204 = vunpack.c.h.b16 %v3851
    %v4205 = vunpack.c.l.b16 %v3852
    %v4206 = vunpack.c.h.b16 %v3852
    %v4207 = vunpack.c.l.b16 %v3853
    %v4208 = vunpack.c.h.b16 %v3853
    %v4209 = vunpack.c.l.b16 %v3854
    %v4210 = vunpack.c.l.b16 %v3855
    %v4211 = vunpack.c.h.b16 %v3855
    %v4212 = vunpack.c.l.b16 %v3856
    %v4213 = vunpack.c.h.b16 %v3856
    %v4214 = vunpack.c.l.b16 %v3857
    %v4215 = vunpack.c.h.b16 %v3857
    %v4216 = vunpack.c.l.b16 %v3858
    %v4217 = vunpack.c.l.b16 %v3859
    %v4218 = vunpack.c.h.b16 %v3859
    %v4219 = vunpack.c.l.b16 %v3860
    %v4220 = vunpack.c.h.b16 %v3860
    %v4221 = vunpack.c.l.b16 %v3861
    %v4222 = vunpack.c.h.b16 %v3861
    %v4223 = vunpack.c.l.b16 %v3862
    %v4224 = vunpack.c.l.b16 %v3863
    %v4225 = vunpack.c.h.b16 %v3863
    %v4226 = vunpack.c.l.b16 %v3864
    %v4227 = vunpack.c.h.b16 %v3864
    %v4228 = vunpack.c.l.b16 %v3865
    %v4229 = vunpack.c.h.b16 %v3865
    %v4230 = vunpack.c.l.b16 %v3866
    %v4231 = vunpack.c.l.b16 %v3867
    %v4232 = vunpack.c.h.b16 %v3867
    %v4233 = vunpack.c.l.b16 %v3868
    %v4234 = vunpack.c.h.b16 %v3868
    %v4235 = vunpack.c.l.b16 %v3869
    %v4236 = vunpack.c.h.b16 %v3869
    %v4237 = vunpack.c.l.b16 %v3870
    %v4238 = vunpack.c.l.b16 %v3871
    %v4239 = vunpack.c.h.b16 %v3871
    %v4240 = vunpack.c.l.b16 %v3872
    %v4241 = vunpack.c.h.b16 %v3872
    %v4242 = vunpack.c.l.b16 %v3873
    %v4243 = vunpack.c.h.b16 %v3873
    %v4244 = vunpack.c.l.b16 %v3874
    %v4245 = vunpack.c.l.b16 %v3875
    %v4246 = vunpack.c.h.b16 %v3875
    %v4247 = vunpack.c.l.b16 %v3876
    %v4248 = vunpack.c.h.b16 %v3876
    %v4249 = vunpack.c.l.b16 %v3877
    %v4250 = vunpack.c.h.b16 %v3877
    %v4251 = vunpack.c.l.b16 %v3878
    %v4252 = vunpack.c.l.b16 %v3879
    %v4253 = vunpack.c.h.b16 %v3879
    %v4254 = vunpack.c.l.b16 %v3880
    %v4255 = vunpack.c.h.b16 %v3880
    %v4256 = vunpack.c.l.b16 %v3881
    %v4257 = vunpack.c.h.b16 %v3881
    %v4258 = vunpack.c.l.b16 %v3882
    %v4259 = vunpack.c.l.b16 %v3883
    %v4260 = vunpack.c.h.b16 %v3883
    %v4261 = vunpack.c.l.b16 %v3884
    %v4262 = vunpack.c.h.b16 %v3884
    %v4263 = vunpack.c.l.b16 %v3885
    %v4264 = vunpack.c.h.b16 %v3885
    %v4265 = vunpack.c.l.b16 %v3886
    %v4266 = vunpack.c.l.b16 %v3887
    %v4267 = vunpack.c.h.b16 %v3887
    %v4268 = vunpack.c.l.b16 %v3888
    %v4269 = vunpack.c.h.b16 %v3888
    %v4270 = vunpack.c.l.b16 %v3889
    %v4271 = vunpack.c.h.b16 %v3889
    %v4272 = vunpack.c.l.b16 %v3890
    %v4273 = vunpack.c.l.b16 %v3891
    %v4274 = vunpack.c.h.b16 %v3891
    %v4275 = vunpack.c.l.b16 %v3892
    %v4276 = vunpack.c.h.b16 %v3892
    %v4277 = vunpack.c.l.b16 %v3893
    %v4278 = vunpack.c.h.b16 %v3893
    %v4279 = vunpack.c.l.b16 %v3894
    %v4280 = vunpack.c.l.b16 %v3895
    %v4281 = vunpack.c.h.b16 %v3895
    %v4282 = vunpack.c.l.b16 %v3896
    %v4283 = vunpack.c.h.b16 %v3896
    %v4284 = vunpack.c.l.b16 %v3897
    %v4285 = vunpack.c.h.b16 %v3897
    %v4286 = vunpack.c.l.b16 %v3898
    %v4287 = vunpack.c.l.b16 %v3899
    %v4288 = vunpack.c.h.b16 %v3899
    %v4289 = vunpack.c.l.b16 %v3900
    %v4290 = vunpack.c.h.b16 %v3900
    %v4291 = vunpack.c.l.b16 %v3901
    %v4292 = vunpack.c.h.b16 %v3901
    %v4293 = vunpack.c.l.b16 %v3902
    %v4294 = vunpack.c.l.b16 %v3903
    %v4295 = vunpack.c.h.b16 %v3903
    %v4296 = vunpack.c.l.b16 %v3904
    %v4297 = vunpack.c.h.b16 %v3904
    %v4298 = vunpack.c.l.b16 %v3905
    %v4299 = vunpack.c.h.b16 %v3905
    %v4300 = vunpack.c.l.b16 %v3906
    %v4301 = vunpack.c.l.b16 %v3907
    %v4302 = vunpack.c.h.b16 %v3907
    %v4303 = vunpack.c.l.b16 %v3908
    %v4304 = vunpack.c.h.b16 %v3908
    %v4305 = vunpack.c.l.b16 %v3909
    %v4306 = vunpack.c.h.b16 %v3909
    %v4307 = vunpack.c.l.b16 %v3910
    %v4308 = vunpack.c.l.b16 %v3911
    %v4309 = vunpack.c.h.b16 %v3911
    %v4310 = vunpack.c.l.b16 %v3912
    %v4311 = vunpack.c.h.b16 %v3912
    %v4312 = vunpack.c.l.b16 %v3913
    %v4313 = vunpack.c.h.b16 %v3913
    %v4314 = vunpack.c.l.b16 %v3914
    %v4315 = vunpack.c.l.b16 %v3915
    %v4316 = vunpack.c.h.b16 %v3915
    %v4317 = vunpack.c.l.b16 %v3916
    %v4318 = vunpack.c.h.b16 %v3916
    %v4319 = vunpack.c.l.b16 %v3917
    %v4320 = vunpack.c.h.b16 %v3917
    %v4321 = vunpack.c.l.b16 %v3918
    %v4322 = vunpack.c.l.b16 %v3919
    %v4323 = vunpack.c.h.b16 %v3919
    %v4324 = vunpack.c.l.b16 %v3920
    %v4325 = vunpack.c.h.b16 %v3920
    %v4326 = vunpack.c.l.b16 %v3921
    %v4327 = vunpack.c.h.b16 %v3921
    %v4328 = vunpack.c.l.b16 %v3922
    %v4329 = vunpack.c.l.b16 %v3923
    %v4330 = vunpack.c.h.b16 %v3923
    %v4331 = vunpack.c.l.b16 %v3924
    %v4332 = vunpack.c.h.b16 %v3924
    %v4333 = vunpack.c.l.b16 %v3925
    %v4334 = vunpack.c.h.b16 %v3925
    %v4335 = vunpack.c.l.b16 %v3926
    %v4336 = vunpack.c.l.b16 %v3927
    %v4337 = vunpack.c.h.b16 %v3927
    %v4338 = vunpack.c.l.b16 %v3928
    %v4339 = vunpack.c.h.b16 %v3928
    %v4340 = vunpack.c.l.b16 %v3929
    %v4341 = vunpack.c.h.b16 %v3929
    %v4342 = vunpack.c.l.b16 %v3930
    %v4343 = vunpack.c.l.b16 %v3931
    %v4344 = vunpack.c.h.b16 %v3931
    %v4345 = vunpack.c.l.b16 %v3932
    %v4346 = vunpack.c.h.b16 %v3932
    %v4347 = vunpack.c.l.b16 %v3933
    %v4348 = vunpack.c.h.b16 %v3933
    %v4349 = vunpack.c.l.b16 %v3934
    %v4350 = vunpack.c.l.b16 %v3935
    %v4351 = vunpack.c.h.b16 %v3935
    %v4352 = vunpack.c.l.b16 %v3936
    %v4353 = vunpack.c.h.b16 %v3936
    %v4354 = vunpack.c.l.b16 %v3937
    %v4355 = vunpack.c.h.b16 %v3937
    %v4356 = vunpack.c.l.b16 %v3938
    %v4357 = vunpack.c.l.b16 %v3939
    %v4358 = vunpack.c.h.b16 %v3939
    %v4359 = vunpack.c.l.b16 %v3940
    %v4360 = vunpack.c.h.b16 %v3940
    %v4361 = vunpack.c.l.b16 %v3941
    %v4362 = vunpack.c.h.b16 %v3941
    %v4363 = vunpack.c.l.b16 %v3942
    %v4364 = vunpack.c.l.b16 %v3943
    %v4365 = vunpack.c.h.b16 %v3943
    %v4366 = vunpack.c.l.b16 %v3944
    %v4367 = vunpack.c.h.b16 %v3944
    %v4368 = vunpack.c.l.b16 %v3945
    %v4369 = vunpack.c.h.b16 %v3945
    %v4370 = vunpack.c.l.b16 %v3946
    %v4371 = vunpack.c.l.b16 %v3947
    %v4372 = vunpack.c.h.b16 %v3947
    %v4373 = vunpack.c.l.b16 %v3948
    %v4374 = vunpack.c.h.b16 %v3948
    %v4375 = vunpack.c.l.b16 %v3949
    %v4376 = vunpack.c.h.b16 %v3949
    %v4377 = vunpack.c.l.b16 %v3950
    %v4378 = vunpack.c.l.b16 %v3951
    %v4379 = vunpack.c.h.b16 %v3951
    %v4380 = vunpack.c.l.b16 %v3952
    %v4381 = vunpack.c.h.b16 %v3952
    %v4382 = vunpack.c.l.b16 %v3953
    %v4383 = vunpack.c.h.b16 %v3953
    %v4384 = vunpack.c.l.b16 %v3954
    %v4385 = vunpack.c.l.b16 %v3955
    %v4386 = vunpack.c.h.b16 %v3955
    %v4387 = vunpack.c.l.b16 %v3956
    %v4388 = vunpack.c.h.b16 %v3956
    %v4389 = vunpack.c.l.b16 %v3957
    %v4390 = vunpack.c.h.b16 %v3957
    %v4391 = vunpack.c.l.b16 %v3958
    %v4392 = vunpack.c.l.b16 %v3959
    %v4393 = vunpack.c.h.b16 %v3959
    %v4394 = vunpack.c.l.b16 %v3960
    %v4395 = vunpack.c.h.b16 %v3960
    %v4396 = vunpack.c.l.b16 %v3961
    %v4397 = vunpack.c.h.b16 %v3961
    %v4398 = vunpack.c.l.b16 %v3962
    %v4399 = vunpack.c.l.b16 %v3963
    %v4400 = vunpack.c.h.b16 %v3963
    %v4401 = vunpack.c.l.b16 %v3964
    %v4402 = vunpack.c.h.b16 %v3964
    %v4403 = vunpack.c.l.b16 %v3965
    %v4404 = vunpack.c.h.b16 %v3965
    %v4405 = vunpack.c.l.b16 %v3966
    %v4406 = vunpack.c.l.b16 %v3967
    %v4407 = vunpack.c.h.b16 %v3967
    %v4408 = vunpack.c.l.b16 %v3968
    %v4409 = vunpack.c.h.b16 %v3968
    %v4410 = vunpack.c.l.b16 %v3969
    %v4411 = vunpack.c.h.b16 %v3969
    %v4412 = vunpack.c.l.b16 %v3970
    %v4413 = vunpack.c.l.b16 %v3971
    %v4414 = vunpack.c.h.b16 %v3971
    %v4415 = vunpack.c.l.b16 %v3972
    %v4416 = vunpack.c.h.b16 %v3972
    %v4417 = vunpack.c.l.b16 %v3973
    %v4418 = vunpack.c.h.b16 %v3973
    %v4419 = vunpack.c.l.b16 %v3974
    %v4420 = vunpack.c.l.b16 %v3975
    %v4421 = vunpack.c.h.b16 %v3975
    %v4422 = vunpack.c.l.b16 %v3976
    %v4423 = vunpack.c.h.b16 %v3976
    %v4424 = vunpack.c.l.b16 %v3977
    %v4425 = vunpack.c.h.b16 %v3977
    %v4426 = vunpack.c.l.b16 %v3978
    %v4427 = vunpack.c.l.b16 %v3979
    %v4428 = vunpack.c.h.b16 %v3979
    %v4429 = vunpack.c.l.b16 %v3980
    %v4430 = vunpack.c.h.b16 %v3980
    %v4431 = vunpack.c.l.b16 %v3981
    %v4432 = vunpack.c.h.b16 %v3981
    %v4433 = vunpack.c.l.b16 %v3982
    %v4434 = vpack.c.b16 %v4189, %v4182
    %v4435 = vpack.c.b16 %v4190, %v4183
    %v4436 = vpack.c.b16 %v4191, %v4184
    %v4437 = vpack.c.b16 %v4192, %v4185
    %v4438 = vpack.c.b16 %v4193, %v4186
    %v4439 = vpack.c.b16 %v4194, %v4187
    %v4440 = vpack.c.b16 %v4195, %v4188
    %v4441 = vpack.c.b16 %v4203, %v4196
    %v4442 = vpack.c.b16 %v4204, %v4197
    %v4443 = vpack.c.b16 %v4205, %v4198
    %v4444 = vpack.c.b16 %v4206, %v4199
    %v4445 = vpack.c.b16 %v4207, %v4200
    %v4446 = vpack.c.b16 %v4208, %v4201
    %v4447 = vpack.c.b16 %v4209, %v4202
    %v4448 = vpack.c.b16 %v4217, %v4210
    %v4449 = vpack.c.b16 %v4218, %v4211
    %v4450 = vpack.c.b16 %v4219, %v4212
    %v4451 = vpack.c.b16 %v4220, %v4213
    %v4452 = vpack.c.b16 %v4221, %v4214
    %v4453 = vpack.c.b16 %v4222, %v4215
    %v4454 = vpack.c.b16 %v4223, %v4216
    %v4455 = vpack.c.b16 %v4231, %v4224
    %v4456 = vpack.c.b16 %v4232, %v4225
    %v4457 = vpack.c.b16 %v4233, %v4226
    %v4458 = vpack.c.b16 %v4234, %v4227
    %v4459 = vpack.c.b16 %v4235, %v4228
    %v4460 = vpack.c.b16 %v4236, %v4229
    %v4461 = vpack.c.b16 %v4237, %v4230
    %v4462 = vpack.c.b16 %v4245, %v4238
    %v4463 = vpack.c.b16 %v4246, %v4239
    %v4464 = vpack.c.b16 %v4247, %v4240
    %v4465 = vpack.c.b16 %v4248, %v4241
    %v4466 = vpack.c.b16 %v4249, %v4242
    %v4467 = vpack.c.b16 %v4250, %v4243
    %v4468 = vpack.c.b16 %v4251, %v4244
    %v4469 = vpack.c.b16 %v4259, %v4252
    %v4470 = vpack.c.b16 %v4260, %v4253
    %v4471 = vpack.c.b16 %v4261, %v4254
    %v4472 = vpack.c.b16 %v4262, %v4255
    %v4473 = vpack.c.b16 %v4263, %v4256
    %v4474 = vpack.c.b16 %v4264, %v4257
    %v4475 = vpack.c.b16 %v4265, %v4258
    %v4476 = vpack.c.b16 %v4273, %v4266
    %v4477 = vpack.c.b16 %v4274, %v4267
    %v4478 = vpack.c.b16 %v4275, %v4268
    %v4479 = vpack.c.b16 %v4276, %v4269
    %v4480 = vpack.c.b16 %v4277, %v4270
    %v4481 = vpack.c.b16 %v4278, %v4271
    %v4482 = vpack.c.b16 %v4279, %v4272
    %v4483 = vpack.c.b16 %v4287, %v4280
    %v4484 = vpack.c.b16 %v4288, %v4281
    %v4485 = vpack.c.b16 %v4289, %v4282
    %v4486 = vpack.c.b16 %v4290, %v4283
    %v4487 = vpack.c.b16 %v4291, %v4284
    %v4488 = vpack.c.b16 %v4292, %v4285
    %v4489 = vpack.c.b16 %v4293, %v4286
    %v4490 = vpack.c.b16 %v4301, %v4294
    %v4491 = vpack.c.b16 %v4302, %v4295
    %v4492 = vpack.c.b16 %v4303, %v4296
    %v4493 = vpack.c.b16 %v4304, %v4297
    %v4494 = vpack.c.b16 %v4305, %v4298
    %v4495 = vpack.c.b16 %v4306, %v4299
    %v4496 = vpack.c.b16 %v4307, %v4300
    %v4497 = vpack.c.b16 %v4315, %v4308
    %v4498 = vpack.c.b16 %v4316, %v4309
    %v4499 = vpack.c.b16 %v4317, %v4310
    %v4500 = vpack.c.b16 %v4318, %v4311
    %v4501 = vpack.c.b16 %v4319, %v4312
    %v4502 = vpack.c.b16 %v4320, %v4313
    %v4503 = vpack.c.b16 %v4321, %v4314
    %v4504 = vpack.c.b16 %v4329, %v4322
    %v4505 = vpack.c.b16 %v4330, %v4323
    %v4506 = vpack.c.b16 %v4331, %v4324
    %v4507 = vpack.c.b16 %v4332, %v4325
    %v4508 = vpack.c.b16 %v4333, %v4326
    %v4509 = vpack.c.b16 %v4334, %v4327
    %v4510 = vpack.c.b16 %v4335, %v4328
    %v4511 = vpack.c.b16 %v4343, %v4336
    %v4512 = vpack.c.b16 %v4344, %v4337
    %v4513 = vpack.c.b16 %v4345, %v4338
    %v4514 = vpack.c.b16 %v4346, %v4339
    %v4515 = vpack.c.b16 %v4347, %v4340
    %v4516 = vpack.c.b16 %v4348, %v4341
    %v4517 = vpack.c.b16 %v4349, %v4342
    %v4518 = vpack.c.b16 %v4357, %v4350
    %v4519 = vpack.c.b16 %v4358, %v4351
    %v4520 = vpack.c.b16 %v4359, %v4352
    %v4521 = vpack.c.b16 %v4360, %v4353
    %v4522 = vpack.c.b16 %v4361, %v4354
    %v4523 = vpack.c.b16 %v4362, %v4355
    %v4524 = vpack.c.b16 %v4363, %v4356
    %v4525 = vpack.c.b16 %v4371, %v4364
    %v4526 = vpack.c.b16 %v4372, %v4365
    %v4527 = vpack.c.b16 %v4373, %v4366
    %v4528 = vpack.c.b16 %v4374, %v4367
    %v4529 = vpack.c.b16 %v4375, %v4368
    %v4530 = vpack.c.b16 %v4376, %v4369
    %v4531 = vpack.c.b16 %v4377, %v4370
    %v4532 = vpack.c.b16 %v4385, %v4378
    %v4533 = vpack.c.b16 %v4386, %v4379
    %v4534 = vpack.c.b16 %v4387, %v4380
    %v4535 = vpack.c.b16 %v4388, %v4381
    %v4536 = vpack.c.b16 %v4389, %v4382
    %v4537 = vpack.c.b16 %v4390, %v4383
    %v4538 = vpack.c.b16 %v4391, %v4384
    %v4539 = vpack.c.b16 %v4399, %v4392
    %v4540 = vpack.c.b16 %v4400, %v4393
    %v4541 = vpack.c.b16 %v4401, %v4394
    %v4542 = vpack.c.b16 %v4402, %v4395
    %v4543 = vpack.c.b16 %v4403, %v4396
    %v4544 = vpack.c.b16 %v4404, %v4397
    %v4545 = vpack.c.b16 %v4405, %v4398
    %v4546 = vpack.c.b16 %v4413, %v4406
    %v4547 = vpack.c.b16 %v4414, %v4407
    %v4548 = vpack.c.b16 %v4415, %v4408
    %v4549 = vpack.c.b16 %v4416, %v4409
    %v4550 = vpack.c.b16 %v4417, %v4410
    %v4551 = vpack.c.b16 %v4418, %v4411
    %v4552 = vpack.c.b16 %v4419, %v4412
    %v4553 = vpack.c.b16 %v4427, %v4420
    %v4554 = vpack.c.b16 %v4428, %v4421
    %v4555 = vpack.c.b16 %v4429, %v4422
    %v4556 = vpack.c.b16 %v4430, %v4423
    %v4557 = vpack.c.b16 %v4431, %v4424
    %v4558 = vpack.c.b16 %v4432, %v4425
    %v4559 = vpack.c.b16 %v4433, %v4426
    %v4687 = vsel %vm2002, %v4030, 0
    %v4690 = vsel %vm2002, %v4033, 0
    %4692 = vmatpush.bf16.msra.mxu0 %v4483
    %4693 = vmatpush.bf16.msra.mxu0 %v4476
    %4694 = vmatpush.bf16.msra.mxu0 %v4469
    %4695 = vmatpush.bf16.msra.mxu0 %v4462
    %4696 = vmatpush.bf16.msra.mxu0 %v4455
    %4697 = vmatpush.bf16.msra.mxu0 %v4448
    %4698 = vmatpush.bf16.msra.mxu0 %v4441
    %4699 = vmatpush.bf16.msra.mxu0 %v4434
    %4700 = vmatmul.bf16.gmra.mxu0 %v4028
    %v4701 = vpop.f32.mrf.mxu0
    %v4702 = vadd.f32 %v3991, %v4701
    %v4703 = vpop.f32.mrf.mxu0
    %v4704 = vadd.f32 %v3996, %v4703
    %4705 = vmatmul.bf16.gmra.mxu0 %v4031
    %v4706 = vpop.f32.mrf.mxu0
    %v4707 = vadd.f32 %v4001, %v4706
    %v4708 = vpop.f32.mrf.mxu0
    %v4709 = vadd.f32 %v4006, %v4708
    %4710 = vdwg.mxu0
    %4711 = vmatpush.bf16.msra.mxu0 %v4539
    %4712 = vmatpush.bf16.msra.mxu0 %v4532
    %4713 = vmatpush.bf16.msra.mxu0 %v4525
    %4714 = vmatpush.bf16.msra.mxu0 %v4518
    %4715 = vmatpush.bf16.msra.mxu0 %v4511
    %4716 = vmatpush.bf16.msra.mxu0 %v4504
    %4717 = vmatpush.bf16.msra.mxu0 %v4497
    %4718 = vmatpush.bf16.msra.mxu0 %v4490
    %4719 = vmatmul.bf16.gmra.mxu0 %v4029
    %v4720 = vpop.f32.mrf.mxu0
    %v4721 = vadd.f32 %v4702, %v4720
    %v4722 = vpop.f32.mrf.mxu0
    %v4723 = vadd.f32 %v4704, %v4722
    %4724 = vmatmul.bf16.gmra.mxu0 %v4032
    %v4725 = vpop.f32.mrf.mxu0
    %v4726 = vadd.f32 %v4707, %v4725
    %v4727 = vpop.f32.mrf.mxu0
    %v4728 = vadd.f32 %v4709, %v4727
    %4729 = vdwg.mxu0
    %4730 = vmatpush.bf16.msra.mxu0 0
    %4731 = vmatpush.bf16.msra.mxu0 0
    %4732 = vmatpush.bf16.msra.mxu0 0
    %4733 = vmatpush.bf16.msra.mxu0 0
    %4734 = vmatpush.bf16.msra.mxu0 0
    %4735 = vmatpush.bf16.msra.mxu0 0
    %4736 = vmatpush.bf16.msra.mxu0 %v4553
    %4737 = vmatpush.bf16.msra.mxu0 %v4546
    %4738 = vmatmul.bf16.gmra.mxu0 %v4687
    %v4739 = vpop.f32.mrf.mxu0
    %v4740 = vadd.f32 %v4721, %v4739
    %v4741 = vpop.f32.mrf.mxu0
    %v4742 = vadd.f32 %v4723, %v4741
    %4743 = vmatmul.bf16.gmra.mxu0 %v4690
    %v4744 = vpop.f32.mrf.mxu0
    %v4745 = vadd.f32 %v4726, %v4744
    %v4746 = vpop.f32.mrf.mxu0
    %v4747 = vadd.f32 %v4728, %v4746
    %4748 = vdwg.mxu0
    %4749 = vmatpush.bf16.msra.mxu0 %v4484
    %4750 = vmatpush.bf16.msra.mxu0 %v4477
    %4751 = vmatpush.bf16.msra.mxu0 %v4470
    %4752 = vmatpush.bf16.msra.mxu0 %v4463
    %4753 = vmatpush.bf16.msra.mxu0 %v4456
    %4754 = vmatpush.bf16.msra.mxu0 %v4449
    %4755 = vmatpush.bf16.msra.mxu0 %v4442
    %4756 = vmatpush.bf16.msra.mxu0 %v4435
    %4757 = vmatmul.bf16.gmra.mxu0 %v4028
    %v4758 = vpop.f32.mrf.mxu0
    %v4759 = vadd.f32 %v3991, %v4758
    %v4760 = vpop.f32.mrf.mxu0
    %v4761 = vadd.f32 %v3996, %v4760
    %4762 = vmatmul.bf16.gmra.mxu0 %v4031
    %v4763 = vpop.f32.mrf.mxu0
    %v4764 = vadd.f32 %v4001, %v4763
    %v4765 = vpop.f32.mrf.mxu0
    %v4766 = vadd.f32 %v4006, %v4765
    %4767 = vdwg.mxu0
    %4768 = vmatpush.bf16.msra.mxu0 %v4540
    %4769 = vmatpush.bf16.msra.mxu0 %v4533
    %4770 = vmatpush.bf16.msra.mxu0 %v4526
    %4771 = vmatpush.bf16.msra.mxu0 %v4519
    %4772 = vmatpush.bf16.msra.mxu0 %v4512
    %4773 = vmatpush.bf16.msra.mxu0 %v4505
    %4774 = vmatpush.bf16.msra.mxu0 %v4498
    %4775 = vmatpush.bf16.msra.mxu0 %v4491
    %4776 = vmatmul.bf16.gmra.mxu0 %v4029
    %v4777 = vpop.f32.mrf.mxu0
    %v4778 = vadd.f32 %v4759, %v4777
    %v4779 = vpop.f32.mrf.mxu0
    %v4780 = vadd.f32 %v4761, %v4779
    %4781 = vmatmul.bf16.gmra.mxu0 %v4032
    %v4782 = vpop.f32.mrf.mxu0
    %v4783 = vadd.f32 %v4764, %v4782
    %v4784 = vpop.f32.mrf.mxu0
    %v4785 = vadd.f32 %v4766, %v4784
    %4786 = vdwg.mxu0
    %4787 = vmatpush.bf16.msra.mxu0 0
    %4788 = vmatpush.bf16.msra.mxu0 0
    %4789 = vmatpush.bf16.msra.mxu0 0
    %4790 = vmatpush.bf16.msra.mxu0 0
    %4791 = vmatpush.bf16.msra.mxu0 0
    %4792 = vmatpush.bf16.msra.mxu0 0
    %4793 = vmatpush.bf16.msra.mxu0 %v4554
    %4794 = vmatpush.bf16.msra.mxu0 %v4547
    %4795 = vmatmul.bf16.gmra.mxu0 %v4687
    %v4796 = vpop.f32.mrf.mxu0
    %v4797 = vadd.f32 %v4778, %v4796
    %v4798 = vpop.f32.mrf.mxu0
    %v4799 = vadd.f32 %v4780, %v4798
    %4800 = vmatmul.bf16.gmra.mxu0 %v4690
    %v4801 = vpop.f32.mrf.mxu0
    %v4802 = vadd.f32 %v4783, %v4801
    %v4803 = vpop.f32.mrf.mxu0
    %v4804 = vadd.f32 %v4785, %v4803
    %4805 = vdwg.mxu0
    %4806 = vmatpush.bf16.msra.mxu0 %v4485
    %4807 = vmatpush.bf16.msra.mxu0 %v4478
    %4808 = vmatpush.bf16.msra.mxu0 %v4471
    %4809 = vmatpush.bf16.msra.mxu0 %v4464
    %4810 = vmatpush.bf16.msra.mxu0 %v4457
    %4811 = vmatpush.bf16.msra.mxu0 %v4450
    %4812 = vmatpush.bf16.msra.mxu0 %v4443
    %4813 = vmatpush.bf16.msra.mxu0 %v4436
    %4814 = vmatmul.bf16.gmra.mxu0 %v4028
    %v4815 = vpop.f32.mrf.mxu0
    %v4816 = vadd.f32 %v3991, %v4815
    %v4817 = vpop.f32.mrf.mxu0
    %v4818 = vadd.f32 %v3996, %v4817
    %4819 = vmatmul.bf16.gmra.mxu0 %v4031
    %v4820 = vpop.f32.mrf.mxu0
    %v4821 = vadd.f32 %v4001, %v4820
    %v4822 = vpop.f32.mrf.mxu0
    %v4823 = vadd.f32 %v4006, %v4822
    %4824 = vdwg.mxu0
    %4825 = vmatpush.bf16.msra.mxu0 %v4541
    %4826 = vmatpush.bf16.msra.mxu0 %v4534
    %4827 = vmatpush.bf16.msra.mxu0 %v4527
    %4828 = vmatpush.bf16.msra.mxu0 %v4520
    %4829 = vmatpush.bf16.msra.mxu0 %v4513
    %4830 = vmatpush.bf16.msra.mxu0 %v4506
    %4831 = vmatpush.bf16.msra.mxu0 %v4499
    %4832 = vmatpush.bf16.msra.mxu0 %v4492
    %4833 = vmatmul.bf16.gmra.mxu0 %v4029
    %v4834 = vpop.f32.mrf.mxu0
    %v4835 = vadd.f32 %v4816, %v4834
    %v4836 = vpop.f32.mrf.mxu0
    %v4837 = vadd.f32 %v4818, %v4836
    %4838 = vmatmul.bf16.gmra.mxu0 %v4032
    %v4839 = vpop.f32.mrf.mxu0
    %v4840 = vadd.f32 %v4821, %v4839
    %v4841 = vpop.f32.mrf.mxu0
    %v4842 = vadd.f32 %v4823, %v4841
    %4843 = vdwg.mxu0
    %4844 = vmatpush.bf16.msra.mxu0 0
    %4845 = vmatpush.bf16.msra.mxu0 0
    %4846 = vmatpush.bf16.msra.mxu0 0
    %4847 = vmatpush.bf16.msra.mxu0 0
    %4848 = vmatpush.bf16.msra.mxu0 0
    %4849 = vmatpush.bf16.msra.mxu0 0
    %4850 = vmatpush.bf16.msra.mxu0 %v4555
    %4851 = vmatpush.bf16.msra.mxu0 %v4548
    %4852 = vmatmul.bf16.gmra.mxu0 %v4687
    %v4853 = vpop.f32.mrf.mxu0
    %v4854 = vadd.f32 %v4835, %v4853
    %v4855 = vpop.f32.mrf.mxu0
    %v4856 = vadd.f32 %v4837, %v4855
    %4857 = vmatmul.bf16.gmra.mxu0 %v4690
    %v4858 = vpop.f32.mrf.mxu0
    %v4859 = vadd.f32 %v4840, %v4858
    %v4860 = vpop.f32.mrf.mxu0
    %v4861 = vadd.f32 %v4842, %v4860
    %4862 = vdwg.mxu0
    %4863 = vmatpush.bf16.msra.mxu0 %v4486
    %4864 = vmatpush.bf16.msra.mxu0 %v4479
    %4865 = vmatpush.bf16.msra.mxu0 %v4472
    %4866 = vmatpush.bf16.msra.mxu0 %v4465
    %4867 = vmatpush.bf16.msra.mxu0 %v4458
    %4868 = vmatpush.bf16.msra.mxu0 %v4451
    %4869 = vmatpush.bf16.msra.mxu0 %v4444
    %4870 = vmatpush.bf16.msra.mxu0 %v4437
    %4871 = vmatmul.bf16.gmra.mxu0 %v4028
    %v4872 = vpop.f32.mrf.mxu0
    %v4873 = vadd.f32 %v3991, %v4872
    %v4874 = vpop.f32.mrf.mxu0
    %v4875 = vadd.f32 %v3996, %v4874
    %4876 = vmatmul.bf16.gmra.mxu0 %v4031
    %v4877 = vpop.f32.mrf.mxu0
    %v4878 = vadd.f32 %v4001, %v4877
    %v4879 = vpop.f32.mrf.mxu0
    %v4880 = vadd.f32 %v4006, %v4879
    %4881 = vdwg.mxu0
    %4882 = vmatpush.bf16.msra.mxu0 %v4542
    %4883 = vmatpush.bf16.msra.mxu0 %v4535
    %4884 = vmatpush.bf16.msra.mxu0 %v4528
    %4885 = vmatpush.bf16.msra.mxu0 %v4521
    %4886 = vmatpush.bf16.msra.mxu0 %v4514
    %4887 = vmatpush.bf16.msra.mxu0 %v4507
    %4888 = vmatpush.bf16.msra.mxu0 %v4500
    %4889 = vmatpush.bf16.msra.mxu0 %v4493
    %4890 = vmatmul.bf16.gmra.mxu0 %v4029
    %v4891 = vpop.f32.mrf.mxu0
    %v4892 = vadd.f32 %v4873, %v4891
    %v4893 = vpop.f32.mrf.mxu0
    %v4894 = vadd.f32 %v4875, %v4893
    %4895 = vmatmul.bf16.gmra.mxu0 %v4032
    %v4896 = vpop.f32.mrf.mxu0
    %v4897 = vadd.f32 %v4878, %v4896
    %v4898 = vpop.f32.mrf.mxu0
    %v4899 = vadd.f32 %v4880, %v4898
    %4900 = vdwg.mxu0
    %4901 = vmatpush.bf16.msra.mxu0 0
    %4902 = vmatpush.bf16.msra.mxu0 0
    %4903 = vmatpush.bf16.msra.mxu0 0
    %4904 = vmatpush.bf16.msra.mxu0 0
    %4905 = vmatpush.bf16.msra.mxu0 0
    %4906 = vmatpush.bf16.msra.mxu0 0
    %4907 = vmatpush.bf16.msra.mxu0 %v4556
    %4908 = vmatpush.bf16.msra.mxu0 %v4549
    %4909 = vmatmul.bf16.gmra.mxu0 %v4687
    %v4910 = vpop.f32.mrf.mxu0
    %v4911 = vadd.f32 %v4892, %v4910
    %v4912 = vpop.f32.mrf.mxu0
    %v4913 = vadd.f32 %v4894, %v4912
    %4914 = vmatmul.bf16.gmra.mxu0 %v4690
    %v4915 = vpop.f32.mrf.mxu0
    %v4916 = vadd.f32 %v4897, %v4915
    %v4917 = vpop.f32.mrf.mxu0
    %v4918 = vadd.f32 %v4899, %v4917
    %4919 = vdwg.mxu0
    %4920 = vmatpush.bf16.msra.mxu0 %v4487
    %4921 = vmatpush.bf16.msra.mxu0 %v4480
    %4922 = vmatpush.bf16.msra.mxu0 %v4473
    %4923 = vmatpush.bf16.msra.mxu0 %v4466
    %4924 = vmatpush.bf16.msra.mxu0 %v4459
    %4925 = vmatpush.bf16.msra.mxu0 %v4452
    %4926 = vmatpush.bf16.msra.mxu0 %v4445
    %4927 = vmatpush.bf16.msra.mxu0 %v4438
    %4928 = vmatmul.bf16.gmra.mxu0 %v4028
    %v4929 = vpop.f32.mrf.mxu0
    %v4930 = vadd.f32 %v3991, %v4929
    %v4931 = vpop.f32.mrf.mxu0
    %v4932 = vadd.f32 %v3996, %v4931
    %4933 = vmatmul.bf16.gmra.mxu0 %v4031
    %v4934 = vpop.f32.mrf.mxu0
    %v4935 = vadd.f32 %v4001, %v4934
    %v4936 = vpop.f32.mrf.mxu0
    %v4937 = vadd.f32 %v4006, %v4936
    %4938 = vdwg.mxu0
    %4939 = vmatpush.bf16.msra.mxu0 %v4543
    %4940 = vmatpush.bf16.msra.mxu0 %v4536
    %4941 = vmatpush.bf16.msra.mxu0 %v4529
    %4942 = vmatpush.bf16.msra.mxu0 %v4522
    %4943 = vmatpush.bf16.msra.mxu0 %v4515
    %4944 = vmatpush.bf16.msra.mxu0 %v4508
    %4945 = vmatpush.bf16.msra.mxu0 %v4501
    %4946 = vmatpush.bf16.msra.mxu0 %v4494
    %4947 = vmatmul.bf16.gmra.mxu0 %v4029
    %v4948 = vpop.f32.mrf.mxu0
    %v4949 = vadd.f32 %v4930, %v4948
    %v4950 = vpop.f32.mrf.mxu0
    %v4951 = vadd.f32 %v4932, %v4950
    %4952 = vmatmul.bf16.gmra.mxu0 %v4032
    %v4953 = vpop.f32.mrf.mxu0
    %v4954 = vadd.f32 %v4935, %v4953
    %v4955 = vpop.f32.mrf.mxu0
    %v4956 = vadd.f32 %v4937, %v4955
    %4957 = vdwg.mxu0
    %4958 = vmatpush.bf16.msra.mxu0 0
    %4959 = vmatpush.bf16.msra.mxu0 0
    %4960 = vmatpush.bf16.msra.mxu0 0
    %4961 = vmatpush.bf16.msra.mxu0 0
    %4962 = vmatpush.bf16.msra.mxu0 0
    %4963 = vmatpush.bf16.msra.mxu0 0
    %4964 = vmatpush.bf16.msra.mxu0 %v4557
    %4965 = vmatpush.bf16.msra.mxu0 %v4550
    %4966 = vmatmul.bf16.gmra.mxu0 %v4687
    %v4967 = vpop.f32.mrf.mxu0
    %v4968 = vadd.f32 %v4949, %v4967
    %v4969 = vpop.f32.mrf.mxu0
    %v4970 = vadd.f32 %v4951, %v4969
    %4971 = vmatmul.bf16.gmra.mxu0 %v4690
    %v4972 = vpop.f32.mrf.mxu0
    %v4973 = vadd.f32 %v4954, %v4972
    %v4974 = vpop.f32.mrf.mxu0
    %v4975 = vadd.f32 %v4956, %v4974
    %4976 = vdwg.mxu0
    %4977 = vmatpush.bf16.msra.mxu0 %v4488
    %4978 = vmatpush.bf16.msra.mxu0 %v4481
    %4979 = vmatpush.bf16.msra.mxu0 %v4474
    %4980 = vmatpush.bf16.msra.mxu0 %v4467
    %4981 = vmatpush.bf16.msra.mxu0 %v4460
    %4982 = vmatpush.bf16.msra.mxu0 %v4453
    %4983 = vmatpush.bf16.msra.mxu0 %v4446
    %4984 = vmatpush.bf16.msra.mxu0 %v4439
    %4985 = vmatmul.bf16.gmra.mxu0 %v4028
    %v4986 = vpop.f32.mrf.mxu0
    %v4987 = vadd.f32 %v3991, %v4986
    %v4988 = vpop.f32.mrf.mxu0
    %v4989 = vadd.f32 %v3996, %v4988
    %4990 = vmatmul.bf16.gmra.mxu0 %v4031
    %v4991 = vpop.f32.mrf.mxu0
    %v4992 = vadd.f32 %v4001, %v4991
    %v4993 = vpop.f32.mrf.mxu0
    %v4994 = vadd.f32 %v4006, %v4993
    %4995 = vdwg.mxu0
    %4996 = vmatpush.bf16.msra.mxu0 %v4544
    %4997 = vmatpush.bf16.msra.mxu0 %v4537
    %4998 = vmatpush.bf16.msra.mxu0 %v4530
    %4999 = vmatpush.bf16.msra.mxu0 %v4523
    %5000 = vmatpush.bf16.msra.mxu0 %v4516
    %5001 = vmatpush.bf16.msra.mxu0 %v4509
    %5002 = vmatpush.bf16.msra.mxu0 %v4502
    %5003 = vmatpush.bf16.msra.mxu0 %v4495
    %5004 = vmatmul.bf16.gmra.mxu0 %v4029
    %v5005 = vpop.f32.mrf.mxu0
    %v5006 = vadd.f32 %v4987, %v5005
    %v5007 = vpop.f32.mrf.mxu0
    %v5008 = vadd.f32 %v4989, %v5007
    %5009 = vmatmul.bf16.gmra.mxu0 %v4032
    %v5010 = vpop.f32.mrf.mxu0
    %v5011 = vadd.f32 %v4992, %v5010
    %v5012 = vpop.f32.mrf.mxu0
    %v5013 = vadd.f32 %v4994, %v5012
    %5014 = vdwg.mxu0
    %5015 = vmatpush.bf16.msra.mxu0 0
    %5016 = vmatpush.bf16.msra.mxu0 0
    %5017 = vmatpush.bf16.msra.mxu0 0
    %5018 = vmatpush.bf16.msra.mxu0 0
    %5019 = vmatpush.bf16.msra.mxu0 0
    %5020 = vmatpush.bf16.msra.mxu0 0
    %5021 = vmatpush.bf16.msra.mxu0 %v4558
    %5022 = vmatpush.bf16.msra.mxu0 %v4551
    %5023 = vmatmul.bf16.gmra.mxu0 %v4687
    %v5024 = vpop.f32.mrf.mxu0
    %v5025 = vadd.f32 %v5006, %v5024
    %v5026 = vpop.f32.mrf.mxu0
    %v5027 = vadd.f32 %v5008, %v5026
    %5028 = vmatmul.bf16.gmra.mxu0 %v4690
    %v5029 = vpop.f32.mrf.mxu0
    %v5030 = vadd.f32 %v5011, %v5029
    %v5031 = vpop.f32.mrf.mxu0
    %v5032 = vadd.f32 %v5013, %v5031
    %5033 = vdwg.mxu0
    %5034 = vmatpush.bf16.msra.mxu0 %v4489
    %5035 = vmatpush.bf16.msra.mxu0 %v4482
    %5036 = vmatpush.bf16.msra.mxu0 %v4475
    %5037 = vmatpush.bf16.msra.mxu0 %v4468
    %5038 = vmatpush.bf16.msra.mxu0 %v4461
    %5039 = vmatpush.bf16.msra.mxu0 %v4454
    %5040 = vmatpush.bf16.msra.mxu0 %v4447
    %5041 = vmatpush.bf16.msra.mxu0 %v4440
    %5042 = vmatmul.bf16.gmra.mxu0 %v4028
    %v5043 = vpop.f32.mrf.mxu0
    %v5044 = vadd.f32 %v3991, %v5043
    %v5045 = vpop.f32.mrf.mxu0
    %v5046 = vadd.f32 %v3996, %v5045
    %5047 = vmatmul.bf16.gmra.mxu0 %v4031
    %v5048 = vpop.f32.mrf.mxu0
    %v5049 = vadd.f32 %v4001, %v5048
    %v5050 = vpop.f32.mrf.mxu0
    %v5051 = vadd.f32 %v4006, %v5050
    %5052 = vdwg.mxu0
    %5053 = vmatpush.bf16.msra.mxu0 %v4545
    %5054 = vmatpush.bf16.msra.mxu0 %v4538
    %5055 = vmatpush.bf16.msra.mxu0 %v4531
    %5056 = vmatpush.bf16.msra.mxu0 %v4524
    %5057 = vmatpush.bf16.msra.mxu0 %v4517
    %5058 = vmatpush.bf16.msra.mxu0 %v4510
    %5059 = vmatpush.bf16.msra.mxu0 %v4503
    %5060 = vmatpush.bf16.msra.mxu0 %v4496
    %5061 = vmatmul.bf16.gmra.mxu0 %v4029
    %v5062 = vpop.f32.mrf.mxu0
    %v5063 = vadd.f32 %v5044, %v5062
    %v5064 = vpop.f32.mrf.mxu0
    %v5065 = vadd.f32 %v5046, %v5064
    %5066 = vmatmul.bf16.gmra.mxu0 %v4032
    %v5067 = vpop.f32.mrf.mxu0
    %v5068 = vadd.f32 %v5049, %v5067
    %v5069 = vpop.f32.mrf.mxu0
    %v5070 = vadd.f32 %v5051, %v5069
    %5071 = vdwg.mxu0
    %5072 = vmatpush.bf16.msra.mxu0 0
    %5073 = vmatpush.bf16.msra.mxu0 0
    %5074 = vmatpush.bf16.msra.mxu0 0
    %5075 = vmatpush.bf16.msra.mxu0 0
    %5076 = vmatpush.bf16.msra.mxu0 0
    %5077 = vmatpush.bf16.msra.mxu0 0
    %5078 = vmatpush.bf16.msra.mxu0 %v4559
    %5079 = vmatpush.bf16.msra.mxu0 %v4552
    %5080 = vmatmul.bf16.gmra.mxu0 %v4687
    %v5081 = vpop.f32.mrf.mxu0
    %v5082 = vadd.f32 %v5063, %v5081
    %v5083 = vpop.f32.mrf.mxu0
    %v5084 = vadd.f32 %v5065, %v5083
    %5085 = vmatmul.bf16.gmra.mxu0 %v4690
    %v5086 = vpop.f32.mrf.mxu0
    %v5087 = vadd.f32 %v5068, %v5086
    %v5088 = vpop.f32.mrf.mxu0
    %v5089 = vadd.f32 %v5070, %v5088
    %5090 = vdwg.mxu0
    %s5091 = scalar_lea.vmem %s3, 1
    %v5092 = vld [vmem:[%s5091] ss:$4 sm:$0xff]
    %vm5093 = vcmp.gt.f32.partialorder %v5092, 0.5
    %v5094 = vsel %vm5093, 1, 0
    %v5095 = vperm.slane %v5094, 0
    %v5096 = vperm.slane %v5094, 1
    %v5097 = vperm.slane %v5094, 2
    %v5098 = vperm.slane %v5094, 3
    %v5099 = vperm.slane %v5094, 4
    %v5100 = vperm.slane %v5094, 5
    %v5101 = vperm.slane %v5094, 6
    %vm5102 = vcmp.eq.s32.totalorder %v5095, 1
    %vm5103 = vcmp.eq.s32.totalorder %v5096, 1
    %vm5104 = vcmp.eq.s32.totalorder %v5097, 1
    %vm5105 = vcmp.eq.s32.totalorder %v5098, 1
    %vm5106 = vcmp.eq.s32.totalorder %v5099, 1
    %vm5107 = vcmp.eq.s32.totalorder %v5100, 1
    %vm5108 = vcmp.eq.s32.totalorder %v5101, 1
    %v5109 = vsel %vm5102, %v4740, 0.0
    %v5110 = vsel %vm5103, %v4797, 0.0
    %v5111 = vsel %vm5104, %v4854, 0.0
    %v5112 = vsel %vm5105, %v4911, 0.0
    %v5113 = vsel %vm5106, %v4968, 0.0
    %v5114 = vsel %vm5107, %v5025, 0.0
    %v5115 = vsel %vm5108, %v5082, 0.0
    %v5116 = vsel %vm5102, %v4742, 0.0
    %v5117 = vsel %vm5103, %v4799, 0.0
    %v5118 = vsel %vm5104, %v4856, 0.0
    %v5119 = vsel %vm5105, %v4913, 0.0
    %v5120 = vsel %vm5106, %v4970, 0.0
    %v5121 = vsel %vm5107, %v5027, 0.0
    %v5122 = vsel %vm5108, %v5084, 0.0
    %v5123 = vsel %vm5102, %v4745, 0.0
    %v5124 = vsel %vm5103, %v4802, 0.0
    %v5125 = vsel %vm5104, %v4859, 0.0
    %v5126 = vsel %vm5105, %v4916, 0.0
    %v5127 = vsel %vm5106, %v4973, 0.0
    %v5128 = vsel %vm5107, %v5030, 0.0
    %v5129 = vsel %vm5108, %v5087, 0.0
    %v5130 = vsel %vm5102, %v4747, 0.0
    %v5131 = vsel %vm5103, %v4804, 0.0
    %v5132 = vsel %vm5104, %v4861, 0.0
    %v5133 = vsel %vm5105, %v4918, 0.0
    %v5134 = vsel %vm5106, %v4975, 0.0
    %v5135 = vsel %vm5107, %v5032, 0.0
    %v5136 = vsel %vm5108, %v5089, 0.0
    %v5137 = vadd.f32 %v5109, %v5110
    %v5138 = vadd.f32 %v5137, %v5111
    %v5139 = vadd.f32 %v5138, %v5112
    %v5140 = vadd.f32 %v5139, %v5113
    %v5141 = vadd.f32 %v5140, %v5114
    %v5142 = vadd.f32 %v5141, %v5115
    %5143 = vadd.xlane.f32.xlu0 %v5142
    %v5144 = vpop.xlane.xlu0 %5143
    %v5145 = vadd.f32 %v5116, %v5117
    %v5146 = vadd.f32 %v5145, %v5118
    %v5147 = vadd.f32 %v5146, %v5119
    %v5148 = vadd.f32 %v5147, %v5120
    %v5149 = vadd.f32 %v5148, %v5121
    %v5150 = vadd.f32 %v5149, %v5122
    %5151 = vadd.xlane.f32.xlu0 %v5150
    %v5152 = vpop.xlane.xlu0 %5151
    %v5153 = vadd.f32 %v5123, %v5124
    %v5154 = vadd.f32 %v5153, %v5125
    %v5155 = vadd.f32 %v5154, %v5126
    %v5156 = vadd.f32 %v5155, %v5127
    %v5157 = vadd.f32 %v5156, %v5128
    %v5158 = vadd.f32 %v5157, %v5129
    %5159 = vadd.xlane.f32.xlu0 %v5158
    %v5160 = vpop.xlane.xlu0 %5159
    %v5161 = vadd.f32 %v5130, %v5131
    %v5162 = vadd.f32 %v5161, %v5132
    %v5163 = vadd.f32 %v5162, %v5133
    %v5164 = vadd.f32 %v5163, %v5134
    %v5165 = vadd.f32 %v5164, %v5135
    %v5166 = vadd.f32 %v5165, %v5136
    %5167 = vadd.xlane.f32.xlu0 %v5166
    %v5168 = vpop.xlane.xlu0 %5167
    %v5169 = vmul.f32 %v5144, 0.0034722222
    %v5170 = vmul.f32 %v5152, 0.0034722222
    %v5171 = vmul.f32 %v5160, 0.0034722222
    %v5172 = vmul.f32 %v5168, 0.0034722222
    %v5173 = vsub.f32 %v4740, %v5169
    %v5174 = vsub.f32 %v4797, %v5169
    %v5175 = vsub.f32 %v4854, %v5169
    %v5176 = vsub.f32 %v4911, %v5169
    %v5177 = vsub.f32 %v4968, %v5169
    %v5178 = vsub.f32 %v5025, %v5169
    %v5179 = vsub.f32 %v5082, %v5169
    %v5180 = vsub.f32 %v4742, %v5170
    %v5181 = vsub.f32 %v4799, %v5170
    %v5182 = vsub.f32 %v4856, %v5170
    %v5183 = vsub.f32 %v4913, %v5170
    %v5184 = vsub.f32 %v4970, %v5170
    %v5185 = vsub.f32 %v5027, %v5170
    %v5186 = vsub.f32 %v5084, %v5170
    %v5187 = vsub.f32 %v4745, %v5171
    %v5188 = vsub.f32 %v4802, %v5171
    %v5189 = vsub.f32 %v4859, %v5171
    %v5190 = vsub.f32 %v4916, %v5171
    %v5191 = vsub.f32 %v4973, %v5171
    %v5192 = vsub.f32 %v5030, %v5171
    %v5193 = vsub.f32 %v5087, %v5171
    %v5194 = vsub.f32 %v4747, %v5172
    %v5195 = vsub.f32 %v4804, %v5172
    %v5196 = vsub.f32 %v4861, %v5172
    %v5197 = vsub.f32 %v4918, %v5172
    %v5198 = vsub.f32 %v4975, %v5172
    %v5199 = vsub.f32 %v5032, %v5172
    %v5200 = vsub.f32 %v5089, %v5172
    %v5201 = vsel %vm5102, %v5173, 0.0
    %v5202 = vsel %vm5103, %v5174, 0.0
    %v5203 = vsel %vm5104, %v5175, 0.0
    %v5204 = vsel %vm5105, %v5176, 0.0
    %v5205 = vsel %vm5106, %v5177, 0.0
    %v5206 = vsel %vm5107, %v5178, 0.0
    %v5207 = vsel %vm5108, %v5179, 0.0
    %v5208 = vsel %vm5102, %v5180, 0.0
    %v5209 = vsel %vm5103, %v5181, 0.0
    %v5210 = vsel %vm5104, %v5182, 0.0
    %v5211 = vsel %vm5105, %v5183, 0.0
    %v5212 = vsel %vm5106, %v5184, 0.0
    %v5213 = vsel %vm5107, %v5185, 0.0
    %v5214 = vsel %vm5108, %v5186, 0.0
    %v5215 = vsel %vm5102, %v5187, 0.0
    %v5216 = vsel %vm5103, %v5188, 0.0
    %v5217 = vsel %vm5104, %v5189, 0.0
    %v5218 = vsel %vm5105, %v5190, 0.0
    %v5219 = vsel %vm5106, %v5191, 0.0
    %v5220 = vsel %vm5107, %v5192, 0.0
    %v5221 = vsel %vm5108, %v5193, 0.0
    %v5222 = vsel %vm5102, %v5194, 0.0
    %v5223 = vsel %vm5103, %v5195, 0.0
    %v5224 = vsel %vm5104, %v5196, 0.0
    %v5225 = vsel %vm5105, %v5197, 0.0
    %v5226 = vsel %vm5106, %v5198, 0.0
    %v5227 = vsel %vm5107, %v5199, 0.0
    %v5228 = vsel %vm5108, %v5200, 0.0
    %v5229 = vmul.f32 %v5201, %v5201
    %v5230 = vmul.f32 %v5202, %v5202
    %v5231 = vmul.f32 %v5203, %v5203
    %v5232 = vmul.f32 %v5204, %v5204
    %v5233 = vmul.f32 %v5205, %v5205
    %v5234 = vmul.f32 %v5206, %v5206
    %v5235 = vmul.f32 %v5207, %v5207
    %v5236 = vmul.f32 %v5208, %v5208
    %v5237 = vmul.f32 %v5209, %v5209
    %v5238 = vmul.f32 %v5210, %v5210
    %v5239 = vmul.f32 %v5211, %v5211
    %v5240 = vmul.f32 %v5212, %v5212
    %v5241 = vmul.f32 %v5213, %v5213
    %v5242 = vmul.f32 %v5214, %v5214
    %v5243 = vmul.f32 %v5215, %v5215
    %v5244 = vmul.f32 %v5216, %v5216
    %v5245 = vmul.f32 %v5217, %v5217
    %v5246 = vmul.f32 %v5218, %v5218
    %v5247 = vmul.f32 %v5219, %v5219
    %v5248 = vmul.f32 %v5220, %v5220
    %v5249 = vmul.f32 %v5221, %v5221
    %v5250 = vmul.f32 %v5222, %v5222
    %v5251 = vmul.f32 %v5223, %v5223
    %v5252 = vmul.f32 %v5224, %v5224
    %v5253 = vmul.f32 %v5225, %v5225
    %v5254 = vmul.f32 %v5226, %v5226
    %v5255 = vmul.f32 %v5227, %v5227
    %v5256 = vmul.f32 %v5228, %v5228
    %v5257 = vadd.f32 %v5229, %v5230
    %v5258 = vadd.f32 %v5257, %v5231
    %v5259 = vadd.f32 %v5258, %v5232
    %v5260 = vadd.f32 %v5259, %v5233
    %v5261 = vadd.f32 %v5260, %v5234
    %v5262 = vadd.f32 %v5261, %v5235
    %5263 = vadd.xlane.f32.xlu0 %v5262
    %v5264 = vpop.xlane.xlu0 %5263
    %v5265 = vadd.f32 %v5236, %v5237
    %v5266 = vadd.f32 %v5265, %v5238
    %v5267 = vadd.f32 %v5266, %v5239
    %v5268 = vadd.f32 %v5267, %v5240
    %v5269 = vadd.f32 %v5268, %v5241
    %v5270 = vadd.f32 %v5269, %v5242
    %5271 = vadd.xlane.f32.xlu0 %v5270
    %v5272 = vpop.xlane.xlu0 %5271
    %v5273 = vadd.f32 %v5243, %v5244
    %v5274 = vadd.f32 %v5273, %v5245
    %v5275 = vadd.f32 %v5274, %v5246
    %v5276 = vadd.f32 %v5275, %v5247
    %v5277 = vadd.f32 %v5276, %v5248
    %v5278 = vadd.f32 %v5277, %v5249
    %5279 = vadd.xlane.f32.xlu0 %v5278
    %v5280 = vpop.xlane.xlu0 %5279
    %v5281 = vadd.f32 %v5250, %v5251
    %v5282 = vadd.f32 %v5281, %v5252
    %v5283 = vadd.f32 %v5282, %v5253
    %v5284 = vadd.f32 %v5283, %v5254
    %v5285 = vadd.f32 %v5284, %v5255
    %v5286 = vadd.f32 %v5285, %v5256
    %5287 = vadd.xlane.f32.xlu0 %v5286
    %v5288 = vpop.xlane.xlu0 %5287
    %v5289 = vmul.f32 %v5264, 0.0034722222
    %v5290 = vmul.f32 %v5272, 0.0034722222
    %v5291 = vmul.f32 %v5280, 0.0034722222
    %v5292 = vmul.f32 %v5288, 0.0034722222
    %s5293 = scalar_lea.vmem %s2, 128
    %v5294 = vld [vmem:[%s5293] sm:$0xff]
    %v5295 = vld [vmem:[%s5293 + $0x8] sm:$0xff]
    %v5296 = vld [vmem:[%s5293 + $0x10] sm:$0xff]
    %v5297 = vld [vmem:[%s5293 + $0x18] sm:$0xff]
    %v5298 = vadd.f32 %v5289, 1e-05
    %v5299 = vadd.f32 %v5290, 1e-05
    %v5300 = vadd.f32 %v5291, 1e-05
    %v5301 = vadd.f32 %v5292, 1e-05
    %v5302 = vrsqrt.pop %v5298
    %v5303 = vmul.f32 %v5302, %v5298
    %v5304 = vmul.f32 %v5303, %v5302
    %v5305 = vmul.f32 0.5, %v5304
    %v5306 = vsub.f32 1.5, %v5305
    %v5307 = vmul.f32 %v5302, %v5306
    %vm5308 = vweird.f32 %v5298
    %vm5309 = vweird.f32 %v5302
    %vm5310 = vmor %vm5308, %vm5309
    %v5311 = vsel %vm5310, %v5302, %v5307
    %v5312 = vrsqrt.pop %v5299
    %v5313 = vmul.f32 %v5312, %v5299
    %v5314 = vmul.f32 %v5313, %v5312
    %v5315 = vmul.f32 0.5, %v5314
    %v5316 = vsub.f32 1.5, %v5315
    %v5317 = vmul.f32 %v5312, %v5316
    %vm5318 = vweird.f32 %v5299
    %vm5319 = vweird.f32 %v5312
    %vm5320 = vmor %vm5318, %vm5319
    %v5321 = vsel %vm5320, %v5312, %v5317
    %v5322 = vrsqrt.pop %v5300
    %v5323 = vmul.f32 %v5322, %v5300
    %v5324 = vmul.f32 %v5323, %v5322
    %v5325 = vmul.f32 0.5, %v5324
    %v5326 = vsub.f32 1.5, %v5325
    %v5327 = vmul.f32 %v5322, %v5326
    %vm5328 = vweird.f32 %v5300
    %vm5329 = vweird.f32 %v5322
    %vm5330 = vmor %vm5328, %vm5329
    %v5331 = vsel %vm5330, %v5322, %v5327
    %v5332 = vrsqrt.pop %v5301
    %v5333 = vmul.f32 %v5332, %v5301
    %v5334 = vmul.f32 %v5333, %v5332
    %v5335 = vmul.f32 0.5, %v5334
    %v5336 = vsub.f32 1.5, %v5335
    %v5337 = vmul.f32 %v5332, %v5336
    %vm5338 = vweird.f32 %v5301
    %vm5339 = vweird.f32 %v5332
    %vm5340 = vmor %vm5338, %vm5339
    %v5341 = vsel %vm5340, %v5332, %v5337
    %v5342 = vmul.f32 %v5294, %v5311
    %v5343 = vmul.f32 %v5295, %v5321
    %v5344 = vmul.f32 %v5296, %v5331
    %v5345 = vmul.f32 %v5297, %v5341
    %5347 = vset.pattern.permute.xlu0 0
    %5348 = vperm.xlu0 %5347, %v5342
    %v5349 = vpop.permute.xlu0 %5348
    %5352 = vset.pattern.permute.xlu0 0
    %5353 = vperm.xlu0 %5352, %v5343
    %v5354 = vpop.permute.xlu0 %5353
    %5357 = vset.pattern.permute.xlu0 0
    %5358 = vperm.xlu0 %5357, %v5344
    %v5359 = vpop.permute.xlu0 %5358
    %5362 = vset.pattern.permute.xlu0 0
    %5363 = vperm.xlu0 %5362, %v5345
    %v5364 = vpop.permute.xlu0 %5363
    %v5366 = vmul.f32 %v5173, %v5349
    %v5367 = vmul.f32 %v5174, %v5349
    %v5368 = vmul.f32 %v5175, %v5349
    %v5369 = vmul.f32 %v5176, %v5349
    %v5370 = vmul.f32 %v5177, %v5349
    %v5371 = vmul.f32 %v5178, %v5349
    %v5372 = vmul.f32 %v5179, %v5349
    %v5373 = vmul.f32 %v5180, %v5354
    %v5374 = vmul.f32 %v5181, %v5354
    %v5375 = vmul.f32 %v5182, %v5354
    %v5376 = vmul.f32 %v5183, %v5354
    %v5377 = vmul.f32 %v5184, %v5354
    %v5378 = vmul.f32 %v5185, %v5354
    %v5379 = vmul.f32 %v5186, %v5354
    %v5380 = vmul.f32 %v5187, %v5359
    %v5381 = vmul.f32 %v5188, %v5359
    %v5382 = vmul.f32 %v5189, %v5359
    %v5383 = vmul.f32 %v5190, %v5359
    %v5384 = vmul.f32 %v5191, %v5359
    %v5385 = vmul.f32 %v5192, %v5359
    %v5386 = vmul.f32 %v5193, %v5359
    %v5387 = vmul.f32 %v5194, %v5364
    %v5388 = vmul.f32 %v5195, %v5364
    %v5389 = vmul.f32 %v5196, %v5364
    %v5390 = vmul.f32 %v5197, %v5364
    %v5391 = vmul.f32 %v5198, %v5364
    %v5392 = vmul.f32 %v5199, %v5364
    %v5393 = vmul.f32 %v5200, %v5364
    %s5394 = scalar_lea.vmem %s2, 160
    %v5395 = vld [vmem:[%s5394] sm:$0xff]
    %v5396 = vld [vmem:[%s5394 + $0x8] sm:$0xff]
    %v5397 = vld [vmem:[%s5394 + $0x10] sm:$0xff]
    %v5398 = vld [vmem:[%s5394 + $0x18] sm:$0xff]
    %5400 = vset.pattern.permute.xlu0 0
    %5401 = vperm.xlu0 %5400, %v5395
    %v5402 = vpop.permute.xlu0 %5401
    %5405 = vset.pattern.permute.xlu0 0
    %5406 = vperm.xlu0 %5405, %v5396
    %v5407 = vpop.permute.xlu0 %5406
    %5410 = vset.pattern.permute.xlu0 0
    %5411 = vperm.xlu0 %5410, %v5397
    %v5412 = vpop.permute.xlu0 %5411
    %5415 = vset.pattern.permute.xlu0 0
    %5416 = vperm.xlu0 %5415, %v5398
    %v5417 = vpop.permute.xlu0 %5416
    %v5419 = vadd.f32 %v5366, %v5402
    %v5420 = vadd.f32 %v5367, %v5402
    %v5421 = vadd.f32 %v5368, %v5402
    %v5422 = vadd.f32 %v5369, %v5402
    %v5423 = vadd.f32 %v5370, %v5402
    %v5424 = vadd.f32 %v5371, %v5402
    %v5425 = vadd.f32 %v5372, %v5402
    %v5426 = vadd.f32 %v5373, %v5407
    %v5427 = vadd.f32 %v5374, %v5407
    %v5428 = vadd.f32 %v5375, %v5407
    %v5429 = vadd.f32 %v5376, %v5407
    %v5430 = vadd.f32 %v5377, %v5407
    %v5431 = vadd.f32 %v5378, %v5407
    %v5432 = vadd.f32 %v5379, %v5407
    %v5433 = vadd.f32 %v5380, %v5412
    %v5434 = vadd.f32 %v5381, %v5412
    %v5435 = vadd.f32 %v5382, %v5412
    %v5436 = vadd.f32 %v5383, %v5412
    %v5437 = vadd.f32 %v5384, %v5412
    %v5438 = vadd.f32 %v5385, %v5412
    %v5439 = vadd.f32 %v5386, %v5412
    %v5440 = vadd.f32 %v5387, %v5417
    %v5441 = vadd.f32 %v5388, %v5417
    %v5442 = vadd.f32 %v5389, %v5417
    %v5443 = vadd.f32 %v5390, %v5417
    %v5444 = vadd.f32 %v5391, %v5417
    %v5445 = vadd.f32 %v5392, %v5417
    %v5446 = vadd.f32 %v5393, %v5417
    %v5447 = vmul.f32 %v5419, 0.2
    %v5448 = vmul.f32 %v5420, 0.2
    %v5449 = vmul.f32 %v5421, 0.2
    %v5450 = vmul.f32 %v5422, 0.2
    %v5451 = vmul.f32 %v5423, 0.2
    %v5452 = vmul.f32 %v5424, 0.2
    %v5453 = vmul.f32 %v5425, 0.2
    %v5454 = vmul.f32 %v5426, 0.2
    %v5455 = vmul.f32 %v5427, 0.2
    %v5456 = vmul.f32 %v5428, 0.2
    %v5457 = vmul.f32 %v5429, 0.2
    %v5458 = vmul.f32 %v5430, 0.2
    %v5459 = vmul.f32 %v5431, 0.2
    %v5460 = vmul.f32 %v5432, 0.2
    %v5461 = vmul.f32 %v5433, 0.2
    %v5462 = vmul.f32 %v5434, 0.2
    %v5463 = vmul.f32 %v5435, 0.2
    %v5464 = vmul.f32 %v5436, 0.2
    %v5465 = vmul.f32 %v5437, 0.2
    %v5466 = vmul.f32 %v5438, 0.2
    %v5467 = vmul.f32 %v5439, 0.2
    %v5468 = vmul.f32 %v5440, 0.2
    %v5469 = vmul.f32 %v5441, 0.2
    %v5470 = vmul.f32 %v5442, 0.2
    %v5471 = vmul.f32 %v5443, 0.2
    %v5472 = vmul.f32 %v5444, 0.2
    %v5473 = vmul.f32 %v5445, 0.2
    %v5474 = vmul.f32 %v5446, 0.2
    %v5475 = vmax.f32 %v5419, %v5447
    %v5476 = vmax.f32 %v5420, %v5448
    %v5477 = vmax.f32 %v5421, %v5449
    %v5478 = vmax.f32 %v5422, %v5450
    %v5479 = vmax.f32 %v5423, %v5451
    %v5480 = vmax.f32 %v5424, %v5452
    %v5481 = vmax.f32 %v5425, %v5453
    %v5482 = vmax.f32 %v5426, %v5454
    %v5483 = vmax.f32 %v5427, %v5455
    %v5484 = vmax.f32 %v5428, %v5456
    %v5485 = vmax.f32 %v5429, %v5457
    %v5486 = vmax.f32 %v5430, %v5458
    %v5487 = vmax.f32 %v5431, %v5459
    %v5488 = vmax.f32 %v5432, %v5460
    %v5489 = vmax.f32 %v5433, %v5461
    %v5490 = vmax.f32 %v5434, %v5462
    %v5491 = vmax.f32 %v5435, %v5463
    %v5492 = vmax.f32 %v5436, %v5464
    %v5493 = vmax.f32 %v5437, %v5465
    %v5494 = vmax.f32 %v5438, %v5466
    %v5495 = vmax.f32 %v5439, %v5467
    %v5496 = vmax.f32 %v5440, %v5468
    %v5497 = vmax.f32 %v5441, %v5469
    %v5498 = vmax.f32 %v5442, %v5470
    %v5499 = vmax.f32 %v5443, %v5471
    %v5500 = vmax.f32 %v5444, %v5472
    %v5501 = vmax.f32 %v5445, %v5473
    %v5502 = vmax.f32 %v5446, %v5474
    %v5503 = vpack.c.bf16 %v5476, %v5475
    %v5504 = vpack.c.bf16 %v5478, %v5477
    %v5505 = vpack.c.bf16 %v5480, %v5479
    %v5506 = vpack.c.bf16 %v5481, %v5481
    %v5507 = vpack.c.bf16 %v5483, %v5482
    %v5508 = vpack.c.bf16 %v5485, %v5484
    %v5509 = vpack.c.bf16 %v5487, %v5486
    %v5510 = vpack.c.bf16 %v5488, %v5488
    %v5511 = vpack.c.bf16 %v5490, %v5489
    %v5512 = vpack.c.bf16 %v5492, %v5491
    %v5513 = vpack.c.bf16 %v5494, %v5493
    %v5514 = vpack.c.bf16 %v5495, %v5495
    %v5515 = vpack.c.bf16 %v5497, %v5496
    %v5516 = vpack.c.bf16 %v5499, %v5498
    %v5517 = vpack.c.bf16 %v5501, %v5500
    %v5518 = vpack.c.bf16 %v5502, %v5502
    %5519 = vst [vmem:[#allocation2] sm:$0xff] %v5503
    %5520 = vst [vmem:[#allocation2 + $0x8] sm:$0xff] %v5504
    %5521 = vst [vmem:[#allocation2 + $0x10] sm:$0xff] %v5505
    %5522 = vst [vmem:[#allocation2 + $0x20] sm:$0xff] %v5507
    %5523 = vst [vmem:[#allocation2 + $0x28] sm:$0xff] %v5508
    %5524 = vst [vmem:[#allocation2 + $0x30] sm:$0xff] %v5509
    %5525 = vst [vmem:[#allocation2 + $0x40] sm:$0xff] %v5511
    %5526 = vst [vmem:[#allocation2 + $0x48] sm:$0xff] %v5512
    %5527 = vst [vmem:[#allocation2 + $0x50] sm:$0xff] %v5513
    %5528 = vst [vmem:[#allocation2 + $0x60] sm:$0xff] %v5515
    %5529 = vst [vmem:[#allocation2 + $0x68] sm:$0xff] %v5516
    %5530 = vst [vmem:[#allocation2 + $0x70] sm:$0xff] %v5517
    %5547 = vrot.lane.b32.xlu0 %v5503, 127
    %v5548 = vpop.permute.xlu0 %5547
    %5549 = vrot.lane.b32.xlu0 %v5504, 127
    %v5550 = vpop.permute.xlu0 %5549
    %5551 = vrot.lane.b32.xlu0 %v5505, 127
    %v5552 = vpop.permute.xlu0 %5551
    %5553 = vrot.lane.b32.xlu0 %v5506, 127
    %v5554 = vpop.permute.xlu0 %5553
    %5555 = vrot.lane.b32.xlu0 %v5507, 127
    %v5556 = vpop.permute.xlu0 %5555
    %5557 = vrot.lane.b32.xlu0 %v5508, 127
    %v5558 = vpop.permute.xlu0 %5557
    %5559 = vrot.lane.b32.xlu0 %v5509, 127
    %v5560 = vpop.permute.xlu0 %5559
    %5561 = vrot.lane.b32.xlu0 %v5510, 127
    %v5562 = vpop.permute.xlu0 %5561
    %5563 = vrot.lane.b32.xlu0 %v5511, 127
    %v5564 = vpop.permute.xlu0 %5563
    %5565 = vrot.lane.b32.xlu0 %v5512, 127
    %v5566 = vpop.permute.xlu0 %5565
    %5567 = vrot.lane.b32.xlu0 %v5513, 127
    %v5568 = vpop.permute.xlu0 %5567
    %5569 = vrot.lane.b32.xlu0 %v5514, 127
    %v5570 = vpop.permute.xlu0 %5569
    %5571 = vrot.lane.b32.xlu0 %v5515, 127
    %v5572 = vpop.permute.xlu0 %5571
    %5573 = vrot.lane.b32.xlu0 %v5516, 127
    %v5574 = vpop.permute.xlu0 %5573
    %5575 = vrot.lane.b32.xlu0 %v5517, 127
    %v5576 = vpop.permute.xlu0 %5575
    %5577 = vrot.lane.b32.xlu0 %v5518, 127
    %v5578 = vpop.permute.xlu0 %5577
    %v5579 = vrot.slane %v5548, 4
    %v5580 = vrot.slane %v5550, 4
    %v5581 = vrot.slane %v5552, 4
    %v5582 = vrot.slane %v5554, 4
    %v5583 = vrot.slane %v5556, 4
    %v5584 = vrot.slane %v5558, 4
    %v5585 = vrot.slane %v5560, 4
    %v5586 = vrot.slane %v5562, 4
    %v5587 = vrot.slane %v5564, 4
    %v5588 = vrot.slane %v5566, 4
    %v5589 = vrot.slane %v5568, 4
    %v5590 = vrot.slane %v5570, 4
    %v5591 = vrot.slane %v5572, 4
    %v5592 = vrot.slane %v5574, 4
    %v5593 = vrot.slane %v5576, 4
    %v5594 = vrot.slane %v5578, 4
    %v5595 = vsel %vm135, %v5579, %v5580
    %v5596 = vsel %vm137, %v5548, %v5595
    %v5597 = vsel %vm135, %v5580, %v5581
    %v5598 = vsel %vm137, %v5550, %v5597
    %v5599 = vsel %vm135, %v5581, %v5582
    %v5600 = vsel %vm137, %v5552, %v5599
    %v5601 = vsel %vm135, %v5583, %v5584
    %v5602 = vsel %vm137, %v5556, %v5601
    %v5603 = vsel %vm135, %v5584, %v5585
    %v5604 = vsel %vm137, %v5558, %v5603
    %v5605 = vsel %vm135, %v5585, %v5586
    %v5606 = vsel %vm137, %v5560, %v5605
    %v5607 = vsel %vm135, %v5587, %v5588
    %v5608 = vsel %vm137, %v5564, %v5607
    %v5609 = vsel %vm135, %v5588, %v5589
    %v5610 = vsel %vm137, %v5566, %v5609
    %v5611 = vsel %vm135, %v5589, %v5590
    %v5612 = vsel %vm137, %v5568, %v5611
    %v5613 = vsel %vm135, %v5591, %v5592
    %v5614 = vsel %vm137, %v5572, %v5613
    %v5615 = vsel %vm135, %v5592, %v5593
    %v5616 = vsel %vm137, %v5574, %v5615
    %v5617 = vsel %vm135, %v5593, %v5594
    %v5618 = vsel %vm137, %v5576, %v5617
    %5631 = vst [vmem:[#allocation2 + $0x80] sm:$0xff] %v5596
    %5632 = vst [vmem:[#allocation2 + $0x88] sm:$0xff] %v5598
    %5633 = vst [vmem:[#allocation2 + $0x90] sm:$0xff] %v5600
    %5634 = vst [vmem:[#allocation2 + $0xa0] sm:$0xff] %v5602
    %5635 = vst [vmem:[#allocation2 + $0xa8] sm:$0xff] %v5604
    %5636 = vst [vmem:[#allocation2 + $0xb0] sm:$0xff] %v5606
    %5637 = vst [vmem:[#allocation2 + $0xc0] sm:$0xff] %v5608
    %5638 = vst [vmem:[#allocation2 + $0xc8] sm:$0xff] %v5610
    %5639 = vst [vmem:[#allocation2 + $0xd0] sm:$0xff] %v5612
    %5640 = vst [vmem:[#allocation2 + $0xe0] sm:$0xff] %v5614
    %5641 = vst [vmem:[#allocation2 + $0xe8] sm:$0xff] %v5616
    %5642 = vst [vmem:[#allocation2 + $0xf0] sm:$0xff] %v5618
    %5643 = vrot.lane.b32.xlu0 %v5503, 126
    %v5644 = vpop.permute.xlu0 %5643
    %5645 = vrot.lane.b32.xlu0 %v5504, 126
    %v5646 = vpop.permute.xlu0 %5645
    %5647 = vrot.lane.b32.xlu0 %v5505, 126
    %v5648 = vpop.permute.xlu0 %5647
    %5649 = vrot.lane.b32.xlu0 %v5506, 126
    %v5650 = vpop.permute.xlu0 %5649
    %5651 = vrot.lane.b32.xlu0 %v5507, 126
    %v5652 = vpop.permute.xlu0 %5651
    %5653 = vrot.lane.b32.xlu0 %v5508, 126
    %v5654 = vpop.permute.xlu0 %5653
    %5655 = vrot.lane.b32.xlu0 %v5509, 126
    %v5656 = vpop.permute.xlu0 %5655
    %5657 = vrot.lane.b32.xlu0 %v5510, 126
    %v5658 = vpop.permute.xlu0 %5657
    %5659 = vrot.lane.b32.xlu0 %v5511, 126
    %v5660 = vpop.permute.xlu0 %5659
    %5661 = vrot.lane.b32.xlu0 %v5512, 126
    %v5662 = vpop.permute.xlu0 %5661
    %5663 = vrot.lane.b32.xlu0 %v5513, 126
    %v5664 = vpop.permute.xlu0 %5663
    %5665 = vrot.lane.b32.xlu0 %v5514, 126
    %v5666 = vpop.permute.xlu0 %5665
    %5667 = vrot.lane.b32.xlu0 %v5515, 126
    %v5668 = vpop.permute.xlu0 %5667
    %5669 = vrot.lane.b32.xlu0 %v5516, 126
    %v5670 = vpop.permute.xlu0 %5669
    %5671 = vrot.lane.b32.xlu0 %v5517, 126
    %v5672 = vpop.permute.xlu0 %5671
    %5673 = vrot.lane.b32.xlu0 %v5518, 126
    %v5674 = vpop.permute.xlu0 %5673
    %v5675 = vrot.slane %v5644, 4
    %v5676 = vrot.slane %v5646, 4
    %v5677 = vrot.slane %v5648, 4
    %v5678 = vrot.slane %v5650, 4
    %v5679 = vrot.slane %v5652, 4
    %v5680 = vrot.slane %v5654, 4
    %v5681 = vrot.slane %v5656, 4
    %v5682 = vrot.slane %v5658, 4
    %v5683 = vrot.slane %v5660, 4
    %v5684 = vrot.slane %v5662, 4
    %v5685 = vrot.slane %v5664, 4
    %v5686 = vrot.slane %v5666, 4
    %v5687 = vrot.slane %v5668, 4
    %v5688 = vrot.slane %v5670, 4
    %v5689 = vrot.slane %v5672, 4
    %v5690 = vrot.slane %v5674, 4
    %v5691 = vsel %vm135, %v5675, %v5676
    %v5692 = vsel %vm262, %v5644, %v5691
    %v5693 = vsel %vm135, %v5676, %v5677
    %v5694 = vsel %vm262, %v5646, %v5693
    %v5695 = vsel %vm135, %v5677, %v5678
    %v5696 = vsel %vm262, %v5648, %v5695
    %v5697 = vsel %vm135, %v5679, %v5680
    %v5698 = vsel %vm262, %v5652, %v5697
    %v5699 = vsel %vm135, %v5680, %v5681
    %v5700 = vsel %vm262, %v5654, %v5699
    %v5701 = vsel %vm135, %v5681, %v5682
    %v5702 = vsel %vm262, %v5656, %v5701
    %v5703 = vsel %vm135, %v5683, %v5684
    %v5704 = vsel %vm262, %v5660, %v5703
    %v5705 = vsel %vm135, %v5684, %v5685
    %v5706 = vsel %vm262, %v5662, %v5705
    %v5707 = vsel %vm135, %v5685, %v5686
    %v5708 = vsel %vm262, %v5664, %v5707
    %v5709 = vsel %vm135, %v5687, %v5688
    %v5710 = vsel %vm262, %v5668, %v5709
    %v5711 = vsel %vm135, %v5688, %v5689
    %v5712 = vsel %vm262, %v5670, %v5711
    %v5713 = vsel %vm135, %v5689, %v5690
    %v5714 = vsel %vm262, %v5672, %v5713
    %5727 = vst [vmem:[#allocation2 + $0x100] sm:$0xff] %v5692
    %5728 = vst [vmem:[#allocation2 + $0x108] sm:$0xff] %v5694
    %5729 = vst [vmem:[#allocation2 + $0x110] sm:$0xff] %v5696
    %5730 = vst [vmem:[#allocation2 + $0x120] sm:$0xff] %v5698
    %5731 = vst [vmem:[#allocation2 + $0x128] sm:$0xff] %v5700
    %5732 = vst [vmem:[#allocation2 + $0x130] sm:$0xff] %v5702
    %5733 = vst [vmem:[#allocation2 + $0x140] sm:$0xff] %v5704
    %5734 = vst [vmem:[#allocation2 + $0x148] sm:$0xff] %v5706
    %5735 = vst [vmem:[#allocation2 + $0x150] sm:$0xff] %v5708
    %5736 = vst [vmem:[#allocation2 + $0x160] sm:$0xff] %v5710
    %5737 = vst [vmem:[#allocation2 + $0x168] sm:$0xff] %v5712
    %5738 = vst [vmem:[#allocation2 + $0x170] sm:$0xff] %v5714
    %5739 = vrot.lane.b32.xlu0 %v5503, 112
    %v5740 = vpop.permute.xlu0 %5739
    %5741 = vrot.lane.b32.xlu0 %v5504, 112
    %v5742 = vpop.permute.xlu0 %5741
    %5743 = vrot.lane.b32.xlu0 %v5505, 112
    %v5744 = vpop.permute.xlu0 %5743
    %5745 = vrot.lane.b32.xlu0 %v5506, 112
    %v5746 = vpop.permute.xlu0 %5745
    %5747 = vrot.lane.b32.xlu0 %v5507, 112
    %v5748 = vpop.permute.xlu0 %5747
    %5749 = vrot.lane.b32.xlu0 %v5508, 112
    %v5750 = vpop.permute.xlu0 %5749
    %5751 = vrot.lane.b32.xlu0 %v5509, 112
    %v5752 = vpop.permute.xlu0 %5751
    %5753 = vrot.lane.b32.xlu0 %v5510, 112
    %v5754 = vpop.permute.xlu0 %5753
    %5755 = vrot.lane.b32.xlu0 %v5511, 112
    %v5756 = vpop.permute.xlu0 %5755
    %5757 = vrot.lane.b32.xlu0 %v5512, 112
    %v5758 = vpop.permute.xlu0 %5757
    %5759 = vrot.lane.b32.xlu0 %v5513, 112
    %v5760 = vpop.permute.xlu0 %5759
    %5761 = vrot.lane.b32.xlu0 %v5514, 112
    %v5762 = vpop.permute.xlu0 %5761
    %5763 = vrot.lane.b32.xlu0 %v5515, 112
    %v5764 = vpop.permute.xlu0 %5763
    %5765 = vrot.lane.b32.xlu0 %v5516, 112
    %v5766 = vpop.permute.xlu0 %5765
    %5767 = vrot.lane.b32.xlu0 %v5517, 112
    %v5768 = vpop.permute.xlu0 %5767
    %5769 = vrot.lane.b32.xlu0 %v5518, 112
    %v5770 = vpop.permute.xlu0 %5769
    %v5771 = vrot.slane %v5740, 4
    %v5772 = vrot.slane %v5742, 4
    %v5773 = vrot.slane %v5744, 4
    %v5774 = vrot.slane %v5746, 4
    %v5775 = vrot.slane %v5748, 4
    %v5776 = vrot.slane %v5750, 4
    %v5777 = vrot.slane %v5752, 4
    %v5778 = vrot.slane %v5754, 4
    %v5779 = vrot.slane %v5756, 4
    %v5780 = vrot.slane %v5758, 4
    %v5781 = vrot.slane %v5760, 4
    %v5782 = vrot.slane %v5762, 4
    %v5783 = vrot.slane %v5764, 4
    %v5784 = vrot.slane %v5766, 4
    %v5785 = vrot.slane %v5768, 4
    %v5786 = vrot.slane %v5770, 4
    %v5787 = vsel %vm135, %v5771, %v5772
    %v5788 = vsel %vm387, %v5740, %v5787
    %v5789 = vsel %vm135, %v5772, %v5773
    %v5790 = vsel %vm387, %v5742, %v5789
    %v5791 = vsel %vm135, %v5773, %v5774
    %v5792 = vsel %vm387, %v5744, %v5791
    %v5793 = vsel %vm135, %v5775, %v5776
    %v5794 = vsel %vm387, %v5748, %v5793
    %v5795 = vsel %vm135, %v5776, %v5777
    %v5796 = vsel %vm387, %v5750, %v5795
    %v5797 = vsel %vm135, %v5777, %v5778
    %v5798 = vsel %vm387, %v5752, %v5797
    %v5799 = vsel %vm135, %v5779, %v5780
    %v5800 = vsel %vm387, %v5756, %v5799
    %v5801 = vsel %vm135, %v5780, %v5781
    %v5802 = vsel %vm387, %v5758, %v5801
    %v5803 = vsel %vm135, %v5781, %v5782
    %v5804 = vsel %vm387, %v5760, %v5803
    %v5805 = vsel %vm135, %v5783, %v5784
    %v5806 = vsel %vm387, %v5764, %v5805
    %v5807 = vsel %vm135, %v5784, %v5785
    %v5808 = vsel %vm387, %v5766, %v5807
    %v5809 = vsel %vm135, %v5785, %v5786
    %v5810 = vsel %vm387, %v5768, %v5809
    %5823 = vst [vmem:[#allocation2 + $0x180] sm:$0xff] %v5788
    %5824 = vst [vmem:[#allocation2 + $0x188] sm:$0xff] %v5790
    %5825 = vst [vmem:[#allocation2 + $0x190] sm:$0xff] %v5792
    %5826 = vst [vmem:[#allocation2 + $0x1a0] sm:$0xff] %v5794
    %5827 = vst [vmem:[#allocation2 + $0x1a8] sm:$0xff] %v5796
    %5828 = vst [vmem:[#allocation2 + $0x1b0] sm:$0xff] %v5798
    %5829 = vst [vmem:[#allocation2 + $0x1c0] sm:$0xff] %v5800
    %5830 = vst [vmem:[#allocation2 + $0x1c8] sm:$0xff] %v5802
    %5831 = vst [vmem:[#allocation2 + $0x1d0] sm:$0xff] %v5804
    %5832 = vst [vmem:[#allocation2 + $0x1e0] sm:$0xff] %v5806
    %5833 = vst [vmem:[#allocation2 + $0x1e8] sm:$0xff] %v5808
    %5834 = vst [vmem:[#allocation2 + $0x1f0] sm:$0xff] %v5810
    %5835 = vrot.lane.b32.xlu0 %v5503, 111
    %v5836 = vpop.permute.xlu0 %5835
    %5837 = vrot.lane.b32.xlu0 %v5504, 111
    %v5838 = vpop.permute.xlu0 %5837
    %5839 = vrot.lane.b32.xlu0 %v5505, 111
    %v5840 = vpop.permute.xlu0 %5839
    %5841 = vrot.lane.b32.xlu0 %v5506, 111
    %v5842 = vpop.permute.xlu0 %5841
    %5843 = vrot.lane.b32.xlu0 %v5507, 111
    %v5844 = vpop.permute.xlu0 %5843
    %5845 = vrot.lane.b32.xlu0 %v5508, 111
    %v5846 = vpop.permute.xlu0 %5845
    %5847 = vrot.lane.b32.xlu0 %v5509, 111
    %v5848 = vpop.permute.xlu0 %5847
    %5849 = vrot.lane.b32.xlu0 %v5510, 111
    %v5850 = vpop.permute.xlu0 %5849
    %5851 = vrot.lane.b32.xlu0 %v5511, 111
    %v5852 = vpop.permute.xlu0 %5851
    %5853 = vrot.lane.b32.xlu0 %v5512, 111
    %v5854 = vpop.permute.xlu0 %5853
    %5855 = vrot.lane.b32.xlu0 %v5513, 111
    %v5856 = vpop.permute.xlu0 %5855
    %5857 = vrot.lane.b32.xlu0 %v5514, 111
    %v5858 = vpop.permute.xlu0 %5857
    %5859 = vrot.lane.b32.xlu0 %v5515, 111
    %v5860 = vpop.permute.xlu0 %5859
    %5861 = vrot.lane.b32.xlu0 %v5516, 111
    %v5862 = vpop.permute.xlu0 %5861
    %5863 = vrot.lane.b32.xlu0 %v5517, 111
    %v5864 = vpop.permute.xlu0 %5863
    %5865 = vrot.lane.b32.xlu0 %v5518, 111
    %v5866 = vpop.permute.xlu0 %5865
    %v5867 = vrot.slane %v5836, 4
    %v5868 = vrot.slane %v5838, 4
    %v5869 = vrot.slane %v5840, 4
    %v5870 = vrot.slane %v5842, 4
    %v5871 = vrot.slane %v5844, 4
    %v5872 = vrot.slane %v5846, 4
    %v5873 = vrot.slane %v5848, 4
    %v5874 = vrot.slane %v5850, 4
    %v5875 = vrot.slane %v5852, 4
    %v5876 = vrot.slane %v5854, 4
    %v5877 = vrot.slane %v5856, 4
    %v5878 = vrot.slane %v5858, 4
    %v5879 = vrot.slane %v5860, 4
    %v5880 = vrot.slane %v5862, 4
    %v5881 = vrot.slane %v5864, 4
    %v5882 = vrot.slane %v5866, 4
    %v5883 = vsel %vm135, %v5867, %v5868
    %v5884 = vsel %vm512, %v5836, %v5883
    %v5885 = vsel %vm135, %v5868, %v5869
    %v5886 = vsel %vm512, %v5838, %v5885
    %v5887 = vsel %vm135, %v5869, %v5870
    %v5888 = vsel %vm512, %v5840, %v5887
    %v5889 = vsel %vm135, %v5871, %v5872
    %v5890 = vsel %vm512, %v5844, %v5889
    %v5891 = vsel %vm135, %v5872, %v5873
    %v5892 = vsel %vm512, %v5846, %v5891
    %v5893 = vsel %vm135, %v5873, %v5874
    %v5894 = vsel %vm512, %v5848, %v5893
    %v5895 = vsel %vm135, %v5875, %v5876
    %v5896 = vsel %vm512, %v5852, %v5895
    %v5897 = vsel %vm135, %v5876, %v5877
    %v5898 = vsel %vm512, %v5854, %v5897
    %v5899 = vsel %vm135, %v5877, %v5878
    %v5900 = vsel %vm512, %v5856, %v5899
    %v5901 = vsel %vm135, %v5879, %v5880
    %v5902 = vsel %vm512, %v5860, %v5901
    %v5903 = vsel %vm135, %v5880, %v5881
    %v5904 = vsel %vm512, %v5862, %v5903
    %v5905 = vsel %vm135, %v5881, %v5882
    %v5906 = vsel %vm512, %v5864, %v5905
    %5919 = vst [vmem:[#allocation2 + $0x200] sm:$0xff] %v5884
    %5920 = vst [vmem:[#allocation2 + $0x208] sm:$0xff] %v5886
    %5921 = vst [vmem:[#allocation2 + $0x210] sm:$0xff] %v5888
    %5922 = vst [vmem:[#allocation2 + $0x220] sm:$0xff] %v5890
    %5923 = vst [vmem:[#allocation2 + $0x228] sm:$0xff] %v5892
    %5924 = vst [vmem:[#allocation2 + $0x230] sm:$0xff] %v5894
    %5925 = vst [vmem:[#allocation2 + $0x240] sm:$0xff] %v5896
    %5926 = vst [vmem:[#allocation2 + $0x248] sm:$0xff] %v5898
    %5927 = vst [vmem:[#allocation2 + $0x250] sm:$0xff] %v5900
    %5928 = vst [vmem:[#allocation2 + $0x260] sm:$0xff] %v5902
    %5929 = vst [vmem:[#allocation2 + $0x268] sm:$0xff] %v5904
    %5930 = vst [vmem:[#allocation2 + $0x270] sm:$0xff] %v5906
    %5931 = vrot.lane.b32.xlu0 %v5503, 110
    %v5932 = vpop.permute.xlu0 %5931
    %5933 = vrot.lane.b32.xlu0 %v5504, 110
    %v5934 = vpop.permute.xlu0 %5933
    %5935 = vrot.lane.b32.xlu0 %v5505, 110
    %v5936 = vpop.permute.xlu0 %5935
    %5937 = vrot.lane.b32.xlu0 %v5506, 110
    %v5938 = vpop.permute.xlu0 %5937
    %5939 = vrot.lane.b32.xlu0 %v5507, 110
    %v5940 = vpop.permute.xlu0 %5939
    %5941 = vrot.lane.b32.xlu0 %v5508, 110
    %v5942 = vpop.permute.xlu0 %5941
    %5943 = vrot.lane.b32.xlu0 %v5509, 110
    %v5944 = vpop.permute.xlu0 %5943
    %5945 = vrot.lane.b32.xlu0 %v5510, 110
    %v5946 = vpop.permute.xlu0 %5945
    %5947 = vrot.lane.b32.xlu0 %v5511, 110
    %v5948 = vpop.permute.xlu0 %5947
    %5949 = vrot.lane.b32.xlu0 %v5512, 110
    %v5950 = vpop.permute.xlu0 %5949
    %5951 = vrot.lane.b32.xlu0 %v5513, 110
    %v5952 = vpop.permute.xlu0 %5951
    %5953 = vrot.lane.b32.xlu0 %v5514, 110
    %v5954 = vpop.permute.xlu0 %5953
    %5955 = vrot.lane.b32.xlu0 %v5515, 110
    %v5956 = vpop.permute.xlu0 %5955
    %5957 = vrot.lane.b32.xlu0 %v5516, 110
    %v5958 = vpop.permute.xlu0 %5957
    %5959 = vrot.lane.b32.xlu0 %v5517, 110
    %v5960 = vpop.permute.xlu0 %5959
    %5961 = vrot.lane.b32.xlu0 %v5518, 110
    %v5962 = vpop.permute.xlu0 %5961
    %v5963 = vrot.slane %v5932, 4
    %v5964 = vrot.slane %v5934, 4
    %v5965 = vrot.slane %v5936, 4
    %v5966 = vrot.slane %v5938, 4
    %v5967 = vrot.slane %v5940, 4
    %v5968 = vrot.slane %v5942, 4
    %v5969 = vrot.slane %v5944, 4
    %v5970 = vrot.slane %v5946, 4
    %v5971 = vrot.slane %v5948, 4
    %v5972 = vrot.slane %v5950, 4
    %v5973 = vrot.slane %v5952, 4
    %v5974 = vrot.slane %v5954, 4
    %v5975 = vrot.slane %v5956, 4
    %v5976 = vrot.slane %v5958, 4
    %v5977 = vrot.slane %v5960, 4
    %v5978 = vrot.slane %v5962, 4
    %v5979 = vsel %vm135, %v5963, %v5964
    %v5980 = vsel %vm637, %v5932, %v5979
    %v5981 = vsel %vm135, %v5964, %v5965
    %v5982 = vsel %vm637, %v5934, %v5981
    %v5983 = vsel %vm135, %v5965, %v5966
    %v5984 = vsel %vm637, %v5936, %v5983
    %v5985 = vsel %vm135, %v5967, %v5968
    %v5986 = vsel %vm637, %v5940, %v5985
    %v5987 = vsel %vm135, %v5968, %v5969
    %v5988 = vsel %vm637, %v5942, %v5987
    %v5989 = vsel %vm135, %v5969, %v5970
    %v5990 = vsel %vm637, %v5944, %v5989
    %v5991 = vsel %vm135, %v5971, %v5972
    %v5992 = vsel %vm637, %v5948, %v5991
    %v5993 = vsel %vm135, %v5972, %v5973
    %v5994 = vsel %vm637, %v5950, %v5993
    %v5995 = vsel %vm135, %v5973, %v5974
    %v5996 = vsel %vm637, %v5952, %v5995
    %v5997 = vsel %vm135, %v5975, %v5976
    %v5998 = vsel %vm637, %v5956, %v5997
    %v5999 = vsel %vm135, %v5976, %v5977
    %v6000 = vsel %vm637, %v5958, %v5999
    %v6001 = vsel %vm135, %v5977, %v5978
    %v6002 = vsel %vm637, %v5960, %v6001
    %6015 = vst [vmem:[#allocation2 + $0x280] sm:$0xff] %v5980
    %6016 = vst [vmem:[#allocation2 + $0x288] sm:$0xff] %v5982
    %6017 = vst [vmem:[#allocation2 + $0x290] sm:$0xff] %v5984
    %6018 = vst [vmem:[#allocation2 + $0x2a0] sm:$0xff] %v5986
    %6019 = vst [vmem:[#allocation2 + $0x2a8] sm:$0xff] %v5988
    %6020 = vst [vmem:[#allocation2 + $0x2b0] sm:$0xff] %v5990
    %6021 = vst [vmem:[#allocation2 + $0x2c0] sm:$0xff] %v5992
    %6022 = vst [vmem:[#allocation2 + $0x2c8] sm:$0xff] %v5994
    %6023 = vst [vmem:[#allocation2 + $0x2d0] sm:$0xff] %v5996
    %6024 = vst [vmem:[#allocation2 + $0x2e0] sm:$0xff] %v5998
    %6025 = vst [vmem:[#allocation2 + $0x2e8] sm:$0xff] %v6000
    %6026 = vst [vmem:[#allocation2 + $0x2f0] sm:$0xff] %v6002
    %6027 = vrot.lane.b32.xlu0 %v5503, 96
    %v6028 = vpop.permute.xlu0 %6027
    %6029 = vrot.lane.b32.xlu0 %v5504, 96
    %v6030 = vpop.permute.xlu0 %6029
    %6031 = vrot.lane.b32.xlu0 %v5505, 96
    %v6032 = vpop.permute.xlu0 %6031
    %6033 = vrot.lane.b32.xlu0 %v5506, 96
    %v6034 = vpop.permute.xlu0 %6033
    %6035 = vrot.lane.b32.xlu0 %v5507, 96
    %v6036 = vpop.permute.xlu0 %6035
    %6037 = vrot.lane.b32.xlu0 %v5508, 96
    %v6038 = vpop.permute.xlu0 %6037
    %6039 = vrot.lane.b32.xlu0 %v5509, 96
    %v6040 = vpop.permute.xlu0 %6039
    %6041 = vrot.lane.b32.xlu0 %v5510, 96
    %v6042 = vpop.permute.xlu0 %6041
    %6043 = vrot.lane.b32.xlu0 %v5511, 96
    %v6044 = vpop.permute.xlu0 %6043
    %6045 = vrot.lane.b32.xlu0 %v5512, 96
    %v6046 = vpop.permute.xlu0 %6045
    %6047 = vrot.lane.b32.xlu0 %v5513, 96
    %v6048 = vpop.permute.xlu0 %6047
    %6049 = vrot.lane.b32.xlu0 %v5514, 96
    %v6050 = vpop.permute.xlu0 %6049
    %6051 = vrot.lane.b32.xlu0 %v5515, 96
    %v6052 = vpop.permute.xlu0 %6051
    %6053 = vrot.lane.b32.xlu0 %v5516, 96
    %v6054 = vpop.permute.xlu0 %6053
    %6055 = vrot.lane.b32.xlu0 %v5517, 96
    %v6056 = vpop.permute.xlu0 %6055
    %6057 = vrot.lane.b32.xlu0 %v5518, 96
    %v6058 = vpop.permute.xlu0 %6057
    %v6059 = vrot.slane %v6028, 4
    %v6060 = vrot.slane %v6030, 4
    %v6061 = vrot.slane %v6032, 4
    %v6062 = vrot.slane %v6034, 4
    %v6063 = vrot.slane %v6036, 4
    %v6064 = vrot.slane %v6038, 4
    %v6065 = vrot.slane %v6040, 4
    %v6066 = vrot.slane %v6042, 4
    %v6067 = vrot.slane %v6044, 4
    %v6068 = vrot.slane %v6046, 4
    %v6069 = vrot.slane %v6048, 4
    %v6070 = vrot.slane %v6050, 4
    %v6071 = vrot.slane %v6052, 4
    %v6072 = vrot.slane %v6054, 4
    %v6073 = vrot.slane %v6056, 4
    %v6074 = vrot.slane %v6058, 4
    %v6075 = vsel %vm135, %v6059, %v6060
    %v6076 = vsel %vm762, %v6028, %v6075
    %v6077 = vsel %vm135, %v6060, %v6061
    %v6078 = vsel %vm762, %v6030, %v6077
    %v6079 = vsel %vm135, %v6061, %v6062
    %v6080 = vsel %vm762, %v6032, %v6079
    %v6081 = vsel %vm135, %v6063, %v6064
    %v6082 = vsel %vm762, %v6036, %v6081
    %v6083 = vsel %vm135, %v6064, %v6065
    %v6084 = vsel %vm762, %v6038, %v6083
    %v6085 = vsel %vm135, %v6065, %v6066
    %v6086 = vsel %vm762, %v6040, %v6085
    %v6087 = vsel %vm135, %v6067, %v6068
    %v6088 = vsel %vm762, %v6044, %v6087
    %v6089 = vsel %vm135, %v6068, %v6069
    %v6090 = vsel %vm762, %v6046, %v6089
    %v6091 = vsel %vm135, %v6069, %v6070
    %v6092 = vsel %vm762, %v6048, %v6091
    %v6093 = vsel %vm135, %v6071, %v6072
    %v6094 = vsel %vm762, %v6052, %v6093
    %v6095 = vsel %vm135, %v6072, %v6073
    %v6096 = vsel %vm762, %v6054, %v6095
    %v6097 = vsel %vm135, %v6073, %v6074
    %v6098 = vsel %vm762, %v6056, %v6097
    %6111 = vst [vmem:[#allocation2 + $0x300] sm:$0xff] %v6076
    %6112 = vst [vmem:[#allocation2 + $0x308] sm:$0xff] %v6078
    %6113 = vst [vmem:[#allocation2 + $0x310] sm:$0xff] %v6080
    %6114 = vst [vmem:[#allocation2 + $0x320] sm:$0xff] %v6082
    %6115 = vst [vmem:[#allocation2 + $0x328] sm:$0xff] %v6084
    %6116 = vst [vmem:[#allocation2 + $0x330] sm:$0xff] %v6086
    %6117 = vst [vmem:[#allocation2 + $0x340] sm:$0xff] %v6088
    %6118 = vst [vmem:[#allocation2 + $0x348] sm:$0xff] %v6090
    %6119 = vst [vmem:[#allocation2 + $0x350] sm:$0xff] %v6092
    %6120 = vst [vmem:[#allocation2 + $0x360] sm:$0xff] %v6094
    %6121 = vst [vmem:[#allocation2 + $0x368] sm:$0xff] %v6096
    %6122 = vst [vmem:[#allocation2 + $0x370] sm:$0xff] %v6098
    %6123 = vrot.lane.b32.xlu0 %v5503, 95
    %v6124 = vpop.permute.xlu0 %6123
    %6125 = vrot.lane.b32.xlu0 %v5504, 95
    %v6126 = vpop.permute.xlu0 %6125
    %6127 = vrot.lane.b32.xlu0 %v5505, 95
    %v6128 = vpop.permute.xlu0 %6127
    %6129 = vrot.lane.b32.xlu0 %v5506, 95
    %v6130 = vpop.permute.xlu0 %6129
    %6131 = vrot.lane.b32.xlu0 %v5507, 95
    %v6132 = vpop.permute.xlu0 %6131
    %6133 = vrot.lane.b32.xlu0 %v5508, 95
    %v6134 = vpop.permute.xlu0 %6133
    %6135 = vrot.lane.b32.xlu0 %v5509, 95
    %v6136 = vpop.permute.xlu0 %6135
    %6137 = vrot.lane.b32.xlu0 %v5510, 95
    %v6138 = vpop.permute.xlu0 %6137
    %6139 = vrot.lane.b32.xlu0 %v5511, 95
    %v6140 = vpop.permute.xlu0 %6139
    %6141 = vrot.lane.b32.xlu0 %v5512, 95
    %v6142 = vpop.permute.xlu0 %6141
    %6143 = vrot.lane.b32.xlu0 %v5513, 95
    %v6144 = vpop.permute.xlu0 %6143
    %6145 = vrot.lane.b32.xlu0 %v5514, 95
    %v6146 = vpop.permute.xlu0 %6145
    %6147 = vrot.lane.b32.xlu0 %v5515, 95
    %v6148 = vpop.permute.xlu0 %6147
    %6149 = vrot.lane.b32.xlu0 %v5516, 95
    %v6150 = vpop.permute.xlu0 %6149
    %6151 = vrot.lane.b32.xlu0 %v5517, 95
    %v6152 = vpop.permute.xlu0 %6151
    %6153 = vrot.lane.b32.xlu0 %v5518, 95
    %v6154 = vpop.permute.xlu0 %6153
    %v6155 = vrot.slane %v6124, 4
    %v6156 = vrot.slane %v6126, 4
    %v6157 = vrot.slane %v6128, 4
    %v6158 = vrot.slane %v6130, 4
    %v6159 = vrot.slane %v6132, 4
    %v6160 = vrot.slane %v6134, 4
    %v6161 = vrot.slane %v6136, 4
    %v6162 = vrot.slane %v6138, 4
    %v6163 = vrot.slane %v6140, 4
    %v6164 = vrot.slane %v6142, 4
    %v6165 = vrot.slane %v6144, 4
    %v6166 = vrot.slane %v6146, 4
    %v6167 = vrot.slane %v6148, 4
    %v6168 = vrot.slane %v6150, 4
    %v6169 = vrot.slane %v6152, 4
    %v6170 = vrot.slane %v6154, 4
    %v6171 = vsel %vm135, %v6155, %v6156
    %v6172 = vsel %vm887, %v6124, %v6171
    %v6173 = vsel %vm135, %v6156, %v6157
    %v6174 = vsel %vm887, %v6126, %v6173
    %v6175 = vsel %vm135, %v6157, %v6158
    %v6176 = vsel %vm887, %v6128, %v6175
    %v6177 = vsel %vm135, %v6159, %v6160
    %v6178 = vsel %vm887, %v6132, %v6177
    %v6179 = vsel %vm135, %v6160, %v6161
    %v6180 = vsel %vm887, %v6134, %v6179
    %v6181 = vsel %vm135, %v6161, %v6162
    %v6182 = vsel %vm887, %v6136, %v6181
    %v6183 = vsel %vm135, %v6163, %v6164
    %v6184 = vsel %vm887, %v6140, %v6183
    %v6185 = vsel %vm135, %v6164, %v6165
    %v6186 = vsel %vm887, %v6142, %v6185
    %v6187 = vsel %vm135, %v6165, %v6166
    %v6188 = vsel %vm887, %v6144, %v6187
    %v6189 = vsel %vm135, %v6167, %v6168
    %v6190 = vsel %vm887, %v6148, %v6189
    %v6191 = vsel %vm135, %v6168, %v6169
    %v6192 = vsel %vm887, %v6150, %v6191
    %v6193 = vsel %vm135, %v6169, %v6170
    %v6194 = vsel %vm887, %v6152, %v6193
    %6207 = vst [vmem:[#allocation2 + $0x380] sm:$0xff] %v6172
    %6208 = vst [vmem:[#allocation2 + $0x388] sm:$0xff] %v6174
    %6209 = vst [vmem:[#allocation2 + $0x390] sm:$0xff] %v6176
    %6210 = vst [vmem:[#allocation2 + $0x3a0] sm:$0xff] %v6178
    %6211 = vst [vmem:[#allocation2 + $0x3a8] sm:$0xff] %v6180
    %6212 = vst [vmem:[#allocation2 + $0x3b0] sm:$0xff] %v6182
    %6213 = vst [vmem:[#allocation2 + $0x3c0] sm:$0xff] %v6184
    %6214 = vst [vmem:[#allocation2 + $0x3c8] sm:$0xff] %v6186
    %6215 = vst [vmem:[#allocation2 + $0x3d0] sm:$0xff] %v6188
    %6216 = vst [vmem:[#allocation2 + $0x3e0] sm:$0xff] %v6190
    %6217 = vst [vmem:[#allocation2 + $0x3e8] sm:$0xff] %v6192
    %6218 = vst [vmem:[#allocation2 + $0x3f0] sm:$0xff] %v6194
    %6219 = vrot.lane.b32.xlu0 %v5503, 94
    %v6220 = vpop.permute.xlu0 %6219
    %6221 = vrot.lane.b32.xlu0 %v5504, 94
    %v6222 = vpop.permute.xlu0 %6221
    %6223 = vrot.lane.b32.xlu0 %v5505, 94
    %v6224 = vpop.permute.xlu0 %6223
    %6225 = vrot.lane.b32.xlu0 %v5506, 94
    %v6226 = vpop.permute.xlu0 %6225
    %6227 = vrot.lane.b32.xlu0 %v5507, 94
    %v6228 = vpop.permute.xlu0 %6227
    %6229 = vrot.lane.b32.xlu0 %v5508, 94
    %v6230 = vpop.permute.xlu0 %6229
    %6231 = vrot.lane.b32.xlu0 %v5509, 94
    %v6232 = vpop.permute.xlu0 %6231
    %6233 = vrot.lane.b32.xlu0 %v5510, 94
    %v6234 = vpop.permute.xlu0 %6233
    %6235 = vrot.lane.b32.xlu0 %v5511, 94
    %v6236 = vpop.permute.xlu0 %6235
    %6237 = vrot.lane.b32.xlu0 %v5512, 94
    %v6238 = vpop.permute.xlu0 %6237
    %6239 = vrot.lane.b32.xlu0 %v5513, 94
    %v6240 = vpop.permute.xlu0 %6239
    %6241 = vrot.lane.b32.xlu0 %v5514, 94
    %v6242 = vpop.permute.xlu0 %6241
    %6243 = vrot.lane.b32.xlu0 %v5515, 94
    %v6244 = vpop.permute.xlu0 %6243
    %6245 = vrot.lane.b32.xlu0 %v5516, 94
    %v6246 = vpop.permute.xlu0 %6245
    %6247 = vrot.lane.b32.xlu0 %v5517, 94
    %v6248 = vpop.permute.xlu0 %6247
    %6249 = vrot.lane.b32.xlu0 %v5518, 94
    %v6250 = vpop.permute.xlu0 %6249
    %v6251 = vrot.slane %v6220, 4
    %v6252 = vrot.slane %v6222, 4
    %v6253 = vrot.slane %v6224, 4
    %v6254 = vrot.slane %v6226, 4
    %v6255 = vrot.slane %v6228, 4
    %v6256 = vrot.slane %v6230, 4
    %v6257 = vrot.slane %v6232, 4
    %v6258 = vrot.slane %v6234, 4
    %v6259 = vrot.slane %v6236, 4
    %v6260 = vrot.slane %v6238, 4
    %v6261 = vrot.slane %v6240, 4
    %v6262 = vrot.slane %v6242, 4
    %v6263 = vrot.slane %v6244, 4
    %v6264 = vrot.slane %v6246, 4
    %v6265 = vrot.slane %v6248, 4
    %v6266 = vrot.slane %v6250, 4
    %v6267 = vsel %vm135, %v6251, %v6252
    %v6268 = vsel %vm1012, %v6220, %v6267
    %v6269 = vsel %vm135, %v6252, %v6253
    %v6270 = vsel %vm1012, %v6222, %v6269
    %v6271 = vsel %vm135, %v6253, %v6254
    %v6272 = vsel %vm1012, %v6224, %v6271
    %v6273 = vsel %vm135, %v6255, %v6256
    %v6274 = vsel %vm1012, %v6228, %v6273
    %v6275 = vsel %vm135, %v6256, %v6257
    %v6276 = vsel %vm1012, %v6230, %v6275
    %v6277 = vsel %vm135, %v6257, %v6258
    %v6278 = vsel %vm1012, %v6232, %v6277
    %v6279 = vsel %vm135, %v6259, %v6260
    %v6280 = vsel %vm1012, %v6236, %v6279
    %v6281 = vsel %vm135, %v6260, %v6261
    %v6282 = vsel %vm1012, %v6238, %v6281
    %v6283 = vsel %vm135, %v6261, %v6262
    %v6284 = vsel %vm1012, %v6240, %v6283
    %v6285 = vsel %vm135, %v6263, %v6264
    %v6286 = vsel %vm1012, %v6244, %v6285
    %v6287 = vsel %vm135, %v6264, %v6265
    %v6288 = vsel %vm1012, %v6246, %v6287
    %v6289 = vsel %vm135, %v6265, %v6266
    %v6290 = vsel %vm1012, %v6248, %v6289
    %6303 = vst [vmem:[#allocation2 + $0x400] sm:$0xff] %v6268
    %6304 = vst [vmem:[#allocation2 + $0x408] sm:$0xff] %v6270
    %6305 = vst [vmem:[#allocation2 + $0x410] sm:$0xff] %v6272
    %6306 = vst [vmem:[#allocation2 + $0x420] sm:$0xff] %v6274
    %6307 = vst [vmem:[#allocation2 + $0x428] sm:$0xff] %v6276
    %6308 = vst [vmem:[#allocation2 + $0x430] sm:$0xff] %v6278
    %6309 = vst [vmem:[#allocation2 + $0x440] sm:$0xff] %v6280
    %6310 = vst [vmem:[#allocation2 + $0x448] sm:$0xff] %v6282
    %6311 = vst [vmem:[#allocation2 + $0x450] sm:$0xff] %v6284
    %6312 = vst [vmem:[#allocation2 + $0x460] sm:$0xff] %v6286
    %6313 = vst [vmem:[#allocation2 + $0x468] sm:$0xff] %v6288
    %6314 = vst [vmem:[#allocation2 + $0x470] sm:$0xff] %v6290
    %s6315 = scalar_lea.vmem %s1, 96
    %v6316 = vld [vmem:[%s6315] sm:$0xff]
    %v6317 = vld [vmem:[%s6315 + $0x8] sm:$0xf]
    %v6318 = vld [vmem:[%s6315 + $0xc] sm:$0xff]
    %v6319 = vld [vmem:[%s6315 + $0x14] sm:$0xf]
    %v6320 = vld [vmem:[%s6315 + $0x18] sm:$0xff]
    %v6321 = vld [vmem:[%s6315 + $0x20] sm:$0xf]
    %v6322 = vld [vmem:[%s6315 + $0x24] sm:$0xff]
    %v6323 = vld [vmem:[%s6315 + $0x2c] sm:$0xf]
    %v6324 = vld [vmem:[#allocation2] sm:$0xff]
    %v6325 = vld [vmem:[#allocation2 + $0x8] sm:$0xff]
    %v6326 = vld [vmem:[#allocation2 + $0x10] sm:$0xff]
    %v6327 = vld [vmem:[#allocation2 + $0x20] sm:$0xff]
    %v6328 = vld [vmem:[#allocation2 + $0x28] sm:$0xff]
    %v6329 = vld [vmem:[#allocation2 + $0x30] sm:$0xff]
    %v6330 = vld [vmem:[#allocation2 + $0x40] sm:$0xff]
    %v6331 = vld [vmem:[#allocation2 + $0x48] sm:$0xff]
    %v6332 = vld [vmem:[#allocation2 + $0x50] sm:$0xff]
    %v6333 = vld [vmem:[#allocation2 + $0x60] sm:$0xff]
    %v6334 = vld [vmem:[#allocation2 + $0x68] sm:$0xff]
    %v6335 = vld [vmem:[#allocation2 + $0x70] sm:$0xff]
    %v6336 = vld [vmem:[#allocation2 + $0x80] sm:$0xff]
    %v6337 = vld [vmem:[#allocation2 + $0x88] sm:$0xff]
    %v6338 = vld [vmem:[#allocation2 + $0x90] sm:$0xff]
    %v6339 = vld [vmem:[#allocation2 + $0xa0] sm:$0xff]
    %v6340 = vld [vmem:[#allocation2 + $0xa8] sm:$0xff]
    %v6341 = vld [vmem:[#allocation2 + $0xb0] sm:$0xff]
    %v6342 = vld [vmem:[#allocation2 + $0xc0] sm:$0xff]
    %v6343 = vld [vmem:[#allocation2 + $0xc8] sm:$0xff]
    %v6344 = vld [vmem:[#allocation2 + $0xd0] sm:$0xff]
    %v6345 = vld [vmem:[#allocation2 + $0xe0] sm:$0xff]
    %v6346 = vld [vmem:[#allocation2 + $0xe8] sm:$0xff]
    %v6347 = vld [vmem:[#allocation2 + $0xf0] sm:$0xff]
    %v6348 = vld [vmem:[#allocation2 + $0x100] sm:$0xff]
    %v6349 = vld [vmem:[#allocation2 + $0x108] sm:$0xff]
    %v6350 = vld [vmem:[#allocation2 + $0x110] sm:$0xff]
    %v6351 = vld [vmem:[#allocation2 + $0x120] sm:$0xff]
    %v6352 = vld [vmem:[#allocation2 + $0x128] sm:$0xff]
    %v6353 = vld [vmem:[#allocation2 + $0x130] sm:$0xff]
    %v6354 = vld [vmem:[#allocation2 + $0x140] sm:$0xff]
    %v6355 = vld [vmem:[#allocation2 + $0x148] sm:$0xff]
    %v6356 = vld [vmem:[#allocation2 + $0x150] sm:$0xff]
    %v6357 = vld [vmem:[#allocation2 + $0x160] sm:$0xff]
    %v6358 = vld [vmem:[#allocation2 + $0x168] sm:$0xff]
    %v6359 = vld [vmem:[#allocation2 + $0x170] sm:$0xff]
    %v6360 = vld [vmem:[#allocation2 + $0x180] sm:$0xff]
    %v6361 = vld [vmem:[#allocation2 + $0x188] sm:$0xff]
    %v6362 = vld [vmem:[#allocation2 + $0x190] sm:$0xff]
    %v6363 = vld [vmem:[#allocation2 + $0x1a0] sm:$0xff]
    %v6364 = vld [vmem:[#allocation2 + $0x1a8] sm:$0xff]
    %v6365 = vld [vmem:[#allocation2 + $0x1b0] sm:$0xff]
    %v6366 = vld [vmem:[#allocation2 + $0x1c0] sm:$0xff]
    %v6367 = vld [vmem:[#allocation2 + $0x1c8] sm:$0xff]
    %v6368 = vld [vmem:[#allocation2 + $0x1d0] sm:$0xff]
    %v6369 = vld [vmem:[#allocation2 + $0x1e0] sm:$0xff]
    %v6370 = vld [vmem:[#allocation2 + $0x1e8] sm:$0xff]
    %v6371 = vld [vmem:[#allocation2 + $0x1f0] sm:$0xff]
    %v6372 = vld [vmem:[#allocation2 + $0x200] sm:$0xff]
    %v6373 = vld [vmem:[#allocation2 + $0x208] sm:$0xff]
    %v6374 = vld [vmem:[#allocation2 + $0x210] sm:$0xff]
    %v6375 = vld [vmem:[#allocation2 + $0x220] sm:$0xff]
    %v6376 = vld [vmem:[#allocation2 + $0x228] sm:$0xff]
    %v6377 = vld [vmem:[#allocation2 + $0x230] sm:$0xff]
    %v6378 = vld [vmem:[#allocation2 + $0x240] sm:$0xff]
    %v6379 = vld [vmem:[#allocation2 + $0x248] sm:$0xff]
    %v6380 = vld [vmem:[#allocation2 + $0x250] sm:$0xff]
    %v6381 = vld [vmem:[#allocation2 + $0x260] sm:$0xff]
    %v6382 = vld [vmem:[#allocation2 + $0x268] sm:$0xff]
    %v6383 = vld [vmem:[#allocation2 + $0x270] sm:$0xff]
    %v6384 = vld [vmem:[#allocation2 + $0x280] sm:$0xff]
    %v6385 = vld [vmem:[#allocation2 + $0x288] sm:$0xff]
    %v6386 = vld [vmem:[#allocation2 + $0x290] sm:$0xff]
    %v6387 = vld [vmem:[#allocation2 + $0x2a0] sm:$0xff]
    %v6388 = vld [vmem:[#allocation2 + $0x2a8] sm:$0xff]
    %v6389 = vld [vmem:[#allocation2 + $0x2b0] sm:$0xff]
    %v6390 = vld [vmem:[#allocation2 + $0x2c0] sm:$0xff]
    %v6391 = vld [vmem:[#allocation2 + $0x2c8] sm:$0xff]
    %v6392 = vld [vmem:[#allocation2 + $0x2d0] sm:$0xff]
    %v6393 = vld [vmem:[#allocation2 + $0x2e0] sm:$0xff]
    %v6394 = vld [vmem:[#allocation2 + $0x2e8] sm:$0xff]
    %v6395 = vld [vmem:[#allocation2 + $0x2f0] sm:$0xff]
    %v6396 = vld [vmem:[#allocation2 + $0x300] sm:$0xff]
    %v6397 = vld [vmem:[#allocation2 + $0x308] sm:$0xff]
    %v6398 = vld [vmem:[#allocation2 + $0x310] sm:$0xff]
    %v6399 = vld [vmem:[#allocation2 + $0x320] sm:$0xff]
    %v6400 = vld [vmem:[#allocation2 + $0x328] sm:$0xff]
    %v6401 = vld [vmem:[#allocation2 + $0x330] sm:$0xff]
    %v6402 = vld [vmem:[#allocation2 + $0x340] sm:$0xff]
    %v6403 = vld [vmem:[#allocation2 + $0x348] sm:$0xff]
    %v6404 = vld [vmem:[#allocation2 + $0x350] sm:$0xff]
    %v6405 = vld [vmem:[#allocation2 + $0x360] sm:$0xff]
    %v6406 = vld [vmem:[#allocation2 + $0x368] sm:$0xff]
    %v6407 = vld [vmem:[#allocation2 + $0x370] sm:$0xff]
    %v6408 = vld [vmem:[#allocation2 + $0x380] sm:$0xff]
    %v6409 = vld [vmem:[#allocation2 + $0x388] sm:$0xff]
    %v6410 = vld [vmem:[#allocation2 + $0x390] sm:$0xff]
    %v6411 = vld [vmem:[#allocation2 + $0x3a0] sm:$0xff]
    %v6412 = vld [vmem:[#allocation2 + $0x3a8] sm:$0xff]
    %v6413 = vld [vmem:[#allocation2 + $0x3b0] sm:$0xff]
    %v6414 = vld [vmem:[#allocation2 + $0x3c0] sm:$0xff]
    %v6415 = vld [vmem:[#allocation2 + $0x3c8] sm:$0xff]
    %v6416 = vld [vmem:[#allocation2 + $0x3d0] sm:$0xff]
    %v6417 = vld [vmem:[#allocation2 + $0x3e0] sm:$0xff]
    %v6418 = vld [vmem:[#allocation2 + $0x3e8] sm:$0xff]
    %v6419 = vld [vmem:[#allocation2 + $0x3f0] sm:$0xff]
    %v6420 = vld [vmem:[#allocation2 + $0x400] sm:$0xff]
    %v6421 = vld [vmem:[#allocation2 + $0x408] sm:$0xff]
    %v6422 = vld [vmem:[#allocation2 + $0x410] sm:$0xff]
    %v6423 = vld [vmem:[#allocation2 + $0x420] sm:$0xff]
    %v6424 = vld [vmem:[#allocation2 + $0x428] sm:$0xff]
    %v6425 = vld [vmem:[#allocation2 + $0x430] sm:$0xff]
    %v6426 = vld [vmem:[#allocation2 + $0x440] sm:$0xff]
    %v6427 = vld [vmem:[#allocation2 + $0x448] sm:$0xff]
    %v6428 = vld [vmem:[#allocation2 + $0x450] sm:$0xff]
    %v6429 = vld [vmem:[#allocation2 + $0x460] sm:$0xff]
    %v6430 = vld [vmem:[#allocation2 + $0x468] sm:$0xff]
    %v6431 = vld [vmem:[#allocation2 + $0x470] sm:$0xff]
    %s6432 = scalar_lea.vmem %s2, 192
    %v6433 = vld [vmem:[%s6432] sm:$0xff]
    %v6434 = vld [vmem:[%s6432 + $0x8] sm:$0xff]
    %v6435 = vld [vmem:[%s6432 + $0x10] sm:$0xff]
    %v6436 = vld [vmem:[%s6432 + $0x18] sm:$0xff]
    %6438 = vset.pattern.permute.xlu0 0
    %6439 = vperm.xlu0 %6438, %v6433
    %v6440 = vpop.permute.xlu0 %6439
    %6443 = vset.pattern.permute.xlu0 0
    %6444 = vperm.xlu0 %6443, %v6434
    %v6445 = vpop.permute.xlu0 %6444
    %6448 = vset.pattern.permute.xlu0 0
    %6449 = vperm.xlu0 %6448, %v6435
    %v6450 = vpop.permute.xlu0 %6449
    %6453 = vset.pattern.permute.xlu0 0
    %6454 = vperm.xlu0 %6453, %v6436
    %v6455 = vpop.permute.xlu0 %6454
    %v6465 = vunpack.c.l.b16 %v6316
    %v6466 = vunpack.c.h.b16 %v6316
    %v6467 = vunpack.c.l.b16 %v6317
    %v6468 = vunpack.c.l.b16 %v6318
    %v6469 = vunpack.c.h.b16 %v6318
    %v6470 = vunpack.c.l.b16 %v6319
    %v6471 = vunpack.c.l.b16 %v6320
    %v6472 = vunpack.c.h.b16 %v6320
    %v6473 = vunpack.c.l.b16 %v6321
    %v6474 = vunpack.c.l.b16 %v6322
    %v6475 = vunpack.c.h.b16 %v6322
    %v6476 = vunpack.c.l.b16 %v6323
    %v6477 = vpack.c.b16 %v6468, %v6465
    %v6478 = vpack.c.b16 %v6469, %v6466
    %v6479 = vpack.c.b16 %v6470, %v6467
    %v6480 = vpack.c.b16 %v6474, %v6471
    %v6481 = vpack.c.b16 %v6475, %v6472
    %v6482 = vpack.c.b16 %v6476, %v6473
    %v6595 = vunpack.c.l.b16 %v6324
    %v6596 = vunpack.c.h.b16 %v6324
    %v6597 = vunpack.c.l.b16 %v6325
    %v6598 = vunpack.c.h.b16 %v6325
    %v6599 = vunpack.c.l.b16 %v6326
    %v6600 = vunpack.c.h.b16 %v6326
    %v6601 = vunpack.c.l.b16 %v6327
    %v6602 = vunpack.c.h.b16 %v6327
    %v6603 = vunpack.c.l.b16 %v6328
    %v6604 = vunpack.c.h.b16 %v6328
    %v6605 = vunpack.c.l.b16 %v6329
    %v6606 = vunpack.c.h.b16 %v6329
    %v6607 = vunpack.c.l.b16 %v6330
    %v6608 = vunpack.c.h.b16 %v6330
    %v6609 = vunpack.c.l.b16 %v6331
    %v6610 = vunpack.c.h.b16 %v6331
    %v6611 = vunpack.c.l.b16 %v6332
    %v6612 = vunpack.c.h.b16 %v6332
    %v6613 = vunpack.c.l.b16 %v6333
    %v6614 = vunpack.c.h.b16 %v6333
    %v6615 = vunpack.c.l.b16 %v6334
    %v6616 = vunpack.c.h.b16 %v6334
    %v6617 = vunpack.c.l.b16 %v6335
    %v6618 = vunpack.c.h.b16 %v6335
    %v6619 = vunpack.c.l.b16 %v6336
    %v6620 = vunpack.c.h.b16 %v6336
    %v6621 = vunpack.c.l.b16 %v6337
    %v6622 = vunpack.c.h.b16 %v6337
    %v6623 = vunpack.c.l.b16 %v6338
    %v6624 = vunpack.c.h.b16 %v6338
    %v6625 = vunpack.c.l.b16 %v6339
    %v6626 = vunpack.c.h.b16 %v6339
    %v6627 = vunpack.c.l.b16 %v6340
    %v6628 = vunpack.c.h.b16 %v6340
    %v6629 = vunpack.c.l.b16 %v6341
    %v6630 = vunpack.c.h.b16 %v6341
    %v6631 = vunpack.c.l.b16 %v6342
    %v6632 = vunpack.c.h.b16 %v6342
    %v6633 = vunpack.c.l.b16 %v6343
    %v6634 = vunpack.c.h.b16 %v6343
    %v6635 = vunpack.c.l.b16 %v6344
    %v6636 = vunpack.c.h.b16 %v6344
    %v6637 = vunpack.c.l.b16 %v6345
    %v6638 = vunpack.c.h.b16 %v6345
    %v6639 = vunpack.c.l.b16 %v6346
    %v6640 = vunpack.c.h.b16 %v6346
    %v6641 = vunpack.c.l.b16 %v6347
    %v6642 = vunpack.c.h.b16 %v6347
    %v6643 = vunpack.c.l.b16 %v6348
    %v6644 = vunpack.c.h.b16 %v6348
    %v6645 = vunpack.c.l.b16 %v6349
    %v6646 = vunpack.c.h.b16 %v6349
    %v6647 = vunpack.c.l.b16 %v6350
    %v6648 = vunpack.c.h.b16 %v6350
    %v6649 = vunpack.c.l.b16 %v6351
    %v6650 = vunpack.c.h.b16 %v6351
    %v6651 = vunpack.c.l.b16 %v6352
    %v6652 = vunpack.c.h.b16 %v6352
    %v6653 = vunpack.c.l.b16 %v6353
    %v6654 = vunpack.c.h.b16 %v6353
    %v6655 = vunpack.c.l.b16 %v6354
    %v6656 = vunpack.c.h.b16 %v6354
    %v6657 = vunpack.c.l.b16 %v6355
    %v6658 = vunpack.c.h.b16 %v6355
    %v6659 = vunpack.c.l.b16 %v6356
    %v6660 = vunpack.c.h.b16 %v6356
    %v6661 = vunpack.c.l.b16 %v6357
    %v6662 = vunpack.c.h.b16 %v6357
    %v6663 = vunpack.c.l.b16 %v6358
    %v6664 = vunpack.c.h.b16 %v6358
    %v6665 = vunpack.c.l.b16 %v6359
    %v6666 = vunpack.c.h.b16 %v6359
    %v6667 = vunpack.c.l.b16 %v6360
    %v6668 = vunpack.c.h.b16 %v6360
    %v6669 = vunpack.c.l.b16 %v6361
    %v6670 = vunpack.c.h.b16 %v6361
    %v6671 = vunpack.c.l.b16 %v6362
    %v6672 = vunpack.c.h.b16 %v6362
    %v6673 = vunpack.c.l.b16 %v6363
    %v6674 = vunpack.c.h.b16 %v6363
    %v6675 = vunpack.c.l.b16 %v6364
    %v6676 = vunpack.c.h.b16 %v6364
    %v6677 = vunpack.c.l.b16 %v6365
    %v6678 = vunpack.c.h.b16 %v6365
    %v6679 = vunpack.c.l.b16 %v6366
    %v6680 = vunpack.c.h.b16 %v6366
    %v6681 = vunpack.c.l.b16 %v6367
    %v6682 = vunpack.c.h.b16 %v6367
    %v6683 = vunpack.c.l.b16 %v6368
    %v6684 = vunpack.c.h.b16 %v6368
    %v6685 = vunpack.c.l.b16 %v6369
    %v6686 = vunpack.c.h.b16 %v6369
    %v6687 = vunpack.c.l.b16 %v6370
    %v6688 = vunpack.c.h.b16 %v6370
    %v6689 = vunpack.c.l.b16 %v6371
    %v6690 = vunpack.c.h.b16 %v6371
    %v6691 = vunpack.c.l.b16 %v6372
    %v6692 = vunpack.c.h.b16 %v6372
    %v6693 = vunpack.c.l.b16 %v6373
    %v6694 = vunpack.c.h.b16 %v6373
    %v6695 = vunpack.c.l.b16 %v6374
    %v6696 = vunpack.c.h.b16 %v6374
    %v6697 = vunpack.c.l.b16 %v6375
    %v6698 = vunpack.c.h.b16 %v6375
    %v6699 = vunpack.c.l.b16 %v6376
    %v6700 = vunpack.c.h.b16 %v6376
    %v6701 = vunpack.c.l.b16 %v6377
    %v6702 = vunpack.c.h.b16 %v6377
    %v6703 = vunpack.c.l.b16 %v6378
    %v6704 = vunpack.c.h.b16 %v6378
    %v6705 = vunpack.c.l.b16 %v6379
    %v6706 = vunpack.c.h.b16 %v6379
    %v6707 = vunpack.c.l.b16 %v6380
    %v6708 = vunpack.c.h.b16 %v6380
    %v6709 = vunpack.c.l.b16 %v6381
    %v6710 = vunpack.c.h.b16 %v6381
    %v6711 = vunpack.c.l.b16 %v6382
    %v6712 = vunpack.c.h.b16 %v6382
    %v6713 = vunpack.c.l.b16 %v6383
    %v6714 = vunpack.c.h.b16 %v6383
    %v6715 = vunpack.c.l.b16 %v6384
    %v6716 = vunpack.c.h.b16 %v6384
    %v6717 = vunpack.c.l.b16 %v6385
    %v6718 = vunpack.c.h.b16 %v6385
    %v6719 = vunpack.c.l.b16 %v6386
    %v6720 = vunpack.c.h.b16 %v6386
    %v6721 = vunpack.c.l.b16 %v6387
    %v6722 = vunpack.c.h.b16 %v6387
    %v6723 = vunpack.c.l.b16 %v6388
    %v6724 = vunpack.c.h.b16 %v6388
    %v6725 = vunpack.c.l.b16 %v6389
    %v6726 = vunpack.c.h.b16 %v6389
    %v6727 = vunpack.c.l.b16 %v6390
    %v6728 = vunpack.c.h.b16 %v6390
    %v6729 = vunpack.c.l.b16 %v6391
    %v6730 = vunpack.c.h.b16 %v6391
    %v6731 = vunpack.c.l.b16 %v6392
    %v6732 = vunpack.c.h.b16 %v6392
    %v6733 = vunpack.c.l.b16 %v6393
    %v6734 = vunpack.c.h.b16 %v6393
    %v6735 = vunpack.c.l.b16 %v6394
    %v6736 = vunpack.c.h.b16 %v6394
    %v6737 = vunpack.c.l.b16 %v6395
    %v6738 = vunpack.c.h.b16 %v6395
    %v6739 = vunpack.c.l.b16 %v6396
    %v6740 = vunpack.c.h.b16 %v6396
    %v6741 = vunpack.c.l.b16 %v6397
    %v6742 = vunpack.c.h.b16 %v6397
    %v6743 = vunpack.c.l.b16 %v6398
    %v6744 = vunpack.c.h.b16 %v6398
    %v6745 = vunpack.c.l.b16 %v6399
    %v6746 = vunpack.c.h.b16 %v6399
    %v6747 = vunpack.c.l.b16 %v6400
    %v6748 = vunpack.c.h.b16 %v6400
    %v6749 = vunpack.c.l.b16 %v6401
    %v6750 = vunpack.c.h.b16 %v6401
    %v6751 = vunpack.c.l.b16 %v6402
    %v6752 = vunpack.c.h.b16 %v6402
    %v6753 = vunpack.c.l.b16 %v6403
    %v6754 = vunpack.c.h.b16 %v6403
    %v6755 = vunpack.c.l.b16 %v6404
    %v6756 = vunpack.c.h.b16 %v6404
    %v6757 = vunpack.c.l.b16 %v6405
    %v6758 = vunpack.c.h.b16 %v6405
    %v6759 = vunpack.c.l.b16 %v6406
    %v6760 = vunpack.c.h.b16 %v6406
    %v6761 = vunpack.c.l.b16 %v6407
    %v6762 = vunpack.c.h.b16 %v6407
    %v6763 = vunpack.c.l.b16 %v6408
    %v6764 = vunpack.c.h.b16 %v6408
    %v6765 = vunpack.c.l.b16 %v6409
    %v6766 = vunpack.c.h.b16 %v6409
    %v6767 = vunpack.c.l.b16 %v6410
    %v6768 = vunpack.c.h.b16 %v6410
    %v6769 = vunpack.c.l.b16 %v6411
    %v6770 = vunpack.c.h.b16 %v6411
    %v6771 = vunpack.c.l.b16 %v6412
    %v6772 = vunpack.c.h.b16 %v6412
    %v6773 = vunpack.c.l.b16 %v6413
    %v6774 = vunpack.c.h.b16 %v6413
    %v6775 = vunpack.c.l.b16 %v6414
    %v6776 = vunpack.c.h.b16 %v6414
    %v6777 = vunpack.c.l.b16 %v6415
    %v6778 = vunpack.c.h.b16 %v6415
    %v6779 = vunpack.c.l.b16 %v6416
    %v6780 = vunpack.c.h.b16 %v6416
    %v6781 = vunpack.c.l.b16 %v6417
    %v6782 = vunpack.c.h.b16 %v6417
    %v6783 = vunpack.c.l.b16 %v6418
    %v6784 = vunpack.c.h.b16 %v6418
    %v6785 = vunpack.c.l.b16 %v6419
    %v6786 = vunpack.c.h.b16 %v6419
    %v6787 = vunpack.c.l.b16 %v6420
    %v6788 = vunpack.c.h.b16 %v6420
    %v6789 = vunpack.c.l.b16 %v6421
    %v6790 = vunpack.c.h.b16 %v6421
    %v6791 = vunpack.c.l.b16 %v6422
    %v6792 = vunpack.c.h.b16 %v6422
    %v6793 = vunpack.c.l.b16 %v6423
    %v6794 = vunpack.c.h.b16 %v6423
    %v6795 = vunpack.c.l.b16 %v6424
    %v6796 = vunpack.c.h.b16 %v6424
    %v6797 = vunpack.c.l.b16 %v6425
    %v6798 = vunpack.c.h.b16 %v6425
    %v6799 = vunpack.c.l.b16 %v6426
    %v6800 = vunpack.c.h.b16 %v6426
    %v6801 = vunpack.c.l.b16 %v6427
    %v6802 = vunpack.c.h.b16 %v6427
    %v6803 = vunpack.c.l.b16 %v6428
    %v6804 = vunpack.c.h.b16 %v6428
    %v6805 = vunpack.c.l.b16 %v6429
    %v6806 = vunpack.c.h.b16 %v6429
    %v6807 = vunpack.c.l.b16 %v6430
    %v6808 = vunpack.c.h.b16 %v6430
    %v6809 = vunpack.c.l.b16 %v6431
    %v6810 = vunpack.c.h.b16 %v6431
    %v6811 = vpack.c.b16 %v6601, %v6595
    %v6812 = vpack.c.b16 %v6602, %v6596
    %v6813 = vpack.c.b16 %v6603, %v6597
    %v6814 = vpack.c.b16 %v6604, %v6598
    %v6815 = vpack.c.b16 %v6605, %v6599
    %v6816 = vpack.c.b16 %v6606, %v6600
    %v6817 = vpack.c.b16 %v6613, %v6607
    %v6818 = vpack.c.b16 %v6614, %v6608
    %v6819 = vpack.c.b16 %v6615, %v6609
    %v6820 = vpack.c.b16 %v6616, %v6610
    %v6821 = vpack.c.b16 %v6617, %v6611
    %v6822 = vpack.c.b16 %v6618, %v6612
    %v6823 = vpack.c.b16 %v6625, %v6619
    %v6824 = vpack.c.b16 %v6626, %v6620
    %v6825 = vpack.c.b16 %v6627, %v6621
    %v6826 = vpack.c.b16 %v6628, %v6622
    %v6827 = vpack.c.b16 %v6629, %v6623
    %v6828 = vpack.c.b16 %v6630, %v6624
    %v6829 = vpack.c.b16 %v6637, %v6631
    %v6830 = vpack.c.b16 %v6638, %v6632
    %v6831 = vpack.c.b16 %v6639, %v6633
    %v6832 = vpack.c.b16 %v6640, %v6634
    %v6833 = vpack.c.b16 %v6641, %v6635
    %v6834 = vpack.c.b16 %v6642, %v6636
    %v6835 = vpack.c.b16 %v6649, %v6643
    %v6836 = vpack.c.b16 %v6650, %v6644
    %v6837 = vpack.c.b16 %v6651, %v6645
    %v6838 = vpack.c.b16 %v6652, %v6646
    %v6839 = vpack.c.b16 %v6653, %v6647
    %v6840 = vpack.c.b16 %v6654, %v6648
    %v6841 = vpack.c.b16 %v6661, %v6655
    %v6842 = vpack.c.b16 %v6662, %v6656
    %v6843 = vpack.c.b16 %v6663, %v6657
    %v6844 = vpack.c.b16 %v6664, %v6658
    %v6845 = vpack.c.b16 %v6665, %v6659
    %v6846 = vpack.c.b16 %v6666, %v6660
    %v6847 = vpack.c.b16 %v6673, %v6667
    %v6848 = vpack.c.b16 %v6674, %v6668
    %v6849 = vpack.c.b16 %v6675, %v6669
    %v6850 = vpack.c.b16 %v6676, %v6670
    %v6851 = vpack.c.b16 %v6677, %v6671
    %v6852 = vpack.c.b16 %v6678, %v6672
    %v6853 = vpack.c.b16 %v6685, %v6679
    %v6854 = vpack.c.b16 %v6686, %v6680
    %v6855 = vpack.c.b16 %v6687, %v6681
    %v6856 = vpack.c.b16 %v6688, %v6682
    %v6857 = vpack.c.b16 %v6689, %v6683
    %v6858 = vpack.c.b16 %v6690, %v6684
    %v6859 = vpack.c.b16 %v6697, %v6691
    %v6860 = vpack.c.b16 %v6698, %v6692
    %v6861 = vpack.c.b16 %v6699, %v6693
    %v6862 = vpack.c.b16 %v6700, %v6694
    %v6863 = vpack.c.b16 %v6701, %v6695
    %v6864 = vpack.c.b16 %v6702, %v6696
    %v6865 = vpack.c.b16 %v6709, %v6703
    %v6866 = vpack.c.b16 %v6710, %v6704
    %v6867 = vpack.c.b16 %v6711, %v6705
    %v6868 = vpack.c.b16 %v6712, %v6706
    %v6869 = vpack.c.b16 %v6713, %v6707
    %v6870 = vpack.c.b16 %v6714, %v6708
    %v6871 = vpack.c.b16 %v6721, %v6715
    %v6872 = vpack.c.b16 %v6722, %v6716
    %v6873 = vpack.c.b16 %v6723, %v6717
    %v6874 = vpack.c.b16 %v6724, %v6718
    %v6875 = vpack.c.b16 %v6725, %v6719
    %v6876 = vpack.c.b16 %v6726, %v6720
    %v6877 = vpack.c.b16 %v6733, %v6727
    %v6878 = vpack.c.b16 %v6734, %v6728
    %v6879 = vpack.c.b16 %v6735, %v6729
    %v6880 = vpack.c.b16 %v6736, %v6730
    %v6881 = vpack.c.b16 %v6737, %v6731
    %v6882 = vpack.c.b16 %v6738, %v6732
    %v6883 = vpack.c.b16 %v6745, %v6739
    %v6884 = vpack.c.b16 %v6746, %v6740
    %v6885 = vpack.c.b16 %v6747, %v6741
    %v6886 = vpack.c.b16 %v6748, %v6742
    %v6887 = vpack.c.b16 %v6749, %v6743
    %v6888 = vpack.c.b16 %v6750, %v6744
    %v6889 = vpack.c.b16 %v6757, %v6751
    %v6890 = vpack.c.b16 %v6758, %v6752
    %v6891 = vpack.c.b16 %v6759, %v6753
    %v6892 = vpack.c.b16 %v6760, %v6754
    %v6893 = vpack.c.b16 %v6761, %v6755
    %v6894 = vpack.c.b16 %v6762, %v6756
    %v6895 = vpack.c.b16 %v6769, %v6763
    %v6896 = vpack.c.b16 %v6770, %v6764
    %v6897 = vpack.c.b16 %v6771, %v6765
    %v6898 = vpack.c.b16 %v6772, %v6766
    %v6899 = vpack.c.b16 %v6773, %v6767
    %v6900 = vpack.c.b16 %v6774, %v6768
    %v6901 = vpack.c.b16 %v6781, %v6775
    %v6902 = vpack.c.b16 %v6782, %v6776
    %v6903 = vpack.c.b16 %v6783, %v6777
    %v6904 = vpack.c.b16 %v6784, %v6778
    %v6905 = vpack.c.b16 %v6785, %v6779
    %v6906 = vpack.c.b16 %v6786, %v6780
    %v6907 = vpack.c.b16 %v6793, %v6787
    %v6908 = vpack.c.b16 %v6794, %v6788
    %v6909 = vpack.c.b16 %v6795, %v6789
    %v6910 = vpack.c.b16 %v6796, %v6790
    %v6911 = vpack.c.b16 %v6797, %v6791
    %v6912 = vpack.c.b16 %v6798, %v6792
    %v6913 = vpack.c.b16 %v6805, %v6799
    %v6914 = vpack.c.b16 %v6806, %v6800
    %v6915 = vpack.c.b16 %v6807, %v6801
    %v6916 = vpack.c.b16 %v6808, %v6802
    %v6917 = vpack.c.b16 %v6809, %v6803
    %v6918 = vpack.c.b16 %v6810, %v6804
    %v7028 = vsel %vm2002, %v6479, 0
    %v7031 = vsel %vm2002, %v6482, 0
    %7033 = vmatpush.bf16.msra.mxu0 %v6853
    %7034 = vmatpush.bf16.msra.mxu0 %v6847
    %7035 = vmatpush.bf16.msra.mxu0 %v6841
    %7036 = vmatpush.bf16.msra.mxu0 %v6835
    %7037 = vmatpush.bf16.msra.mxu0 %v6829
    %7038 = vmatpush.bf16.msra.mxu0 %v6823
    %7039 = vmatpush.bf16.msra.mxu0 %v6817
    %7040 = vmatpush.bf16.msra.mxu0 %v6811
    %7041 = vmatmul.bf16.gmra.mxu0 %v6477
    %v7042 = vpop.f32.mrf.mxu0
    %v7043 = vadd.f32 %v6440, %v7042
    %v7044 = vpop.f32.mrf.mxu0
    %v7045 = vadd.f32 %v6445, %v7044
    %7046 = vmatmul.bf16.gmra.mxu0 %v6480
    %v7047 = vpop.f32.mrf.mxu0
    %v7048 = vadd.f32 %v6450, %v7047
    %v7049 = vpop.f32.mrf.mxu0
    %v7050 = vadd.f32 %v6455, %v7049
    %7051 = vdwg.mxu0
    %7052 = vmatpush.bf16.msra.mxu0 %v6901
    %7053 = vmatpush.bf16.msra.mxu0 %v6895
    %7054 = vmatpush.bf16.msra.mxu0 %v6889
    %7055 = vmatpush.bf16.msra.mxu0 %v6883
    %7056 = vmatpush.bf16.msra.mxu0 %v6877
    %7057 = vmatpush.bf16.msra.mxu0 %v6871
    %7058 = vmatpush.bf16.msra.mxu0 %v6865
    %7059 = vmatpush.bf16.msra.mxu0 %v6859
    %7060 = vmatmul.bf16.gmra.mxu0 %v6478
    %v7061 = vpop.f32.mrf.mxu0
    %v7062 = vadd.f32 %v7043, %v7061
    %v7063 = vpop.f32.mrf.mxu0
    %v7064 = vadd.f32 %v7045, %v7063
    %7065 = vmatmul.bf16.gmra.mxu0 %v6481
    %v7066 = vpop.f32.mrf.mxu0
    %v7067 = vadd.f32 %v7048, %v7066
    %v7068 = vpop.f32.mrf.mxu0
    %v7069 = vadd.f32 %v7050, %v7068
    %7070 = vdwg.mxu0
    %7071 = vmatpush.bf16.msra.mxu0 0
    %7072 = vmatpush.bf16.msra.mxu0 0
    %7073 = vmatpush.bf16.msra.mxu0 0
    %7074 = vmatpush.bf16.msra.mxu0 0
    %7075 = vmatpush.bf16.msra.mxu0 0
    %7076 = vmatpush.bf16.msra.mxu0 0
    %7077 = vmatpush.bf16.msra.mxu0 %v6913
    %7078 = vmatpush.bf16.msra.mxu0 %v6907
    %7079 = vmatmul.bf16.gmra.mxu0 %v7028
    %v7080 = vpop.f32.mrf.mxu0
    %v7081 = vadd.f32 %v7062, %v7080
    %v7082 = vpop.f32.mrf.mxu0
    %v7083 = vadd.f32 %v7064, %v7082
    %7084 = vmatmul.bf16.gmra.mxu0 %v7031
    %v7085 = vpop.f32.mrf.mxu0
    %v7086 = vadd.f32 %v7067, %v7085
    %v7087 = vpop.f32.mrf.mxu0
    %v7088 = vadd.f32 %v7069, %v7087
    %7089 = vdwg.mxu0
    %7090 = vmatpush.bf16.msra.mxu0 %v6854
    %7091 = vmatpush.bf16.msra.mxu0 %v6848
    %7092 = vmatpush.bf16.msra.mxu0 %v6842
    %7093 = vmatpush.bf16.msra.mxu0 %v6836
    %7094 = vmatpush.bf16.msra.mxu0 %v6830
    %7095 = vmatpush.bf16.msra.mxu0 %v6824
    %7096 = vmatpush.bf16.msra.mxu0 %v6818
    %7097 = vmatpush.bf16.msra.mxu0 %v6812
    %7098 = vmatmul.bf16.gmra.mxu0 %v6477
    %v7099 = vpop.f32.mrf.mxu0
    %v7100 = vadd.f32 %v6440, %v7099
    %v7101 = vpop.f32.mrf.mxu0
    %v7102 = vadd.f32 %v6445, %v7101
    %7103 = vmatmul.bf16.gmra.mxu0 %v6480
    %v7104 = vpop.f32.mrf.mxu0
    %v7105 = vadd.f32 %v6450, %v7104
    %v7106 = vpop.f32.mrf.mxu0
    %v7107 = vadd.f32 %v6455, %v7106
    %7108 = vdwg.mxu0
    %7109 = vmatpush.bf16.msra.mxu0 %v6902
    %7110 = vmatpush.bf16.msra.mxu0 %v6896
    %7111 = vmatpush.bf16.msra.mxu0 %v6890
    %7112 = vmatpush.bf16.msra.mxu0 %v6884
    %7113 = vmatpush.bf16.msra.mxu0 %v6878
    %7114 = vmatpush.bf16.msra.mxu0 %v6872
    %7115 = vmatpush.bf16.msra.mxu0 %v6866
    %7116 = vmatpush.bf16.msra.mxu0 %v6860
    %7117 = vmatmul.bf16.gmra.mxu0 %v6478
    %v7118 = vpop.f32.mrf.mxu0
    %v7119 = vadd.f32 %v7100, %v7118
    %v7120 = vpop.f32.mrf.mxu0
    %v7121 = vadd.f32 %v7102, %v7120
    %7122 = vmatmul.bf16.gmra.mxu0 %v6481
    %v7123 = vpop.f32.mrf.mxu0
    %v7124 = vadd.f32 %v7105, %v7123
    %v7125 = vpop.f32.mrf.mxu0
    %v7126 = vadd.f32 %v7107, %v7125
    %7127 = vdwg.mxu0
    %7128 = vmatpush.bf16.msra.mxu0 0
    %7129 = vmatpush.bf16.msra.mxu0 0
    %7130 = vmatpush.bf16.msra.mxu0 0
    %7131 = vmatpush.bf16.msra.mxu0 0
    %7132 = vmatpush.bf16.msra.mxu0 0
    %7133 = vmatpush.bf16.msra.mxu0 0
    %7134 = vmatpush.bf16.msra.mxu0 %v6914
    %7135 = vmatpush.bf16.msra.mxu0 %v6908
    %7136 = vmatmul.bf16.gmra.mxu0 %v7028
    %v7137 = vpop.f32.mrf.mxu0
    %v7138 = vadd.f32 %v7119, %v7137
    %v7139 = vpop.f32.mrf.mxu0
    %v7140 = vadd.f32 %v7121, %v7139
    %7141 = vmatmul.bf16.gmra.mxu0 %v7031
    %v7142 = vpop.f32.mrf.mxu0
    %v7143 = vadd.f32 %v7124, %v7142
    %v7144 = vpop.f32.mrf.mxu0
    %v7145 = vadd.f32 %v7126, %v7144
    %7146 = vdwg.mxu0
    %7147 = vmatpush.bf16.msra.mxu0 %v6855
    %7148 = vmatpush.bf16.msra.mxu0 %v6849
    %7149 = vmatpush.bf16.msra.mxu0 %v6843
    %7150 = vmatpush.bf16.msra.mxu0 %v6837
    %7151 = vmatpush.bf16.msra.mxu0 %v6831
    %7152 = vmatpush.bf16.msra.mxu0 %v6825
    %7153 = vmatpush.bf16.msra.mxu0 %v6819
    %7154 = vmatpush.bf16.msra.mxu0 %v6813
    %7155 = vmatmul.bf16.gmra.mxu0 %v6477
    %v7156 = vpop.f32.mrf.mxu0
    %v7157 = vadd.f32 %v6440, %v7156
    %v7158 = vpop.f32.mrf.mxu0
    %v7159 = vadd.f32 %v6445, %v7158
    %7160 = vmatmul.bf16.gmra.mxu0 %v6480
    %v7161 = vpop.f32.mrf.mxu0
    %v7162 = vadd.f32 %v6450, %v7161
    %v7163 = vpop.f32.mrf.mxu0
    %v7164 = vadd.f32 %v6455, %v7163
    %7165 = vdwg.mxu0
    %7166 = vmatpush.bf16.msra.mxu0 %v6903
    %7167 = vmatpush.bf16.msra.mxu0 %v6897
    %7168 = vmatpush.bf16.msra.mxu0 %v6891
    %7169 = vmatpush.bf16.msra.mxu0 %v6885
    %7170 = vmatpush.bf16.msra.mxu0 %v6879
    %7171 = vmatpush.bf16.msra.mxu0 %v6873
    %7172 = vmatpush.bf16.msra.mxu0 %v6867
    %7173 = vmatpush.bf16.msra.mxu0 %v6861
    %7174 = vmatmul.bf16.gmra.mxu0 %v6478
    %v7175 = vpop.f32.mrf.mxu0
    %v7176 = vadd.f32 %v7157, %v7175
    %v7177 = vpop.f32.mrf.mxu0
    %v7178 = vadd.f32 %v7159, %v7177
    %7179 = vmatmul.bf16.gmra.mxu0 %v6481
    %v7180 = vpop.f32.mrf.mxu0
    %v7181 = vadd.f32 %v7162, %v7180
    %v7182 = vpop.f32.mrf.mxu0
    %v7183 = vadd.f32 %v7164, %v7182
    %7184 = vdwg.mxu0
    %7185 = vmatpush.bf16.msra.mxu0 0
    %7186 = vmatpush.bf16.msra.mxu0 0
    %7187 = vmatpush.bf16.msra.mxu0 0
    %7188 = vmatpush.bf16.msra.mxu0 0
    %7189 = vmatpush.bf16.msra.mxu0 0
    %7190 = vmatpush.bf16.msra.mxu0 0
    %7191 = vmatpush.bf16.msra.mxu0 %v6915
    %7192 = vmatpush.bf16.msra.mxu0 %v6909
    %7193 = vmatmul.bf16.gmra.mxu0 %v7028
    %v7194 = vpop.f32.mrf.mxu0
    %v7195 = vadd.f32 %v7176, %v7194
    %v7196 = vpop.f32.mrf.mxu0
    %v7197 = vadd.f32 %v7178, %v7196
    %7198 = vmatmul.bf16.gmra.mxu0 %v7031
    %v7199 = vpop.f32.mrf.mxu0
    %v7200 = vadd.f32 %v7181, %v7199
    %v7201 = vpop.f32.mrf.mxu0
    %v7202 = vadd.f32 %v7183, %v7201
    %7203 = vdwg.mxu0
    %7204 = vmatpush.bf16.msra.mxu0 %v6856
    %7205 = vmatpush.bf16.msra.mxu0 %v6850
    %7206 = vmatpush.bf16.msra.mxu0 %v6844
    %7207 = vmatpush.bf16.msra.mxu0 %v6838
    %7208 = vmatpush.bf16.msra.mxu0 %v6832
    %7209 = vmatpush.bf16.msra.mxu0 %v6826
    %7210 = vmatpush.bf16.msra.mxu0 %v6820
    %7211 = vmatpush.bf16.msra.mxu0 %v6814
    %7212 = vmatmul.bf16.gmra.mxu0 %v6477
    %v7213 = vpop.f32.mrf.mxu0
    %v7214 = vadd.f32 %v6440, %v7213
    %v7215 = vpop.f32.mrf.mxu0
    %v7216 = vadd.f32 %v6445, %v7215
    %7217 = vmatmul.bf16.gmra.mxu0 %v6480
    %v7218 = vpop.f32.mrf.mxu0
    %v7219 = vadd.f32 %v6450, %v7218
    %v7220 = vpop.f32.mrf.mxu0
    %v7221 = vadd.f32 %v6455, %v7220
    %7222 = vdwg.mxu0
    %7223 = vmatpush.bf16.msra.mxu0 %v6904
    %7224 = vmatpush.bf16.msra.mxu0 %v6898
    %7225 = vmatpush.bf16.msra.mxu0 %v6892
    %7226 = vmatpush.bf16.msra.mxu0 %v6886
    %7227 = vmatpush.bf16.msra.mxu0 %v6880
    %7228 = vmatpush.bf16.msra.mxu0 %v6874
    %7229 = vmatpush.bf16.msra.mxu0 %v6868
    %7230 = vmatpush.bf16.msra.mxu0 %v6862
    %7231 = vmatmul.bf16.gmra.mxu0 %v6478
    %v7232 = vpop.f32.mrf.mxu0
    %v7233 = vadd.f32 %v7214, %v7232
    %v7234 = vpop.f32.mrf.mxu0
    %v7235 = vadd.f32 %v7216, %v7234
    %7236 = vmatmul.bf16.gmra.mxu0 %v6481
    %v7237 = vpop.f32.mrf.mxu0
    %v7238 = vadd.f32 %v7219, %v7237
    %v7239 = vpop.f32.mrf.mxu0
    %v7240 = vadd.f32 %v7221, %v7239
    %7241 = vdwg.mxu0
    %7242 = vmatpush.bf16.msra.mxu0 0
    %7243 = vmatpush.bf16.msra.mxu0 0
    %7244 = vmatpush.bf16.msra.mxu0 0
    %7245 = vmatpush.bf16.msra.mxu0 0
    %7246 = vmatpush.bf16.msra.mxu0 0
    %7247 = vmatpush.bf16.msra.mxu0 0
    %7248 = vmatpush.bf16.msra.mxu0 %v6916
    %7249 = vmatpush.bf16.msra.mxu0 %v6910
    %7250 = vmatmul.bf16.gmra.mxu0 %v7028
    %v7251 = vpop.f32.mrf.mxu0
    %v7252 = vadd.f32 %v7233, %v7251
    %v7253 = vpop.f32.mrf.mxu0
    %v7254 = vadd.f32 %v7235, %v7253
    %7255 = vmatmul.bf16.gmra.mxu0 %v7031
    %v7256 = vpop.f32.mrf.mxu0
    %v7257 = vadd.f32 %v7238, %v7256
    %v7258 = vpop.f32.mrf.mxu0
    %v7259 = vadd.f32 %v7240, %v7258
    %7260 = vdwg.mxu0
    %7261 = vmatpush.bf16.msra.mxu0 %v6857
    %7262 = vmatpush.bf16.msra.mxu0 %v6851
    %7263 = vmatpush.bf16.msra.mxu0 %v6845
    %7264 = vmatpush.bf16.msra.mxu0 %v6839
    %7265 = vmatpush.bf16.msra.mxu0 %v6833
    %7266 = vmatpush.bf16.msra.mxu0 %v6827
    %7267 = vmatpush.bf16.msra.mxu0 %v6821
    %7268 = vmatpush.bf16.msra.mxu0 %v6815
    %7269 = vmatmul.bf16.gmra.mxu0 %v6477
    %v7270 = vpop.f32.mrf.mxu0
    %v7271 = vadd.f32 %v6440, %v7270
    %v7272 = vpop.f32.mrf.mxu0
    %v7273 = vadd.f32 %v6445, %v7272
    %7274 = vmatmul.bf16.gmra.mxu0 %v6480
    %v7275 = vpop.f32.mrf.mxu0
    %v7276 = vadd.f32 %v6450, %v7275
    %v7277 = vpop.f32.mrf.mxu0
    %v7278 = vadd.f32 %v6455, %v7277
    %7279 = vdwg.mxu0
    %7280 = vmatpush.bf16.msra.mxu0 %v6905
    %7281 = vmatpush.bf16.msra.mxu0 %v6899
    %7282 = vmatpush.bf16.msra.mxu0 %v6893
    %7283 = vmatpush.bf16.msra.mxu0 %v6887
    %7284 = vmatpush.bf16.msra.mxu0 %v6881
    %7285 = vmatpush.bf16.msra.mxu0 %v6875
    %7286 = vmatpush.bf16.msra.mxu0 %v6869
    %7287 = vmatpush.bf16.msra.mxu0 %v6863
    %7288 = vmatmul.bf16.gmra.mxu0 %v6478
    %v7289 = vpop.f32.mrf.mxu0
    %v7290 = vadd.f32 %v7271, %v7289
    %v7291 = vpop.f32.mrf.mxu0
    %v7292 = vadd.f32 %v7273, %v7291
    %7293 = vmatmul.bf16.gmra.mxu0 %v6481
    %v7294 = vpop.f32.mrf.mxu0
    %v7295 = vadd.f32 %v7276, %v7294
    %v7296 = vpop.f32.mrf.mxu0
    %v7297 = vadd.f32 %v7278, %v7296
    %7298 = vdwg.mxu0
    %7299 = vmatpush.bf16.msra.mxu0 0
    %7300 = vmatpush.bf16.msra.mxu0 0
    %7301 = vmatpush.bf16.msra.mxu0 0
    %7302 = vmatpush.bf16.msra.mxu0 0
    %7303 = vmatpush.bf16.msra.mxu0 0
    %7304 = vmatpush.bf16.msra.mxu0 0
    %7305 = vmatpush.bf16.msra.mxu0 %v6917
    %7306 = vmatpush.bf16.msra.mxu0 %v6911
    %7307 = vmatmul.bf16.gmra.mxu0 %v7028
    %v7308 = vpop.f32.mrf.mxu0
    %v7309 = vadd.f32 %v7290, %v7308
    %v7310 = vpop.f32.mrf.mxu0
    %v7311 = vadd.f32 %v7292, %v7310
    %7312 = vmatmul.bf16.gmra.mxu0 %v7031
    %v7313 = vpop.f32.mrf.mxu0
    %v7314 = vadd.f32 %v7295, %v7313
    %v7315 = vpop.f32.mrf.mxu0
    %v7316 = vadd.f32 %v7297, %v7315
    %7317 = vdwg.mxu0
    %7318 = vmatpush.bf16.msra.mxu0 %v6858
    %7319 = vmatpush.bf16.msra.mxu0 %v6852
    %7320 = vmatpush.bf16.msra.mxu0 %v6846
    %7321 = vmatpush.bf16.msra.mxu0 %v6840
    %7322 = vmatpush.bf16.msra.mxu0 %v6834
    %7323 = vmatpush.bf16.msra.mxu0 %v6828
    %7324 = vmatpush.bf16.msra.mxu0 %v6822
    %7325 = vmatpush.bf16.msra.mxu0 %v6816
    %7326 = vmatmul.bf16.gmra.mxu0 %v6477
    %v7327 = vpop.f32.mrf.mxu0
    %v7328 = vadd.f32 %v6440, %v7327
    %v7329 = vpop.f32.mrf.mxu0
    %v7330 = vadd.f32 %v6445, %v7329
    %7331 = vmatmul.bf16.gmra.mxu0 %v6480
    %v7332 = vpop.f32.mrf.mxu0
    %v7333 = vadd.f32 %v6450, %v7332
    %v7334 = vpop.f32.mrf.mxu0
    %v7335 = vadd.f32 %v6455, %v7334
    %7336 = vdwg.mxu0
    %7337 = vmatpush.bf16.msra.mxu0 %v6906
    %7338 = vmatpush.bf16.msra.mxu0 %v6900
    %7339 = vmatpush.bf16.msra.mxu0 %v6894
    %7340 = vmatpush.bf16.msra.mxu0 %v6888
    %7341 = vmatpush.bf16.msra.mxu0 %v6882
    %7342 = vmatpush.bf16.msra.mxu0 %v6876
    %7343 = vmatpush.bf16.msra.mxu0 %v6870
    %7344 = vmatpush.bf16.msra.mxu0 %v6864
    %7345 = vmatmul.bf16.gmra.mxu0 %v6478
    %v7346 = vpop.f32.mrf.mxu0
    %v7347 = vadd.f32 %v7328, %v7346
    %v7348 = vpop.f32.mrf.mxu0
    %v7349 = vadd.f32 %v7330, %v7348
    %7350 = vmatmul.bf16.gmra.mxu0 %v6481
    %v7351 = vpop.f32.mrf.mxu0
    %v7352 = vadd.f32 %v7333, %v7351
    %v7353 = vpop.f32.mrf.mxu0
    %v7354 = vadd.f32 %v7335, %v7353
    %7355 = vdwg.mxu0
    %7356 = vmatpush.bf16.msra.mxu0 0
    %7357 = vmatpush.bf16.msra.mxu0 0
    %7358 = vmatpush.bf16.msra.mxu0 0
    %7359 = vmatpush.bf16.msra.mxu0 0
    %7360 = vmatpush.bf16.msra.mxu0 0
    %7361 = vmatpush.bf16.msra.mxu0 0
    %7362 = vmatpush.bf16.msra.mxu0 %v6918
    %7363 = vmatpush.bf16.msra.mxu0 %v6912
    %7364 = vmatmul.bf16.gmra.mxu0 %v7028
    %v7365 = vpop.f32.mrf.mxu0
    %v7366 = vadd.f32 %v7347, %v7365
    %v7367 = vpop.f32.mrf.mxu0
    %v7368 = vadd.f32 %v7349, %v7367
    %7369 = vmatmul.bf16.gmra.mxu0 %v7031
    %v7370 = vpop.f32.mrf.mxu0
    %v7371 = vadd.f32 %v7352, %v7370
    %v7372 = vpop.f32.mrf.mxu0
    %v7373 = vadd.f32 %v7354, %v7372
    %7374 = vdwg.mxu0
    %s7375 = scalar_lea.vmem %s3, 2
    %v7376 = vld [vmem:[%s7375] ss:$4 sm:$0x3f]
    %vm7377 = vcmp.gt.f32.partialorder %v7376, 0.5
    %v7378 = vsel %vm7377, 1, 0
    %v7379 = vperm.slane %v7378, 0
    %v7380 = vperm.slane %v7378, 1
    %v7381 = vperm.slane %v7378, 2
    %v7382 = vperm.slane %v7378, 3
    %v7383 = vperm.slane %v7378, 4
    %v7384 = vperm.slane %v7378, 5
    %vm7385 = vcmp.eq.s32.totalorder %v7379, 1
    %vm7386 = vcmp.eq.s32.totalorder %v7380, 1
    %vm7387 = vcmp.eq.s32.totalorder %v7381, 1
    %vm7388 = vcmp.eq.s32.totalorder %v7382, 1
    %vm7389 = vcmp.eq.s32.totalorder %v7383, 1
    %vm7390 = vcmp.eq.s32.totalorder %v7384, 1
    %v7391 = vsel %vm7385, %v7081, 0.0
    %v7392 = vsel %vm7386, %v7138, 0.0
    %v7393 = vsel %vm7387, %v7195, 0.0
    %v7394 = vsel %vm7388, %v7252, 0.0
    %v7395 = vsel %vm7389, %v7309, 0.0
    %v7396 = vsel %vm7390, %v7366, 0.0
    %v7397 = vsel %vm7385, %v7083, 0.0
    %v7398 = vsel %vm7386, %v7140, 0.0
    %v7399 = vsel %vm7387, %v7197, 0.0
    %v7400 = vsel %vm7388, %v7254, 0.0
    %v7401 = vsel %vm7389, %v7311, 0.0
    %v7402 = vsel %vm7390, %v7368, 0.0
    %v7403 = vsel %vm7385, %v7086, 0.0
    %v7404 = vsel %vm7386, %v7143, 0.0
    %v7405 = vsel %vm7387, %v7200, 0.0
    %v7406 = vsel %vm7388, %v7257, 0.0
    %v7407 = vsel %vm7389, %v7314, 0.0
    %v7408 = vsel %vm7390, %v7371, 0.0
    %v7409 = vsel %vm7385, %v7088, 0.0
    %v7410 = vsel %vm7386, %v7145, 0.0
    %v7411 = vsel %vm7387, %v7202, 0.0
    %v7412 = vsel %vm7388, %v7259, 0.0
    %v7413 = vsel %vm7389, %v7316, 0.0
    %v7414 = vsel %vm7390, %v7373, 0.0
    %v7415 = vadd.f32 %v7391, %v7392
    %v7416 = vadd.f32 %v7415, %v7393
    %v7417 = vadd.f32 %v7416, %v7394
    %v7418 = vadd.f32 %v7417, %v7395
    %v7419 = vadd.f32 %v7418, %v7396
    %7420 = vadd.xlane.f32.xlu0 %v7419
    %v7421 = vpop.xlane.xlu0 %7420
    %v7422 = vadd.f32 %v7397, %v7398
    %v7423 = vadd.f32 %v7422, %v7399
    %v7424 = vadd.f32 %v7423, %v7400
    %v7425 = vadd.f32 %v7424, %v7401
    %v7426 = vadd.f32 %v7425, %v7402
    %7427 = vadd.xlane.f32.xlu0 %v7426
    %v7428 = vpop.xlane.xlu0 %7427
    %v7429 = vadd.f32 %v7403, %v7404
    %v7430 = vadd.f32 %v7429, %v7405
    %v7431 = vadd.f32 %v7430, %v7406
    %v7432 = vadd.f32 %v7431, %v7407
    %v7433 = vadd.f32 %v7432, %v7408
    %7434 = vadd.xlane.f32.xlu0 %v7433
    %v7435 = vpop.xlane.xlu0 %7434
    %v7436 = vadd.f32 %v7409, %v7410
    %v7437 = vadd.f32 %v7436, %v7411
    %v7438 = vadd.f32 %v7437, %v7412
    %v7439 = vadd.f32 %v7438, %v7413
    %v7440 = vadd.f32 %v7439, %v7414
    %7441 = vadd.xlane.f32.xlu0 %v7440
    %v7442 = vpop.xlane.xlu0 %7441
    %v7443 = vmul.f32 %v7421, 0.005
    %v7444 = vmul.f32 %v7428, 0.005
    %v7445 = vmul.f32 %v7435, 0.005
    %v7446 = vmul.f32 %v7442, 0.005
    %v7447 = vsub.f32 %v7081, %v7443
    %v7448 = vsub.f32 %v7138, %v7443
    %v7449 = vsub.f32 %v7195, %v7443
    %v7450 = vsub.f32 %v7252, %v7443
    %v7451 = vsub.f32 %v7309, %v7443
    %v7452 = vsub.f32 %v7366, %v7443
    %v7453 = vsub.f32 %v7083, %v7444
    %v7454 = vsub.f32 %v7140, %v7444
    %v7455 = vsub.f32 %v7197, %v7444
    %v7456 = vsub.f32 %v7254, %v7444
    %v7457 = vsub.f32 %v7311, %v7444
    %v7458 = vsub.f32 %v7368, %v7444
    %v7459 = vsub.f32 %v7086, %v7445
    %v7460 = vsub.f32 %v7143, %v7445
    %v7461 = vsub.f32 %v7200, %v7445
    %v7462 = vsub.f32 %v7257, %v7445
    %v7463 = vsub.f32 %v7314, %v7445
    %v7464 = vsub.f32 %v7371, %v7445
    %v7465 = vsub.f32 %v7088, %v7446
    %v7466 = vsub.f32 %v7145, %v7446
    %v7467 = vsub.f32 %v7202, %v7446
    %v7468 = vsub.f32 %v7259, %v7446
    %v7469 = vsub.f32 %v7316, %v7446
    %v7470 = vsub.f32 %v7373, %v7446
    %v7471 = vsel %vm7385, %v7447, 0.0
    %v7472 = vsel %vm7386, %v7448, 0.0
    %v7473 = vsel %vm7387, %v7449, 0.0
    %v7474 = vsel %vm7388, %v7450, 0.0
    %v7475 = vsel %vm7389, %v7451, 0.0
    %v7476 = vsel %vm7390, %v7452, 0.0
    %v7477 = vsel %vm7385, %v7453, 0.0
    %v7478 = vsel %vm7386, %v7454, 0.0
    %v7479 = vsel %vm7387, %v7455, 0.0
    %v7480 = vsel %vm7388, %v7456, 0.0
    %v7481 = vsel %vm7389, %v7457, 0.0
    %v7482 = vsel %vm7390, %v7458, 0.0
    %v7483 = vsel %vm7385, %v7459, 0.0
    %v7484 = vsel %vm7386, %v7460, 0.0
    %v7485 = vsel %vm7387, %v7461, 0.0
    %v7486 = vsel %vm7388, %v7462, 0.0
    %v7487 = vsel %vm7389, %v7463, 0.0
    %v7488 = vsel %vm7390, %v7464, 0.0
    %v7489 = vsel %vm7385, %v7465, 0.0
    %v7490 = vsel %vm7386, %v7466, 0.0
    %v7491 = vsel %vm7387, %v7467, 0.0
    %v7492 = vsel %vm7388, %v7468, 0.0
    %v7493 = vsel %vm7389, %v7469, 0.0
    %v7494 = vsel %vm7390, %v7470, 0.0
    %v7495 = vmul.f32 %v7471, %v7471
    %v7496 = vmul.f32 %v7472, %v7472
    %v7497 = vmul.f32 %v7473, %v7473
    %v7498 = vmul.f32 %v7474, %v7474
    %v7499 = vmul.f32 %v7475, %v7475
    %v7500 = vmul.f32 %v7476, %v7476
    %v7501 = vmul.f32 %v7477, %v7477
    %v7502 = vmul.f32 %v7478, %v7478
    %v7503 = vmul.f32 %v7479, %v7479
    %v7504 = vmul.f32 %v7480, %v7480
    %v7505 = vmul.f32 %v7481, %v7481
    %v7506 = vmul.f32 %v7482, %v7482
    %v7507 = vmul.f32 %v7483, %v7483
    %v7508 = vmul.f32 %v7484, %v7484
    %v7509 = vmul.f32 %v7485, %v7485
    %v7510 = vmul.f32 %v7486, %v7486
    %v7511 = vmul.f32 %v7487, %v7487
    %v7512 = vmul.f32 %v7488, %v7488
    %v7513 = vmul.f32 %v7489, %v7489
    %v7514 = vmul.f32 %v7490, %v7490
    %v7515 = vmul.f32 %v7491, %v7491
    %v7516 = vmul.f32 %v7492, %v7492
    %v7517 = vmul.f32 %v7493, %v7493
    %v7518 = vmul.f32 %v7494, %v7494
    %v7519 = vadd.f32 %v7495, %v7496
    %v7520 = vadd.f32 %v7519, %v7497
    %v7521 = vadd.f32 %v7520, %v7498
    %v7522 = vadd.f32 %v7521, %v7499
    %v7523 = vadd.f32 %v7522, %v7500
    %7524 = vadd.xlane.f32.xlu0 %v7523
    %v7525 = vpop.xlane.xlu0 %7524
    %v7526 = vadd.f32 %v7501, %v7502
    %v7527 = vadd.f32 %v7526, %v7503
    %v7528 = vadd.f32 %v7527, %v7504
    %v7529 = vadd.f32 %v7528, %v7505
    %v7530 = vadd.f32 %v7529, %v7506
    %7531 = vadd.xlane.f32.xlu0 %v7530
    %v7532 = vpop.xlane.xlu0 %7531
    %v7533 = vadd.f32 %v7507, %v7508
    %v7534 = vadd.f32 %v7533, %v7509
    %v7535 = vadd.f32 %v7534, %v7510
    %v7536 = vadd.f32 %v7535, %v7511
    %v7537 = vadd.f32 %v7536, %v7512
    %7538 = vadd.xlane.f32.xlu0 %v7537
    %v7539 = vpop.xlane.xlu0 %7538
    %v7540 = vadd.f32 %v7513, %v7514
    %v7541 = vadd.f32 %v7540, %v7515
    %v7542 = vadd.f32 %v7541, %v7516
    %v7543 = vadd.f32 %v7542, %v7517
    %v7544 = vadd.f32 %v7543, %v7518
    %7545 = vadd.xlane.f32.xlu0 %v7544
    %v7546 = vpop.xlane.xlu0 %7545
    %v7547 = vmul.f32 %v7525, 0.005
    %v7548 = vmul.f32 %v7532, 0.005
    %v7549 = vmul.f32 %v7539, 0.005
    %v7550 = vmul.f32 %v7546, 0.005
    %s7551 = scalar_lea.vmem %s2, 224
    %v7552 = vld [vmem:[%s7551] sm:$0xff]
    %v7553 = vld [vmem:[%s7551 + $0x8] sm:$0xff]
    %v7554 = vld [vmem:[%s7551 + $0x10] sm:$0xff]
    %v7555 = vld [vmem:[%s7551 + $0x18] sm:$0xff]
    %v7556 = vadd.f32 %v7547, 1e-05
    %v7557 = vadd.f32 %v7548, 1e-05
    %v7558 = vadd.f32 %v7549, 1e-05
    %v7559 = vadd.f32 %v7550, 1e-05
    %v7560 = vrsqrt.pop %v7556
    %v7561 = vmul.f32 %v7560, %v7556
    %v7562 = vmul.f32 %v7561, %v7560
    %v7563 = vmul.f32 0.5, %v7562
    %v7564 = vsub.f32 1.5, %v7563
    %v7565 = vmul.f32 %v7560, %v7564
    %vm7566 = vweird.f32 %v7556
    %vm7567 = vweird.f32 %v7560
    %vm7568 = vmor %vm7566, %vm7567
    %v7569 = vsel %vm7568, %v7560, %v7565
    %v7570 = vrsqrt.pop %v7557
    %v7571 = vmul.f32 %v7570, %v7557
    %v7572 = vmul.f32 %v7571, %v7570
    %v7573 = vmul.f32 0.5, %v7572
    %v7574 = vsub.f32 1.5, %v7573
    %v7575 = vmul.f32 %v7570, %v7574
    %vm7576 = vweird.f32 %v7557
    %vm7577 = vweird.f32 %v7570
    %vm7578 = vmor %vm7576, %vm7577
    %v7579 = vsel %vm7578, %v7570, %v7575
    %v7580 = vrsqrt.pop %v7558
    %v7581 = vmul.f32 %v7580, %v7558
    %v7582 = vmul.f32 %v7581, %v7580
    %v7583 = vmul.f32 0.5, %v7582
    %v7584 = vsub.f32 1.5, %v7583
    %v7585 = vmul.f32 %v7580, %v7584
    %vm7586 = vweird.f32 %v7558
    %vm7587 = vweird.f32 %v7580
    %vm7588 = vmor %vm7586, %vm7587
    %v7589 = vsel %vm7588, %v7580, %v7585
    %v7590 = vrsqrt.pop %v7559
    %v7591 = vmul.f32 %v7590, %v7559
    %v7592 = vmul.f32 %v7591, %v7590
    %v7593 = vmul.f32 0.5, %v7592
    %v7594 = vsub.f32 1.5, %v7593
    %v7595 = vmul.f32 %v7590, %v7594
    %vm7596 = vweird.f32 %v7559
    %vm7597 = vweird.f32 %v7590
    %vm7598 = vmor %vm7596, %vm7597
    %v7599 = vsel %vm7598, %v7590, %v7595
    %v7600 = vmul.f32 %v7552, %v7569
    %v7601 = vmul.f32 %v7553, %v7579
    %v7602 = vmul.f32 %v7554, %v7589
    %v7603 = vmul.f32 %v7555, %v7599
    %7605 = vset.pattern.permute.xlu0 0
    %7606 = vperm.xlu0 %7605, %v7600
    %v7607 = vpop.permute.xlu0 %7606
    %7610 = vset.pattern.permute.xlu0 0
    %7611 = vperm.xlu0 %7610, %v7601
    %v7612 = vpop.permute.xlu0 %7611
    %7615 = vset.pattern.permute.xlu0 0
    %7616 = vperm.xlu0 %7615, %v7602
    %v7617 = vpop.permute.xlu0 %7616
    %7620 = vset.pattern.permute.xlu0 0
    %7621 = vperm.xlu0 %7620, %v7603
    %v7622 = vpop.permute.xlu0 %7621
    %v7624 = vmul.f32 %v7447, %v7607
    %v7625 = vmul.f32 %v7448, %v7607
    %v7626 = vmul.f32 %v7449, %v7607
    %v7627 = vmul.f32 %v7450, %v7607
    %v7628 = vmul.f32 %v7451, %v7607
    %v7629 = vmul.f32 %v7452, %v7607
    %v7630 = vmul.f32 %v7453, %v7612
    %v7631 = vmul.f32 %v7454, %v7612
    %v7632 = vmul.f32 %v7455, %v7612
    %v7633 = vmul.f32 %v7456, %v7612
    %v7634 = vmul.f32 %v7457, %v7612
    %v7635 = vmul.f32 %v7458, %v7612
    %v7636 = vmul.f32 %v7459, %v7617
    %v7637 = vmul.f32 %v7460, %v7617
    %v7638 = vmul.f32 %v7461, %v7617
    %v7639 = vmul.f32 %v7462, %v7617
    %v7640 = vmul.f32 %v7463, %v7617
    %v7641 = vmul.f32 %v7464, %v7617
    %v7642 = vmul.f32 %v7465, %v7622
    %v7643 = vmul.f32 %v7466, %v7622
    %v7644 = vmul.f32 %v7467, %v7622
    %v7645 = vmul.f32 %v7468, %v7622
    %v7646 = vmul.f32 %v7469, %v7622
    %v7647 = vmul.f32 %v7470, %v7622
    %s7648 = scalar_lea.vmem %s2, 256
    %v7649 = vld [vmem:[%s7648] sm:$0xff]
    %v7650 = vld [vmem:[%s7648 + $0x8] sm:$0xff]
    %v7651 = vld [vmem:[%s7648 + $0x10] sm:$0xff]
    %v7652 = vld [vmem:[%s7648 + $0x18] sm:$0xff]
    %7654 = vset.pattern.permute.xlu0 0
    %7655 = vperm.xlu0 %7654, %v7649
    %v7656 = vpop.permute.xlu0 %7655
    %7659 = vset.pattern.permute.xlu0 0
    %7660 = vperm.xlu0 %7659, %v7650
    %v7661 = vpop.permute.xlu0 %7660
    %7664 = vset.pattern.permute.xlu0 0
    %7665 = vperm.xlu0 %7664, %v7651
    %v7666 = vpop.permute.xlu0 %7665
    %7669 = vset.pattern.permute.xlu0 0
    %7670 = vperm.xlu0 %7669, %v7652
    %v7671 = vpop.permute.xlu0 %7670
    %v7673 = vadd.f32 %v7624, %v7656
    %v7674 = vadd.f32 %v7625, %v7656
    %v7675 = vadd.f32 %v7626, %v7656
    %v7676 = vadd.f32 %v7627, %v7656
    %v7677 = vadd.f32 %v7628, %v7656
    %v7678 = vadd.f32 %v7629, %v7656
    %v7679 = vadd.f32 %v7630, %v7661
    %v7680 = vadd.f32 %v7631, %v7661
    %v7681 = vadd.f32 %v7632, %v7661
    %v7682 = vadd.f32 %v7633, %v7661
    %v7683 = vadd.f32 %v7634, %v7661
    %v7684 = vadd.f32 %v7635, %v7661
    %v7685 = vadd.f32 %v7636, %v7666
    %v7686 = vadd.f32 %v7637, %v7666
    %v7687 = vadd.f32 %v7638, %v7666
    %v7688 = vadd.f32 %v7639, %v7666
    %v7689 = vadd.f32 %v7640, %v7666
    %v7690 = vadd.f32 %v7641, %v7666
    %v7691 = vadd.f32 %v7642, %v7671
    %v7692 = vadd.f32 %v7643, %v7671
    %v7693 = vadd.f32 %v7644, %v7671
    %v7694 = vadd.f32 %v7645, %v7671
    %v7695 = vadd.f32 %v7646, %v7671
    %v7696 = vadd.f32 %v7647, %v7671
    %v7697 = vmul.f32 %v7673, 0.2
    %v7698 = vmul.f32 %v7674, 0.2
    %v7699 = vmul.f32 %v7675, 0.2
    %v7700 = vmul.f32 %v7676, 0.2
    %v7701 = vmul.f32 %v7677, 0.2
    %v7702 = vmul.f32 %v7678, 0.2
    %v7703 = vmul.f32 %v7679, 0.2
    %v7704 = vmul.f32 %v7680, 0.2
    %v7705 = vmul.f32 %v7681, 0.2
    %v7706 = vmul.f32 %v7682, 0.2
    %v7707 = vmul.f32 %v7683, 0.2
    %v7708 = vmul.f32 %v7684, 0.2
    %v7709 = vmul.f32 %v7685, 0.2
    %v7710 = vmul.f32 %v7686, 0.2
    %v7711 = vmul.f32 %v7687, 0.2
    %v7712 = vmul.f32 %v7688, 0.2
    %v7713 = vmul.f32 %v7689, 0.2
    %v7714 = vmul.f32 %v7690, 0.2
    %v7715 = vmul.f32 %v7691, 0.2
    %v7716 = vmul.f32 %v7692, 0.2
    %v7717 = vmul.f32 %v7693, 0.2
    %v7718 = vmul.f32 %v7694, 0.2
    %v7719 = vmul.f32 %v7695, 0.2
    %v7720 = vmul.f32 %v7696, 0.2
    %v7721 = vmax.f32 %v7673, %v7697
    %v7722 = vmax.f32 %v7674, %v7698
    %v7723 = vmax.f32 %v7675, %v7699
    %v7724 = vmax.f32 %v7676, %v7700
    %v7725 = vmax.f32 %v7677, %v7701
    %v7726 = vmax.f32 %v7678, %v7702
    %v7727 = vmax.f32 %v7679, %v7703
    %v7728 = vmax.f32 %v7680, %v7704
    %v7729 = vmax.f32 %v7681, %v7705
    %v7730 = vmax.f32 %v7682, %v7706
    %v7731 = vmax.f32 %v7683, %v7707
    %v7732 = vmax.f32 %v7684, %v7708
    %v7733 = vmax.f32 %v7685, %v7709
    %v7734 = vmax.f32 %v7686, %v7710
    %v7735 = vmax.f32 %v7687, %v7711
    %v7736 = vmax.f32 %v7688, %v7712
    %v7737 = vmax.f32 %v7689, %v7713
    %v7738 = vmax.f32 %v7690, %v7714
    %v7739 = vmax.f32 %v7691, %v7715
    %v7740 = vmax.f32 %v7692, %v7716
    %v7741 = vmax.f32 %v7693, %v7717
    %v7742 = vmax.f32 %v7694, %v7718
    %v7743 = vmax.f32 %v7695, %v7719
    %v7744 = vmax.f32 %v7696, %v7720
    %v7745 = vpack.c.bf16 %v7722, %v7721
    %v7746 = vpack.c.bf16 %v7724, %v7723
    %v7747 = vpack.c.bf16 %v7726, %v7725
    %v7748 = vpack.c.bf16 %v7728, %v7727
    %v7749 = vpack.c.bf16 %v7730, %v7729
    %v7750 = vpack.c.bf16 %v7732, %v7731
    %v7751 = vpack.c.bf16 %v7734, %v7733
    %v7752 = vpack.c.bf16 %v7736, %v7735
    %v7753 = vpack.c.bf16 %v7738, %v7737
    %v7754 = vpack.c.bf16 %v7740, %v7739
    %v7755 = vpack.c.bf16 %v7742, %v7741
    %v7756 = vpack.c.bf16 %v7744, %v7743
    %7757 = vst [vmem:[#allocation2] sm:$0xff] %v7745
    %7758 = vst [vmem:[#allocation2 + $0x8] sm:$0xff] %v7746
    %7759 = vst [vmem:[#allocation2 + $0x10] sm:$0xf] %v7747
    %7760 = vst [vmem:[#allocation2 + $0x20] sm:$0xff] %v7748
    %7761 = vst [vmem:[#allocation2 + $0x28] sm:$0xff] %v7749
    %7762 = vst [vmem:[#allocation2 + $0x30] sm:$0xf] %v7750
    %7763 = vst [vmem:[#allocation2 + $0x40] sm:$0xff] %v7751
    %7764 = vst [vmem:[#allocation2 + $0x48] sm:$0xff] %v7752
    %7765 = vst [vmem:[#allocation2 + $0x50] sm:$0xf] %v7753
    %7766 = vst [vmem:[#allocation2 + $0x60] sm:$0xff] %v7754
    %7767 = vst [vmem:[#allocation2 + $0x68] sm:$0xff] %v7755
    %7768 = vst [vmem:[#allocation2 + $0x70] sm:$0xf] %v7756
    %7781 = vrot.lane.b32.xlu0 %v7745, 127
    %v7782 = vpop.permute.xlu0 %7781
    %7783 = vrot.lane.b32.xlu0 %v7746, 127
    %v7784 = vpop.permute.xlu0 %7783
    %7785 = vrot.lane.b32.xlu0 %v7747, 127
    %v7786 = vpop.permute.xlu0 %7785
    %7787 = vrot.lane.b32.xlu0 %v7748, 127
    %v7788 = vpop.permute.xlu0 %7787
    %7789 = vrot.lane.b32.xlu0 %v7749, 127
    %v7790 = vpop.permute.xlu0 %7789
    %7791 = vrot.lane.b32.xlu0 %v7750, 127
    %v7792 = vpop.permute.xlu0 %7791
    %7793 = vrot.lane.b32.xlu0 %v7751, 127
    %v7794 = vpop.permute.xlu0 %7793
    %7795 = vrot.lane.b32.xlu0 %v7752, 127
    %v7796 = vpop.permute.xlu0 %7795
    %7797 = vrot.lane.b32.xlu0 %v7753, 127
    %v7798 = vpop.permute.xlu0 %7797
    %7799 = vrot.lane.b32.xlu0 %v7754, 127
    %v7800 = vpop.permute.xlu0 %7799
    %7801 = vrot.lane.b32.xlu0 %v7755, 127
    %v7802 = vpop.permute.xlu0 %7801
    %7803 = vrot.lane.b32.xlu0 %v7756, 127
    %v7804 = vpop.permute.xlu0 %7803
    %v7805 = vrot.slane %v7782, 4
    %v7806 = vrot.slane %v7784, 4
    %v7807 = vrot.slane %v7786, 4
    %v7808 = vrot.slane %v7788, 4
    %v7809 = vrot.slane %v7790, 4
    %v7810 = vrot.slane %v7792, 4
    %v7811 = vrot.slane %v7794, 4
    %v7812 = vrot.slane %v7796, 4
    %v7813 = vrot.slane %v7798, 4
    %v7814 = vrot.slane %v7800, 4
    %v7815 = vrot.slane %v7802, 4
    %v7816 = vrot.slane %v7804, 4
    %v7817 = vsel %vm135, %v7805, %v7806
    %v7818 = vsel %vm137, %v7782, %v7817
    %v7819 = vsel %vm135, %v7806, %v7807
    %v7820 = vsel %vm137, %v7784, %v7819
    %v7821 = vsel %vm137, %v7786, %v7807
    %v7822 = vsel %vm135, %v7808, %v7809
    %v7823 = vsel %vm137, %v7788, %v7822
    %v7824 = vsel %vm135, %v7809, %v7810
    %v7825 = vsel %vm137, %v7790, %v7824
    %v7826 = vsel %vm137, %v7792, %v7810
    %v7827 = vsel %vm135, %v7811, %v7812
    %v7828 = vsel %vm137, %v7794, %v7827
    %v7829 = vsel %vm135, %v7812, %v7813
    %v7830 = vsel %vm137, %v7796, %v7829
    %v7831 = vsel %vm137, %v7798, %v7813
    %v7832 = vsel %vm135, %v7814, %v7815
    %v7833 = vsel %vm137, %v7800, %v7832
    %v7834 = vsel %vm135, %v7815, %v7816
    %v7835 = vsel %vm137, %v7802, %v7834
    %v7836 = vsel %vm137, %v7804, %v7816
    %7849 = vst [vmem:[#allocation2 + $0x80] sm:$0xff] %v7818
    %7850 = vst [vmem:[#allocation2 + $0x88] sm:$0xff] %v7820
    %7851 = vst [vmem:[#allocation2 + $0x90] sm:$0xf] %v7821
    %7852 = vst [vmem:[#allocation2 + $0xa0] sm:$0xff] %v7823
    %7853 = vst [vmem:[#allocation2 + $0xa8] sm:$0xff] %v7825
    %7854 = vst [vmem:[#allocation2 + $0xb0] sm:$0xf] %v7826
    %7855 = vst [vmem:[#allocation2 + $0xc0] sm:$0xff] %v7828
    %7856 = vst [vmem:[#allocation2 + $0xc8] sm:$0xff] %v7830
    %7857 = vst [vmem:[#allocation2 + $0xd0] sm:$0xf] %v7831
    %7858 = vst [vmem:[#allocation2 + $0xe0] sm:$0xff] %v7833
    %7859 = vst [vmem:[#allocation2 + $0xe8] sm:$0xff] %v7835
    %7860 = vst [vmem:[#allocation2 + $0xf0] sm:$0xf] %v7836
    %7861 = vrot.lane.b32.xlu0 %v7745, 126
    %v7862 = vpop.permute.xlu0 %7861
    %7863 = vrot.lane.b32.xlu0 %v7746, 126
    %v7864 = vpop.permute.xlu0 %7863
    %7865 = vrot.lane.b32.xlu0 %v7747, 126
    %v7866 = vpop.permute.xlu0 %7865
    %7867 = vrot.lane.b32.xlu0 %v7748, 126
    %v7868 = vpop.permute.xlu0 %7867
    %7869 = vrot.lane.b32.xlu0 %v7749, 126
    %v7870 = vpop.permute.xlu0 %7869
    %7871 = vrot.lane.b32.xlu0 %v7750, 126
    %v7872 = vpop.permute.xlu0 %7871
    %7873 = vrot.lane.b32.xlu0 %v7751, 126
    %v7874 = vpop.permute.xlu0 %7873
    %7875 = vrot.lane.b32.xlu0 %v7752, 126
    %v7876 = vpop.permute.xlu0 %7875
    %7877 = vrot.lane.b32.xlu0 %v7753, 126
    %v7878 = vpop.permute.xlu0 %7877
    %7879 = vrot.lane.b32.xlu0 %v7754, 126
    %v7880 = vpop.permute.xlu0 %7879
    %7881 = vrot.lane.b32.xlu0 %v7755, 126
    %v7882 = vpop.permute.xlu0 %7881
    %7883 = vrot.lane.b32.xlu0 %v7756, 126
    %v7884 = vpop.permute.xlu0 %7883
    %v7885 = vrot.slane %v7862, 4
    %v7886 = vrot.slane %v7864, 4
    %v7887 = vrot.slane %v7866, 4
    %v7888 = vrot.slane %v7868, 4
    %v7889 = vrot.slane %v7870, 4
    %v7890 = vrot.slane %v7872, 4
    %v7891 = vrot.slane %v7874, 4
    %v7892 = vrot.slane %v7876, 4
    %v7893 = vrot.slane %v7878, 4
    %v7894 = vrot.slane %v7880, 4
    %v7895 = vrot.slane %v7882, 4
    %v7896 = vrot.slane %v7884, 4
    %v7897 = vsel %vm135, %v7885, %v7886
    %v7898 = vsel %vm262, %v7862, %v7897
    %v7899 = vsel %vm135, %v7886, %v7887
    %v7900 = vsel %vm262, %v7864, %v7899
    %v7901 = vsel %vm262, %v7866, %v7887
    %v7902 = vsel %vm135, %v7888, %v7889
    %v7903 = vsel %vm262, %v7868, %v7902
    %v7904 = vsel %vm135, %v7889, %v7890
    %v7905 = vsel %vm262, %v7870, %v7904
    %v7906 = vsel %vm262, %v7872, %v7890
    %v7907 = vsel %vm135, %v7891, %v7892
    %v7908 = vsel %vm262, %v7874, %v7907
    %v7909 = vsel %vm135, %v7892, %v7893
    %v7910 = vsel %vm262, %v7876, %v7909
    %v7911 = vsel %vm262, %v7878, %v7893
    %v7912 = vsel %vm135, %v7894, %v7895
    %v7913 = vsel %vm262, %v7880, %v7912
    %v7914 = vsel %vm135, %v7895, %v7896
    %v7915 = vsel %vm262, %v7882, %v7914
    %v7916 = vsel %vm262, %v7884, %v7896
    %7929 = vst [vmem:[#allocation2 + $0x100] sm:$0xff] %v7898
    %7930 = vst [vmem:[#allocation2 + $0x108] sm:$0xff] %v7900
    %7931 = vst [vmem:[#allocation2 + $0x110] sm:$0xf] %v7901
    %7932 = vst [vmem:[#allocation2 + $0x120] sm:$0xff] %v7903
    %7933 = vst [vmem:[#allocation2 + $0x128] sm:$0xff] %v7905
    %7934 = vst [vmem:[#allocation2 + $0x130] sm:$0xf] %v7906
    %7935 = vst [vmem:[#allocation2 + $0x140] sm:$0xff] %v7908
    %7936 = vst [vmem:[#allocation2 + $0x148] sm:$0xff] %v7910
    %7937 = vst [vmem:[#allocation2 + $0x150] sm:$0xf] %v7911
    %7938 = vst [vmem:[#allocation2 + $0x160] sm:$0xff] %v7913
    %7939 = vst [vmem:[#allocation2 + $0x168] sm:$0xff] %v7915
    %7940 = vst [vmem:[#allocation2 + $0x170] sm:$0xf] %v7916
    %7941 = vrot.lane.b32.xlu0 %v7745, 112
    %v7942 = vpop.permute.xlu0 %7941
    %7943 = vrot.lane.b32.xlu0 %v7746, 112
    %v7944 = vpop.permute.xlu0 %7943
    %7945 = vrot.lane.b32.xlu0 %v7747, 112
    %v7946 = vpop.permute.xlu0 %7945
    %7947 = vrot.lane.b32.xlu0 %v7748, 112
    %v7948 = vpop.permute.xlu0 %7947
    %7949 = vrot.lane.b32.xlu0 %v7749, 112
    %v7950 = vpop.permute.xlu0 %7949
    %7951 = vrot.lane.b32.xlu0 %v7750, 112
    %v7952 = vpop.permute.xlu0 %7951
    %7953 = vrot.lane.b32.xlu0 %v7751, 112
    %v7954 = vpop.permute.xlu0 %7953
    %7955 = vrot.lane.b32.xlu0 %v7752, 112
    %v7956 = vpop.permute.xlu0 %7955
    %7957 = vrot.lane.b32.xlu0 %v7753, 112
    %v7958 = vpop.permute.xlu0 %7957
    %7959 = vrot.lane.b32.xlu0 %v7754, 112
    %v7960 = vpop.permute.xlu0 %7959
    %7961 = vrot.lane.b32.xlu0 %v7755, 112
    %v7962 = vpop.permute.xlu0 %7961
    %7963 = vrot.lane.b32.xlu0 %v7756, 112
    %v7964 = vpop.permute.xlu0 %7963
    %v7965 = vrot.slane %v7942, 4
    %v7966 = vrot.slane %v7944, 4
    %v7967 = vrot.slane %v7946, 4
    %v7968 = vrot.slane %v7948, 4
    %v7969 = vrot.slane %v7950, 4
    %v7970 = vrot.slane %v7952, 4
    %v7971 = vrot.slane %v7954, 4
    %v7972 = vrot.slane %v7956, 4
    %v7973 = vrot.slane %v7958, 4
    %v7974 = vrot.slane %v7960, 4
    %v7975 = vrot.slane %v7962, 4
    %v7976 = vrot.slane %v7964, 4
    %v7977 = vsel %vm135, %v7965, %v7966
    %v7978 = vsel %vm387, %v7942, %v7977
    %v7979 = vsel %vm135, %v7966, %v7967
    %v7980 = vsel %vm387, %v7944, %v7979
    %v7981 = vsel %vm387, %v7946, %v7967
    %v7982 = vsel %vm135, %v7968, %v7969
    %v7983 = vsel %vm387, %v7948, %v7982
    %v7984 = vsel %vm135, %v7969, %v7970
    %v7985 = vsel %vm387, %v7950, %v7984
    %v7986 = vsel %vm387, %v7952, %v7970
    %v7987 = vsel %vm135, %v7971, %v7972
    %v7988 = vsel %vm387, %v7954, %v7987
    %v7989 = vsel %vm135, %v7972, %v7973
    %v7990 = vsel %vm387, %v7956, %v7989
    %v7991 = vsel %vm387, %v7958, %v7973
    %v7992 = vsel %vm135, %v7974, %v7975
    %v7993 = vsel %vm387, %v7960, %v7992
    %v7994 = vsel %vm135, %v7975, %v7976
    %v7995 = vsel %vm387, %v7962, %v7994
    %v7996 = vsel %vm387, %v7964, %v7976
    %8009 = vst [vmem:[#allocation2 + $0x180] sm:$0xff] %v7978
    %8010 = vst [vmem:[#allocation2 + $0x188] sm:$0xff] %v7980
    %8011 = vst [vmem:[#allocation2 + $0x190] sm:$0xf] %v7981
    %8012 = vst [vmem:[#allocation2 + $0x1a0] sm:$0xff] %v7983
    %8013 = vst [vmem:[#allocation2 + $0x1a8] sm:$0xff] %v7985
    %8014 = vst [vmem:[#allocation2 + $0x1b0] sm:$0xf] %v7986
    %8015 = vst [vmem:[#allocation2 + $0x1c0] sm:$0xff] %v7988
    %8016 = vst [vmem:[#allocation2 + $0x1c8] sm:$0xff] %v7990
    %8017 = vst [vmem:[#allocation2 + $0x1d0] sm:$0xf] %v7991
    %8018 = vst [vmem:[#allocation2 + $0x1e0] sm:$0xff] %v7993
    %8019 = vst [vmem:[#allocation2 + $0x1e8] sm:$0xff] %v7995
    %8020 = vst [vmem:[#allocation2 + $0x1f0] sm:$0xf] %v7996
    %8021 = vrot.lane.b32.xlu0 %v7745, 111
    %v8022 = vpop.permute.xlu0 %8021
    %8023 = vrot.lane.b32.xlu0 %v7746, 111
    %v8024 = vpop.permute.xlu0 %8023
    %8025 = vrot.lane.b32.xlu0 %v7747, 111
    %v8026 = vpop.permute.xlu0 %8025
    %8027 = vrot.lane.b32.xlu0 %v7748, 111
    %v8028 = vpop.permute.xlu0 %8027
    %8029 = vrot.lane.b32.xlu0 %v7749, 111
    %v8030 = vpop.permute.xlu0 %8029
    %8031 = vrot.lane.b32.xlu0 %v7750, 111
    %v8032 = vpop.permute.xlu0 %8031
    %8033 = vrot.lane.b32.xlu0 %v7751, 111
    %v8034 = vpop.permute.xlu0 %8033
    %8035 = vrot.lane.b32.xlu0 %v7752, 111
    %v8036 = vpop.permute.xlu0 %8035
    %8037 = vrot.lane.b32.xlu0 %v7753, 111
    %v8038 = vpop.permute.xlu0 %8037
    %8039 = vrot.lane.b32.xlu0 %v7754, 111
    %v8040 = vpop.permute.xlu0 %8039
    %8041 = vrot.lane.b32.xlu0 %v7755, 111
    %v8042 = vpop.permute.xlu0 %8041
    %8043 = vrot.lane.b32.xlu0 %v7756, 111
    %v8044 = vpop.permute.xlu0 %8043
    %v8045 = vrot.slane %v8022, 4
    %v8046 = vrot.slane %v8024, 4
    %v8047 = vrot.slane %v8026, 4
    %v8048 = vrot.slane %v8028, 4
    %v8049 = vrot.slane %v8030, 4
    %v8050 = vrot.slane %v8032, 4
    %v8051 = vrot.slane %v8034, 4
    %v8052 = vrot.slane %v8036, 4
    %v8053 = vrot.slane %v8038, 4
    %v8054 = vrot.slane %v8040, 4
    %v8055 = vrot.slane %v8042, 4
    %v8056 = vrot.slane %v8044, 4
    %v8057 = vsel %vm135, %v8045, %v8046
    %v8058 = vsel %vm512, %v8022, %v8057
    %v8059 = vsel %vm135, %v8046, %v8047
    %v8060 = vsel %vm512, %v8024, %v8059
    %v8061 = vsel %vm512, %v8026, %v8047
    %v8062 = vsel %vm135, %v8048, %v8049
    %v8063 = vsel %vm512, %v8028, %v8062
    %v8064 = vsel %vm135, %v8049, %v8050
    %v8065 = vsel %vm512, %v8030, %v8064
    %v8066 = vsel %vm512, %v8032, %v8050
    %v8067 = vsel %vm135, %v8051, %v8052
    %v8068 = vsel %vm512, %v8034, %v8067
    %v8069 = vsel %vm135, %v8052, %v8053
    %v8070 = vsel %vm512, %v8036, %v8069
    %v8071 = vsel %vm512, %v8038, %v8053
    %v8072 = vsel %vm135, %v8054, %v8055
    %v8073 = vsel %vm512, %v8040, %v8072
    %v8074 = vsel %vm135, %v8055, %v8056
    %v8075 = vsel %vm512, %v8042, %v8074
    %v8076 = vsel %vm512, %v8044, %v8056
    %8089 = vst [vmem:[#allocation2 + $0x200] sm:$0xff] %v8058
    %8090 = vst [vmem:[#allocation2 + $0x208] sm:$0xff] %v8060
    %8091 = vst [vmem:[#allocation2 + $0x210] sm:$0xf] %v8061
    %8092 = vst [vmem:[#allocation2 + $0x220] sm:$0xff] %v8063
    %8093 = vst [vmem:[#allocation2 + $0x228] sm:$0xff] %v8065
    %8094 = vst [vmem:[#allocation2 + $0x230] sm:$0xf] %v8066
    %8095 = vst [vmem:[#allocation2 + $0x240] sm:$0xff] %v8068
    %8096 = vst [vmem:[#allocation2 + $0x248] sm:$0xff] %v8070
    %8097 = vst [vmem:[#allocation2 + $0x250] sm:$0xf] %v8071
    %8098 = vst [vmem:[#allocation2 + $0x260] sm:$0xff] %v8073
    %8099 = vst [vmem:[#allocation2 + $0x268] sm:$0xff] %v8075
    %8100 = vst [vmem:[#allocation2 + $0x270] sm:$0xf] %v8076
    %8101 = vrot.lane.b32.xlu0 %v7745, 110
    %v8102 = vpop.permute.xlu0 %8101
    %8103 = vrot.lane.b32.xlu0 %v7746, 110
    %v8104 = vpop.permute.xlu0 %8103
    %8105 = vrot.lane.b32.xlu0 %v7747, 110
    %v8106 = vpop.permute.xlu0 %8105
    %8107 = vrot.lane.b32.xlu0 %v7748, 110
    %v8108 = vpop.permute.xlu0 %8107
    %8109 = vrot.lane.b32.xlu0 %v7749, 110
    %v8110 = vpop.permute.xlu0 %8109
    %8111 = vrot.lane.b32.xlu0 %v7750, 110
    %v8112 = vpop.permute.xlu0 %8111
    %8113 = vrot.lane.b32.xlu0 %v7751, 110
    %v8114 = vpop.permute.xlu0 %8113
    %8115 = vrot.lane.b32.xlu0 %v7752, 110
    %v8116 = vpop.permute.xlu0 %8115
    %8117 = vrot.lane.b32.xlu0 %v7753, 110
    %v8118 = vpop.permute.xlu0 %8117
    %8119 = vrot.lane.b32.xlu0 %v7754, 110
    %v8120 = vpop.permute.xlu0 %8119
    %8121 = vrot.lane.b32.xlu0 %v7755, 110
    %v8122 = vpop.permute.xlu0 %8121
    %8123 = vrot.lane.b32.xlu0 %v7756, 110
    %v8124 = vpop.permute.xlu0 %8123
    %v8125 = vrot.slane %v8102, 4
    %v8126 = vrot.slane %v8104, 4
    %v8127 = vrot.slane %v8106, 4
    %v8128 = vrot.slane %v8108, 4
    %v8129 = vrot.slane %v8110, 4
    %v8130 = vrot.slane %v8112, 4
    %v8131 = vrot.slane %v8114, 4
    %v8132 = vrot.slane %v8116, 4
    %v8133 = vrot.slane %v8118, 4
    %v8134 = vrot.slane %v8120, 4
    %v8135 = vrot.slane %v8122, 4
    %v8136 = vrot.slane %v8124, 4
    %v8137 = vsel %vm135, %v8125, %v8126
    %v8138 = vsel %vm637, %v8102, %v8137
    %v8139 = vsel %vm135, %v8126, %v8127
    %v8140 = vsel %vm637, %v8104, %v8139
    %v8141 = vsel %vm637, %v8106, %v8127
    %v8142 = vsel %vm135, %v8128, %v8129
    %v8143 = vsel %vm637, %v8108, %v8142
    %v8144 = vsel %vm135, %v8129, %v8130
    %v8145 = vsel %vm637, %v8110, %v8144
    %v8146 = vsel %vm637, %v8112, %v8130
    %v8147 = vsel %vm135, %v8131, %v8132
    %v8148 = vsel %vm637, %v8114, %v8147
    %v8149 = vsel %vm135, %v8132, %v8133
    %v8150 = vsel %vm637, %v8116, %v8149
    %v8151 = vsel %vm637, %v8118, %v8133
    %v8152 = vsel %vm135, %v8134, %v8135
    %v8153 = vsel %vm637, %v8120, %v8152
    %v8154 = vsel %vm135, %v8135, %v8136
    %v8155 = vsel %vm637, %v8122, %v8154
    %v8156 = vsel %vm637, %v8124, %v8136
    %8169 = vst [vmem:[#allocation2 + $0x280] sm:$0xff] %v8138
    %8170 = vst [vmem:[#allocation2 + $0x288] sm:$0xff] %v8140
    %8171 = vst [vmem:[#allocation2 + $0x290] sm:$0xf] %v8141
    %8172 = vst [vmem:[#allocation2 + $0x2a0] sm:$0xff] %v8143
    %8173 = vst [vmem:[#allocation2 + $0x2a8] sm:$0xff] %v8145
    %8174 = vst [vmem:[#allocation2 + $0x2b0] sm:$0xf] %v8146
    %8175 = vst [vmem:[#allocation2 + $0x2c0] sm:$0xff] %v8148
    %8176 = vst [vmem:[#allocation2 + $0x2c8] sm:$0xff] %v8150
    %8177 = vst [vmem:[#allocation2 + $0x2d0] sm:$0xf] %v8151
    %8178 = vst [vmem:[#allocation2 + $0x2e0] sm:$0xff] %v8153
    %8179 = vst [vmem:[#allocation2 + $0x2e8] sm:$0xff] %v8155
    %8180 = vst [vmem:[#allocation2 + $0x2f0] sm:$0xf] %v8156
    %8181 = vrot.lane.b32.xlu0 %v7745, 96
    %v8182 = vpop.permute.xlu0 %8181
    %8183 = vrot.lane.b32.xlu0 %v7746, 96
    %v8184 = vpop.permute.xlu0 %8183
    %8185 = vrot.lane.b32.xlu0 %v7747, 96
    %v8186 = vpop.permute.xlu0 %8185
    %8187 = vrot.lane.b32.xlu0 %v7748, 96
    %v8188 = vpop.permute.xlu0 %8187
    %8189 = vrot.lane.b32.xlu0 %v7749, 96
    %v8190 = vpop.permute.xlu0 %8189
    %8191 = vrot.lane.b32.xlu0 %v7750, 96
    %v8192 = vpop.permute.xlu0 %8191
    %8193 = vrot.lane.b32.xlu0 %v7751, 96
    %v8194 = vpop.permute.xlu0 %8193
    %8195 = vrot.lane.b32.xlu0 %v7752, 96
    %v8196 = vpop.permute.xlu0 %8195
    %8197 = vrot.lane.b32.xlu0 %v7753, 96
    %v8198 = vpop.permute.xlu0 %8197
    %8199 = vrot.lane.b32.xlu0 %v7754, 96
    %v8200 = vpop.permute.xlu0 %8199
    %8201 = vrot.lane.b32.xlu0 %v7755, 96
    %v8202 = vpop.permute.xlu0 %8201
    %8203 = vrot.lane.b32.xlu0 %v7756, 96
    %v8204 = vpop.permute.xlu0 %8203
    %v8205 = vrot.slane %v8182, 4
    %v8206 = vrot.slane %v8184, 4
    %v8207 = vrot.slane %v8186, 4
    %v8208 = vrot.slane %v8188, 4
    %v8209 = vrot.slane %v8190, 4
    %v8210 = vrot.slane %v8192, 4
    %v8211 = vrot.slane %v8194, 4
    %v8212 = vrot.slane %v8196, 4
    %v8213 = vrot.slane %v8198, 4
    %v8214 = vrot.slane %v8200, 4
    %v8215 = vrot.slane %v8202, 4
    %v8216 = vrot.slane %v8204, 4
    %v8217 = vsel %vm135, %v8205, %v8206
    %v8218 = vsel %vm762, %v8182, %v8217
    %v8219 = vsel %vm135, %v8206, %v8207
    %v8220 = vsel %vm762, %v8184, %v8219
    %v8221 = vsel %vm762, %v8186, %v8207
    %v8222 = vsel %vm135, %v8208, %v8209
    %v8223 = vsel %vm762, %v8188, %v8222
    %v8224 = vsel %vm135, %v8209, %v8210
    %v8225 = vsel %vm762, %v8190, %v8224
    %v8226 = vsel %vm762, %v8192, %v8210
    %v8227 = vsel %vm135, %v8211, %v8212
    %v8228 = vsel %vm762, %v8194, %v8227
    %v8229 = vsel %vm135, %v8212, %v8213
    %v8230 = vsel %vm762, %v8196, %v8229
    %v8231 = vsel %vm762, %v8198, %v8213
    %v8232 = vsel %vm135, %v8214, %v8215
    %v8233 = vsel %vm762, %v8200, %v8232
    %v8234 = vsel %vm135, %v8215, %v8216
    %v8235 = vsel %vm762, %v8202, %v8234
    %v8236 = vsel %vm762, %v8204, %v8216
    %8249 = vst [vmem:[#allocation2 + $0x300] sm:$0xff] %v8218
    %8250 = vst [vmem:[#allocation2 + $0x308] sm:$0xff] %v8220
    %8251 = vst [vmem:[#allocation2 + $0x310] sm:$0xf] %v8221
    %8252 = vst [vmem:[#allocation2 + $0x320] sm:$0xff] %v8223
    %8253 = vst [vmem:[#allocation2 + $0x328] sm:$0xff] %v8225
    %8254 = vst [vmem:[#allocation2 + $0x330] sm:$0xf] %v8226
    %8255 = vst [vmem:[#allocation2 + $0x340] sm:$0xff] %v8228
    %8256 = vst [vmem:[#allocation2 + $0x348] sm:$0xff] %v8230
    %8257 = vst [vmem:[#allocation2 + $0x350] sm:$0xf] %v8231
    %8258 = vst [vmem:[#allocation2 + $0x360] sm:$0xff] %v8233
    %8259 = vst [vmem:[#allocation2 + $0x368] sm:$0xff] %v8235
    %8260 = vst [vmem:[#allocation2 + $0x370] sm:$0xf] %v8236
    %8261 = vrot.lane.b32.xlu0 %v7745, 95
    %v8262 = vpop.permute.xlu0 %8261
    %8263 = vrot.lane.b32.xlu0 %v7746, 95
    %v8264 = vpop.permute.xlu0 %8263
    %8265 = vrot.lane.b32.xlu0 %v7747, 95
    %v8266 = vpop.permute.xlu0 %8265
    %8267 = vrot.lane.b32.xlu0 %v7748, 95
    %v8268 = vpop.permute.xlu0 %8267
    %8269 = vrot.lane.b32.xlu0 %v7749, 95
    %v8270 = vpop.permute.xlu0 %8269
    %8271 = vrot.lane.b32.xlu0 %v7750, 95
    %v8272 = vpop.permute.xlu0 %8271
    %8273 = vrot.lane.b32.xlu0 %v7751, 95
    %v8274 = vpop.permute.xlu0 %8273
    %8275 = vrot.lane.b32.xlu0 %v7752, 95
    %v8276 = vpop.permute.xlu0 %8275
    %8277 = vrot.lane.b32.xlu0 %v7753, 95
    %v8278 = vpop.permute.xlu0 %8277
    %8279 = vrot.lane.b32.xlu0 %v7754, 95
    %v8280 = vpop.permute.xlu0 %8279
    %8281 = vrot.lane.b32.xlu0 %v7755, 95
    %v8282 = vpop.permute.xlu0 %8281
    %8283 = vrot.lane.b32.xlu0 %v7756, 95
    %v8284 = vpop.permute.xlu0 %8283
    %v8285 = vrot.slane %v8262, 4
    %v8286 = vrot.slane %v8264, 4
    %v8287 = vrot.slane %v8266, 4
    %v8288 = vrot.slane %v8268, 4
    %v8289 = vrot.slane %v8270, 4
    %v8290 = vrot.slane %v8272, 4
    %v8291 = vrot.slane %v8274, 4
    %v8292 = vrot.slane %v8276, 4
    %v8293 = vrot.slane %v8278, 4
    %v8294 = vrot.slane %v8280, 4
    %v8295 = vrot.slane %v8282, 4
    %v8296 = vrot.slane %v8284, 4
    %v8297 = vsel %vm135, %v8285, %v8286
    %v8298 = vsel %vm887, %v8262, %v8297
    %v8299 = vsel %vm135, %v8286, %v8287
    %v8300 = vsel %vm887, %v8264, %v8299
    %v8301 = vsel %vm887, %v8266, %v8287
    %v8302 = vsel %vm135, %v8288, %v8289
    %v8303 = vsel %vm887, %v8268, %v8302
    %v8304 = vsel %vm135, %v8289, %v8290
    %v8305 = vsel %vm887, %v8270, %v8304
    %v8306 = vsel %vm887, %v8272, %v8290
    %v8307 = vsel %vm135, %v8291, %v8292
    %v8308 = vsel %vm887, %v8274, %v8307
    %v8309 = vsel %vm135, %v8292, %v8293
    %v8310 = vsel %vm887, %v8276, %v8309
    %v8311 = vsel %vm887, %v8278, %v8293
    %v8312 = vsel %vm135, %v8294, %v8295
    %v8313 = vsel %vm887, %v8280, %v8312
    %v8314 = vsel %vm135, %v8295, %v8296
    %v8315 = vsel %vm887, %v8282, %v8314
    %v8316 = vsel %vm887, %v8284, %v8296
    %8329 = vst [vmem:[#allocation2 + $0x380] sm:$0xff] %v8298
    %8330 = vst [vmem:[#allocation2 + $0x388] sm:$0xff] %v8300
    %8331 = vst [vmem:[#allocation2 + $0x390] sm:$0xf] %v8301
    %8332 = vst [vmem:[#allocation2 + $0x3a0] sm:$0xff] %v8303
    %8333 = vst [vmem:[#allocation2 + $0x3a8] sm:$0xff] %v8305
    %8334 = vst [vmem:[#allocation2 + $0x3b0] sm:$0xf] %v8306
    %8335 = vst [vmem:[#allocation2 + $0x3c0] sm:$0xff] %v8308
    %8336 = vst [vmem:[#allocation2 + $0x3c8] sm:$0xff] %v8310
    %8337 = vst [vmem:[#allocation2 + $0x3d0] sm:$0xf] %v8311
    %8338 = vst [vmem:[#allocation2 + $0x3e0] sm:$0xff] %v8313
    %8339 = vst [vmem:[#allocation2 + $0x3e8] sm:$0xff] %v8315
    %8340 = vst [vmem:[#allocation2 + $0x3f0] sm:$0xf] %v8316
    %8341 = vrot.lane.b32.xlu0 %v7745, 94
    %v8342 = vpop.permute.xlu0 %8341
    %8343 = vrot.lane.b32.xlu0 %v7746, 94
    %v8344 = vpop.permute.xlu0 %8343
    %8345 = vrot.lane.b32.xlu0 %v7747, 94
    %v8346 = vpop.permute.xlu0 %8345
    %8347 = vrot.lane.b32.xlu0 %v7748, 94
    %v8348 = vpop.permute.xlu0 %8347
    %8349 = vrot.lane.b32.xlu0 %v7749, 94
    %v8350 = vpop.permute.xlu0 %8349
    %8351 = vrot.lane.b32.xlu0 %v7750, 94
    %v8352 = vpop.permute.xlu0 %8351
    %8353 = vrot.lane.b32.xlu0 %v7751, 94
    %v8354 = vpop.permute.xlu0 %8353
    %8355 = vrot.lane.b32.xlu0 %v7752, 94
    %v8356 = vpop.permute.xlu0 %8355
    %8357 = vrot.lane.b32.xlu0 %v7753, 94
    %v8358 = vpop.permute.xlu0 %8357
    %8359 = vrot.lane.b32.xlu0 %v7754, 94
    %v8360 = vpop.permute.xlu0 %8359
    %8361 = vrot.lane.b32.xlu0 %v7755, 94
    %v8362 = vpop.permute.xlu0 %8361
    %8363 = vrot.lane.b32.xlu0 %v7756, 94
    %v8364 = vpop.permute.xlu0 %8363
    %v8365 = vrot.slane %v8342, 4
    %v8366 = vrot.slane %v8344, 4
    %v8367 = vrot.slane %v8346, 4
    %v8368 = vrot.slane %v8348, 4
    %v8369 = vrot.slane %v8350, 4
    %v8370 = vrot.slane %v8352, 4
    %v8371 = vrot.slane %v8354, 4
    %v8372 = vrot.slane %v8356, 4
    %v8373 = vrot.slane %v8358, 4
    %v8374 = vrot.slane %v8360, 4
    %v8375 = vrot.slane %v8362, 4
    %v8376 = vrot.slane %v8364, 4
    %v8377 = vsel %vm135, %v8365, %v8366
    %v8378 = vsel %vm1012, %v8342, %v8377
    %v8379 = vsel %vm135, %v8366, %v8367
    %v8380 = vsel %vm1012, %v8344, %v8379
    %v8381 = vsel %vm1012, %v8346, %v8367
    %v8382 = vsel %vm135, %v8368, %v8369
    %v8383 = vsel %vm1012, %v8348, %v8382
    %v8384 = vsel %vm135, %v8369, %v8370
    %v8385 = vsel %vm1012, %v8350, %v8384
    %v8386 = vsel %vm1012, %v8352, %v8370
    %v8387 = vsel %vm135, %v8371, %v8372
    %v8388 = vsel %vm1012, %v8354, %v8387
    %v8389 = vsel %vm135, %v8372, %v8373
    %v8390 = vsel %vm1012, %v8356, %v8389
    %v8391 = vsel %vm1012, %v8358, %v8373
    %v8392 = vsel %vm135, %v8374, %v8375
    %v8393 = vsel %vm1012, %v8360, %v8392
    %v8394 = vsel %vm135, %v8375, %v8376
    %v8395 = vsel %vm1012, %v8362, %v8394
    %v8396 = vsel %vm1012, %v8364, %v8376
    %8409 = vst [vmem:[#allocation2 + $0x400] sm:$0xff] %v8378
    %8410 = vst [vmem:[#allocation2 + $0x408] sm:$0xff] %v8380
    %8411 = vst [vmem:[#allocation2 + $0x410] sm:$0xf] %v8381
    %8412 = vst [vmem:[#allocation2 + $0x420] sm:$0xff] %v8383
    %8413 = vst [vmem:[#allocation2 + $0x428] sm:$0xff] %v8385
    %8414 = vst [vmem:[#allocation2 + $0x430] sm:$0xf] %v8386
    %8415 = vst [vmem:[#allocation2 + $0x440] sm:$0xff] %v8388
    %8416 = vst [vmem:[#allocation2 + $0x448] sm:$0xff] %v8390
    %8417 = vst [vmem:[#allocation2 + $0x450] sm:$0xf] %v8391
    %8418 = vst [vmem:[#allocation2 + $0x460] sm:$0xff] %v8393
    %8419 = vst [vmem:[#allocation2 + $0x468] sm:$0xff] %v8395
    %8420 = vst [vmem:[#allocation2 + $0x470] sm:$0xf] %v8396
    %s8421 = scalar_lea.vmem %s1, 144
    %v8422 = vld [vmem:[%s8421] sm:$0xff]
    %v8423 = vld [vmem:[%s8421 + $0x8] sm:$0xf]
    %v8424 = vld [vmem:[%s8421 + $0xc] sm:$0xff]
    %v8425 = vld [vmem:[%s8421 + $0x14] sm:$0xf]
    %v8426 = vld [vmem:[%s8421 + $0x18] sm:$0xff]
    %v8427 = vld [vmem:[%s8421 + $0x20] sm:$0xf]
    %v8428 = vld [vmem:[%s8421 + $0x24] sm:$0xff]
    %v8429 = vld [vmem:[%s8421 + $0x2c] sm:$0xf]
    %v8430 = vld [vmem:[#allocation2] sm:$0xff]
    %v8431 = vld [vmem:[#allocation2 + $0x8] sm:$0xff]
    %v8432 = vld [vmem:[#allocation2 + $0x10] sm:$0xf]
    %v8433 = vld [vmem:[#allocation2 + $0x20] sm:$0xff]
    %v8434 = vld [vmem:[#allocation2 + $0x28] sm:$0xff]
    %v8435 = vld [vmem:[#allocation2 + $0x30] sm:$0xf]
    %v8436 = vld [vmem:[#allocation2 + $0x40] sm:$0xff]
    %v8437 = vld [vmem:[#allocation2 + $0x48] sm:$0xff]
    %v8438 = vld [vmem:[#allocation2 + $0x50] sm:$0xf]
    %v8439 = vld [vmem:[#allocation2 + $0x60] sm:$0xff]
    %v8440 = vld [vmem:[#allocation2 + $0x68] sm:$0xff]
    %v8441 = vld [vmem:[#allocation2 + $0x70] sm:$0xf]
    %v8442 = vld [vmem:[#allocation2 + $0x80] sm:$0xff]
    %v8443 = vld [vmem:[#allocation2 + $0x88] sm:$0xff]
    %v8444 = vld [vmem:[#allocation2 + $0x90] sm:$0xf]
    %v8445 = vld [vmem:[#allocation2 + $0xa0] sm:$0xff]
    %v8446 = vld [vmem:[#allocation2 + $0xa8] sm:$0xff]
    %v8447 = vld [vmem:[#allocation2 + $0xb0] sm:$0xf]
    %v8448 = vld [vmem:[#allocation2 + $0xc0] sm:$0xff]
    %v8449 = vld [vmem:[#allocation2 + $0xc8] sm:$0xff]
    %v8450 = vld [vmem:[#allocation2 + $0xd0] sm:$0xf]
    %v8451 = vld [vmem:[#allocation2 + $0xe0] sm:$0xff]
    %v8452 = vld [vmem:[#allocation2 + $0xe8] sm:$0xff]
    %v8453 = vld [vmem:[#allocation2 + $0xf0] sm:$0xf]
    %v8454 = vld [vmem:[#allocation2 + $0x100] sm:$0xff]
    %v8455 = vld [vmem:[#allocation2 + $0x108] sm:$0xff]
    %v8456 = vld [vmem:[#allocation2 + $0x110] sm:$0xf]
    %v8457 = vld [vmem:[#allocation2 + $0x120] sm:$0xff]
    %v8458 = vld [vmem:[#allocation2 + $0x128] sm:$0xff]
    %v8459 = vld [vmem:[#allocation2 + $0x130] sm:$0xf]
    %v8460 = vld [vmem:[#allocation2 + $0x140] sm:$0xff]
    %v8461 = vld [vmem:[#allocation2 + $0x148] sm:$0xff]
    %v8462 = vld [vmem:[#allocation2 + $0x150] sm:$0xf]
    %v8463 = vld [vmem:[#allocation2 + $0x160] sm:$0xff]
    %v8464 = vld [vmem:[#allocation2 + $0x168] sm:$0xff]
    %v8465 = vld [vmem:[#allocation2 + $0x170] sm:$0xf]
    %v8466 = vld [vmem:[#allocation2 + $0x180] sm:$0xff]
    %v8467 = vld [vmem:[#allocation2 + $0x188] sm:$0xff]
    %v8468 = vld [vmem:[#allocation2 + $0x190] sm:$0xf]
    %v8469 = vld [vmem:[#allocation2 + $0x1a0] sm:$0xff]
    %v8470 = vld [vmem:[#allocation2 + $0x1a8] sm:$0xff]
    %v8471 = vld [vmem:[#allocation2 + $0x1b0] sm:$0xf]
    %v8472 = vld [vmem:[#allocation2 + $0x1c0] sm:$0xff]
    %v8473 = vld [vmem:[#allocation2 + $0x1c8] sm:$0xff]
    %v8474 = vld [vmem:[#allocation2 + $0x1d0] sm:$0xf]
    %v8475 = vld [vmem:[#allocation2 + $0x1e0] sm:$0xff]
    %v8476 = vld [vmem:[#allocation2 + $0x1e8] sm:$0xff]
    %v8477 = vld [vmem:[#allocation2 + $0x1f0] sm:$0xf]
    %v8478 = vld [vmem:[#allocation2 + $0x200] sm:$0xff]
    %v8479 = vld [vmem:[#allocation2 + $0x208] sm:$0xff]
    %v8480 = vld [vmem:[#allocation2 + $0x210] sm:$0xf]
    %v8481 = vld [vmem:[#allocation2 + $0x220] sm:$0xff]
    %v8482 = vld [vmem:[#allocation2 + $0x228] sm:$0xff]
    %v8483 = vld [vmem:[#allocation2 + $0x230] sm:$0xf]
    %v8484 = vld [vmem:[#allocation2 + $0x240] sm:$0xff]
    %v8485 = vld [vmem:[#allocation2 + $0x248] sm:$0xff]
    %v8486 = vld [vmem:[#allocation2 + $0x250] sm:$0xf]
    %v8487 = vld [vmem:[#allocation2 + $0x260] sm:$0xff]
    %v8488 = vld [vmem:[#allocation2 + $0x268] sm:$0xff]
    %v8489 = vld [vmem:[#allocation2 + $0x270] sm:$0xf]
    %v8490 = vld [vmem:[#allocation2 + $0x280] sm:$0xff]
    %v8491 = vld [vmem:[#allocation2 + $0x288] sm:$0xff]
    %v8492 = vld [vmem:[#allocation2 + $0x290] sm:$0xf]
    %v8493 = vld [vmem:[#allocation2 + $0x2a0] sm:$0xff]
    %v8494 = vld [vmem:[#allocation2 + $0x2a8] sm:$0xff]
    %v8495 = vld [vmem:[#allocation2 + $0x2b0] sm:$0xf]
    %v8496 = vld [vmem:[#allocation2 + $0x2c0] sm:$0xff]
    %v8497 = vld [vmem:[#allocation2 + $0x2c8] sm:$0xff]
    %v8498 = vld [vmem:[#allocation2 + $0x2d0] sm:$0xf]
    %v8499 = vld [vmem:[#allocation2 + $0x2e0] sm:$0xff]
    %v8500 = vld [vmem:[#allocation2 + $0x2e8] sm:$0xff]
    %v8501 = vld [vmem:[#allocation2 + $0x2f0] sm:$0xf]
    %v8502 = vld [vmem:[#allocation2 + $0x300] sm:$0xff]
    %v8503 = vld [vmem:[#allocation2 + $0x308] sm:$0xff]
    %v8504 = vld [vmem:[#allocation2 + $0x310] sm:$0xf]
    %v8505 = vld [vmem:[#allocation2 + $0x320] sm:$0xff]
    %v8506 = vld [vmem:[#allocation2 + $0x328] sm:$0xff]
    %v8507 = vld [vmem:[#allocation2 + $0x330] sm:$0xf]
    %v8508 = vld [vmem:[#allocation2 + $0x340] sm:$0xff]
    %v8509 = vld [vmem:[#allocation2 + $0x348] sm:$0xff]
    %v8510 = vld [vmem:[#allocation2 + $0x350] sm:$0xf]
    %v8511 = vld [vmem:[#allocation2 + $0x360] sm:$0xff]
    %v8512 = vld [vmem:[#allocation2 + $0x368] sm:$0xff]
    %v8513 = vld [vmem:[#allocation2 + $0x370] sm:$0xf]
    %v8514 = vld [vmem:[#allocation2 + $0x380] sm:$0xff]
    %v8515 = vld [vmem:[#allocation2 + $0x388] sm:$0xff]
    %v8516 = vld [vmem:[#allocation2 + $0x390] sm:$0xf]
    %v8517 = vld [vmem:[#allocation2 + $0x3a0] sm:$0xff]
    %v8518 = vld [vmem:[#allocation2 + $0x3a8] sm:$0xff]
    %v8519 = vld [vmem:[#allocation2 + $0x3b0] sm:$0xf]
    %v8520 = vld [vmem:[#allocation2 + $0x3c0] sm:$0xff]
    %v8521 = vld [vmem:[#allocation2 + $0x3c8] sm:$0xff]
    %v8522 = vld [vmem:[#allocation2 + $0x3d0] sm:$0xf]
    %v8523 = vld [vmem:[#allocation2 + $0x3e0] sm:$0xff]
    %v8524 = vld [vmem:[#allocation2 + $0x3e8] sm:$0xff]
    %v8525 = vld [vmem:[#allocation2 + $0x3f0] sm:$0xf]
    %v8526 = vld [vmem:[#allocation2 + $0x400] sm:$0xff]
    %v8527 = vld [vmem:[#allocation2 + $0x408] sm:$0xff]
    %v8528 = vld [vmem:[#allocation2 + $0x410] sm:$0xf]
    %v8529 = vld [vmem:[#allocation2 + $0x420] sm:$0xff]
    %v8530 = vld [vmem:[#allocation2 + $0x428] sm:$0xff]
    %v8531 = vld [vmem:[#allocation2 + $0x430] sm:$0xf]
    %v8532 = vld [vmem:[#allocation2 + $0x440] sm:$0xff]
    %v8533 = vld [vmem:[#allocation2 + $0x448] sm:$0xff]
    %v8534 = vld [vmem:[#allocation2 + $0x450] sm:$0xf]
    %v8535 = vld [vmem:[#allocation2 + $0x460] sm:$0xff]
    %v8536 = vld [vmem:[#allocation2 + $0x468] sm:$0xff]
    %v8537 = vld [vmem:[#allocation2 + $0x470] sm:$0xf]
    %s8538 = scalar_lea.vmem %s2, 288
    %v8539 = vld [vmem:[%s8538] sm:$0xff]
    %v8540 = vld [vmem:[%s8538 + $0x8] sm:$0xff]
    %v8541 = vld [vmem:[%s8538 + $0x10] sm:$0xff]
    %v8542 = vld [vmem:[%s8538 + $0x18] sm:$0xff]
    %8544 = vset.pattern.permute.xlu0 0
    %8545 = vperm.xlu0 %8544, %v8539
    %v8546 = vpop.permute.xlu0 %8545
    %8549 = vset.pattern.permute.xlu0 0
    %8550 = vperm.xlu0 %8549, %v8540
    %v8551 = vpop.permute.xlu0 %8550
    %8554 = vset.pattern.permute.xlu0 0
    %8555 = vperm.xlu0 %8554, %v8541
    %v8556 = vpop.permute.xlu0 %8555
    %8559 = vset.pattern.permute.xlu0 0
    %8560 = vperm.xlu0 %8559, %v8542
    %v8561 = vpop.permute.xlu0 %8560
    %v8571 = vunpack.c.l.b16 %v8422
    %v8572 = vunpack.c.h.b16 %v8422
    %v8573 = vunpack.c.l.b16 %v8423
    %v8574 = vunpack.c.l.b16 %v8424
    %v8575 = vunpack.c.h.b16 %v8424
    %v8576 = vunpack.c.l.b16 %v8425
    %v8577 = vunpack.c.l.b16 %v8426
    %v8578 = vunpack.c.h.b16 %v8426
    %v8579 = vunpack.c.l.b16 %v8427
    %v8580 = vunpack.c.l.b16 %v8428
    %v8581 = vunpack.c.h.b16 %v8428
    %v8582 = vunpack.c.l.b16 %v8429
    %v8583 = vpack.c.b16 %v8574, %v8571
    %v8584 = vpack.c.b16 %v8575, %v8572
    %v8585 = vpack.c.b16 %v8576, %v8573
    %v8586 = vpack.c.b16 %v8580, %v8577
    %v8587 = vpack.c.b16 %v8581, %v8578
    %v8588 = vpack.c.b16 %v8582, %v8579
    %v8701 = vunpack.c.l.b16 %v8430
    %v8702 = vunpack.c.h.b16 %v8430
    %v8703 = vunpack.c.l.b16 %v8431
    %v8704 = vunpack.c.h.b16 %v8431
    %v8705 = vunpack.c.l.b16 %v8432
    %v8706 = vunpack.c.l.b16 %v8433
    %v8707 = vunpack.c.h.b16 %v8433
    %v8708 = vunpack.c.l.b16 %v8434
    %v8709 = vunpack.c.h.b16 %v8434
    %v8710 = vunpack.c.l.b16 %v8435
    %v8711 = vunpack.c.l.b16 %v8436
    %v8712 = vunpack.c.h.b16 %v8436
    %v8713 = vunpack.c.l.b16 %v8437
    %v8714 = vunpack.c.h.b16 %v8437
    %v8715 = vunpack.c.l.b16 %v8438
    %v8716 = vunpack.c.l.b16 %v8439
    %v8717 = vunpack.c.h.b16 %v8439
    %v8718 = vunpack.c.l.b16 %v8440
    %v8719 = vunpack.c.h.b16 %v8440
    %v8720 = vunpack.c.l.b16 %v8441
    %v8721 = vunpack.c.l.b16 %v8442
    %v8722 = vunpack.c.h.b16 %v8442
    %v8723 = vunpack.c.l.b16 %v8443
    %v8724 = vunpack.c.h.b16 %v8443
    %v8725 = vunpack.c.l.b16 %v8444
    %v8726 = vunpack.c.l.b16 %v8445
    %v8727 = vunpack.c.h.b16 %v8445
    %v8728 = vunpack.c.l.b16 %v8446
    %v8729 = vunpack.c.h.b16 %v8446
    %v8730 = vunpack.c.l.b16 %v8447
    %v8731 = vunpack.c.l.b16 %v8448
    %v8732 = vunpack.c.h.b16 %v8448
    %v8733 = vunpack.c.l.b16 %v8449
    %v8734 = vunpack.c.h.b16 %v8449
    %v8735 = vunpack.c.l.b16 %v8450
    %v8736 = vunpack.c.l.b16 %v8451
    %v8737 = vunpack.c.h.b16 %v8451
    %v8738 = vunpack.c.l.b16 %v8452
    %v8739 = vunpack.c.h.b16 %v8452
    %v8740 = vunpack.c.l.b16 %v8453
    %v8741 = vunpack.c.l.b16 %v8454
    %v8742 = vunpack.c.h.b16 %v8454
    %v8743 = vunpack.c.l.b16 %v8455
    %v8744 = vunpack.c.h.b16 %v8455
    %v8745 = vunpack.c.l.b16 %v8456
    %v8746 = vunpack.c.l.b16 %v8457
    %v8747 = vunpack.c.h.b16 %v8457
    %v8748 = vunpack.c.l.b16 %v8458
    %v8749 = vunpack.c.h.b16 %v8458
    %v8750 = vunpack.c.l.b16 %v8459
    %v8751 = vunpack.c.l.b16 %v8460
    %v8752 = vunpack.c.h.b16 %v8460
    %v8753 = vunpack.c.l.b16 %v8461
    %v8754 = vunpack.c.h.b16 %v8461
    %v8755 = vunpack.c.l.b16 %v8462
    %v8756 = vunpack.c.l.b16 %v8463
    %v8757 = vunpack.c.h.b16 %v8463
    %v8758 = vunpack.c.l.b16 %v8464
    %v8759 = vunpack.c.h.b16 %v8464
    %v8760 = vunpack.c.l.b16 %v8465
    %v8761 = vunpack.c.l.b16 %v8466
    %v8762 = vunpack.c.h.b16 %v8466
    %v8763 = vunpack.c.l.b16 %v8467
    %v8764 = vunpack.c.h.b16 %v8467
    %v8765 = vunpack.c.l.b16 %v8468
    %v8766 = vunpack.c.l.b16 %v8469
    %v8767 = vunpack.c.h.b16 %v8469
    %v8768 = vunpack.c.l.b16 %v8470
    %v8769 = vunpack.c.h.b16 %v8470
    %v8770 = vunpack.c.l.b16 %v8471
    %v8771 = vunpack.c.l.b16 %v8472
    %v8772 = vunpack.c.h.b16 %v8472
    %v8773 = vunpack.c.l.b16 %v8473
    %v8774 = vunpack.c.h.b16 %v8473
    %v8775 = vunpack.c.l.b16 %v8474
    %v8776 = vunpack.c.l.b16 %v8475
    %v8777 = vunpack.c.h.b16 %v8475
    %v8778 = vunpack.c.l.b16 %v8476
    %v8779 = vunpack.c.h.b16 %v8476
    %v8780 = vunpack.c.l.b16 %v8477
    %v8781 = vunpack.c.l.b16 %v8478
    %v8782 = vunpack.c.h.b16 %v8478
    %v8783 = vunpack.c.l.b16 %v8479
    %v8784 = vunpack.c.h.b16 %v8479
    %v8785 = vunpack.c.l.b16 %v8480
    %v8786 = vunpack.c.l.b16 %v8481
    %v8787 = vunpack.c.h.b16 %v8481
    %v8788 = vunpack.c.l.b16 %v8482
    %v8789 = vunpack.c.h.b16 %v8482
    %v8790 = vunpack.c.l.b16 %v8483
    %v8791 = vunpack.c.l.b16 %v8484
    %v8792 = vunpack.c.h.b16 %v8484
    %v8793 = vunpack.c.l.b16 %v8485
    %v8794 = vunpack.c.h.b16 %v8485
    %v8795 = vunpack.c.l.b16 %v8486
    %v8796 = vunpack.c.l.b16 %v8487
    %v8797 = vunpack.c.h.b16 %v8487
    %v8798 = vunpack.c.l.b16 %v8488
    %v8799 = vunpack.c.h.b16 %v8488
    %v8800 = vunpack.c.l.b16 %v8489
    %v8801 = vunpack.c.l.b16 %v8490
    %v8802 = vunpack.c.h.b16 %v8490
    %v8803 = vunpack.c.l.b16 %v8491
    %v8804 = vunpack.c.h.b16 %v8491
    %v8805 = vunpack.c.l.b16 %v8492
    %v8806 = vunpack.c.l.b16 %v8493
    %v8807 = vunpack.c.h.b16 %v8493
    %v8808 = vunpack.c.l.b16 %v8494
    %v8809 = vunpack.c.h.b16 %v8494
    %v8810 = vunpack.c.l.b16 %v8495
    %v8811 = vunpack.c.l.b16 %v8496
    %v8812 = vunpack.c.h.b16 %v8496
    %v8813 = vunpack.c.l.b16 %v8497
    %v8814 = vunpack.c.h.b16 %v8497
    %v8815 = vunpack.c.l.b16 %v8498
    %v8816 = vunpack.c.l.b16 %v8499
    %v8817 = vunpack.c.h.b16 %v8499
    %v8818 = vunpack.c.l.b16 %v8500
    %v8819 = vunpack.c.h.b16 %v8500
    %v8820 = vunpack.c.l.b16 %v8501
    %v8821 = vunpack.c.l.b16 %v8502
    %v8822 = vunpack.c.h.b16 %v8502
    %v8823 = vunpack.c.l.b16 %v8503
    %v8824 = vunpack.c.h.b16 %v8503
    %v8825 = vunpack.c.l.b16 %v8504
    %v8826 = vunpack.c.l.b16 %v8505
    %v8827 = vunpack.c.h.b16 %v8505
    %v8828 = vunpack.c.l.b16 %v8506
    %v8829 = vunpack.c.h.b16 %v8506
    %v8830 = vunpack.c.l.b16 %v8507
    %v8831 = vunpack.c.l.b16 %v8508
    %v8832 = vunpack.c.h.b16 %v8508
    %v8833 = vunpack.c.l.b16 %v8509
    %v8834 = vunpack.c.h.b16 %v8509
    %v8835 = vunpack.c.l.b16 %v8510
    %v8836 = vunpack.c.l.b16 %v8511
    %v8837 = vunpack.c.h.b16 %v8511
    %v8838 = vunpack.c.l.b16 %v8512
    %v8839 = vunpack.c.h.b16 %v8512
    %v8840 = vunpack.c.l.b16 %v8513
    %v8841 = vunpack.c.l.b16 %v8514
    %v8842 = vunpack.c.h.b16 %v8514
    %v8843 = vunpack.c.l.b16 %v8515
    %v8844 = vunpack.c.h.b16 %v8515
    %v8845 = vunpack.c.l.b16 %v8516
    %v8846 = vunpack.c.l.b16 %v8517
    %v8847 = vunpack.c.h.b16 %v8517
    %v8848 = vunpack.c.l.b16 %v8518
    %v8849 = vunpack.c.h.b16 %v8518
    %v8850 = vunpack.c.l.b16 %v8519
    %v8851 = vunpack.c.l.b16 %v8520
    %v8852 = vunpack.c.h.b16 %v8520
    %v8853 = vunpack.c.l.b16 %v8521
    %v8854 = vunpack.c.h.b16 %v8521
    %v8855 = vunpack.c.l.b16 %v8522
    %v8856 = vunpack.c.l.b16 %v8523
    %v8857 = vunpack.c.h.b16 %v8523
    %v8858 = vunpack.c.l.b16 %v8524
    %v8859 = vunpack.c.h.b16 %v8524
    %v8860 = vunpack.c.l.b16 %v8525
    %v8861 = vunpack.c.l.b16 %v8526
    %v8862 = vunpack.c.h.b16 %v8526
    %v8863 = vunpack.c.l.b16 %v8527
    %v8864 = vunpack.c.h.b16 %v8527
    %v8865 = vunpack.c.l.b16 %v8528
    %v8866 = vunpack.c.l.b16 %v8529
    %v8867 = vunpack.c.h.b16 %v8529
    %v8868 = vunpack.c.l.b16 %v8530
    %v8869 = vunpack.c.h.b16 %v8530
    %v8870 = vunpack.c.l.b16 %v8531
    %v8871 = vunpack.c.l.b16 %v8532
    %v8872 = vunpack.c.h.b16 %v8532
    %v8873 = vunpack.c.l.b16 %v8533
    %v8874 = vunpack.c.h.b16 %v8533
    %v8875 = vunpack.c.l.b16 %v8534
    %v8876 = vunpack.c.l.b16 %v8535
    %v8877 = vunpack.c.h.b16 %v8535
    %v8878 = vunpack.c.l.b16 %v8536
    %v8879 = vunpack.c.h.b16 %v8536
    %v8880 = vunpack.c.l.b16 %v8537
    %v8881 = vpack.c.b16 %v8706, %v8701
    %v8882 = vpack.c.b16 %v8707, %v8702
    %v8883 = vpack.c.b16 %v8708, %v8703
    %v8884 = vpack.c.b16 %v8709, %v8704
    %v8885 = vpack.c.b16 %v8710, %v8705
    %v8886 = vpack.c.b16 %v8716, %v8711
    %v8887 = vpack.c.b16 %v8717, %v8712
    %v8888 = vpack.c.b16 %v8718, %v8713
    %v8889 = vpack.c.b16 %v8719, %v8714
    %v8890 = vpack.c.b16 %v8720, %v8715
    %v8891 = vpack.c.b16 %v8726, %v8721
    %v8892 = vpack.c.b16 %v8727, %v8722
    %v8893 = vpack.c.b16 %v8728, %v8723
    %v8894 = vpack.c.b16 %v8729, %v8724
    %v8895 = vpack.c.b16 %v8730, %v8725
    %v8896 = vpack.c.b16 %v8736, %v8731
    %v8897 = vpack.c.b16 %v8737, %v8732
    %v8898 = vpack.c.b16 %v8738, %v8733
    %v8899 = vpack.c.b16 %v8739, %v8734
    %v8900 = vpack.c.b16 %v8740, %v8735
    %v8901 = vpack.c.b16 %v8746, %v8741
    %v8902 = vpack.c.b16 %v8747, %v8742
    %v8903 = vpack.c.b16 %v8748, %v8743
    %v8904 = vpack.c.b16 %v8749, %v8744
    %v8905 = vpack.c.b16 %v8750, %v8745
    %v8906 = vpack.c.b16 %v8756, %v8751
    %v8907 = vpack.c.b16 %v8757, %v8752
    %v8908 = vpack.c.b16 %v8758, %v8753
    %v8909 = vpack.c.b16 %v8759, %v8754
    %v8910 = vpack.c.b16 %v8760, %v8755
    %v8911 = vpack.c.b16 %v8766, %v8761
    %v8912 = vpack.c.b16 %v8767, %v8762
    %v8913 = vpack.c.b16 %v8768, %v8763
    %v8914 = vpack.c.b16 %v8769, %v8764
    %v8915 = vpack.c.b16 %v8770, %v8765
    %v8916 = vpack.c.b16 %v8776, %v8771
    %v8917 = vpack.c.b16 %v8777, %v8772
    %v8918 = vpack.c.b16 %v8778, %v8773
    %v8919 = vpack.c.b16 %v8779, %v8774
    %v8920 = vpack.c.b16 %v8780, %v8775
    %v8921 = vpack.c.b16 %v8786, %v8781
    %v8922 = vpack.c.b16 %v8787, %v8782
    %v8923 = vpack.c.b16 %v8788, %v8783
    %v8924 = vpack.c.b16 %v8789, %v8784
    %v8925 = vpack.c.b16 %v8790, %v8785
    %v8926 = vpack.c.b16 %v8796, %v8791
    %v8927 = vpack.c.b16 %v8797, %v8792
    %v8928 = vpack.c.b16 %v8798, %v8793
    %v8929 = vpack.c.b16 %v8799, %v8794
    %v8930 = vpack.c.b16 %v8800, %v8795
    %v8931 = vpack.c.b16 %v8806, %v8801
    %v8932 = vpack.c.b16 %v8807, %v8802
    %v8933 = vpack.c.b16 %v8808, %v8803
    %v8934 = vpack.c.b16 %v8809, %v8804
    %v8935 = vpack.c.b16 %v8810, %v8805
    %v8936 = vpack.c.b16 %v8816, %v8811
    %v8937 = vpack.c.b16 %v8817, %v8812
    %v8938 = vpack.c.b16 %v8818, %v8813
    %v8939 = vpack.c.b16 %v8819, %v8814
    %v8940 = vpack.c.b16 %v8820, %v8815
    %v8941 = vpack.c.b16 %v8826, %v8821
    %v8942 = vpack.c.b16 %v8827, %v8822
    %v8943 = vpack.c.b16 %v8828, %v8823
    %v8944 = vpack.c.b16 %v8829, %v8824
    %v8945 = vpack.c.b16 %v8830, %v8825
    %v8946 = vpack.c.b16 %v8836, %v8831
    %v8947 = vpack.c.b16 %v8837, %v8832
    %v8948 = vpack.c.b16 %v8838, %v8833
    %v8949 = vpack.c.b16 %v8839, %v8834
    %v8950 = vpack.c.b16 %v8840, %v8835
    %v8951 = vpack.c.b16 %v8846, %v8841
    %v8952 = vpack.c.b16 %v8847, %v8842
    %v8953 = vpack.c.b16 %v8848, %v8843
    %v8954 = vpack.c.b16 %v8849, %v8844
    %v8955 = vpack.c.b16 %v8850, %v8845
    %v8956 = vpack.c.b16 %v8856, %v8851
    %v8957 = vpack.c.b16 %v8857, %v8852
    %v8958 = vpack.c.b16 %v8858, %v8853
    %v8959 = vpack.c.b16 %v8859, %v8854
    %v8960 = vpack.c.b16 %v8860, %v8855
    %v8961 = vpack.c.b16 %v8866, %v8861
    %v8962 = vpack.c.b16 %v8867, %v8862
    %v8963 = vpack.c.b16 %v8868, %v8863
    %v8964 = vpack.c.b16 %v8869, %v8864
    %v8965 = vpack.c.b16 %v8870, %v8865
    %v8966 = vpack.c.b16 %v8876, %v8871
    %v8967 = vpack.c.b16 %v8877, %v8872
    %v8968 = vpack.c.b16 %v8878, %v8873
    %v8969 = vpack.c.b16 %v8879, %v8874
    %v8970 = vpack.c.b16 %v8880, %v8875
    %v9062 = vsel %vm2002, %v8585, 0
    %v9065 = vsel %vm2002, %v8588, 0
    %9067 = vmatpush.bf16.msra.mxu0 %v8916
    %9068 = vmatpush.bf16.msra.mxu0 %v8911
    %9069 = vmatpush.bf16.msra.mxu0 %v8906
    %9070 = vmatpush.bf16.msra.mxu0 %v8901
    %9071 = vmatpush.bf16.msra.mxu0 %v8896
    %9072 = vmatpush.bf16.msra.mxu0 %v8891
    %9073 = vmatpush.bf16.msra.mxu0 %v8886
    %9074 = vmatpush.bf16.msra.mxu0 %v8881
    %9075 = vmatmul.bf16.gmra.mxu0 %v8583
    %v9076 = vpop.f32.mrf.mxu0
    %v9077 = vadd.f32 %v8546, %v9076
    %v9078 = vpop.f32.mrf.mxu0
    %v9079 = vadd.f32 %v8551, %v9078
    %9080 = vmatmul.bf16.gmra.mxu0 %v8586
    %v9081 = vpop.f32.mrf.mxu0
    %v9082 = vadd.f32 %v8556, %v9081
    %v9083 = vpop.f32.mrf.mxu0
    %v9084 = vadd.f32 %v8561, %v9083
    %9085 = vdwg.mxu0
    %9086 = vmatpush.bf16.msra.mxu0 %v8956
    %9087 = vmatpush.bf16.msra.mxu0 %v8951
    %9088 = vmatpush.bf16.msra.mxu0 %v8946
    %9089 = vmatpush.bf16.msra.mxu0 %v8941
    %9090 = vmatpush.bf16.msra.mxu0 %v8936
    %9091 = vmatpush.bf16.msra.mxu0 %v8931
    %9092 = vmatpush.bf16.msra.mxu0 %v8926
    %9093 = vmatpush.bf16.msra.mxu0 %v8921
    %9094 = vmatmul.bf16.gmra.mxu0 %v8584
    %v9095 = vpop.f32.mrf.mxu0
    %v9096 = vadd.f32 %v9077, %v9095
    %v9097 = vpop.f32.mrf.mxu0
    %v9098 = vadd.f32 %v9079, %v9097
    %9099 = vmatmul.bf16.gmra.mxu0 %v8587
    %v9100 = vpop.f32.mrf.mxu0
    %v9101 = vadd.f32 %v9082, %v9100
    %v9102 = vpop.f32.mrf.mxu0
    %v9103 = vadd.f32 %v9084, %v9102
    %9104 = vdwg.mxu0
    %9105 = vmatpush.bf16.msra.mxu0 0
    %9106 = vmatpush.bf16.msra.mxu0 0
    %9107 = vmatpush.bf16.msra.mxu0 0
    %9108 = vmatpush.bf16.msra.mxu0 0
    %9109 = vmatpush.bf16.msra.mxu0 0
    %9110 = vmatpush.bf16.msra.mxu0 0
    %9111 = vmatpush.bf16.msra.mxu0 %v8966
    %9112 = vmatpush.bf16.msra.mxu0 %v8961
    %9113 = vmatmul.bf16.gmra.mxu0 %v9062
    %v9114 = vpop.f32.mrf.mxu0
    %v9115 = vadd.f32 %v9096, %v9114
    %v9116 = vpop.f32.mrf.mxu0
    %v9117 = vadd.f32 %v9098, %v9116
    %9118 = vmatmul.bf16.gmra.mxu0 %v9065
    %v9119 = vpop.f32.mrf.mxu0
    %v9120 = vadd.f32 %v9101, %v9119
    %v9121 = vpop.f32.mrf.mxu0
    %v9122 = vadd.f32 %v9103, %v9121
    %9123 = vdwg.mxu0
    %9124 = vmatpush.bf16.msra.mxu0 %v8917
    %9125 = vmatpush.bf16.msra.mxu0 %v8912
    %9126 = vmatpush.bf16.msra.mxu0 %v8907
    %9127 = vmatpush.bf16.msra.mxu0 %v8902
    %9128 = vmatpush.bf16.msra.mxu0 %v8897
    %9129 = vmatpush.bf16.msra.mxu0 %v8892
    %9130 = vmatpush.bf16.msra.mxu0 %v8887
    %9131 = vmatpush.bf16.msra.mxu0 %v8882
    %9132 = vmatmul.bf16.gmra.mxu0 %v8583
    %v9133 = vpop.f32.mrf.mxu0
    %v9134 = vadd.f32 %v8546, %v9133
    %v9135 = vpop.f32.mrf.mxu0
    %v9136 = vadd.f32 %v8551, %v9135
    %9137 = vmatmul.bf16.gmra.mxu0 %v8586
    %v9138 = vpop.f32.mrf.mxu0
    %v9139 = vadd.f32 %v8556, %v9138
    %v9140 = vpop.f32.mrf.mxu0
    %v9141 = vadd.f32 %v8561, %v9140
    %9142 = vdwg.mxu0
    %9143 = vmatpush.bf16.msra.mxu0 %v8957
    %9144 = vmatpush.bf16.msra.mxu0 %v8952
    %9145 = vmatpush.bf16.msra.mxu0 %v8947
    %9146 = vmatpush.bf16.msra.mxu0 %v8942
    %9147 = vmatpush.bf16.msra.mxu0 %v8937
    %9148 = vmatpush.bf16.msra.mxu0 %v8932
    %9149 = vmatpush.bf16.msra.mxu0 %v8927
    %9150 = vmatpush.bf16.msra.mxu0 %v8922
    %9151 = vmatmul.bf16.gmra.mxu0 %v8584
    %v9152 = vpop.f32.mrf.mxu0
    %v9153 = vadd.f32 %v9134, %v9152
    %v9154 = vpop.f32.mrf.mxu0
    %v9155 = vadd.f32 %v9136, %v9154
    %9156 = vmatmul.bf16.gmra.mxu0 %v8587
    %v9157 = vpop.f32.mrf.mxu0
    %v9158 = vadd.f32 %v9139, %v9157
    %v9159 = vpop.f32.mrf.mxu0
    %v9160 = vadd.f32 %v9141, %v9159
    %9161 = vdwg.mxu0
    %9162 = vmatpush.bf16.msra.mxu0 0
    %9163 = vmatpush.bf16.msra.mxu0 0
    %9164 = vmatpush.bf16.msra.mxu0 0
    %9165 = vmatpush.bf16.msra.mxu0 0
    %9166 = vmatpush.bf16.msra.mxu0 0
    %9167 = vmatpush.bf16.msra.mxu0 0
    %9168 = vmatpush.bf16.msra.mxu0 %v8967
    %9169 = vmatpush.bf16.msra.mxu0 %v8962
    %9170 = vmatmul.bf16.gmra.mxu0 %v9062
    %v9171 = vpop.f32.mrf.mxu0
    %v9172 = vadd.f32 %v9153, %v9171
    %v9173 = vpop.f32.mrf.mxu0
    %v9174 = vadd.f32 %v9155, %v9173
    %9175 = vmatmul.bf16.gmra.mxu0 %v9065
    %v9176 = vpop.f32.mrf.mxu0
    %v9177 = vadd.f32 %v9158, %v9176
    %v9178 = vpop.f32.mrf.mxu0
    %v9179 = vadd.f32 %v9160, %v9178
    %9180 = vdwg.mxu0
    %9181 = vmatpush.bf16.msra.mxu0 %v8918
    %9182 = vmatpush.bf16.msra.mxu0 %v8913
    %9183 = vmatpush.bf16.msra.mxu0 %v8908
    %9184 = vmatpush.bf16.msra.mxu0 %v8903
    %9185 = vmatpush.bf16.msra.mxu0 %v8898
    %9186 = vmatpush.bf16.msra.mxu0 %v8893
    %9187 = vmatpush.bf16.msra.mxu0 %v8888
    %9188 = vmatpush.bf16.msra.mxu0 %v8883
    %9189 = vmatmul.bf16.gmra.mxu0 %v8583
    %v9190 = vpop.f32.mrf.mxu0
    %v9191 = vadd.f32 %v8546, %v9190
    %v9192 = vpop.f32.mrf.mxu0
    %v9193 = vadd.f32 %v8551, %v9192
    %9194 = vmatmul.bf16.gmra.mxu0 %v8586
    %v9195 = vpop.f32.mrf.mxu0
    %v9196 = vadd.f32 %v8556, %v9195
    %v9197 = vpop.f32.mrf.mxu0
    %v9198 = vadd.f32 %v8561, %v9197
    %9199 = vdwg.mxu0
    %9200 = vmatpush.bf16.msra.mxu0 %v8958
    %9201 = vmatpush.bf16.msra.mxu0 %v8953
    %9202 = vmatpush.bf16.msra.mxu0 %v8948
    %9203 = vmatpush.bf16.msra.mxu0 %v8943
    %9204 = vmatpush.bf16.msra.mxu0 %v8938
    %9205 = vmatpush.bf16.msra.mxu0 %v8933
    %9206 = vmatpush.bf16.msra.mxu0 %v8928
    %9207 = vmatpush.bf16.msra.mxu0 %v8923
    %9208 = vmatmul.bf16.gmra.mxu0 %v8584
    %v9209 = vpop.f32.mrf.mxu0
    %v9210 = vadd.f32 %v9191, %v9209
    %v9211 = vpop.f32.mrf.mxu0
    %v9212 = vadd.f32 %v9193, %v9211
    %9213 = vmatmul.bf16.gmra.mxu0 %v8587
    %v9214 = vpop.f32.mrf.mxu0
    %v9215 = vadd.f32 %v9196, %v9214
    %v9216 = vpop.f32.mrf.mxu0
    %v9217 = vadd.f32 %v9198, %v9216
    %9218 = vdwg.mxu0
    %9219 = vmatpush.bf16.msra.mxu0 0
    %9220 = vmatpush.bf16.msra.mxu0 0
    %9221 = vmatpush.bf16.msra.mxu0 0
    %9222 = vmatpush.bf16.msra.mxu0 0
    %9223 = vmatpush.bf16.msra.mxu0 0
    %9224 = vmatpush.bf16.msra.mxu0 0
    %9225 = vmatpush.bf16.msra.mxu0 %v8968
    %9226 = vmatpush.bf16.msra.mxu0 %v8963
    %9227 = vmatmul.bf16.gmra.mxu0 %v9062
    %v9228 = vpop.f32.mrf.mxu0
    %v9229 = vadd.f32 %v9210, %v9228
    %v9230 = vpop.f32.mrf.mxu0
    %v9231 = vadd.f32 %v9212, %v9230
    %9232 = vmatmul.bf16.gmra.mxu0 %v9065
    %v9233 = vpop.f32.mrf.mxu0
    %v9234 = vadd.f32 %v9215, %v9233
    %v9235 = vpop.f32.mrf.mxu0
    %v9236 = vadd.f32 %v9217, %v9235
    %9237 = vdwg.mxu0
    %9238 = vmatpush.bf16.msra.mxu0 %v8919
    %9239 = vmatpush.bf16.msra.mxu0 %v8914
    %9240 = vmatpush.bf16.msra.mxu0 %v8909
    %9241 = vmatpush.bf16.msra.mxu0 %v8904
    %9242 = vmatpush.bf16.msra.mxu0 %v8899
    %9243 = vmatpush.bf16.msra.mxu0 %v8894
    %9244 = vmatpush.bf16.msra.mxu0 %v8889
    %9245 = vmatpush.bf16.msra.mxu0 %v8884
    %9246 = vmatmul.bf16.gmra.mxu0 %v8583
    %v9247 = vpop.f32.mrf.mxu0
    %v9248 = vadd.f32 %v8546, %v9247
    %v9249 = vpop.f32.mrf.mxu0
    %v9250 = vadd.f32 %v8551, %v9249
    %9251 = vmatmul.bf16.gmra.mxu0 %v8586
    %v9252 = vpop.f32.mrf.mxu0
    %v9253 = vadd.f32 %v8556, %v9252
    %v9254 = vpop.f32.mrf.mxu0
    %v9255 = vadd.f32 %v8561, %v9254
    %9256 = vdwg.mxu0
    %9257 = vmatpush.bf16.msra.mxu0 %v8959
    %9258 = vmatpush.bf16.msra.mxu0 %v8954
    %9259 = vmatpush.bf16.msra.mxu0 %v8949
    %9260 = vmatpush.bf16.msra.mxu0 %v8944
    %9261 = vmatpush.bf16.msra.mxu0 %v8939
    %9262 = vmatpush.bf16.msra.mxu0 %v8934
    %9263 = vmatpush.bf16.msra.mxu0 %v8929
    %9264 = vmatpush.bf16.msra.mxu0 %v8924
    %9265 = vmatmul.bf16.gmra.mxu0 %v8584
    %v9266 = vpop.f32.mrf.mxu0
    %v9267 = vadd.f32 %v9248, %v9266
    %v9268 = vpop.f32.mrf.mxu0
    %v9269 = vadd.f32 %v9250, %v9268
    %9270 = vmatmul.bf16.gmra.mxu0 %v8587
    %v9271 = vpop.f32.mrf.mxu0
    %v9272 = vadd.f32 %v9253, %v9271
    %v9273 = vpop.f32.mrf.mxu0
    %v9274 = vadd.f32 %v9255, %v9273
    %9275 = vdwg.mxu0
    %9276 = vmatpush.bf16.msra.mxu0 0
    %9277 = vmatpush.bf16.msra.mxu0 0
    %9278 = vmatpush.bf16.msra.mxu0 0
    %9279 = vmatpush.bf16.msra.mxu0 0
    %9280 = vmatpush.bf16.msra.mxu0 0
    %9281 = vmatpush.bf16.msra.mxu0 0
    %9282 = vmatpush.bf16.msra.mxu0 %v8969
    %9283 = vmatpush.bf16.msra.mxu0 %v8964
    %9284 = vmatmul.bf16.gmra.mxu0 %v9062
    %v9285 = vpop.f32.mrf.mxu0
    %v9286 = vadd.f32 %v9267, %v9285
    %v9287 = vpop.f32.mrf.mxu0
    %v9288 = vadd.f32 %v9269, %v9287
    %9289 = vmatmul.bf16.gmra.mxu0 %v9065
    %v9290 = vpop.f32.mrf.mxu0
    %v9291 = vadd.f32 %v9272, %v9290
    %v9292 = vpop.f32.mrf.mxu0
    %v9293 = vadd.f32 %v9274, %v9292
    %9294 = vdwg.mxu0
    %9295 = vmatpush.bf16.msra.mxu0 %v8920
    %9296 = vmatpush.bf16.msra.mxu0 %v8915
    %9297 = vmatpush.bf16.msra.mxu0 %v8910
    %9298 = vmatpush.bf16.msra.mxu0 %v8905
    %9299 = vmatpush.bf16.msra.mxu0 %v8900
    %9300 = vmatpush.bf16.msra.mxu0 %v8895
    %9301 = vmatpush.bf16.msra.mxu0 %v8890
    %9302 = vmatpush.bf16.msra.mxu0 %v8885
    %9303 = vmatmul.bf16.gmra.mxu0 %v8583
    %v9304 = vpop.f32.mrf.mxu0
    %v9305 = vadd.f32 %v8546, %v9304
    %v9306 = vpop.f32.mrf.mxu0
    %v9307 = vadd.f32 %v8551, %v9306
    %9308 = vmatmul.bf16.gmra.mxu0 %v8586
    %v9309 = vpop.f32.mrf.mxu0
    %v9310 = vadd.f32 %v8556, %v9309
    %v9311 = vpop.f32.mrf.mxu0
    %v9312 = vadd.f32 %v8561, %v9311
    %9313 = vdwg.mxu0
    %9314 = vmatpush.bf16.msra.mxu0 %v8960
    %9315 = vmatpush.bf16.msra.mxu0 %v8955
    %9316 = vmatpush.bf16.msra.mxu0 %v8950
    %9317 = vmatpush.bf16.msra.mxu0 %v8945
    %9318 = vmatpush.bf16.msra.mxu0 %v8940
    %9319 = vmatpush.bf16.msra.mxu0 %v8935
    %9320 = vmatpush.bf16.msra.mxu0 %v8930
    %9321 = vmatpush.bf16.msra.mxu0 %v8925
    %9322 = vmatmul.bf16.gmra.mxu0 %v8584
    %v9323 = vpop.f32.mrf.mxu0
    %v9324 = vadd.f32 %v9305, %v9323
    %v9325 = vpop.f32.mrf.mxu0
    %v9326 = vadd.f32 %v9307, %v9325
    %9327 = vmatmul.bf16.gmra.mxu0 %v8587
    %v9328 = vpop.f32.mrf.mxu0
    %v9329 = vadd.f32 %v9310, %v9328
    %v9330 = vpop.f32.mrf.mxu0
    %v9331 = vadd.f32 %v9312, %v9330
    %9332 = vdwg.mxu0
    %9333 = vmatpush.bf16.msra.mxu0 0
    %9334 = vmatpush.bf16.msra.mxu0 0
    %9335 = vmatpush.bf16.msra.mxu0 0
    %9336 = vmatpush.bf16.msra.mxu0 0
    %9337 = vmatpush.bf16.msra.mxu0 0
    %9338 = vmatpush.bf16.msra.mxu0 0
    %9339 = vmatpush.bf16.msra.mxu0 %v8970
    %9340 = vmatpush.bf16.msra.mxu0 %v8965
    %9341 = vmatmul.bf16.gmra.mxu0 %v9062
    %v9342 = vpop.f32.mrf.mxu0
    %v9343 = vadd.f32 %v9324, %v9342
    %v9344 = vpop.f32.mrf.mxu0
    %v9345 = vadd.f32 %v9326, %v9344
    %9346 = vmatmul.bf16.gmra.mxu0 %v9065
    %v9347 = vpop.f32.mrf.mxu0
    %v9348 = vadd.f32 %v9329, %v9347
    %v9349 = vpop.f32.mrf.mxu0
    %v9350 = vadd.f32 %v9331, %v9349
    %9351 = vdwg.mxu0
    %s9352 = scalar_lea.vmem %s3, 3
    %v9353 = vld [vmem:[%s9352] ss:$4 sm:$0x1f]
    %vm9354 = vcmp.gt.f32.partialorder %v9353, 0.5
    %v9355 = vsel %vm9354, 1, 0
    %v9356 = vperm.slane %v9355, 0
    %v9357 = vperm.slane %v9355, 1
    %v9358 = vperm.slane %v9355, 2
    %v9359 = vperm.slane %v9355, 3
    %v9360 = vperm.slane %v9355, 4
    %vm9361 = vcmp.eq.s32.totalorder %v9356, 1
    %vm9362 = vcmp.eq.s32.totalorder %v9357, 1
    %vm9363 = vcmp.eq.s32.totalorder %v9358, 1
    %vm9364 = vcmp.eq.s32.totalorder %v9359, 1
    %vm9365 = vcmp.eq.s32.totalorder %v9360, 1
    %v9366 = vsel %vm9361, %v9115, 0.0
    %v9367 = vsel %vm9362, %v9172, 0.0
    %v9368 = vsel %vm9363, %v9229, 0.0
    %v9369 = vsel %vm9364, %v9286, 0.0
    %v9370 = vsel %vm9365, %v9343, 0.0
    %v9371 = vsel %vm9361, %v9117, 0.0
    %v9372 = vsel %vm9362, %v9174, 0.0
    %v9373 = vsel %vm9363, %v9231, 0.0
    %v9374 = vsel %vm9364, %v9288, 0.0
    %v9375 = vsel %vm9365, %v9345, 0.0
    %v9376 = vsel %vm9361, %v9120, 0.0
    %v9377 = vsel %vm9362, %v9177, 0.0
    %v9378 = vsel %vm9363, %v9234, 0.0
    %v9379 = vsel %vm9364, %v9291, 0.0
    %v9380 = vsel %vm9365, %v9348, 0.0
    %v9381 = vsel %vm9361, %v9122, 0.0
    %v9382 = vsel %vm9362, %v9179, 0.0
    %v9383 = vsel %vm9363, %v9236, 0.0
    %v9384 = vsel %vm9364, %v9293, 0.0
    %v9385 = vsel %vm9365, %v9350, 0.0
    %v9386 = vadd.f32 %v9366, %v9367
    %v9387 = vadd.f32 %v9386, %v9368
    %v9388 = vadd.f32 %v9387, %v9369
    %v9389 = vadd.f32 %v9388, %v9370
    %9390 = vadd.xlane.f32.xlu0 %v9389
    %v9391 = vpop.xlane.xlu0 %9390
    %v9392 = vadd.f32 %v9371, %v9372
    %v9393 = vadd.f32 %v9392, %v9373
    %v9394 = vadd.f32 %v9393, %v9374
    %v9395 = vadd.f32 %v9394, %v9375
    %9396 = vadd.xlane.f32.xlu0 %v9395
    %v9397 = vpop.xlane.xlu0 %9396
    %v9398 = vadd.f32 %v9376, %v9377
    %v9399 = vadd.f32 %v9398, %v9378
    %v9400 = vadd.f32 %v9399, %v9379
    %v9401 = vadd.f32 %v9400, %v9380
    %9402 = vadd.xlane.f32.xlu0 %v9401
    %v9403 = vpop.xlane.xlu0 %9402
    %v9404 = vadd.f32 %v9381, %v9382
    %v9405 = vadd.f32 %v9404, %v9383
    %v9406 = vadd.f32 %v9405, %v9384
    %v9407 = vadd.f32 %v9406, %v9385
    %9408 = vadd.xlane.f32.xlu0 %v9407
    %v9409 = vpop.xlane.xlu0 %9408
    %v9410 = vmul.f32 %v9391, 0.0078125
    %v9411 = vmul.f32 %v9397, 0.0078125
    %v9412 = vmul.f32 %v9403, 0.0078125
    %v9413 = vmul.f32 %v9409, 0.0078125
    %v9414 = vsub.f32 %v9115, %v9410
    %v9415 = vsub.f32 %v9172, %v9410
    %v9416 = vsub.f32 %v9229, %v9410
    %v9417 = vsub.f32 %v9286, %v9410
    %v9418 = vsub.f32 %v9343, %v9410
    %v9419 = vsub.f32 %v9117, %v9411
    %v9420 = vsub.f32 %v9174, %v9411
    %v9421 = vsub.f32 %v9231, %v9411
    %v9422 = vsub.f32 %v9288, %v9411
    %v9423 = vsub.f32 %v9345, %v9411
    %v9424 = vsub.f32 %v9120, %v9412
    %v9425 = vsub.f32 %v9177, %v9412
    %v9426 = vsub.f32 %v9234, %v9412
    %v9427 = vsub.f32 %v9291, %v9412
    %v9428 = vsub.f32 %v9348, %v9412
    %v9429 = vsub.f32 %v9122, %v9413
    %v9430 = vsub.f32 %v9179, %v9413
    %v9431 = vsub.f32 %v9236, %v9413
    %v9432 = vsub.f32 %v9293, %v9413
    %v9433 = vsub.f32 %v9350, %v9413
    %v9434 = vsel %vm9361, %v9414, 0.0
    %v9435 = vsel %vm9362, %v9415, 0.0
    %v9436 = vsel %vm9363, %v9416, 0.0
    %v9437 = vsel %vm9364, %v9417, 0.0
    %v9438 = vsel %vm9365, %v9418, 0.0
    %v9439 = vsel %vm9361, %v9419, 0.0
    %v9440 = vsel %vm9362, %v9420, 0.0
    %v9441 = vsel %vm9363, %v9421, 0.0
    %v9442 = vsel %vm9364, %v9422, 0.0
    %v9443 = vsel %vm9365, %v9423, 0.0
    %v9444 = vsel %vm9361, %v9424, 0.0
    %v9445 = vsel %vm9362, %v9425, 0.0
    %v9446 = vsel %vm9363, %v9426, 0.0
    %v9447 = vsel %vm9364, %v9427, 0.0
    %v9448 = vsel %vm9365, %v9428, 0.0
    %v9449 = vsel %vm9361, %v9429, 0.0
    %v9450 = vsel %vm9362, %v9430, 0.0
    %v9451 = vsel %vm9363, %v9431, 0.0
    %v9452 = vsel %vm9364, %v9432, 0.0
    %v9453 = vsel %vm9365, %v9433, 0.0
    %v9454 = vmul.f32 %v9434, %v9434
    %v9455 = vmul.f32 %v9435, %v9435
    %v9456 = vmul.f32 %v9436, %v9436
    %v9457 = vmul.f32 %v9437, %v9437
    %v9458 = vmul.f32 %v9438, %v9438
    %v9459 = vmul.f32 %v9439, %v9439
    %v9460 = vmul.f32 %v9440, %v9440
    %v9461 = vmul.f32 %v9441, %v9441
    %v9462 = vmul.f32 %v9442, %v9442
    %v9463 = vmul.f32 %v9443, %v9443
    %v9464 = vmul.f32 %v9444, %v9444
    %v9465 = vmul.f32 %v9445, %v9445
    %v9466 = vmul.f32 %v9446, %v9446
    %v9467 = vmul.f32 %v9447, %v9447
    %v9468 = vmul.f32 %v9448, %v9448
    %v9469 = vmul.f32 %v9449, %v9449
    %v9470 = vmul.f32 %v9450, %v9450
    %v9471 = vmul.f32 %v9451, %v9451
    %v9472 = vmul.f32 %v9452, %v9452
    %v9473 = vmul.f32 %v9453, %v9453
    %v9474 = vadd.f32 %v9454, %v9455
    %v9475 = vadd.f32 %v9474, %v9456
    %v9476 = vadd.f32 %v9475, %v9457
    %v9477 = vadd.f32 %v9476, %v9458
    %9478 = vadd.xlane.f32.xlu0 %v9477
    %v9479 = vpop.xlane.xlu0 %9478
    %v9480 = vadd.f32 %v9459, %v9460
    %v9481 = vadd.f32 %v9480, %v9461
    %v9482 = vadd.f32 %v9481, %v9462
    %v9483 = vadd.f32 %v9482, %v9463
    %9484 = vadd.xlane.f32.xlu0 %v9483
    %v9485 = vpop.xlane.xlu0 %9484
    %v9486 = vadd.f32 %v9464, %v9465
    %v9487 = vadd.f32 %v9486, %v9466
    %v9488 = vadd.f32 %v9487, %v9467
    %v9489 = vadd.f32 %v9488, %v9468
    %9490 = vadd.xlane.f32.xlu0 %v9489
    %v9491 = vpop.xlane.xlu0 %9490
    %v9492 = vadd.f32 %v9469, %v9470
    %v9493 = vadd.f32 %v9492, %v9471
    %v9494 = vadd.f32 %v9493, %v9472
    %v9495 = vadd.f32 %v9494, %v9473
    %9496 = vadd.xlane.f32.xlu0 %v9495
    %v9497 = vpop.xlane.xlu0 %9496
    %v9498 = vmul.f32 %v9479, 0.0078125
    %v9499 = vmul.f32 %v9485, 0.0078125
    %v9500 = vmul.f32 %v9491, 0.0078125
    %v9501 = vmul.f32 %v9497, 0.0078125
    %s9502 = scalar_lea.vmem %s2, 320
    %v9503 = vld [vmem:[%s9502] sm:$0xff]
    %v9504 = vld [vmem:[%s9502 + $0x8] sm:$0xff]
    %v9505 = vld [vmem:[%s9502 + $0x10] sm:$0xff]
    %v9506 = vld [vmem:[%s9502 + $0x18] sm:$0xff]
    %v9507 = vadd.f32 %v9498, 1e-05
    %v9508 = vadd.f32 %v9499, 1e-05
    %v9509 = vadd.f32 %v9500, 1e-05
    %v9510 = vadd.f32 %v9501, 1e-05
    %v9511 = vrsqrt.pop %v9507
    %v9512 = vmul.f32 %v9511, %v9507
    %v9513 = vmul.f32 %v9512, %v9511
    %v9514 = vmul.f32 0.5, %v9513
    %v9515 = vsub.f32 1.5, %v9514
    %v9516 = vmul.f32 %v9511, %v9515
    %vm9517 = vweird.f32 %v9507
    %vm9518 = vweird.f32 %v9511
    %vm9519 = vmor %vm9517, %vm9518
    %v9520 = vsel %vm9519, %v9511, %v9516
    %v9521 = vrsqrt.pop %v9508
    %v9522 = vmul.f32 %v9521, %v9508
    %v9523 = vmul.f32 %v9522, %v9521
    %v9524 = vmul.f32 0.5, %v9523
    %v9525 = vsub.f32 1.5, %v9524
    %v9526 = vmul.f32 %v9521, %v9525
    %vm9527 = vweird.f32 %v9508
    %vm9528 = vweird.f32 %v9521
    %vm9529 = vmor %vm9527, %vm9528
    %v9530 = vsel %vm9529, %v9521, %v9526
    %v9531 = vrsqrt.pop %v9509
    %v9532 = vmul.f32 %v9531, %v9509
    %v9533 = vmul.f32 %v9532, %v9531
    %v9534 = vmul.f32 0.5, %v9533
    %v9535 = vsub.f32 1.5, %v9534
    %v9536 = vmul.f32 %v9531, %v9535
    %vm9537 = vweird.f32 %v9509
    %vm9538 = vweird.f32 %v9531
    %vm9539 = vmor %vm9537, %vm9538
    %v9540 = vsel %vm9539, %v9531, %v9536
    %v9541 = vrsqrt.pop %v9510
    %v9542 = vmul.f32 %v9541, %v9510
    %v9543 = vmul.f32 %v9542, %v9541
    %v9544 = vmul.f32 0.5, %v9543
    %v9545 = vsub.f32 1.5, %v9544
    %v9546 = vmul.f32 %v9541, %v9545
    %vm9547 = vweird.f32 %v9510
    %vm9548 = vweird.f32 %v9541
    %vm9549 = vmor %vm9547, %vm9548
    %v9550 = vsel %vm9549, %v9541, %v9546
    %v9551 = vmul.f32 %v9503, %v9520
    %v9552 = vmul.f32 %v9504, %v9530
    %v9553 = vmul.f32 %v9505, %v9540
    %v9554 = vmul.f32 %v9506, %v9550
    %9556 = vset.pattern.permute.xlu0 0
    %9557 = vperm.xlu0 %9556, %v9551
    %v9558 = vpop.permute.xlu0 %9557
    %9561 = vset.pattern.permute.xlu0 0
    %9562 = vperm.xlu0 %9561, %v9552
    %v9563 = vpop.permute.xlu0 %9562
    %9566 = vset.pattern.permute.xlu0 0
    %9567 = vperm.xlu0 %9566, %v9553
    %v9568 = vpop.permute.xlu0 %9567
    %9571 = vset.pattern.permute.xlu0 0
    %9572 = vperm.xlu0 %9571, %v9554
    %v9573 = vpop.permute.xlu0 %9572
    %v9575 = vmul.f32 %v9414, %v9558
    %v9576 = vmul.f32 %v9415, %v9558
    %v9577 = vmul.f32 %v9416, %v9558
    %v9578 = vmul.f32 %v9417, %v9558
    %v9579 = vmul.f32 %v9418, %v9558
    %v9580 = vmul.f32 %v9419, %v9563
    %v9581 = vmul.f32 %v9420, %v9563
    %v9582 = vmul.f32 %v9421, %v9563
    %v9583 = vmul.f32 %v9422, %v9563
    %v9584 = vmul.f32 %v9423, %v9563
    %v9585 = vmul.f32 %v9424, %v9568
    %v9586 = vmul.f32 %v9425, %v9568
    %v9587 = vmul.f32 %v9426, %v9568
    %v9588 = vmul.f32 %v9427, %v9568
    %v9589 = vmul.f32 %v9428, %v9568
    %v9590 = vmul.f32 %v9429, %v9573
    %v9591 = vmul.f32 %v9430, %v9573
    %v9592 = vmul.f32 %v9431, %v9573
    %v9593 = vmul.f32 %v9432, %v9573
    %v9594 = vmul.f32 %v9433, %v9573
    %s9595 = scalar_lea.vmem %s2, 352
    %v9596 = vld [vmem:[%s9595] sm:$0xff]
    %v9597 = vld [vmem:[%s9595 + $0x8] sm:$0xff]
    %v9598 = vld [vmem:[%s9595 + $0x10] sm:$0xff]
    %v9599 = vld [vmem:[%s9595 + $0x18] sm:$0xff]
    %9601 = vset.pattern.permute.xlu0 0
    %9602 = vperm.xlu0 %9601, %v9596
    %v9603 = vpop.permute.xlu0 %9602
    %9606 = vset.pattern.permute.xlu0 0
    %9607 = vperm.xlu0 %9606, %v9597
    %v9608 = vpop.permute.xlu0 %9607
    %9611 = vset.pattern.permute.xlu0 0
    %9612 = vperm.xlu0 %9611, %v9598
    %v9613 = vpop.permute.xlu0 %9612
    %9616 = vset.pattern.permute.xlu0 0
    %9617 = vperm.xlu0 %9616, %v9599
    %v9618 = vpop.permute.xlu0 %9617
    %v9620 = vadd.f32 %v9575, %v9603
    %v9621 = vadd.f32 %v9576, %v9603
    %v9622 = vadd.f32 %v9577, %v9603
    %v9623 = vadd.f32 %v9578, %v9603
    %v9624 = vadd.f32 %v9579, %v9603
    %v9625 = vadd.f32 %v9580, %v9608
    %v9626 = vadd.f32 %v9581, %v9608
    %v9627 = vadd.f32 %v9582, %v9608
    %v9628 = vadd.f32 %v9583, %v9608
    %v9629 = vadd.f32 %v9584, %v9608
    %v9630 = vadd.f32 %v9585, %v9613
    %v9631 = vadd.f32 %v9586, %v9613
    %v9632 = vadd.f32 %v9587, %v9613
    %v9633 = vadd.f32 %v9588, %v9613
    %v9634 = vadd.f32 %v9589, %v9613
    %v9635 = vadd.f32 %v9590, %v9618
    %v9636 = vadd.f32 %v9591, %v9618
    %v9637 = vadd.f32 %v9592, %v9618
    %v9638 = vadd.f32 %v9593, %v9618
    %v9639 = vadd.f32 %v9594, %v9618
    %v9640 = vmul.f32 %v9620, 0.2
    %v9641 = vmul.f32 %v9621, 0.2
    %v9642 = vmul.f32 %v9622, 0.2
    %v9643 = vmul.f32 %v9623, 0.2
    %v9644 = vmul.f32 %v9624, 0.2
    %v9645 = vmul.f32 %v9625, 0.2
    %v9646 = vmul.f32 %v9626, 0.2
    %v9647 = vmul.f32 %v9627, 0.2
    %v9648 = vmul.f32 %v9628, 0.2
    %v9649 = vmul.f32 %v9629, 0.2
    %v9650 = vmul.f32 %v9630, 0.2
    %v9651 = vmul.f32 %v9631, 0.2
    %v9652 = vmul.f32 %v9632, 0.2
    %v9653 = vmul.f32 %v9633, 0.2
    %v9654 = vmul.f32 %v9634, 0.2
    %v9655 = vmul.f32 %v9635, 0.2
    %v9656 = vmul.f32 %v9636, 0.2
    %v9657 = vmul.f32 %v9637, 0.2
    %v9658 = vmul.f32 %v9638, 0.2
    %v9659 = vmul.f32 %v9639, 0.2
    %v9660 = vmax.f32 %v9620, %v9640
    %v9661 = vmax.f32 %v9621, %v9641
    %v9662 = vmax.f32 %v9622, %v9642
    %v9663 = vmax.f32 %v9623, %v9643
    %v9664 = vmax.f32 %v9624, %v9644
    %v9665 = vmax.f32 %v9625, %v9645
    %v9666 = vmax.f32 %v9626, %v9646
    %v9667 = vmax.f32 %v9627, %v9647
    %v9668 = vmax.f32 %v9628, %v9648
    %v9669 = vmax.f32 %v9629, %v9649
    %v9670 = vmax.f32 %v9630, %v9650
    %v9671 = vmax.f32 %v9631, %v9651
    %v9672 = vmax.f32 %v9632, %v9652
    %v9673 = vmax.f32 %v9633, %v9653
    %v9674 = vmax.f32 %v9634, %v9654
    %v9675 = vmax.f32 %v9635, %v9655
    %v9676 = vmax.f32 %v9636, %v9656
    %v9677 = vmax.f32 %v9637, %v9657
    %v9678 = vmax.f32 %v9638, %v9658
    %v9679 = vmax.f32 %v9639, %v9659
    %v9680 = vpack.c.bf16 %v9661, %v9660
    %v9681 = vpack.c.bf16 %v9663, %v9662
    %v9682 = vpack.c.bf16 %v9664, %v9664
    %v9683 = vpack.c.bf16 %v9666, %v9665
    %v9684 = vpack.c.bf16 %v9668, %v9667
    %v9685 = vpack.c.bf16 %v9669, %v9669
    %v9686 = vpack.c.bf16 %v9671, %v9670
    %v9687 = vpack.c.bf16 %v9673, %v9672
    %v9688 = vpack.c.bf16 %v9674, %v9674
    %v9689 = vpack.c.bf16 %v9676, %v9675
    %v9690 = vpack.c.bf16 %v9678, %v9677
    %v9691 = vpack.c.bf16 %v9679, %v9679
    %9692 = vst [vmem:[#allocation2] sm:$0xff] %v9680
    %9693 = vst [vmem:[#allocation2 + $0x8] sm:$0xff] %v9681
    %9694 = vst [vmem:[#allocation2 + $0x20] sm:$0xff] %v9683
    %9695 = vst [vmem:[#allocation2 + $0x28] sm:$0xff] %v9684
    %9696 = vst [vmem:[#allocation2 + $0x40] sm:$0xff] %v9686
    %9697 = vst [vmem:[#allocation2 + $0x48] sm:$0xff] %v9687
    %9698 = vst [vmem:[#allocation2 + $0x60] sm:$0xff] %v9689
    %9699 = vst [vmem:[#allocation2 + $0x68] sm:$0xff] %v9690
    %9712 = vrot.lane.b32.xlu0 %v9680, 127
    %v9713 = vpop.permute.xlu0 %9712
    %9714 = vrot.lane.b32.xlu0 %v9681, 127
    %v9715 = vpop.permute.xlu0 %9714
    %9716 = vrot.lane.b32.xlu0 %v9682, 127
    %v9717 = vpop.permute.xlu0 %9716
    %9718 = vrot.lane.b32.xlu0 %v9683, 127
    %v9719 = vpop.permute.xlu0 %9718
    %9720 = vrot.lane.b32.xlu0 %v9684, 127
    %v9721 = vpop.permute.xlu0 %9720
    %9722 = vrot.lane.b32.xlu0 %v9685, 127
    %v9723 = vpop.permute.xlu0 %9722
    %9724 = vrot.lane.b32.xlu0 %v9686, 127
    %v9725 = vpop.permute.xlu0 %9724
    %9726 = vrot.lane.b32.xlu0 %v9687, 127
    %v9727 = vpop.permute.xlu0 %9726
    %9728 = vrot.lane.b32.xlu0 %v9688, 127
    %v9729 = vpop.permute.xlu0 %9728
    %9730 = vrot.lane.b32.xlu0 %v9689, 127
    %v9731 = vpop.permute.xlu0 %9730
    %9732 = vrot.lane.b32.xlu0 %v9690, 127
    %v9733 = vpop.permute.xlu0 %9732
    %9734 = vrot.lane.b32.xlu0 %v9691, 127
    %v9735 = vpop.permute.xlu0 %9734
    %v9736 = vrot.slane %v9713, 4
    %v9737 = vrot.slane %v9715, 4
    %v9738 = vrot.slane %v9717, 4
    %v9739 = vrot.slane %v9719, 4
    %v9740 = vrot.slane %v9721, 4
    %v9741 = vrot.slane %v9723, 4
    %v9742 = vrot.slane %v9725, 4
    %v9743 = vrot.slane %v9727, 4
    %v9744 = vrot.slane %v9729, 4
    %v9745 = vrot.slane %v9731, 4
    %v9746 = vrot.slane %v9733, 4
    %v9747 = vrot.slane %v9735, 4
    %v9748 = vsel %vm135, %v9736, %v9737
    %v9749 = vsel %vm137, %v9713, %v9748
    %v9750 = vsel %vm135, %v9737, %v9738
    %v9751 = vsel %vm137, %v9715, %v9750
    %v9752 = vsel %vm135, %v9739, %v9740
    %v9753 = vsel %vm137, %v9719, %v9752
    %v9754 = vsel %vm135, %v9740, %v9741
    %v9755 = vsel %vm137, %v9721, %v9754
    %v9756 = vsel %vm135, %v9742, %v9743
    %v9757 = vsel %vm137, %v9725, %v9756
    %v9758 = vsel %vm135, %v9743, %v9744
    %v9759 = vsel %vm137, %v9727, %v9758
    %v9760 = vsel %vm135, %v9745, %v9746
    %v9761 = vsel %vm137, %v9731, %v9760
    %v9762 = vsel %vm135, %v9746, %v9747
    %v9763 = vsel %vm137, %v9733, %v9762
    %9772 = vst [vmem:[#allocation2 + $0x80] sm:$0xff] %v9749
    %9773 = vst [vmem:[#allocation2 + $0x88] sm:$0xff] %v9751
    %9774 = vst [vmem:[#allocation2 + $0xa0] sm:$0xff] %v9753
    %9775 = vst [vmem:[#allocation2 + $0xa8] sm:$0xff] %v9755
    %9776 = vst [vmem:[#allocation2 + $0xc0] sm:$0xff] %v9757
    %9777 = vst [vmem:[#allocation2 + $0xc8] sm:$0xff] %v9759
    %9778 = vst [vmem:[#allocation2 + $0xe0] sm:$0xff] %v9761
    %9779 = vst [vmem:[#allocation2 + $0xe8] sm:$0xff] %v9763
    %9780 = vrot.lane.b32.xlu0 %v9680, 126
    %v9781 = vpop.permute.xlu0 %9780
    %9782 = vrot.lane.b32.xlu0 %v9681, 126
    %v9783 = vpop.permute.xlu0 %9782
    %9784 = vrot.lane.b32.xlu0 %v9682, 126
    %v9785 = vpop.permute.xlu0 %9784
    %9786 = vrot.lane.b32.xlu0 %v9683, 126
    %v9787 = vpop.permute.xlu0 %9786
    %9788 = vrot.lane.b32.xlu0 %v9684, 126
    %v9789 = vpop.permute.xlu0 %9788
    %9790 = vrot.lane.b32.xlu0 %v9685, 126
    %v9791 = vpop.permute.xlu0 %9790
    %9792 = vrot.lane.b32.xlu0 %v9686, 126
    %v9793 = vpop.permute.xlu0 %9792
    %9794 = vrot.lane.b32.xlu0 %v9687, 126
    %v9795 = vpop.permute.xlu0 %9794
    %9796 = vrot.lane.b32.xlu0 %v9688, 126
    %v9797 = vpop.permute.xlu0 %9796
    %9798 = vrot.lane.b32.xlu0 %v9689, 126
    %v9799 = vpop.permute.xlu0 %9798
    %9800 = vrot.lane.b32.xlu0 %v9690, 126
    %v9801 = vpop.permute.xlu0 %9800
    %9802 = vrot.lane.b32.xlu0 %v9691, 126
    %v9803 = vpop.permute.xlu0 %9802
    %v9804 = vrot.slane %v9781, 4
    %v9805 = vrot.slane %v9783, 4
    %v9806 = vrot.slane %v9785, 4
    %v9807 = vrot.slane %v9787, 4
    %v9808 = vrot.slane %v9789, 4
    %v9809 = vrot.slane %v9791, 4
    %v9810 = vrot.slane %v9793, 4
    %v9811 = vrot.slane %v9795, 4
    %v9812 = vrot.slane %v9797, 4
    %v9813 = vrot.slane %v9799, 4
    %v9814 = vrot.slane %v9801, 4
    %v9815 = vrot.slane %v9803, 4
    %v9816 = vsel %vm135, %v9804, %v9805
    %v9817 = vsel %vm262, %v9781, %v9816
    %v9818 = vsel %vm135, %v9805, %v9806
    %v9819 = vsel %vm262, %v9783, %v9818
    %v9820 = vsel %vm135, %v9807, %v9808
    %v9821 = vsel %vm262, %v9787, %v9820
    %v9822 = vsel %vm135, %v9808, %v9809
    %v9823 = vsel %vm262, %v9789, %v9822
    %v9824 = vsel %vm135, %v9810, %v9811
    %v9825 = vsel %vm262, %v9793, %v9824
    %v9826 = vsel %vm135, %v9811, %v9812
    %v9827 = vsel %vm262, %v9795, %v9826
    %v9828 = vsel %vm135, %v9813, %v9814
    %v9829 = vsel %vm262, %v9799, %v9828
    %v9830 = vsel %vm135, %v9814, %v9815
    %v9831 = vsel %vm262, %v9801, %v9830
    %9840 = vst [vmem:[#allocation2 + $0x100] sm:$0xff] %v9817
    %9841 = vst [vmem:[#allocation2 + $0x108] sm:$0xff] %v9819
    %9842 = vst [vmem:[#allocation2 + $0x120] sm:$0xff] %v9821
    %9843 = vst [vmem:[#allocation2 + $0x128] sm:$0xff] %v9823
    %9844 = vst [vmem:[#allocation2 + $0x140] sm:$0xff] %v9825
    %9845 = vst [vmem:[#allocation2 + $0x148] sm:$0xff] %v9827
    %9846 = vst [vmem:[#allocation2 + $0x160] sm:$0xff] %v9829
    %9847 = vst [vmem:[#allocation2 + $0x168] sm:$0xff] %v9831
    %9848 = vrot.lane.b32.xlu0 %v9680, 112
    %v9849 = vpop.permute.xlu0 %9848
    %9850 = vrot.lane.b32.xlu0 %v9681, 112
    %v9851 = vpop.permute.xlu0 %9850
    %9852 = vrot.lane.b32.xlu0 %v9682, 112
    %v9853 = vpop.permute.xlu0 %9852
    %9854 = vrot.lane.b32.xlu0 %v9683, 112
    %v9855 = vpop.permute.xlu0 %9854
    %9856 = vrot.lane.b32.xlu0 %v9684, 112
    %v9857 = vpop.permute.xlu0 %9856
    %9858 = vrot.lane.b32.xlu0 %v9685, 112
    %v9859 = vpop.permute.xlu0 %9858
    %9860 = vrot.lane.b32.xlu0 %v9686, 112
    %v9861 = vpop.permute.xlu0 %9860
    %9862 = vrot.lane.b32.xlu0 %v9687, 112
    %v9863 = vpop.permute.xlu0 %9862
    %9864 = vrot.lane.b32.xlu0 %v9688, 112
    %v9865 = vpop.permute.xlu0 %9864
    %9866 = vrot.lane.b32.xlu0 %v9689, 112
    %v9867 = vpop.permute.xlu0 %9866
    %9868 = vrot.lane.b32.xlu0 %v9690, 112
    %v9869 = vpop.permute.xlu0 %9868
    %9870 = vrot.lane.b32.xlu0 %v9691, 112
    %v9871 = vpop.permute.xlu0 %9870
    %v9872 = vrot.slane %v9849, 4
    %v9873 = vrot.slane %v9851, 4
    %v9874 = vrot.slane %v9853, 4
    %v9875 = vrot.slane %v9855, 4
    %v9876 = vrot.slane %v9857, 4
    %v9877 = vrot.slane %v9859, 4
    %v9878 = vrot.slane %v9861, 4
    %v9879 = vrot.slane %v9863, 4
    %v9880 = vrot.slane %v9865, 4
    %v9881 = vrot.slane %v9867, 4
    %v9882 = vrot.slane %v9869, 4
    %v9883 = vrot.slane %v9871, 4
    %v9884 = vsel %vm135, %v9872, %v9873
    %v9885 = vsel %vm387, %v9849, %v9884
    %v9886 = vsel %vm135, %v9873, %v9874
    %v9887 = vsel %vm387, %v9851, %v9886
    %v9888 = vsel %vm135, %v9875, %v9876
    %v9889 = vsel %vm387, %v9855, %v9888
    %v9890 = vsel %vm135, %v9876, %v9877
    %v9891 = vsel %vm387, %v9857, %v9890
    %v9892 = vsel %vm135, %v9878, %v9879
    %v9893 = vsel %vm387, %v9861, %v9892
    %v9894 = vsel %vm135, %v9879, %v9880
    %v9895 = vsel %vm387, %v9863, %v9894
    %v9896 = vsel %vm135, %v9881, %v9882
    %v9897 = vsel %vm387, %v9867, %v9896
    %v9898 = vsel %vm135, %v9882, %v9883
    %v9899 = vsel %vm387, %v9869, %v9898
    %9908 = vst [vmem:[#allocation2 + $0x180] sm:$0xff] %v9885
    %9909 = vst [vmem:[#allocation2 + $0x188] sm:$0xff] %v9887
    %9910 = vst [vmem:[#allocation2 + $0x1a0] sm:$0xff] %v9889
    %9911 = vst [vmem:[#allocation2 + $0x1a8] sm:$0xff] %v9891
    %9912 = vst [vmem:[#allocation2 + $0x1c0] sm:$0xff] %v9893
    %9913 = vst [vmem:[#allocation2 + $0x1c8] sm:$0xff] %v9895
    %9914 = vst [vmem:[#allocation2 + $0x1e0] sm:$0xff] %v9897
    %9915 = vst [vmem:[#allocation2 + $0x1e8] sm:$0xff] %v9899
    %9916 = vrot.lane.b32.xlu0 %v9680, 111
    %v9917 = vpop.permute.xlu0 %9916
    %9918 = vrot.lane.b32.xlu0 %v9681, 111
    %v9919 = vpop.permute.xlu0 %9918
    %9920 = vrot.lane.b32.xlu0 %v9682, 111
    %v9921 = vpop.permute.xlu0 %9920
    %9922 = vrot.lane.b32.xlu0 %v9683, 111
    %v9923 = vpop.permute.xlu0 %9922
    %9924 = vrot.lane.b32.xlu0 %v9684, 111
    %v9925 = vpop.permute.xlu0 %9924
    %9926 = vrot.lane.b32.xlu0 %v9685, 111
    %v9927 = vpop.permute.xlu0 %9926
    %9928 = vrot.lane.b32.xlu0 %v9686, 111
    %v9929 = vpop.permute.xlu0 %9928
    %9930 = vrot.lane.b32.xlu0 %v9687, 111
    %v9931 = vpop.permute.xlu0 %9930
    %9932 = vrot.lane.b32.xlu0 %v9688, 111
    %v9933 = vpop.permute.xlu0 %9932
    %9934 = vrot.lane.b32.xlu0 %v9689, 111
    %v9935 = vpop.permute.xlu0 %9934
    %9936 = vrot.lane.b32.xlu0 %v9690, 111
    %v9937 = vpop.permute.xlu0 %9936
    %9938 = vrot.lane.b32.xlu0 %v9691, 111
    %v9939 = vpop.permute.xlu0 %9938
    %v9940 = vrot.slane %v9917, 4
    %v9941 = vrot.slane %v9919, 4
    %v9942 = vrot.slane %v9921, 4
    %v9943 = vrot.slane %v9923, 4
    %v9944 = vrot.slane %v9925, 4
    %v9945 = vrot.slane %v9927, 4
    %v9946 = vrot.slane %v9929, 4
    %v9947 = vrot.slane %v9931, 4
    %v9948 = vrot.slane %v9933, 4
    %v9949 = vrot.slane %v9935, 4
    %v9950 = vrot.slane %v9937, 4
    %v9951 = vrot.slane %v9939, 4
    %v9952 = vsel %vm135, %v9940, %v9941
    %v9953 = vsel %vm512, %v9917, %v9952
    %v9954 = vsel %vm135, %v9941, %v9942
    %v9955 = vsel %vm512, %v9919, %v9954
    %v9956 = vsel %vm135, %v9943, %v9944
    %v9957 = vsel %vm512, %v9923, %v9956
    %v9958 = vsel %vm135, %v9944, %v9945
    %v9959 = vsel %vm512, %v9925, %v9958
    %v9960 = vsel %vm135, %v9946, %v9947
    %v9961 = vsel %vm512, %v9929, %v9960
    %v9962 = vsel %vm135, %v9947, %v9948
    %v9963 = vsel %vm512, %v9931, %v9962
    %v9964 = vsel %vm135, %v9949, %v9950
    %v9965 = vsel %vm512, %v9935, %v9964
    %v9966 = vsel %vm135, %v9950, %v9951
    %v9967 = vsel %vm512, %v9937, %v9966
    %9976 = vst [vmem:[#allocation2 + $0x200] sm:$0xff] %v9953
    %9977 = vst [vmem:[#allocation2 + $0x208] sm:$0xff] %v9955
    %9978 = vst [vmem:[#allocation2 + $0x220] sm:$0xff] %v9957
    %9979 = vst [vmem:[#allocation2 + $0x228] sm:$0xff] %v9959
    %9980 = vst [vmem:[#allocation2 + $0x240] sm:$0xff] %v9961
    %9981 = vst [vmem:[#allocation2 + $0x248] sm:$0xff] %v9963
    %9982 = vst [vmem:[#allocation2 + $0x260] sm:$0xff] %v9965
    %9983 = vst [vmem:[#allocation2 + $0x268] sm:$0xff] %v9967
    %9984 = vrot.lane.b32.xlu0 %v9680, 110
    %v9985 = vpop.permute.xlu0 %9984
    %9986 = vrot.lane.b32.xlu0 %v9681, 110
    %v9987 = vpop.permute.xlu0 %9986
    %9988 = vrot.lane.b32.xlu0 %v9682, 110
    %v9989 = vpop.permute.xlu0 %9988
    %9990 = vrot.lane.b32.xlu0 %v9683, 110
    %v9991 = vpop.permute.xlu0 %9990
    %9992 = vrot.lane.b32.xlu0 %v9684, 110
    %v9993 = vpop.permute.xlu0 %9992
    %9994 = vrot.lane.b32.xlu0 %v9685, 110
    %v9995 = vpop.permute.xlu0 %9994
    %9996 = vrot.lane.b32.xlu0 %v9686, 110
    %v9997 = vpop.permute.xlu0 %9996
    %9998 = vrot.lane.b32.xlu0 %v9687, 110
    %v9999 = vpop.permute.xlu0 %9998
    %10000 = vrot.lane.b32.xlu0 %v9688, 110
    %v10001 = vpop.permute.xlu0 %10000
    %10002 = vrot.lane.b32.xlu0 %v9689, 110
    %v10003 = vpop.permute.xlu0 %10002
    %10004 = vrot.lane.b32.xlu0 %v9690, 110
    %v10005 = vpop.permute.xlu0 %10004
    %10006 = vrot.lane.b32.xlu0 %v9691, 110
    %v10007 = vpop.permute.xlu0 %10006
    %v10008 = vrot.slane %v9985, 4
    %v10009 = vrot.slane %v9987, 4
    %v10010 = vrot.slane %v9989, 4
    %v10011 = vrot.slane %v9991, 4
    %v10012 = vrot.slane %v9993, 4
    %v10013 = vrot.slane %v9995, 4
    %v10014 = vrot.slane %v9997, 4
    %v10015 = vrot.slane %v9999, 4
    %v10016 = vrot.slane %v10001, 4
    %v10017 = vrot.slane %v10003, 4
    %v10018 = vrot.slane %v10005, 4
    %v10019 = vrot.slane %v10007, 4
    %v10020 = vsel %vm135, %v10008, %v10009
    %v10021 = vsel %vm637, %v9985, %v10020
    %v10022 = vsel %vm135, %v10009, %v10010
    %v10023 = vsel %vm637, %v9987, %v10022
    %v10024 = vsel %vm135, %v10011, %v10012
    %v10025 = vsel %vm637, %v9991, %v10024
    %v10026 = vsel %vm135, %v10012, %v10013
    %v10027 = vsel %vm637, %v9993, %v10026
    %v10028 = vsel %vm135, %v10014, %v10015
    %v10029 = vsel %vm637, %v9997, %v10028
    %v10030 = vsel %vm135, %v10015, %v10016
    %v10031 = vsel %vm637, %v9999, %v10030
    %v10032 = vsel %vm135, %v10017, %v10018
    %v10033 = vsel %vm637, %v10003, %v10032
    %v10034 = vsel %vm135, %v10018, %v10019
    %v10035 = vsel %vm637, %v10005, %v10034
    %10044 = vst [vmem:[#allocation2 + $0x280] sm:$0xff] %v10021
    %10045 = vst [vmem:[#allocation2 + $0x288] sm:$0xff] %v10023
    %10046 = vst [vmem:[#allocation2 + $0x2a0] sm:$0xff] %v10025
    %10047 = vst [vmem:[#allocation2 + $0x2a8] sm:$0xff] %v10027
    %10048 = vst [vmem:[#allocation2 + $0x2c0] sm:$0xff] %v10029
    %10049 = vst [vmem:[#allocation2 + $0x2c8] sm:$0xff] %v10031
    %10050 = vst [vmem:[#allocation2 + $0x2e0] sm:$0xff] %v10033
    %10051 = vst [vmem:[#allocation2 + $0x2e8] sm:$0xff] %v10035
    %10052 = vrot.lane.b32.xlu0 %v9680, 96
    %v10053 = vpop.permute.xlu0 %10052
    %10054 = vrot.lane.b32.xlu0 %v9681, 96
    %v10055 = vpop.permute.xlu0 %10054
    %10056 = vrot.lane.b32.xlu0 %v9682, 96
    %v10057 = vpop.permute.xlu0 %10056
    %10058 = vrot.lane.b32.xlu0 %v9683, 96
    %v10059 = vpop.permute.xlu0 %10058
    %10060 = vrot.lane.b32.xlu0 %v9684, 96
    %v10061 = vpop.permute.xlu0 %10060
    %10062 = vrot.lane.b32.xlu0 %v9685, 96
    %v10063 = vpop.permute.xlu0 %10062
    %10064 = vrot.lane.b32.xlu0 %v9686, 96
    %v10065 = vpop.permute.xlu0 %10064
    %10066 = vrot.lane.b32.xlu0 %v9687, 96
    %v10067 = vpop.permute.xlu0 %10066
    %10068 = vrot.lane.b32.xlu0 %v9688, 96
    %v10069 = vpop.permute.xlu0 %10068
    %10070 = vrot.lane.b32.xlu0 %v9689, 96
    %v10071 = vpop.permute.xlu0 %10070
    %10072 = vrot.lane.b32.xlu0 %v9690, 96
    %v10073 = vpop.permute.xlu0 %10072
    %10074 = vrot.lane.b32.xlu0 %v9691, 96
    %v10075 = vpop.permute.xlu0 %10074
    %v10076 = vrot.slane %v10053, 4
    %v10077 = vrot.slane %v10055, 4
    %v10078 = vrot.slane %v10057, 4
    %v10079 = vrot.slane %v10059, 4
    %v10080 = vrot.slane %v10061, 4
    %v10081 = vrot.slane %v10063, 4
    %v10082 = vrot.slane %v10065, 4
    %v10083 = vrot.slane %v10067, 4
    %v10084 = vrot.slane %v10069, 4
    %v10085 = vrot.slane %v10071, 4
    %v10086 = vrot.slane %v10073, 4
    %v10087 = vrot.slane %v10075, 4
    %v10088 = vsel %vm135, %v10076, %v10077
    %v10089 = vsel %vm762, %v10053, %v10088
    %v10090 = vsel %vm135, %v10077, %v10078
    %v10091 = vsel %vm762, %v10055, %v10090
    %v10092 = vsel %vm135, %v10079, %v10080
    %v10093 = vsel %vm762, %v10059, %v10092
    %v10094 = vsel %vm135, %v10080, %v10081
    %v10095 = vsel %vm762, %v10061, %v10094
    %v10096 = vsel %vm135, %v10082, %v10083
    %v10097 = vsel %vm762, %v10065, %v10096
    %v10098 = vsel %vm135, %v10083, %v10084
    %v10099 = vsel %vm762, %v10067, %v10098
    %v10100 = vsel %vm135, %v10085, %v10086
    %v10101 = vsel %vm762, %v10071, %v10100
    %v10102 = vsel %vm135, %v10086, %v10087
    %v10103 = vsel %vm762, %v10073, %v10102
    %10112 = vst [vmem:[#allocation2 + $0x300] sm:$0xff] %v10089
    %10113 = vst [vmem:[#allocation2 + $0x308] sm:$0xff] %v10091
    %10114 = vst [vmem:[#allocation2 + $0x320] sm:$0xff] %v10093
    %10115 = vst [vmem:[#allocation2 + $0x328] sm:$0xff] %v10095
    %10116 = vst [vmem:[#allocation2 + $0x340] sm:$0xff] %v10097
    %10117 = vst [vmem:[#allocation2 + $0x348] sm:$0xff] %v10099
    %10118 = vst [vmem:[#allocation2 + $0x360] sm:$0xff] %v10101
    %10119 = vst [vmem:[#allocation2 + $0x368] sm:$0xff] %v10103
    %10120 = vrot.lane.b32.xlu0 %v9680, 95
    %v10121 = vpop.permute.xlu0 %10120
    %10122 = vrot.lane.b32.xlu0 %v9681, 95
    %v10123 = vpop.permute.xlu0 %10122
    %10124 = vrot.lane.b32.xlu0 %v9682, 95
    %v10125 = vpop.permute.xlu0 %10124
    %10126 = vrot.lane.b32.xlu0 %v9683, 95
    %v10127 = vpop.permute.xlu0 %10126
    %10128 = vrot.lane.b32.xlu0 %v9684, 95
    %v10129 = vpop.permute.xlu0 %10128
    %10130 = vrot.lane.b32.xlu0 %v9685, 95
    %v10131 = vpop.permute.xlu0 %10130
    %10132 = vrot.lane.b32.xlu0 %v9686, 95
    %v10133 = vpop.permute.xlu0 %10132
    %10134 = vrot.lane.b32.xlu0 %v9687, 95
    %v10135 = vpop.permute.xlu0 %10134
    %10136 = vrot.lane.b32.xlu0 %v9688, 95
    %v10137 = vpop.permute.xlu0 %10136
    %10138 = vrot.lane.b32.xlu0 %v9689, 95
    %v10139 = vpop.permute.xlu0 %10138
    %10140 = vrot.lane.b32.xlu0 %v9690, 95
    %v10141 = vpop.permute.xlu0 %10140
    %10142 = vrot.lane.b32.xlu0 %v9691, 95
    %v10143 = vpop.permute.xlu0 %10142
    %v10144 = vrot.slane %v10121, 4
    %v10145 = vrot.slane %v10123, 4
    %v10146 = vrot.slane %v10125, 4
    %v10147 = vrot.slane %v10127, 4
    %v10148 = vrot.slane %v10129, 4
    %v10149 = vrot.slane %v10131, 4
    %v10150 = vrot.slane %v10133, 4
    %v10151 = vrot.slane %v10135, 4
    %v10152 = vrot.slane %v10137, 4
    %v10153 = vrot.slane %v10139, 4
    %v10154 = vrot.slane %v10141, 4
    %v10155 = vrot.slane %v10143, 4
    %v10156 = vsel %vm135, %v10144, %v10145
    %v10157 = vsel %vm887, %v10121, %v10156
    %v10158 = vsel %vm135, %v10145, %v10146
    %v10159 = vsel %vm887, %v10123, %v10158
    %v10160 = vsel %vm135, %v10147, %v10148
    %v10161 = vsel %vm887, %v10127, %v10160
    %v10162 = vsel %vm135, %v10148, %v10149
    %v10163 = vsel %vm887, %v10129, %v10162
    %v10164 = vsel %vm135, %v10150, %v10151
    %v10165 = vsel %vm887, %v10133, %v10164
    %v10166 = vsel %vm135, %v10151, %v10152
    %v10167 = vsel %vm887, %v10135, %v10166
    %v10168 = vsel %vm135, %v10153, %v10154
    %v10169 = vsel %vm887, %v10139, %v10168
    %v10170 = vsel %vm135, %v10154, %v10155
    %v10171 = vsel %vm887, %v10141, %v10170
    %10180 = vst [vmem:[#allocation2 + $0x380] sm:$0xff] %v10157
    %10181 = vst [vmem:[#allocation2 + $0x388] sm:$0xff] %v10159
    %10182 = vst [vmem:[#allocation2 + $0x3a0] sm:$0xff] %v10161
    %10183 = vst [vmem:[#allocation2 + $0x3a8] sm:$0xff] %v10163
    %10184 = vst [vmem:[#allocation2 + $0x3c0] sm:$0xff] %v10165
    %10185 = vst [vmem:[#allocation2 + $0x3c8] sm:$0xff] %v10167
    %10186 = vst [vmem:[#allocation2 + $0x3e0] sm:$0xff] %v10169
    %10187 = vst [vmem:[#allocation2 + $0x3e8] sm:$0xff] %v10171
    %10188 = vrot.lane.b32.xlu0 %v9680, 94
    %v10189 = vpop.permute.xlu0 %10188
    %10190 = vrot.lane.b32.xlu0 %v9681, 94
    %v10191 = vpop.permute.xlu0 %10190
    %10192 = vrot.lane.b32.xlu0 %v9682, 94
    %v10193 = vpop.permute.xlu0 %10192
    %10194 = vrot.lane.b32.xlu0 %v9683, 94
    %v10195 = vpop.permute.xlu0 %10194
    %10196 = vrot.lane.b32.xlu0 %v9684, 94
    %v10197 = vpop.permute.xlu0 %10196
    %10198 = vrot.lane.b32.xlu0 %v9685, 94
    %v10199 = vpop.permute.xlu0 %10198
    %10200 = vrot.lane.b32.xlu0 %v9686, 94
    %v10201 = vpop.permute.xlu0 %10200
    %10202 = vrot.lane.b32.xlu0 %v9687, 94
    %v10203 = vpop.permute.xlu0 %10202
    %10204 = vrot.lane.b32.xlu0 %v9688, 94
    %v10205 = vpop.permute.xlu0 %10204
    %10206 = vrot.lane.b32.xlu0 %v9689, 94
    %v10207 = vpop.permute.xlu0 %10206
    %10208 = vrot.lane.b32.xlu0 %v9690, 94
    %v10209 = vpop.permute.xlu0 %10208
    %10210 = vrot.lane.b32.xlu0 %v9691, 94
    %v10211 = vpop.permute.xlu0 %10210
    %v10212 = vrot.slane %v10189, 4
    %v10213 = vrot.slane %v10191, 4
    %v10214 = vrot.slane %v10193, 4
    %v10215 = vrot.slane %v10195, 4
    %v10216 = vrot.slane %v10197, 4
    %v10217 = vrot.slane %v10199, 4
    %v10218 = vrot.slane %v10201, 4
    %v10219 = vrot.slane %v10203, 4
    %v10220 = vrot.slane %v10205, 4
    %v10221 = vrot.slane %v10207, 4
    %v10222 = vrot.slane %v10209, 4
    %v10223 = vrot.slane %v10211, 4
    %v10224 = vsel %vm135, %v10212, %v10213
    %v10225 = vsel %vm1012, %v10189, %v10224
    %v10226 = vsel %vm135, %v10213, %v10214
    %v10227 = vsel %vm1012, %v10191, %v10226
    %v10228 = vsel %vm135, %v10215, %v10216
    %v10229 = vsel %vm1012, %v10195, %v10228
    %v10230 = vsel %vm135, %v10216, %v10217
    %v10231 = vsel %vm1012, %v10197, %v10230
    %v10232 = vsel %vm135, %v10218, %v10219
    %v10233 = vsel %vm1012, %v10201, %v10232
    %v10234 = vsel %vm135, %v10219, %v10220
    %v10235 = vsel %vm1012, %v10203, %v10234
    %v10236 = vsel %vm135, %v10221, %v10222
    %v10237 = vsel %vm1012, %v10207, %v10236
    %v10238 = vsel %vm135, %v10222, %v10223
    %v10239 = vsel %vm1012, %v10209, %v10238
    %10248 = vst [vmem:[#allocation2 + $0x400] sm:$0xff] %v10225
    %10249 = vst [vmem:[#allocation2 + $0x408] sm:$0xff] %v10227
    %10250 = vst [vmem:[#allocation2 + $0x420] sm:$0xff] %v10229
    %10251 = vst [vmem:[#allocation2 + $0x428] sm:$0xff] %v10231
    %10252 = vst [vmem:[#allocation2 + $0x440] sm:$0xff] %v10233
    %10253 = vst [vmem:[#allocation2 + $0x448] sm:$0xff] %v10235
    %10254 = vst [vmem:[#allocation2 + $0x460] sm:$0xff] %v10237
    %10255 = vst [vmem:[#allocation2 + $0x468] sm:$0xff] %v10239
    %s10256 = scalar_lea.vmem %s1, 192
    %v10257 = vld [vmem:[%s10256] sm:$0xff]
    %v10258 = vld [vmem:[%s10256 + $0x8] sm:$0xf]
    %v10259 = vld [vmem:[%s10256 + $0xc] sm:$0xff]
    %v10260 = vld [vmem:[%s10256 + $0x14] sm:$0xf]
    %v10261 = vld [vmem:[%s10256 + $0x18] sm:$0xff]
    %v10262 = vld [vmem:[%s10256 + $0x20] sm:$0xf]
    %v10263 = vld [vmem:[%s10256 + $0x24] sm:$0xff]
    %v10264 = vld [vmem:[%s10256 + $0x2c] sm:$0xf]
    %v10265 = vld [vmem:[#allocation2] sm:$0xff]
    %v10266 = vld [vmem:[#allocation2 + $0x8] sm:$0xff]
    %v10267 = vld [vmem:[#allocation2 + $0x20] sm:$0xff]
    %v10268 = vld [vmem:[#allocation2 + $0x28] sm:$0xff]
    %v10269 = vld [vmem:[#allocation2 + $0x40] sm:$0xff]
    %v10270 = vld [vmem:[#allocation2 + $0x48] sm:$0xff]
    %v10271 = vld [vmem:[#allocation2 + $0x60] sm:$0xff]
    %v10272 = vld [vmem:[#allocation2 + $0x68] sm:$0xff]
    %v10273 = vld [vmem:[#allocation2 + $0x80] sm:$0xff]
    %v10274 = vld [vmem:[#allocation2 + $0x88] sm:$0xff]
    %v10275 = vld [vmem:[#allocation2 + $0xa0] sm:$0xff]
    %v10276 = vld [vmem:[#allocation2 + $0xa8] sm:$0xff]
    %v10277 = vld [vmem:[#allocation2 + $0xc0] sm:$0xff]
    %v10278 = vld [vmem:[#allocation2 + $0xc8] sm:$0xff]
    %v10279 = vld [vmem:[#allocation2 + $0xe0] sm:$0xff]
    %v10280 = vld [vmem:[#allocation2 + $0xe8] sm:$0xff]
    %v10281 = vld [vmem:[#allocation2 + $0x100] sm:$0xff]
    %v10282 = vld [vmem:[#allocation2 + $0x108] sm:$0xff]
    %v10283 = vld [vmem:[#allocation2 + $0x120] sm:$0xff]
    %v10284 = vld [vmem:[#allocation2 + $0x128] sm:$0xff]
    %v10285 = vld [vmem:[#allocation2 + $0x140] sm:$0xff]
    %v10286 = vld [vmem:[#allocation2 + $0x148] sm:$0xff]
    %v10287 = vld [vmem:[#allocation2 + $0x160] sm:$0xff]
    %v10288 = vld [vmem:[#allocation2 + $0x168] sm:$0xff]
    %v10289 = vld [vmem:[#allocation2 + $0x180] sm:$0xff]
    %v10290 = vld [vmem:[#allocation2 + $0x188] sm:$0xff]
    %v10291 = vld [vmem:[#allocation2 + $0x1a0] sm:$0xff]
    %v10292 = vld [vmem:[#allocation2 + $0x1a8] sm:$0xff]
    %v10293 = vld [vmem:[#allocation2 + $0x1c0] sm:$0xff]
    %v10294 = vld [vmem:[#allocation2 + $0x1c8] sm:$0xff]
    %v10295 = vld [vmem:[#allocation2 + $0x1e0] sm:$0xff]
    %v10296 = vld [vmem:[#allocation2 + $0x1e8] sm:$0xff]
    %v10297 = vld [vmem:[#allocation2 + $0x200] sm:$0xff]
    %v10298 = vld [vmem:[#allocation2 + $0x208] sm:$0xff]
    %v10299 = vld [vmem:[#allocation2 + $0x220] sm:$0xff]
    %v10300 = vld [vmem:[#allocation2 + $0x228] sm:$0xff]
    %v10301 = vld [vmem:[#allocation2 + $0x240] sm:$0xff]
    %v10302 = vld [vmem:[#allocation2 + $0x248] sm:$0xff]
    %v10303 = vld [vmem:[#allocation2 + $0x260] sm:$0xff]
    %v10304 = vld [vmem:[#allocation2 + $0x268] sm:$0xff]
    %v10305 = vld [vmem:[#allocation2 + $0x280] sm:$0xff]
    %v10306 = vld [vmem:[#allocation2 + $0x288] sm:$0xff]
    %v10307 = vld [vmem:[#allocation2 + $0x2a0] sm:$0xff]
    %v10308 = vld [vmem:[#allocation2 + $0x2a8] sm:$0xff]
    %v10309 = vld [vmem:[#allocation2 + $0x2c0] sm:$0xff]
    %v10310 = vld [vmem:[#allocation2 + $0x2c8] sm:$0xff]
    %v10311 = vld [vmem:[#allocation2 + $0x2e0] sm:$0xff]
    %v10312 = vld [vmem:[#allocation2 + $0x2e8] sm:$0xff]
    %v10313 = vld [vmem:[#allocation2 + $0x300] sm:$0xff]
    %v10314 = vld [vmem:[#allocation2 + $0x308] sm:$0xff]
    %v10315 = vld [vmem:[#allocation2 + $0x320] sm:$0xff]
    %v10316 = vld [vmem:[#allocation2 + $0x328] sm:$0xff]
    %v10317 = vld [vmem:[#allocation2 + $0x340] sm:$0xff]
    %v10318 = vld [vmem:[#allocation2 + $0x348] sm:$0xff]
    %v10319 = vld [vmem:[#allocation2 + $0x360] sm:$0xff]
    %v10320 = vld [vmem:[#allocation2 + $0x368] sm:$0xff]
    %v10321 = vld [vmem:[#allocation2 + $0x380] sm:$0xff]
    %v10322 = vld [vmem:[#allocation2 + $0x388] sm:$0xff]
    %v10323 = vld [vmem:[#allocation2 + $0x3a0] sm:$0xff]
    %v10324 = vld [vmem:[#allocation2 + $0x3a8] sm:$0xff]
    %v10325 = vld [vmem:[#allocation2 + $0x3c0] sm:$0xff]
    %v10326 = vld [vmem:[#allocation2 + $0x3c8] sm:$0xff]
    %v10327 = vld [vmem:[#allocation2 + $0x3e0] sm:$0xff]
    %v10328 = vld [vmem:[#allocation2 + $0x3e8] sm:$0xff]
    %v10329 = vld [vmem:[#allocation2 + $0x400] sm:$0xff]
    %v10330 = vld [vmem:[#allocation2 + $0x408] sm:$0xff]
    %v10331 = vld [vmem:[#allocation2 + $0x420] sm:$0xff]
    %v10332 = vld [vmem:[#allocation2 + $0x428] sm:$0xff]
    %v10333 = vld [vmem:[#allocation2 + $0x440] sm:$0xff]
    %v10334 = vld [vmem:[#allocation2 + $0x448] sm:$0xff]
    %v10335 = vld [vmem:[#allocation2 + $0x460] sm:$0xff]
    %v10336 = vld [vmem:[#allocation2 + $0x468] sm:$0xff]
    %s10337 = scalar_lea.vmem %s2, 384
    %v10338 = vld [vmem:[%s10337] sm:$0xff]
    %v10339 = vld [vmem:[%s10337 + $0x8] sm:$0xff]
    %v10340 = vld [vmem:[%s10337 + $0x10] sm:$0xff]
    %v10341 = vld [vmem:[%s10337 + $0x18] sm:$0xff]
    %10343 = vset.pattern.permute.xlu0 0
    %10344 = vperm.xlu0 %10343, %v10338
    %v10345 = vpop.permute.xlu0 %10344
    %10348 = vset.pattern.permute.xlu0 0
    %10349 = vperm.xlu0 %10348, %v10339
    %v10350 = vpop.permute.xlu0 %10349
    %10352 = vset.pattern.permute.xlu0 0
    %10353 = vperm.xlu0 %10352, %v10340
    %v10354 = vpop.permute.xlu0 %10353
    %10356 = vset.pattern.permute.xlu0 0
    %10357 = vperm.xlu0 %10356, %v10341
    %v10358 = vpop.permute.xlu0 %10357
    %v10367 = vunpack.c.l.b16 %v10257
    %v10368 = vunpack.c.h.b16 %v10257
    %v10369 = vunpack.c.l.b16 %v10258
    %v10370 = vunpack.c.l.b16 %v10259
    %v10371 = vunpack.c.h.b16 %v10259
    %v10372 = vunpack.c.l.b16 %v10260
    %v10373 = vunpack.c.l.b16 %v10261
    %v10374 = vunpack.c.h.b16 %v10261
    %v10375 = vunpack.c.l.b16 %v10262
    %v10376 = vunpack.c.l.b16 %v10263
    %v10377 = vunpack.c.h.b16 %v10263
    %v10378 = vunpack.c.l.b16 %v10264
    %v10379 = vpack.c.b16 %v10370, %v10367
    %v10380 = vpack.c.b16 %v10371, %v10368
    %v10381 = vpack.c.b16 %v10372, %v10369
    %v10382 = vpack.c.b16 %v10376, %v10373
    %v10383 = vpack.c.b16 %v10377, %v10374
    %v10384 = vpack.c.b16 %v10378, %v10375
    %v10461 = vunpack.c.l.b16 %v10265
    %v10462 = vunpack.c.h.b16 %v10265
    %v10463 = vunpack.c.l.b16 %v10266
    %v10464 = vunpack.c.h.b16 %v10266
    %v10465 = vunpack.c.l.b16 %v10267
    %v10466 = vunpack.c.h.b16 %v10267
    %v10467 = vunpack.c.l.b16 %v10268
    %v10468 = vunpack.c.h.b16 %v10268
    %v10469 = vunpack.c.l.b16 %v10269
    %v10470 = vunpack.c.h.b16 %v10269
    %v10471 = vunpack.c.l.b16 %v10270
    %v10472 = vunpack.c.h.b16 %v10270
    %v10473 = vunpack.c.l.b16 %v10271
    %v10474 = vunpack.c.h.b16 %v10271
    %v10475 = vunpack.c.l.b16 %v10272
    %v10476 = vunpack.c.h.b16 %v10272
    %v10477 = vunpack.c.l.b16 %v10273
    %v10478 = vunpack.c.h.b16 %v10273
    %v10479 = vunpack.c.l.b16 %v10274
    %v10480 = vunpack.c.h.b16 %v10274
    %v10481 = vunpack.c.l.b16 %v10275
    %v10482 = vunpack.c.h.b16 %v10275
    %v10483 = vunpack.c.l.b16 %v10276
    %v10484 = vunpack.c.h.b16 %v10276
    %v10485 = vunpack.c.l.b16 %v10277
    %v10486 = vunpack.c.h.b16 %v10277
    %v10487 = vunpack.c.l.b16 %v10278
    %v10488 = vunpack.c.h.b16 %v10278
    %v10489 = vunpack.c.l.b16 %v10279
    %v10490 = vunpack.c.h.b16 %v10279
    %v10491 = vunpack.c.l.b16 %v10280
    %v10492 = vunpack.c.h.b16 %v10280
    %v10493 = vunpack.c.l.b16 %v10281
    %v10494 = vunpack.c.h.b16 %v10281
    %v10495 = vunpack.c.l.b16 %v10282
    %v10496 = vunpack.c.h.b16 %v10282
    %v10497 = vunpack.c.l.b16 %v10283
    %v10498 = vunpack.c.h.b16 %v10283
    %v10499 = vunpack.c.l.b16 %v10284
    %v10500 = vunpack.c.h.b16 %v10284
    %v10501 = vunpack.c.l.b16 %v10285
    %v10502 = vunpack.c.h.b16 %v10285
    %v10503 = vunpack.c.l.b16 %v10286
    %v10504 = vunpack.c.h.b16 %v10286
    %v10505 = vunpack.c.l.b16 %v10287
    %v10506 = vunpack.c.h.b16 %v10287
    %v10507 = vunpack.c.l.b16 %v10288
    %v10508 = vunpack.c.h.b16 %v10288
    %v10509 = vunpack.c.l.b16 %v10289
    %v10510 = vunpack.c.h.b16 %v10289
    %v10511 = vunpack.c.l.b16 %v10290
    %v10512 = vunpack.c.h.b16 %v10290
    %v10513 = vunpack.c.l.b16 %v10291
    %v10514 = vunpack.c.h.b16 %v10291
    %v10515 = vunpack.c.l.b16 %v10292
    %v10516 = vunpack.c.h.b16 %v10292
    %v10517 = vunpack.c.l.b16 %v10293
    %v10518 = vunpack.c.h.b16 %v10293
    %v10519 = vunpack.c.l.b16 %v10294
    %v10520 = vunpack.c.h.b16 %v10294
    %v10521 = vunpack.c.l.b16 %v10295
    %v10522 = vunpack.c.h.b16 %v10295
    %v10523 = vunpack.c.l.b16 %v10296
    %v10524 = vunpack.c.h.b16 %v10296
    %v10525 = vunpack.c.l.b16 %v10297
    %v10526 = vunpack.c.h.b16 %v10297
    %v10527 = vunpack.c.l.b16 %v10298
    %v10528 = vunpack.c.h.b16 %v10298
    %v10529 = vunpack.c.l.b16 %v10299
    %v10530 = vunpack.c.h.b16 %v10299
    %v10531 = vunpack.c.l.b16 %v10300
    %v10532 = vunpack.c.h.b16 %v10300
    %v10533 = vunpack.c.l.b16 %v10301
    %v10534 = vunpack.c.h.b16 %v10301
    %v10535 = vunpack.c.l.b16 %v10302
    %v10536 = vunpack.c.h.b16 %v10302
    %v10537 = vunpack.c.l.b16 %v10303
    %v10538 = vunpack.c.h.b16 %v10303
    %v10539 = vunpack.c.l.b16 %v10304
    %v10540 = vunpack.c.h.b16 %v10304
    %v10541 = vunpack.c.l.b16 %v10305
    %v10542 = vunpack.c.h.b16 %v10305
    %v10543 = vunpack.c.l.b16 %v10306
    %v10544 = vunpack.c.h.b16 %v10306
    %v10545 = vunpack.c.l.b16 %v10307
    %v10546 = vunpack.c.h.b16 %v10307
    %v10547 = vunpack.c.l.b16 %v10308
    %v10548 = vunpack.c.h.b16 %v10308
    %v10549 = vunpack.c.l.b16 %v10309
    %v10550 = vunpack.c.h.b16 %v10309
    %v10551 = vunpack.c.l.b16 %v10310
    %v10552 = vunpack.c.h.b16 %v10310
    %v10553 = vunpack.c.l.b16 %v10311
    %v10554 = vunpack.c.h.b16 %v10311
    %v10555 = vunpack.c.l.b16 %v10312
    %v10556 = vunpack.c.h.b16 %v10312
    %v10557 = vunpack.c.l.b16 %v10313
    %v10558 = vunpack.c.h.b16 %v10313
    %v10559 = vunpack.c.l.b16 %v10314
    %v10560 = vunpack.c.h.b16 %v10314
    %v10561 = vunpack.c.l.b16 %v10315
    %v10562 = vunpack.c.h.b16 %v10315
    %v10563 = vunpack.c.l.b16 %v10316
    %v10564 = vunpack.c.h.b16 %v10316
    %v10565 = vunpack.c.l.b16 %v10317
    %v10566 = vunpack.c.h.b16 %v10317
    %v10567 = vunpack.c.l.b16 %v10318
    %v10568 = vunpack.c.h.b16 %v10318
    %v10569 = vunpack.c.l.b16 %v10319
    %v10570 = vunpack.c.h.b16 %v10319
    %v10571 = vunpack.c.l.b16 %v10320
    %v10572 = vunpack.c.h.b16 %v10320
    %v10573 = vunpack.c.l.b16 %v10321
    %v10574 = vunpack.c.h.b16 %v10321
    %v10575 = vunpack.c.l.b16 %v10322
    %v10576 = vunpack.c.h.b16 %v10322
    %v10577 = vunpack.c.l.b16 %v10323
    %v10578 = vunpack.c.h.b16 %v10323
    %v10579 = vunpack.c.l.b16 %v10324
    %v10580 = vunpack.c.h.b16 %v10324
    %v10581 = vunpack.c.l.b16 %v10325
    %v10582 = vunpack.c.h.b16 %v10325
    %v10583 = vunpack.c.l.b16 %v10326
    %v10584 = vunpack.c.h.b16 %v10326
    %v10585 = vunpack.c.l.b16 %v10327
    %v10586 = vunpack.c.h.b16 %v10327
    %v10587 = vunpack.c.l.b16 %v10328
    %v10588 = vunpack.c.h.b16 %v10328
    %v10589 = vunpack.c.l.b16 %v10329
    %v10590 = vunpack.c.h.b16 %v10329
    %v10591 = vunpack.c.l.b16 %v10330
    %v10592 = vunpack.c.h.b16 %v10330
    %v10593 = vunpack.c.l.b16 %v10331
    %v10594 = vunpack.c.h.b16 %v10331
    %v10595 = vunpack.c.l.b16 %v10332
    %v10596 = vunpack.c.h.b16 %v10332
    %v10597 = vunpack.c.l.b16 %v10333
    %v10598 = vunpack.c.h.b16 %v10333
    %v10599 = vunpack.c.l.b16 %v10334
    %v10600 = vunpack.c.h.b16 %v10334
    %v10601 = vunpack.c.l.b16 %v10335
    %v10602 = vunpack.c.h.b16 %v10335
    %v10603 = vunpack.c.l.b16 %v10336
    %v10604 = vunpack.c.h.b16 %v10336
    %v10605 = vpack.c.b16 %v10465, %v10461
    %v10606 = vpack.c.b16 %v10466, %v10462
    %v10607 = vpack.c.b16 %v10467, %v10463
    %v10608 = vpack.c.b16 %v10468, %v10464
    %v10609 = vpack.c.b16 %v10473, %v10469
    %v10610 = vpack.c.b16 %v10474, %v10470
    %v10611 = vpack.c.b16 %v10475, %v10471
    %v10612 = vpack.c.b16 %v10476, %v10472
    %v10613 = vpack.c.b16 %v10481, %v10477
    %v10614 = vpack.c.b16 %v10482, %v10478
    %v10615 = vpack.c.b16 %v10483, %v10479
    %v10616 = vpack.c.b16 %v10484, %v10480
    %v10617 = vpack.c.b16 %v10489, %v10485
    %v10618 = vpack.c.b16 %v10490, %v10486
    %v10619 = vpack.c.b16 %v10491, %v10487
    %v10620 = vpack.c.b16 %v10492, %v10488
    %v10621 = vpack.c.b16 %v10497, %v10493
    %v10622 = vpack.c.b16 %v10498, %v10494
    %v10623 = vpack.c.b16 %v10499, %v10495
    %v10624 = vpack.c.b16 %v10500, %v10496
    %v10625 = vpack.c.b16 %v10505, %v10501
    %v10626 = vpack.c.b16 %v10506, %v10502
    %v10627 = vpack.c.b16 %v10507, %v10503
    %v10628 = vpack.c.b16 %v10508, %v10504
    %v10629 = vpack.c.b16 %v10513, %v10509
    %v10630 = vpack.c.b16 %v10514, %v10510
    %v10631 = vpack.c.b16 %v10515, %v10511
    %v10632 = vpack.c.b16 %v10516, %v10512
    %v10633 = vpack.c.b16 %v10521, %v10517
    %v10634 = vpack.c.b16 %v10522, %v10518
    %v10635 = vpack.c.b16 %v10523, %v10519
    %v10636 = vpack.c.b16 %v10524, %v10520
    %v10637 = vpack.c.b16 %v10529, %v10525
    %v10638 = vpack.c.b16 %v10530, %v10526
    %v10639 = vpack.c.b16 %v10531, %v10527
    %v10640 = vpack.c.b16 %v10532, %v10528
    %v10641 = vpack.c.b16 %v10537, %v10533
    %v10642 = vpack.c.b16 %v10538, %v10534
    %v10643 = vpack.c.b16 %v10539, %v10535
    %v10644 = vpack.c.b16 %v10540, %v10536
    %v10645 = vpack.c.b16 %v10545, %v10541
    %v10646 = vpack.c.b16 %v10546, %v10542
    %v10647 = vpack.c.b16 %v10547, %v10543
    %v10648 = vpack.c.b16 %v10548, %v10544
    %v10649 = vpack.c.b16 %v10553, %v10549
    %v10650 = vpack.c.b16 %v10554, %v10550
    %v10651 = vpack.c.b16 %v10555, %v10551
    %v10652 = vpack.c.b16 %v10556, %v10552
    %v10653 = vpack.c.b16 %v10561, %v10557
    %v10654 = vpack.c.b16 %v10562, %v10558
    %v10655 = vpack.c.b16 %v10563, %v10559
    %v10656 = vpack.c.b16 %v10564, %v10560
    %v10657 = vpack.c.b16 %v10569, %v10565
    %v10658 = vpack.c.b16 %v10570, %v10566
    %v10659 = vpack.c.b16 %v10571, %v10567
    %v10660 = vpack.c.b16 %v10572, %v10568
    %v10661 = vpack.c.b16 %v10577, %v10573
    %v10662 = vpack.c.b16 %v10578, %v10574
    %v10663 = vpack.c.b16 %v10579, %v10575
    %v10664 = vpack.c.b16 %v10580, %v10576
    %v10665 = vpack.c.b16 %v10585, %v10581
    %v10666 = vpack.c.b16 %v10586, %v10582
    %v10667 = vpack.c.b16 %v10587, %v10583
    %v10668 = vpack.c.b16 %v10588, %v10584
    %v10669 = vpack.c.b16 %v10593, %v10589
    %v10670 = vpack.c.b16 %v10594, %v10590
    %v10671 = vpack.c.b16 %v10595, %v10591
    %v10672 = vpack.c.b16 %v10596, %v10592
    %v10673 = vpack.c.b16 %v10601, %v10597
    %v10674 = vpack.c.b16 %v10602, %v10598
    %v10675 = vpack.c.b16 %v10603, %v10599
    %v10676 = vpack.c.b16 %v10604, %v10600
    %v10750 = vsel %vm2002, %v10381, 0
    %v10753 = vsel %vm2002, %v10384, 0
    %10755 = vmatpush.bf16.msra.mxu0 %v10633
    %10756 = vmatpush.bf16.msra.mxu0 %v10629
    %10757 = vmatpush.bf16.msra.mxu0 %v10625
    %10758 = vmatpush.bf16.msra.mxu0 %v10621
    %10759 = vmatpush.bf16.msra.mxu0 %v10617
    %10760 = vmatpush.bf16.msra.mxu0 %v10613
    %10761 = vmatpush.bf16.msra.mxu0 %v10609
    %10762 = vmatpush.bf16.msra.mxu0 %v10605
    %10763 = vmatmul.bf16.gmra.mxu0 %v10379
    %v10764 = vpop.f32.mrf.mxu0
    %v10765 = vadd.f32 %v10345, %v10764
    %v10766 = vpop.f32.mrf.mxu0
    %10767 = vmatmul.bf16.gmra.mxu0 %v10382
    %v10768 = vpop.f32.mrf.mxu0
    %v10769 = vpop.f32.mrf.mxu0
    %10770 = vdwg.mxu0
    %10771 = vmatpush.bf16.msra.mxu0 %v10665
    %10772 = vmatpush.bf16.msra.mxu0 %v10661
    %10773 = vmatpush.bf16.msra.mxu0 %v10657
    %10774 = vmatpush.bf16.msra.mxu0 %v10653
    %10775 = vmatpush.bf16.msra.mxu0 %v10649
    %10776 = vmatpush.bf16.msra.mxu0 %v10645
    %10777 = vmatpush.bf16.msra.mxu0 %v10641
    %10778 = vmatpush.bf16.msra.mxu0 %v10637
    %10779 = vmatmul.bf16.gmra.mxu0 %v10380
    %v10780 = vpop.f32.mrf.mxu0
    %v10781 = vadd.f32 %v10765, %v10780
    %v10782 = vpop.f32.mrf.mxu0
    %10783 = vmatmul.bf16.gmra.mxu0 %v10383
    %v10784 = vpop.f32.mrf.mxu0
    %v10785 = vpop.f32.mrf.mxu0
    %10786 = vdwg.mxu0
    %10787 = vmatpush.bf16.msra.mxu0 0
    %10788 = vmatpush.bf16.msra.mxu0 0
    %10789 = vmatpush.bf16.msra.mxu0 0
    %10790 = vmatpush.bf16.msra.mxu0 0
    %10791 = vmatpush.bf16.msra.mxu0 0
    %10792 = vmatpush.bf16.msra.mxu0 0
    %10793 = vmatpush.bf16.msra.mxu0 %v10673
    %10794 = vmatpush.bf16.msra.mxu0 %v10669
    %10795 = vmatmul.bf16.gmra.mxu0 %v10750
    %v10796 = vpop.f32.mrf.mxu0
    %v10797 = vadd.f32 %v10781, %v10796
    %v10798 = vpop.f32.mrf.mxu0
    %10799 = vmatmul.bf16.gmra.mxu0 %v10753
    %v10800 = vpop.f32.mrf.mxu0
    %v10801 = vpop.f32.mrf.mxu0
    %10802 = vdwg.mxu0
    %10803 = vmatpush.bf16.msra.mxu0 %v10634
    %10804 = vmatpush.bf16.msra.mxu0 %v10630
    %10805 = vmatpush.bf16.msra.mxu0 %v10626
    %10806 = vmatpush.bf16.msra.mxu0 %v10622
    %10807 = vmatpush.bf16.msra.mxu0 %v10618
    %10808 = vmatpush.bf16.msra.mxu0 %v10614
    %10809 = vmatpush.bf16.msra.mxu0 %v10610
    %10810 = vmatpush.bf16.msra.mxu0 %v10606
    %10811 = vmatmul.bf16.gmra.mxu0 %v10379
    %v10812 = vpop.f32.mrf.mxu0
    %v10813 = vadd.f32 %v10345, %v10812
    %v10814 = vpop.f32.mrf.mxu0
    %10815 = vmatmul.bf16.gmra.mxu0 %v10382
    %v10816 = vpop.f32.mrf.mxu0
    %v10817 = vpop.f32.mrf.mxu0
    %10818 = vdwg.mxu0
    %10819 = vmatpush.bf16.msra.mxu0 %v10666
    %10820 = vmatpush.bf16.msra.mxu0 %v10662
    %10821 = vmatpush.bf16.msra.mxu0 %v10658
    %10822 = vmatpush.bf16.msra.mxu0 %v10654
    %10823 = vmatpush.bf16.msra.mxu0 %v10650
    %10824 = vmatpush.bf16.msra.mxu0 %v10646
    %10825 = vmatpush.bf16.msra.mxu0 %v10642
    %10826 = vmatpush.bf16.msra.mxu0 %v10638
    %10827 = vmatmul.bf16.gmra.mxu0 %v10380
    %v10828 = vpop.f32.mrf.mxu0
    %v10829 = vadd.f32 %v10813, %v10828
    %v10830 = vpop.f32.mrf.mxu0
    %10831 = vmatmul.bf16.gmra.mxu0 %v10383
    %v10832 = vpop.f32.mrf.mxu0
    %v10833 = vpop.f32.mrf.mxu0
    %10834 = vdwg.mxu0
    %10835 = vmatpush.bf16.msra.mxu0 0
    %10836 = vmatpush.bf16.msra.mxu0 0
    %10837 = vmatpush.bf16.msra.mxu0 0
    %10838 = vmatpush.bf16.msra.mxu0 0
    %10839 = vmatpush.bf16.msra.mxu0 0
    %10840 = vmatpush.bf16.msra.mxu0 0
    %10841 = vmatpush.bf16.msra.mxu0 %v10674
    %10842 = vmatpush.bf16.msra.mxu0 %v10670
    %10843 = vmatmul.bf16.gmra.mxu0 %v10750
    %v10844 = vpop.f32.mrf.mxu0
    %v10845 = vadd.f32 %v10829, %v10844
    %v10846 = vpop.f32.mrf.mxu0
    %10847 = vmatmul.bf16.gmra.mxu0 %v10753
    %v10848 = vpop.f32.mrf.mxu0
    %v10849 = vpop.f32.mrf.mxu0
    %10850 = vdwg.mxu0
    %10851 = vmatpush.bf16.msra.mxu0 %v10635
    %10852 = vmatpush.bf16.msra.mxu0 %v10631
    %10853 = vmatpush.bf16.msra.mxu0 %v10627
    %10854 = vmatpush.bf16.msra.mxu0 %v10623
    %10855 = vmatpush.bf16.msra.mxu0 %v10619
    %10856 = vmatpush.bf16.msra.mxu0 %v10615
    %10857 = vmatpush.bf16.msra.mxu0 %v10611
    %10858 = vmatpush.bf16.msra.mxu0 %v10607
    %10859 = vmatmul.bf16.gmra.mxu0 %v10379
    %v10860 = vpop.f32.mrf.mxu0
    %v10861 = vadd.f32 %v10345, %v10860
    %v10862 = vpop.f32.mrf.mxu0
    %10863 = vmatmul.bf16.gmra.mxu0 %v10382
    %v10864 = vpop.f32.mrf.mxu0
    %v10865 = vpop.f32.mrf.mxu0
    %10866 = vdwg.mxu0
    %10867 = vmatpush.bf16.msra.mxu0 %v10667
    %10868 = vmatpush.bf16.msra.mxu0 %v10663
    %10869 = vmatpush.bf16.msra.mxu0 %v10659
    %10870 = vmatpush.bf16.msra.mxu0 %v10655
    %10871 = vmatpush.bf16.msra.mxu0 %v10651
    %10872 = vmatpush.bf16.msra.mxu0 %v10647
    %10873 = vmatpush.bf16.msra.mxu0 %v10643
    %10874 = vmatpush.bf16.msra.mxu0 %v10639
    %10875 = vmatmul.bf16.gmra.mxu0 %v10380
    %v10876 = vpop.f32.mrf.mxu0
    %v10877 = vadd.f32 %v10861, %v10876
    %v10878 = vpop.f32.mrf.mxu0
    %10879 = vmatmul.bf16.gmra.mxu0 %v10383
    %v10880 = vpop.f32.mrf.mxu0
    %v10881 = vpop.f32.mrf.mxu0
    %10882 = vdwg.mxu0
    %10883 = vmatpush.bf16.msra.mxu0 0
    %10884 = vmatpush.bf16.msra.mxu0 0
    %10885 = vmatpush.bf16.msra.mxu0 0
    %10886 = vmatpush.bf16.msra.mxu0 0
    %10887 = vmatpush.bf16.msra.mxu0 0
    %10888 = vmatpush.bf16.msra.mxu0 0
    %10889 = vmatpush.bf16.msra.mxu0 %v10675
    %10890 = vmatpush.bf16.msra.mxu0 %v10671
    %10891 = vmatmul.bf16.gmra.mxu0 %v10750
    %v10892 = vpop.f32.mrf.mxu0
    %v10893 = vadd.f32 %v10877, %v10892
    %v10894 = vpop.f32.mrf.mxu0
    %10895 = vmatmul.bf16.gmra.mxu0 %v10753
    %v10896 = vpop.f32.mrf.mxu0
    %v10897 = vpop.f32.mrf.mxu0
    %10898 = vdwg.mxu0
    %10899 = vmatpush.bf16.msra.mxu0 %v10636
    %10900 = vmatpush.bf16.msra.mxu0 %v10632
    %10901 = vmatpush.bf16.msra.mxu0 %v10628
    %10902 = vmatpush.bf16.msra.mxu0 %v10624
    %10903 = vmatpush.bf16.msra.mxu0 %v10620
    %10904 = vmatpush.bf16.msra.mxu0 %v10616
    %10905 = vmatpush.bf16.msra.mxu0 %v10612
    %10906 = vmatpush.bf16.msra.mxu0 %v10608
    %10907 = vmatmul.bf16.gmra.mxu0 %v10379
    %v10908 = vpop.f32.mrf.mxu0
    %v10909 = vadd.f32 %v10345, %v10908
    %v10910 = vpop.f32.mrf.mxu0
    %10911 = vmatmul.bf16.gmra.mxu0 %v10382
    %v10912 = vpop.f32.mrf.mxu0
    %v10913 = vpop.f32.mrf.mxu0
    %10914 = vdwg.mxu0
    %10915 = vmatpush.bf16.msra.mxu0 %v10668
    %10916 = vmatpush.bf16.msra.mxu0 %v10664
    %10917 = vmatpush.bf16.msra.mxu0 %v10660
    %10918 = vmatpush.bf16.msra.mxu0 %v10656
    %10919 = vmatpush.bf16.msra.mxu0 %v10652
    %10920 = vmatpush.bf16.msra.mxu0 %v10648
    %10921 = vmatpush.bf16.msra.mxu0 %v10644
    %10922 = vmatpush.bf16.msra.mxu0 %v10640
    %10923 = vmatmul.bf16.gmra.mxu0 %v10380
    %v10924 = vpop.f32.mrf.mxu0
    %v10925 = vadd.f32 %v10909, %v10924
    %v10926 = vpop.f32.mrf.mxu0
    %10927 = vmatmul.bf16.gmra.mxu0 %v10383
    %v10928 = vpop.f32.mrf.mxu0
    %v10929 = vpop.f32.mrf.mxu0
    %10930 = vdwg.mxu0
    %10931 = vmatpush.bf16.msra.mxu0 0
    %10932 = vmatpush.bf16.msra.mxu0 0
    %10933 = vmatpush.bf16.msra.mxu0 0
    %10934 = vmatpush.bf16.msra.mxu0 0
    %10935 = vmatpush.bf16.msra.mxu0 0
    %10936 = vmatpush.bf16.msra.mxu0 0
    %10937 = vmatpush.bf16.msra.mxu0 %v10676
    %10938 = vmatpush.bf16.msra.mxu0 %v10672
    %10939 = vmatmul.bf16.gmra.mxu0 %v10750
    %v10940 = vpop.f32.mrf.mxu0
    %v10941 = vadd.f32 %v10925, %v10940
    %v10942 = vpop.f32.mrf.mxu0
    %10943 = vmatmul.bf16.gmra.mxu0 %v10753
    %v10944 = vpop.f32.mrf.mxu0
    %v10945 = vpop.f32.mrf.mxu0
    %10946 = vdwg.mxu0
    %v10951 = vrot.slane %v10845, 7
    %v10952 = vrot.slane %v10893, 6
    %v10953 = vrot.slane %v10941, 5
    %vm10954 = vcmask 1040384
    %v10955 = vsel %vm10954, %v10797, %v10951
    %vm10956 = vcmask 1042434
    %v10957 = vsel %vm10956, %v10952, %v10953
    %vm10958 = vcmask 1041408
    %v10959 = vsel %vm10958, %v10955, %v10957
    %v10961 = vlaneseq
    %vm10962 = vcmp.ge.s32.totalorder %v10961, 0
    %vm10963 = vcmp.lt.s32.totalorder %v10961, 512
    %vm10964 = vmand %vm10962, %vm10963
    %10965 = vst.msk [vmem:[#allocation3] sm:$0xf] %vm10964, %v10959
    // Predicated region
    $region18: #{tpu_custom_call.1} parent=1 // pred_check
      _
    $region19: #{tpu_custom_call.1} parent=1 // pred_check_branch
      %10967 = sbr.rel (0) target = $region21
    $region20: #{tpu_custom_call.1} parent=1 // pred_region
      %10969 = vsyncadd [#allocation4], 0
      %s10971 = sshll.u32 [#allocation3], 4
      %s10972 = int_to_ptr.vmem [resolvable:$true] %s10971
      %s10973 = sshll.u32 %s4, 4
      %s10974 = int_to_ptr.hbm [resolvable:$true] %s10973
      %10976 = dma.vmem_to_hbm [thread:$0]  %s10972, 64, %s10974, [#allocation4]
    $region21: #{tpu_custom_call.1} parent=1 // pred_fallthru
      _
    // Predicated region
    $region22: #{tpu_custom_call.1} parent=1 // pred_check
      _
    $region23: #{tpu_custom_call.1} parent=1 // pred_check_branch
      %10978 = sbr.rel (0) target = $region25
    $region24: #{tpu_custom_call.1} parent=1 // pred_region
      %10980 = dma.done [#allocation4], 64
    $region25: #{tpu_custom_call.1} parent=1 // pred_fallthru
      _
    %10981 = vsyncpa [#allocation4], 1

</llo_original>
